<compile_context>
chip_gen: v7x
topology: tpu7x:2x2x1
jax: 0.10.0
libtpu: 0.0.40
codegen_flags: <defaults>
</compile_context>

<pallas_src>
import functools

import jax
import jax.numpy as jnp
from jax.experimental import pallas as pl
from jax.experimental.pallas import tpu as pltpu

BN_EPS = 1e-5

_VMEM = pl.BlockSpec(memory_space=pltpu.MemorySpace.VMEM)


# --------------------------------------------------------------------------
# Pallas kernels
# --------------------------------------------------------------------------
def _conv_kernel(*refs, has_bn, act):
    """One conv layer in lane-dense [OC, M] orientation.

    w: [OC, K]   patches: [K, M]   bias/gamma/beta: [OC, 1]   out: [OC, M]
    BatchNorm uses batch statistics over the M = N*OH*OW axis (PyTorch
    training-mode BN per channel, biased variance, eps=1e-5), computed with
    lane-axis (XLU) reductions in a single pass.
    """
    if has_bn:
        w_ref, p_ref, b_ref, g_ref, bt_ref, o_ref = refs
    else:
        w_ref, p_ref, b_ref, o_ref = refs

    y = jnp.dot(w_ref[...], p_ref[...], preferred_element_type=jnp.float32)
    y = y + b_ref[...]

    if has_bn:
        mean = jnp.mean(y, axis=1, keepdims=True)                 # [OC, 1]
        var = jnp.mean(y * y, axis=1, keepdims=True) - mean * mean
        y = (y - mean) * jax.lax.rsqrt(var + BN_EPS) * g_ref[...] + bt_ref[...]

    if act == "relu":
        y = jnp.maximum(y, 0.0)
    elif act == "sigmoid":
        # exp + approximate reciprocal both route to the EUP slot.
        y = pl.reciprocal(1.0 + jnp.exp(-y), approx=True)
        y = jnp.clip(y, 0.0, 1.0)

    o_ref[...] = y


def conv_layer(patches, w_mat, bias, bn=None, act="none"):
    """Run one (already im2col'ed, [K, M]) conv layer through the Pallas kernel."""
    OC = w_mat.shape[0]
    M = patches.shape[1]
    args = [w_mat, patches, bias.reshape(OC, 1)]
    if bn is not None:
        gamma, beta = bn
        args += [gamma.reshape(OC, 1), beta.reshape(OC, 1)]

    kernel = functools.partial(_conv_kernel, has_bn=bn is not None, act=act)
    return pl.pallas_call(
        kernel,
        out_shape=jax.ShapeDtypeStruct((OC, M), jnp.float32),
        in_specs=[_VMEM] * len(args),
        out_specs=_VMEM,
    )(*args)


def _latent_kernel(p_ref, wmu_ref, bmu_ref, wlv_ref, blv_ref, eps_ref,
                   mu_ref, lv_ref, z_ref):
    """Fused fc_mu + fc_logvar + reparameterize (shared patch matrix).

    patches: [K, M]   w_mu/w_lv: [OC, K]   b_mu/b_lv: [OC, 1]   eps: [OC, M]
    outputs: mu, logvar, z  each [OC, M].
    """
    p = p_ref[...]
    mu = jnp.dot(wmu_ref[...], p, preferred_element_type=jnp.float32) + bmu_ref[...]
    lv = jnp.dot(wlv_ref[...], p, preferred_element_type=jnp.float32) + blv_ref[...]
    mu_ref[...] = mu
    lv_ref[...] = lv
    z_ref[...] = jnp.exp(lv * 0.5) * eps_ref[...] + mu


def latent_layer(patches, w_mu, b_mu, w_lv, b_lv, eps):
    OC = w_mu.shape[0]
    M = patches.shape[1]
    out = jax.ShapeDtypeStruct((OC, M), jnp.float32)
    return pl.pallas_call(
        _latent_kernel,
        out_shape=(out, out, out),
        in_specs=[_VMEM] * 6,
        out_specs=(_VMEM, _VMEM, _VMEM),
    )(patches, w_mu, b_mu.reshape(OC, 1), w_lv, b_lv.reshape(OC, 1), eps)


# --------------------------------------------------------------------------
# Plain-JAX glue: im2col ([K, M] orientation), conv-transpose rewrite, weights
# --------------------------------------------------------------------------
def im2col_km(x, kh, kw, stride, padding):
    """x: [N, H, W, C] -> patches [kh*kw*C, N*OH*OW].

    K order is (i, j, c) (matches conv_w_to_mat), M order is (n, oh, ow)."""
    if padding > 0:
        x = jnp.pad(x, ((0, 0), (padding, padding), (padding, padding), (0, 0)))
    N, H, W, C = x.shape
    OH = (H - kh) // stride + 1
    OW = (W - kw) // stride + 1
    cols = []
    for i in range(kh):
        for j in range(kw):
            cols.append(
                x[:, i : i + stride * (OH - 1) + 1 : stride,
                     j : j + stride * (OW - 1) + 1 : stride, :]
            )  # [N, OH, OW, C]
    p = jnp.stack(cols, axis=0)                      # [kh*kw, N, OH, OW, C]
    p = p.transpose(0, 4, 1, 2, 3).reshape(kh * kw * C, N * OH * OW)
    return p, OH, OW


def dilate_pad_for_convT(x, stride, k, pad):
    """ConvTranspose2d(stride, padding=pad) == (stride-1) zero insertion +
    (k-1-pad) padding + stride-1 conv with the spatially flipped kernel."""
    N, H, W, C = x.shape
    if stride > 1:
        xd = jnp.zeros((N, (H - 1) * stride + 1, (W - 1) * stride + 1, C), x.dtype)
        xd = xd.at[:, ::stride, ::stride, :].set(x)
    else:
        xd = x
    p = k - 1 - pad
    return jnp.pad(xd, ((0, 0), (p, p), (p, p), (0, 0)))


def conv_w_to_mat(w):
    """PyTorch Conv2d weight [OC, IC, KH, KW] -> [OC, KH*KW*IC] (K order i,j,ic)."""
    oc = w.shape[0]
    return jnp.transpose(w, (0, 2, 3, 1)).reshape(oc, -1)


def convT_w_to_mat(w):
    """PyTorch ConvTranspose2d weight [IC, OC, KH, KW] -> equivalent conv matrix
    [OC, KH*KW*IC] (spatially flipped)."""
    oc = w.shape[1]
    wf = jnp.flip(w, axis=(2, 3))
    return jnp.transpose(wf, (1, 2, 3, 0)).reshape(oc, -1)


def to_nhwc(y, n, oh, ow):
    """Kernel output [OC, N*OH*OW] -> image [N, OH, OW, OC]."""
    oc = y.shape[0]
    return y.reshape(oc, n, oh, ow).transpose(1, 2, 3, 0)


# --------------------------------------------------------------------------
# Parameters (deterministic synthetic init, PyTorch layouts)
# --------------------------------------------------------------------------
def init_params(key):
    ks = jax.random.split(key, 20)
    s = 0.1

    def nrm(k, shape):
        return jax.random.normal(k, shape, jnp.float32) * s

    return {
        # encoder
        "w1": nrm(ks[0], (2, 1, 8, 8)),  "b1": nrm(ks[1], (2,)),
        "g1": jnp.ones((2,), jnp.float32), "be1": jnp.zeros((2,), jnp.float32),
        "w2": nrm(ks[2], (3, 2, 4, 4)),  "b2": nrm(ks[3], (3,)),
        "g2": jnp.ones((3,), jnp.float32), "be2": jnp.zeros((3,), jnp.float32),
        # fc_mu / fc_logvar
        "wmu": nrm(ks[4], (3, 3, 3, 3)), "bmu": nrm(ks[5], (3,)),
        "wlv": nrm(ks[6], (3, 3, 3, 3)), "blv": nrm(ks[7], (3,)),
        # fc_back (ConvTranspose2d layout: [IC, OC, KH, KW])
        "wback": nrm(ks[8], (3, 3, 3, 3)), "bback": nrm(ks[9], (3,)),
        # decoder
        "wd1": nrm(ks[10], (3, 2, 4, 4)), "bd1": nrm(ks[11], (2,)),
        "gd1": jnp.ones((2,), jnp.float32), "bed1": jnp.zeros((2,), jnp.float32),
        "wd2": nrm(ks[12], (2, 1, 7, 7)), "bd2": nrm(ks[13], (1,)),
    }


# --------------------------------------------------------------------------
# Forward pass (== VAE_preprocess.forward)
# --------------------------------------------------------------------------
def vae_forward(params, x_nchw, eps_key):
    x = jnp.transpose(x_nchw, (0, 2, 3, 1)).astype(jnp.float32)  # NHWC
    N = x.shape[0]

    # --- encoder ---
    # Conv2d(1, 2, k=8, s=3) + BN(2) + ReLU
    p, OH, OW = im2col_km(x, 8, 8, 3, 0)
    y = conv_layer(p, conv_w_to_mat(params["w1"]), params["b1"],
                   bn=(params["g1"], params["be1"]), act="relu")
    x = to_nhwc(y, N, OH, OW)

    # Conv2d(2, 3, k=4, s=2, p=1) + BN(3) + ReLU
    p, OH, OW = im2col_km(x, 4, 4, 2, 1)
    y = conv_layer(p, conv_w_to_mat(params["w2"]), params["b2"],
                   bn=(params["g2"], params["be2"]), act="relu")
    x = to_nhwc(y, N, OH, OW)

    # --- fused fc_mu + fc_logvar + reparameterize (one pallas_call) ---
    p, OHm, OWm = im2col_km(x, 3, 3, 1, 0)
    eps = jax.random.normal(eps_key, (3, N * OHm * OWm), dtype=jnp.float32)
    mu, logvar, z = latent_layer(
        p, conv_w_to_mat(params["wmu"]), params["bmu"],
        conv_w_to_mat(params["wlv"]), params["blv"], eps)
    z_img = to_nhwc(z, N, OHm, OWm)

    # --- fc_back: ConvTranspose2d(3, 3, k=3, s=1) ---
    xd = dilate_pad_for_convT(z_img, stride=1, k=3, pad=0)
    p, OH, OW = im2col_km(xd, 3, 3, 1, 0)
    y = conv_layer(p, convT_w_to_mat(params["wback"]), params["bback"])
    x = to_nhwc(y, N, OH, OW)

    # --- decoder ---
    # ConvTranspose2d(3, 2, k=4, s=2) + BN(2) + ReLU
    xd = dilate_pad_for_convT(x, stride=2, k=4, pad=0)
    p, OH, OW = im2col_km(xd, 4, 4, 1, 0)
    y = conv_layer(p, convT_w_to_mat(params["wd1"]), params["bd1"],
                   bn=(params["gd1"], params["bed1"]), act="relu")
    x = to_nhwc(y, N, OH, OW)

    # ConvTranspose2d(2, 1, k=7, s=3, p=1) + Sigmoid
    xd = dilate_pad_for_convT(x, stride=3, k=7, pad=1)
    p, OH, OW = im2col_km(xd, 7, 7, 1, 0)
    y = conv_layer(p, convT_w_to_mat(params["wd2"]), params["bd2"], act="sigmoid")

    # back to NCHW like PyTorch
    recon = y.reshape(1, N, OH, OW).transpose(1, 0, 2, 3)          # [N, 1, 80, 80]
    mu_img = mu.reshape(3, N, OHm, OWm).transpose(1, 0, 2, 3)      # [N, 3, 10, 10]
    lv_img = logvar.reshape(3, N, OHm, OWm).transpose(1, 0, 2, 3)  # [N, 3, 10, 10]
    return recon, mu_img, lv_img


# --------------------------------------------------------------------------
if __name__ == "__main__":
    params = init_params(jax.random.PRNGKey(42))

    # The module's geometry (decoder reconstructs 80x80 from the encoder path)
    # implies 80x80 single-channel inputs; batch=2 keeps it small.
    x = jax.random.normal(jax.random.PRNGKey(0), (2, 1, 80, 80), jnp.float32)
    eps_key = jax.random.PRNGKey(1)

    fwd = jax.jit(vae_forward)
    recon, mu, logvar = fwd(params, x, eps_key)
    jax.block_until_ready((recon, mu, logvar))

    assert recon.shape == (2, 1, 80, 80), recon.shape
    assert mu.shape == (2, 3, 10, 10), mu.shape
    assert logvar.shape == (2, 3, 10, 10), logvar.shape
    assert bool(jnp.all(jnp.isfinite(recon)))
    assert bool(jnp.all(jnp.isfinite(mu))) and bool(jnp.all(jnp.isfinite(logvar)))
    assert bool(jnp.all((recon >= 0.0) & (recon <= 1.0)))  # sigmoid output range

    print("KERNEL_OK")
</pallas_src>

<mosaic_0001>
module attributes {stable_mosaic.version = 11 : i64} {
  func.func @_conv_kernel(%arg0: memref<2x64xf32, #tpu.memory_space<vmem>>, %arg1: memref<64x1250xf32, #tpu.memory_space<vmem>>, %arg2: memref<2x1xf32, #tpu.memory_space<vmem>>, %arg3: memref<2x1xf32, #tpu.memory_space<vmem>>, %arg4: memref<2x1xf32, #tpu.memory_space<vmem>>, %arg5: memref<2x1250xf32, #tpu.memory_space<vmem>>) attributes {dimension_semantics = [], scalar_prefetch = 0 : i64, scratch_operands = 0 : i64, tpu.core_type = #tpu.core_type<tc>} {
    %c0 = arith.constant 0 : index
    %c0_0 = arith.constant 0 : index
    %0 = vector.load %arg0[%c0, %c0_0] : memref<2x64xf32, #tpu.memory_space<vmem>>, vector<2x64xf32>
    %c0_1 = arith.constant 0 : index
    %c0_2 = arith.constant 0 : index
    %1 = vector.load %arg1[%c0_1, %c0_2] : memref<64x1250xf32, #tpu.memory_space<vmem>>, vector<64x1250xf32>
    %cst = arith.constant dense<0.000000e+00> : vector<2x1250xf32>
    %2 = tpu.matmul %0, %1, %cst {dimension_numbers = #tpu.dot_dimension_numbers<[1], [0], [0], [1], [0, 0, 1, 1], [], []>} : vector<2x64xf32>, vector<64x1250xf32>, vector<2x1250xf32> -> vector<2x1250xf32>
    %c0_3 = arith.constant 0 : index
    %c0_4 = arith.constant 0 : index
    %3 = vector.load %arg2[%c0_3, %c0_4] : memref<2x1xf32, #tpu.memory_space<vmem>>, vector<2x1xf32>
    %4 = vector.broadcast %3 : vector<2x1xf32> to vector<2x1250xf32>
    %5 = arith.addf %2, %4 : vector<2x1250xf32>
    %cst_5 = arith.constant dense<0.000000e+00> : vector<2xf32>
    %6 = vector.multi_reduction <add>, %5, %cst_5 [1] : vector<2x1250xf32> to vector<2xf32>
    %7 = vector.shape_cast %6 : vector<2xf32> to vector<2x1xf32>
    %cst_6 = arith.constant 1.250000e+03 : f32
    %8 = vector.broadcast %cst_6 : f32 to vector<2x1xf32>
    %9 = arith.divf %7, %8 : vector<2x1xf32>
    %10 = arith.mulf %5, %5 : vector<2x1250xf32>
    %cst_7 = arith.constant dense<0.000000e+00> : vector<2xf32>
    %11 = vector.multi_reduction <add>, %10, %cst_7 [1] : vector<2x1250xf32> to vector<2xf32>
    %12 = vector.shape_cast %11 : vector<2xf32> to vector<2x1xf32>
    %cst_8 = arith.constant 1.250000e+03 : f32
    %13 = vector.broadcast %cst_8 : f32 to vector<2x1xf32>
    %14 = arith.divf %12, %13 : vector<2x1xf32>
    %15 = arith.mulf %9, %9 : vector<2x1xf32>
    %16 = arith.subf %14, %15 : vector<2x1xf32>
    %17 = vector.broadcast %9 : vector<2x1xf32> to vector<2x1250xf32>
    %18 = arith.subf %5, %17 : vector<2x1250xf32>
    %cst_9 = arith.constant 9.99999974E-6 : f32
    %19 = vector.broadcast %cst_9 : f32 to vector<2x1xf32>
    %20 = arith.addf %16, %19 : vector<2x1xf32>
    %21 = math.rsqrt %20 : vector<2x1xf32>
    %22 = vector.broadcast %21 : vector<2x1xf32> to vector<2x1250xf32>
    %23 = arith.mulf %18, %22 : vector<2x1250xf32>
    %c0_10 = arith.constant 0 : index
    %c0_11 = arith.constant 0 : index
    %24 = vector.load %arg3[%c0_10, %c0_11] : memref<2x1xf32, #tpu.memory_space<vmem>>, vector<2x1xf32>
    %25 = vector.broadcast %24 : vector<2x1xf32> to vector<2x1250xf32>
    %26 = arith.mulf %23, %25 : vector<2x1250xf32>
    %c0_12 = arith.constant 0 : index
    %c0_13 = arith.constant 0 : index
    %27 = vector.load %arg4[%c0_12, %c0_13] : memref<2x1xf32, #tpu.memory_space<vmem>>, vector<2x1xf32>
    %28 = vector.broadcast %27 : vector<2x1xf32> to vector<2x1250xf32>
    %29 = arith.addf %26, %28 : vector<2x1250xf32>
    %cst_14 = arith.constant 0.000000e+00 : f32
    %30 = vector.broadcast %cst_14 : f32 to vector<2x1250xf32>
    %31 = arith.maximumf %29, %30 : vector<2x1250xf32>
    %c0_15 = arith.constant 0 : index
    %c0_16 = arith.constant 0 : index
    %32 = vector.load %arg5[%c0_15, %c0_16] : memref<2x1250xf32, #tpu.memory_space<vmem>>, vector<2x1250xf32>
    tpu.vector_store %arg5[%c0_15, %c0_16], %31 {strides = array<i32>} : memref<2x1250xf32, #tpu.memory_space<vmem>>, vector<2x1250xf32>,
    return
  }
}

module attributes {stable_mosaic.version = 11 : i64} {
  func.func @_conv_kernel(%arg0: memref<3x32xf32, #tpu.memory_space<vmem>>, %arg1: memref<32x288xf32, #tpu.memory_space<vmem>>, %arg2: memref<3x1xf32, #tpu.memory_space<vmem>>, %arg3: memref<3x1xf32, #tpu.memory_space<vmem>>, %arg4: memref<3x1xf32, #tpu.memory_space<vmem>>, %arg5: memref<3x288xf32, #tpu.memory_space<vmem>>) attributes {dimension_semantics = [], scalar_prefetch = 0 : i64, scratch_operands = 0 : i64, tpu.core_type = #tpu.core_type<tc>} {
    %c0 = arith.constant 0 : index
    %c0_0 = arith.constant 0 : index
    %0 = vector.load %arg0[%c0, %c0_0] : memref<3x32xf32, #tpu.memory_space<vmem>>, vector<3x32xf32>
    %c0_1 = arith.constant 0 : index
    %c0_2 = arith.constant 0 : index
    %1 = vector.load %arg1[%c0_1, %c0_2] : memref<32x288xf32, #tpu.memory_space<vmem>>, vector<32x288xf32>
    %cst = arith.constant dense<0.000000e+00> : vector<3x288xf32>
    %2 = tpu.matmul %0, %1, %cst {dimension_numbers = #tpu.dot_dimension_numbers<[1], [0], [0], [1], [0, 0, 1, 1], [], []>} : vector<3x32xf32>, vector<32x288xf32>, vector<3x288xf32> -> vector<3x288xf32>
    %c0_3 = arith.constant 0 : index
    %c0_4 = arith.constant 0 : index
    %3 = vector.load %arg2[%c0_3, %c0_4] : memref<3x1xf32, #tpu.memory_space<vmem>>, vector<3x1xf32>
    %4 = vector.broadcast %3 : vector<3x1xf32> to vector<3x288xf32>
    %5 = arith.addf %2, %4 : vector<3x288xf32>
    %cst_5 = arith.constant dense<0.000000e+00> : vector<3xf32>
    %6 = vector.multi_reduction <add>, %5, %cst_5 [1] : vector<3x288xf32> to vector<3xf32>
    %7 = vector.shape_cast %6 : vector<3xf32> to vector<3x1xf32>
    %cst_6 = arith.constant 2.880000e+02 : f32
    %8 = vector.broadcast %cst_6 : f32 to vector<3x1xf32>
    %9 = arith.divf %7, %8 : vector<3x1xf32>
    %10 = arith.mulf %5, %5 : vector<3x288xf32>
    %cst_7 = arith.constant dense<0.000000e+00> : vector<3xf32>
    %11 = vector.multi_reduction <add>, %10, %cst_7 [1] : vector<3x288xf32> to vector<3xf32>
    %12 = vector.shape_cast %11 : vector<3xf32> to vector<3x1xf32>
    %cst_8 = arith.constant 2.880000e+02 : f32
    %13 = vector.broadcast %cst_8 : f32 to vector<3x1xf32>
    %14 = arith.divf %12, %13 : vector<3x1xf32>
    %15 = arith.mulf %9, %9 : vector<3x1xf32>
    %16 = arith.subf %14, %15 : vector<3x1xf32>
    %17 = vector.broadcast %9 : vector<3x1xf32> to vector<3x288xf32>
    %18 = arith.subf %5, %17 : vector<3x288xf32>
    %cst_9 = arith.constant 9.99999974E-6 : f32
    %19 = vector.broadcast %cst_9 : f32 to vector<3x1xf32>
    %20 = arith.addf %16, %19 : vector<3x1xf32>
    %21 = math.rsqrt %20 : vector<3x1xf32>
    %22 = vector.broadcast %21 : vector<3x1xf32> to vector<3x288xf32>
    %23 = arith.mulf %18, %22 : vector<3x288xf32>
    %c0_10 = arith.constant 0 : index
    %c0_11 = arith.constant 0 : index
    %24 = vector.load %arg3[%c0_10, %c0_11] : memref<3x1xf32, #tpu.memory_space<vmem>>, vector<3x1xf32>
    %25 = vector.broadcast %24 : vector<3x1xf32> to vector<3x288xf32>
    %26 = arith.mulf %23, %25 : vector<3x288xf32>
    %c0_12 = arith.constant 0 : index
    %c0_13 = arith.constant 0 : index
    %27 = vector.load %arg4[%c0_12, %c0_13] : memref<3x1xf32, #tpu.memory_space<vmem>>, vector<3x1xf32>
    %28 = vector.broadcast %27 : vector<3x1xf32> to vector<3x288xf32>
    %29 = arith.addf %26, %28 : vector<3x288xf32>
    %cst_14 = arith.constant 0.000000e+00 : f32
    %30 = vector.broadcast %cst_14 : f32 to vector<3x288xf32>
    %31 = arith.maximumf %29, %30 : vector<3x288xf32>
    %c0_15 = arith.constant 0 : index
    %c0_16 = arith.constant 0 : index
    %32 = vector.load %arg5[%c0_15, %c0_16] : memref<3x288xf32, #tpu.memory_space<vmem>>, vector<3x288xf32>
    tpu.vector_store %arg5[%c0_15, %c0_16], %31 {strides = array<i32>} : memref<3x288xf32, #tpu.memory_space<vmem>>, vector<3x288xf32>,
    return
  }
}

module attributes {stable_mosaic.version = 11 : i64} {
  func.func @_latent_kernel(%arg0: memref<27x200xf32, #tpu.memory_space<vmem>>, %arg1: memref<3x27xf32, #tpu.memory_space<vmem>>, %arg2: memref<3x1xf32, #tpu.memory_space<vmem>>, %arg3: memref<3x27xf32, #tpu.memory_space<vmem>>, %arg4: memref<3x1xf32, #tpu.memory_space<vmem>>, %arg5: memref<3x200xf32, #tpu.memory_space<vmem>>, %arg6: memref<3x200xf32, #tpu.memory_space<vmem>>, %arg7: memref<3x200xf32, #tpu.memory_space<vmem>>, %arg8: memref<3x200xf32, #tpu.memory_space<vmem>>) attributes {dimension_semantics = [], scalar_prefetch = 0 : i64, scratch_operands = 0 : i64, tpu.core_type = #tpu.core_type<tc>} {
    %c0 = arith.constant 0 : index
    %c0_0 = arith.constant 0 : index
    %0 = vector.load %arg0[%c0, %c0_0] : memref<27x200xf32, #tpu.memory_space<vmem>>, vector<27x200xf32>
    %c0_1 = arith.constant 0 : index
    %c0_2 = arith.constant 0 : index
    %1 = vector.load %arg1[%c0_1, %c0_2] : memref<3x27xf32, #tpu.memory_space<vmem>>, vector<3x27xf32>
    %cst = arith.constant dense<0.000000e+00> : vector<3x200xf32>
    %2 = tpu.matmul %1, %0, %cst {dimension_numbers = #tpu.dot_dimension_numbers<[1], [0], [0], [1], [0, 0, 1, 1], [], []>} : vector<3x27xf32>, vector<27x200xf32>, vector<3x200xf32> -> vector<3x200xf32>
    %c0_3 = arith.constant 0 : index
    %c0_4 = arith.constant 0 : index
    %3 = vector.load %arg2[%c0_3, %c0_4] : memref<3x1xf32, #tpu.memory_space<vmem>>, vector<3x1xf32>
    %4 = vector.broadcast %3 : vector<3x1xf32> to vector<3x200xf32>
    %5 = arith.addf %2, %4 : vector<3x200xf32>
    %c0_5 = arith.constant 0 : index
    %c0_6 = arith.constant 0 : index
    %6 = vector.load %arg3[%c0_5, %c0_6] : memref<3x27xf32, #tpu.memory_space<vmem>>, vector<3x27xf32>
    %cst_7 = arith.constant dense<0.000000e+00> : vector<3x200xf32>
    %7 = tpu.matmul %6, %0, %cst_7 {dimension_numbers = #tpu.dot_dimension_numbers<[1], [0], [0], [1], [0, 0, 1, 1], [], []>} : vector<3x27xf32>, vector<27x200xf32>, vector<3x200xf32> -> vector<3x200xf32>
    %c0_8 = arith.constant 0 : index
    %c0_9 = arith.constant 0 : index
    %8 = vector.load %arg4[%c0_8, %c0_9] : memref<3x1xf32, #tpu.memory_space<vmem>>, vector<3x1xf32>
    %9 = vector.broadcast %8 : vector<3x1xf32> to vector<3x200xf32>
    %10 = arith.addf %7, %9 : vector<3x200xf32>
    %c0_10 = arith.constant 0 : index
    %c0_11 = arith.constant 0 : index
    %11 = vector.load %arg6[%c0_10, %c0_11] : memref<3x200xf32, #tpu.memory_space<vmem>>, vector<3x200xf32>
    tpu.vector_store %arg6[%c0_10, %c0_11], %5 {strides = array<i32>} : memref<3x200xf32, #tpu.memory_space<vmem>>, vector<3x200xf32>,
    %c0_12 = arith.constant 0 : index
    %c0_13 = arith.constant 0 : index
    %12 = vector.load %arg7[%c0_12, %c0_13] : memref<3x200xf32, #tpu.memory_space<vmem>>, vector<3x200xf32>
    tpu.vector_store %arg7[%c0_12, %c0_13], %10 {strides = array<i32>} : memref<3x200xf32, #tpu.memory_space<vmem>>, vector<3x200xf32>,
    %cst_14 = arith.constant 5.000000e-01 : f32
    %13 = vector.broadcast %cst_14 : f32 to vector<3x200xf32>
    %14 = arith.mulf %10, %13 : vector<3x200xf32>
    %15 = math.exp %14 : vector<3x200xf32>
    %c0_15 = arith.constant 0 : index
    %c0_16 = arith.constant 0 : index
    %16 = vector.load %arg5[%c0_15, %c0_16] : memref<3x200xf32, #tpu.memory_space<vmem>>, vector<3x200xf32>
    %17 = arith.mulf %15, %16 : vector<3x200xf32>
    %18 = arith.addf %17, %5 : vector<3x200xf32>
    %c0_17 = arith.constant 0 : index
    %c0_18 = arith.constant 0 : index
    %19 = vector.load %arg8[%c0_17, %c0_18] : memref<3x200xf32, #tpu.memory_space<vmem>>, vector<3x200xf32>
    tpu.vector_store %arg8[%c0_17, %c0_18], %18 {strides = array<i32>} : memref<3x200xf32, #tpu.memory_space<vmem>>, vector<3x200xf32>,
    return
  }
}

module attributes {stable_mosaic.version = 11 : i64} {
  func.func @_conv_kernel(%arg0: memref<3x27xf32, #tpu.memory_space<vmem>>, %arg1: memref<27x288xf32, #tpu.memory_space<vmem>>, %arg2: memref<3x1xf32, #tpu.memory_space<vmem>>, %arg3: memref<3x288xf32, #tpu.memory_space<vmem>>) attributes {dimension_semantics = [], scalar_prefetch = 0 : i64, scratch_operands = 0 : i64, tpu.core_type = #tpu.core_type<tc>} {
    %c0 = arith.constant 0 : index
    %c0_0 = arith.constant 0 : index
    %0 = vector.load %arg0[%c0, %c0_0] : memref<3x27xf32, #tpu.memory_space<vmem>>, vector<3x27xf32>
    %c0_1 = arith.constant 0 : index
    %c0_2 = arith.constant 0 : index
    %1 = vector.load %arg1[%c0_1, %c0_2] : memref<27x288xf32, #tpu.memory_space<vmem>>, vector<27x288xf32>
    %cst = arith.constant dense<0.000000e+00> : vector<3x288xf32>
    %2 = tpu.matmul %0, %1, %cst {dimension_numbers = #tpu.dot_dimension_numbers<[1], [0], [0], [1], [0, 0, 1, 1], [], []>} : vector<3x27xf32>, vector<27x288xf32>, vector<3x288xf32> -> vector<3x288xf32>
    %c0_3 = arith.constant 0 : index
    %c0_4 = arith.constant 0 : index
    %3 = vector.load %arg2[%c0_3, %c0_4] : memref<3x1xf32, #tpu.memory_space<vmem>>, vector<3x1xf32>
    %4 = vector.broadcast %3 : vector<3x1xf32> to vector<3x288xf32>
    %5 = arith.addf %2, %4 : vector<3x288xf32>
    %c0_5 = arith.constant 0 : index
    %c0_6 = arith.constant 0 : index
    %6 = vector.load %arg3[%c0_5, %c0_6] : memref<3x288xf32, #tpu.memory_space<vmem>>, vector<3x288xf32>
    tpu.vector_store %arg3[%c0_5, %c0_6], %5 {strides = array<i32>} : memref<3x288xf32, #tpu.memory_space<vmem>>, vector<3x288xf32>,
    return
  }
}

module attributes {stable_mosaic.version = 11 : i64} {
  func.func @_conv_kernel(%arg0: memref<2x48xf32, #tpu.memory_space<vmem>>, %arg1: memref<48x1352xf32, #tpu.memory_space<vmem>>, %arg2: memref<2x1xf32, #tpu.memory_space<vmem>>, %arg3: memref<2x1xf32, #tpu.memory_space<vmem>>, %arg4: memref<2x1xf32, #tpu.memory_space<vmem>>, %arg5: memref<2x1352xf32, #tpu.memory_space<vmem>>) attributes {dimension_semantics = [], scalar_prefetch = 0 : i64, scratch_operands = 0 : i64, tpu.core_type = #tpu.core_type<tc>} {
    %c0 = arith.constant 0 : index
    %c0_0 = arith.constant 0 : index
    %0 = vector.load %arg0[%c0, %c0_0] : memref<2x48xf32, #tpu.memory_space<vmem>>, vector<2x48xf32>
    %c0_1 = arith.constant 0 : index
    %c0_2 = arith.constant 0 : index
    %1 = vector.load %arg1[%c0_1, %c0_2] : memref<48x1352xf32, #tpu.memory_space<vmem>>, vector<48x1352xf32>
    %cst = arith.constant dense<0.000000e+00> : vector<2x1352xf32>
    %2 = tpu.matmul %0, %1, %cst {dimension_numbers = #tpu.dot_dimension_numbers<[1], [0], [0], [1], [0, 0, 1, 1], [], []>} : vector<2x48xf32>, vector<48x1352xf32>, vector<2x1352xf32> -> vector<2x1352xf32>
    %c0_3 = arith.constant 0 : index
    %c0_4 = arith.constant 0 : index
    %3 = vector.load %arg2[%c0_3, %c0_4] : memref<2x1xf32, #tpu.memory_space<vmem>>, vector<2x1xf32>
    %4 = vector.broadcast %3 : vector<2x1xf32> to vector<2x1352xf32>
    %5 = arith.addf %2, %4 : vector<2x1352xf32>
    %cst_5 = arith.constant dense<0.000000e+00> : vector<2xf32>
    %6 = vector.multi_reduction <add>, %5, %cst_5 [1] : vector<2x1352xf32> to vector<2xf32>
    %7 = vector.shape_cast %6 : vector<2xf32> to vector<2x1xf32>
    %cst_6 = arith.constant 1.352000e+03 : f32
    %8 = vector.broadcast %cst_6 : f32 to vector<2x1xf32>
    %9 = arith.divf %7, %8 : vector<2x1xf32>
    %10 = arith.mulf %5, %5 : vector<2x1352xf32>
    %cst_7 = arith.constant dense<0.000000e+00> : vector<2xf32>
    %11 = vector.multi_reduction <add>, %10, %cst_7 [1] : vector<2x1352xf32> to vector<2xf32>
    %12 = vector.shape_cast %11 : vector<2xf32> to vector<2x1xf32>
    %cst_8 = arith.constant 1.352000e+03 : f32
    %13 = vector.broadcast %cst_8 : f32 to vector<2x1xf32>
    %14 = arith.divf %12, %13 : vector<2x1xf32>
    %15 = arith.mulf %9, %9 : vector<2x1xf32>
    %16 = arith.subf %14, %15 : vector<2x1xf32>
    %17 = vector.broadcast %9 : vector<2x1xf32> to vector<2x1352xf32>
    %18 = arith.subf %5, %17 : vector<2x1352xf32>
    %cst_9 = arith.constant 9.99999974E-6 : f32
    %19 = vector.broadcast %cst_9 : f32 to vector<2x1xf32>
    %20 = arith.addf %16, %19 : vector<2x1xf32>
    %21 = math.rsqrt %20 : vector<2x1xf32>
    %22 = vector.broadcast %21 : vector<2x1xf32> to vector<2x1352xf32>
    %23 = arith.mulf %18, %22 : vector<2x1352xf32>
    %c0_10 = arith.constant 0 : index
    %c0_11 = arith.constant 0 : index
    %24 = vector.load %arg3[%c0_10, %c0_11] : memref<2x1xf32, #tpu.memory_space<vmem>>, vector<2x1xf32>
    %25 = vector.broadcast %24 : vector<2x1xf32> to vector<2x1352xf32>
    %26 = arith.mulf %23, %25 : vector<2x1352xf32>
    %c0_12 = arith.constant 0 : index
    %c0_13 = arith.constant 0 : index
    %27 = vector.load %arg4[%c0_12, %c0_13] : memref<2x1xf32, #tpu.memory_space<vmem>>, vector<2x1xf32>
    %28 = vector.broadcast %27 : vector<2x1xf32> to vector<2x1352xf32>
    %29 = arith.addf %26, %28 : vector<2x1352xf32>
    %cst_14 = arith.constant 0.000000e+00 : f32
    %30 = vector.broadcast %cst_14 : f32 to vector<2x1352xf32>
    %31 = arith.maximumf %29, %30 : vector<2x1352xf32>
    %c0_15 = arith.constant 0 : index
    %c0_16 = arith.constant 0 : index
    %32 = vector.load %arg5[%c0_15, %c0_16] : memref<2x1352xf32, #tpu.memory_space<vmem>>, vector<2x1352xf32>
    tpu.vector_store %arg5[%c0_15, %c0_16], %31 {strides = array<i32>} : memref<2x1352xf32, #tpu.memory_space<vmem>>, vector<2x1352xf32>,
    return
  }
}

module attributes {stable_mosaic.version = 11 : i64} {
  func.func @_conv_kernel(%arg0: memref<1x98xf32, #tpu.memory_space<vmem>>, %arg1: memref<98x12800xf32, #tpu.memory_space<vmem>>, %arg2: memref<1x1xf32, #tpu.memory_space<vmem>>, %arg3: memref<1x12800xf32, #tpu.memory_space<vmem>>) attributes {dimension_semantics = [], scalar_prefetch = 0 : i64, scratch_operands = 0 : i64, tpu.core_type = #tpu.core_type<tc>} {
    %c0 = arith.constant 0 : index
    %c0_0 = arith.constant 0 : index
    %0 = vector.load %arg0[%c0, %c0_0] : memref<1x98xf32, #tpu.memory_space<vmem>>, vector<1x98xf32>
    %c0_1 = arith.constant 0 : index
    %c0_2 = arith.constant 0 : index
    %1 = vector.load %arg1[%c0_1, %c0_2] : memref<98x12800xf32, #tpu.memory_space<vmem>>, vector<98x12800xf32>
    %cst = arith.constant dense<0.000000e+00> : vector<1x12800xf32>
    %2 = tpu.matmul %0, %1, %cst {dimension_numbers = #tpu.dot_dimension_numbers<[1], [0], [0], [1], [0, 0, 1, 1], [], []>} : vector<1x98xf32>, vector<98x12800xf32>, vector<1x12800xf32> -> vector<1x12800xf32>
    %c0_3 = arith.constant 0 : index
    %c0_4 = arith.constant 0 : index
    %3 = vector.load %arg2[%c0_3, %c0_4] : memref<1x1xf32, #tpu.memory_space<vmem>>, vector<1x1xf32>
    %4 = vector.broadcast %3 : vector<1x1xf32> to vector<1x12800xf32>
    %5 = arith.addf %2, %4 : vector<1x12800xf32>
    %cst_5 = arith.constant 0.000000e+00 : f32
    %6 = vector.broadcast %cst_5 : f32 to vector<1x12800xf32>
    %7 = arith.subf %6, %5 : vector<1x12800xf32>
    %8 = math.exp %7 : vector<1x12800xf32>
    %cst_6 = arith.constant 1.000000e+00 : f32
    %9 = vector.broadcast %cst_6 : f32 to vector<1x12800xf32>
    %10 = arith.addf %9, %8 : vector<1x12800xf32>
    %11 = tpu.reciprocal %10 {approx = true} : vector<1x12800xf32> -> vector<1x12800xf32>
    %cst_7 = arith.constant 0.000000e+00 : f32
    %cst_8 = arith.constant 1.000000e+00 : f32
    %12 = vector.broadcast %cst_7 : f32 to vector<1x12800xf32>
    %13 = arith.maximumf %12, %11 : vector<1x12800xf32>
    %14 = vector.broadcast %cst_8 : f32 to vector<1x12800xf32>
    %15 = arith.minimumf %14, %13 : vector<1x12800xf32>
    %c0_9 = arith.constant 0 : index
    %c0_10 = arith.constant 0 : index
    %16 = vector.load %arg3[%c0_9, %c0_10] : memref<1x12800xf32, #tpu.memory_space<vmem>>, vector<1x12800xf32>
    tpu.vector_store %arg3[%c0_9, %c0_10], %15 {strides = array<i32>} : memref<1x12800xf32, #tpu.memory_space<vmem>>, vector<1x12800xf32>,
    return
  }
}

</mosaic_0001>

<llo_original>
// kernel: vae_forward.6
$region0: #{vae_forward.6}
  #allocation0 [shape = 'u32[]', space=smem, size = 0x4, offset = 0x4, fixed_abs, tag = 'smem constant byte address 0x4 - core index']
  #allocation1 [shape = 'u32[144,128]{1,0:T(1,128)}', space=vmem, size = 0x12000, scoped, tag = 'internal scratch']
  %s0 = inlined_call_operand.vmem [shape: f32[2,64], index: 0, kind: input, shape index: {}]
  %s1 = inlined_call_operand.vmem [shape: f32[64,1250], index: 1, kind: input, shape index: {}]
  %s2 = inlined_call_operand.vmem [shape: f32[2,1], index: 2, kind: input, shape index: {}]
  %s3 = inlined_call_operand.vmem [shape: f32[2,1], index: 3, kind: input, shape index: {}]
  %s4 = inlined_call_operand.vmem [shape: f32[2,1], index: 4, kind: input, shape index: {}]
  %s5 = inlined_call_operand.vmem [shape: f32[2,1250], index: 5, kind: output, shape index: {}]
  %s6 = sld [smem:[#allocation0]]
  $region30: #{vae_forward.6} parent=0
    _
  %s8 = ssub.s32 1, %s6
  %s9 = scalar_select 0, %s8, %s6
  // Predicated region
  $region2: #{vae_forward.6} parent=0 // pred_check
    _
  $region3: #{vae_forward.6} parent=0 // pred_check_branch
    %11 = sbr.rel (0) target = $region5
  $region4: #{vae_forward.6} parent=0 // pred_region
    _
  $region5: #{vae_forward.6} parent=0 // pred_fallthru
    _
  // Predicated region
  $region6: #{vae_forward.6} parent=0 // pred_check
    _
  $region7: #{vae_forward.6} parent=0 // pred_check_branch
    %13 = sbr.rel (0) target = $region9
  $region8: #{vae_forward.6} parent=0 // pred_region
    _
  $region9: #{vae_forward.6} parent=0 // pred_fallthru
    _
  // Predicated region
  $region10: #{vae_forward.6} parent=0 // pred_check
    _
  $region11: #{vae_forward.6} parent=0 // pred_check_branch
    %15 = sbr.rel (0) target = $region13
  $region12: #{vae_forward.6} parent=0 // pred_region
    _
  $region13: #{vae_forward.6} parent=0 // pred_fallthru
    _
  // Predicated region
  $region14: #{vae_forward.6} parent=0 // pred_check
    _
  $region15: #{vae_forward.6} parent=0 // pred_check_branch
    %17 = sbr.rel (0) target = $region17
  $region16: #{vae_forward.6} parent=0 // pred_region
    _
  $region17: #{vae_forward.6} parent=0 // pred_fallthru
    _
  // Predicated region
  $region18: #{vae_forward.6} parent=0 // pred_check
    _
  $region19: #{vae_forward.6} parent=0 // pred_check_branch
    %19 = sbr.rel (0) target = $region21
  $region20: #{vae_forward.6} parent=0 // pred_region
    _
  $region21: #{vae_forward.6} parent=0 // pred_fallthru
    _
  %v20 = vld [vmem:[%s0] sm:$0x3]
  %v21 = vld [vmem:[%s1] sm:$0xff]
  %v22 = vld [vmem:[%s1 + $0x8] sm:$0xff]
  %v23 = vld [vmem:[%s1 + $0x10] sm:$0xff]
  %v24 = vld [vmem:[%s1 + $0x18] sm:$0xff]
  %v25 = vld [vmem:[%s1 + $0x20] sm:$0xff]
  %v26 = vld [vmem:[%s1 + $0x28] sm:$0xff]
  %v27 = vld [vmem:[%s1 + $0x30] sm:$0xff]
  %v28 = vld [vmem:[%s1 + $0x38] sm:$0xff]
  %v29 = vld [vmem:[%s1 + $0x40] sm:$0xff]
  %v30 = vld [vmem:[%s1 + $0x48] sm:$0xff]
  %v31 = vld [vmem:[%s1 + $0x50] sm:$0xff]
  %v32 = vld [vmem:[%s1 + $0x58] sm:$0xff]
  %v33 = vld [vmem:[%s1 + $0x60] sm:$0xff]
  %v34 = vld [vmem:[%s1 + $0x68] sm:$0xff]
  %v35 = vld [vmem:[%s1 + $0x70] sm:$0xff]
  %v36 = vld [vmem:[%s1 + $0x78] sm:$0xff]
  %v37 = vld [vmem:[%s1 + $0x80] sm:$0xff]
  %v38 = vld [vmem:[%s1 + $0x88] sm:$0xff]
  %v39 = vld [vmem:[%s1 + $0x90] sm:$0xff]
  %v40 = vld [vmem:[%s1 + $0x98] sm:$0xff]
  %v41 = vld [vmem:[%s1 + $0xa0] sm:$0xff]
  %v42 = vld [vmem:[%s1 + $0xa8] sm:$0xff]
  %v43 = vld [vmem:[%s1 + $0xb0] sm:$0xff]
  %v44 = vld [vmem:[%s1 + $0xb8] sm:$0xff]
  %v45 = vld [vmem:[%s1 + $0xc0] sm:$0xff]
  %v46 = vld [vmem:[%s1 + $0xc8] sm:$0xff]
  %v47 = vld [vmem:[%s1 + $0xd0] sm:$0xff]
  %v48 = vld [vmem:[%s1 + $0xd8] sm:$0xff]
  %v49 = vld [vmem:[%s1 + $0xe0] sm:$0xff]
  %v50 = vld [vmem:[%s1 + $0xe8] sm:$0xff]
  %v51 = vld [vmem:[%s1 + $0xf0] sm:$0xff]
  %v52 = vld [vmem:[%s1 + $0xf8] sm:$0xff]
  %v53 = vld [vmem:[%s1 + $0x100] sm:$0xff]
  %v54 = vld [vmem:[%s1 + $0x108] sm:$0xff]
  %v55 = vld [vmem:[%s1 + $0x110] sm:$0xff]
  %v56 = vld [vmem:[%s1 + $0x118] sm:$0xff]
  %v57 = vld [vmem:[%s1 + $0x120] sm:$0xff]
  %v58 = vld [vmem:[%s1 + $0x128] sm:$0xff]
  %v59 = vld [vmem:[%s1 + $0x130] sm:$0xff]
  %v60 = vld [vmem:[%s1 + $0x138] sm:$0xff]
  %v61 = vld [vmem:[%s1 + $0x140] sm:$0xff]
  %v62 = vld [vmem:[%s1 + $0x148] sm:$0xff]
  %v63 = vld [vmem:[%s1 + $0x150] sm:$0xff]
  %v64 = vld [vmem:[%s1 + $0x158] sm:$0xff]
  %v65 = vld [vmem:[%s1 + $0x160] sm:$0xff]
  %v66 = vld [vmem:[%s1 + $0x168] sm:$0xff]
  %v67 = vld [vmem:[%s1 + $0x170] sm:$0xff]
  %v68 = vld [vmem:[%s1 + $0x178] sm:$0xff]
  %v69 = vld [vmem:[%s1 + $0x180] sm:$0xff]
  %v70 = vld [vmem:[%s1 + $0x188] sm:$0xff]
  %v71 = vld [vmem:[%s1 + $0x190] sm:$0xff]
  %v72 = vld [vmem:[%s1 + $0x198] sm:$0xff]
  %v73 = vld [vmem:[%s1 + $0x1a0] sm:$0xff]
  %v74 = vld [vmem:[%s1 + $0x1a8] sm:$0xff]
  %v75 = vld [vmem:[%s1 + $0x1b0] sm:$0xff]
  %v76 = vld [vmem:[%s1 + $0x1b8] sm:$0xff]
  %v77 = vld [vmem:[%s1 + $0x1c0] sm:$0xff]
  %v78 = vld [vmem:[%s1 + $0x1c8] sm:$0xff]
  %v79 = vld [vmem:[%s1 + $0x1d0] sm:$0xff]
  %v80 = vld [vmem:[%s1 + $0x1d8] sm:$0xff]
  %v81 = vld [vmem:[%s1 + $0x1e0] sm:$0xff]
  %v82 = vld [vmem:[%s1 + $0x1e8] sm:$0xff]
  %v83 = vld [vmem:[%s1 + $0x1f0] sm:$0xff]
  %v84 = vld [vmem:[%s1 + $0x1f8] sm:$0xff]
  %v85 = vld [vmem:[%s1 + $0x200] sm:$0xff]
  %v86 = vld [vmem:[%s1 + $0x208] sm:$0xff]
  %v87 = vld [vmem:[%s1 + $0x210] sm:$0xff]
  %v88 = vld [vmem:[%s1 + $0x218] sm:$0xff]
  %v89 = vld [vmem:[%s1 + $0x220] sm:$0xff]
  %v90 = vld [vmem:[%s1 + $0x228] sm:$0xff]
  %v91 = vld [vmem:[%s1 + $0x230] sm:$0xff]
  %v92 = vld [vmem:[%s1 + $0x238] sm:$0xff]
  %v93 = vld [vmem:[%s1 + $0x240] sm:$0xff]
  %v94 = vld [vmem:[%s1 + $0x248] sm:$0xff]
  %v95 = vld [vmem:[%s1 + $0x250] sm:$0xff]
  %v96 = vld [vmem:[%s1 + $0x258] sm:$0xff]
  %v97 = vld [vmem:[%s1 + $0x260] sm:$0xff]
  %v98 = vld [vmem:[%s1 + $0x268] sm:$0xff]
  %v99 = vld [vmem:[%s1 + $0x270] sm:$0xff]
  %v100 = vld [vmem:[%s1 + $0x278] sm:$0xff]
  %v101 = vld [vmem:[%s2] sm:$0x3]
  %103 = vset.pattern.permute.xlu0 0
  %104 = vperm.xlu0 %103, %v101
  %v105 = vpop.permute.xlu0 %104
  %vm107 = vcmask 523264
  %v109 = vsel %vm107, %v20, 0
  %111 = vmatprep.subr.mxu0 %v22
  %112 = vmatpush1.msra.mxu0 %v21
  %113 = vmatprep.subr.mxu0 %v32
  %114 = vmatpush1.msra.mxu0 %v31
  %115 = vmatprep.subr.mxu0 %v42
  %116 = vmatpush1.msra.mxu0 %v41
  %117 = vmatprep.subr.mxu0 %v52
  %118 = vmatpush1.msra.mxu0 %v51
  %119 = vmatprep.subr.mxu0 %v62
  %120 = vmatpush1.msra.mxu0 %v61
  %121 = vmatprep.subr.mxu0 %v72
  %122 = vmatpush1.msra.mxu0 %v71
  %123 = vmatprep.subr.mxu0 %v82
  %124 = vmatpush1.msra.mxu0 %v81
  %125 = vmatprep.subr.mxu0 %v92
  %126 = vmatpush1.msra.mxu0 %v91
  %127 = vmatprep.subr.mxu0 0.0
  %128 = vmatpush1.msra.mxu0 0.0
  %129 = vmatprep.subr.mxu0 0.0
  %130 = vmatpush1.msra.mxu0 0.0
  %131 = vmatprep.subr.mxu0 0.0
  %132 = vmatpush1.msra.mxu0 0.0
  %133 = vmatprep.subr.mxu0 0.0
  %134 = vmatpush1.msra.mxu0 0.0
  %135 = vmatprep.subr.mxu0 0.0
  %136 = vmatpush1.msra.mxu0 0.0
  %137 = vmatprep.subr.mxu0 0.0
  %138 = vmatpush1.msra.mxu0 0.0
  %139 = vmatprep.subr.mxu0 0.0
  %140 = vmatpush1.msra.mxu0 0.0
  %141 = vmatprep.subr.mxu0 0.0
  %142 = vmatpush1.msra.mxu0 0.0
  %143 = vmatprep.subr.mxu0 0.0
  %144 = vmatpush1.msra.mxu0 0.0
  %145 = vmatprep.subr.mxu0 0.0
  %146 = vmatpush1.msra.mxu0 0.0
  %147 = vmatprep.subr.mxu0 0.0
  %148 = vmatpush1.msra.mxu0 0.0
  %149 = vmatprep.subr.mxu0 0.0
  %150 = vmatpush1.msra.mxu0 0.0
  %151 = vmatprep.subr.mxu0 0.0
  %152 = vmatpush1.msra.mxu0 0.0
  %153 = vmatprep.subr.mxu0 0.0
  %154 = vmatpush1.msra.mxu0 0.0
  %155 = vmatprep.subr.mxu0 0.0
  %156 = vmatpush1.msra.mxu0 0.0
  %157 = vmatprep.subr.mxu0 0.0
  %158 = vmatpush1.msra.mxu0 0.0
  %159 = vmatprep.subr.mxu0 0.0
  %160 = vmatpush1.msra.mxu0 0.0
  %161 = vmatprep.subr.mxu0 0.0
  %162 = vmatpush1.msra.mxu0 0.0
  %163 = vmatprep.subr.mxu0 0.0
  %164 = vmatpush1.msra.mxu0 0.0
  %165 = vmatprep.subr.mxu0 0.0
  %166 = vmatpush1.msra.mxu0 0.0
  %167 = vmatprep.subr.mxu0 0.0
  %168 = vmatpush1.msra.mxu0 0.0
  %169 = vmatprep.subr.mxu0 0.0
  %170 = vmatpush1.msra.mxu0 0.0
  %171 = vmatprep.subr.mxu0 0.0
  %172 = vmatpush1.msra.mxu0 0.0
  %173 = vmatprep.subr.mxu0 0.0
  %174 = vmatpush1.msra.mxu0 0.0
  %175 = vmatprep.mubr.f32.mxu0 0.0
  %176 = vmatmul.mubr.f32.gmra.mrb[0].mxu0 %v109
  %v177 = vpop.f32.mrb[0].mxu0
  %v178 = vadd.f32 %v105, %v177
  %v179 = vpop.f32.mrb[0].mxu0
  %v180 = vadd.f32 %v105, %v179
  %181 = vdwg.mxu0
  %182 = vmatprep.subr.mxu0 %v24
  %183 = vmatpush1.msra.mxu0 %v23
  %184 = vmatprep.subr.mxu0 %v34
  %185 = vmatpush1.msra.mxu0 %v33
  %186 = vmatprep.subr.mxu0 %v44
  %187 = vmatpush1.msra.mxu0 %v43
  %188 = vmatprep.subr.mxu0 %v54
  %189 = vmatpush1.msra.mxu0 %v53
  %190 = vmatprep.subr.mxu0 %v64
  %191 = vmatpush1.msra.mxu0 %v63
  %192 = vmatprep.subr.mxu0 %v74
  %193 = vmatpush1.msra.mxu0 %v73
  %194 = vmatprep.subr.mxu0 %v84
  %195 = vmatpush1.msra.mxu0 %v83
  %196 = vmatprep.subr.mxu0 %v94
  %197 = vmatpush1.msra.mxu0 %v93
  %198 = vmatprep.subr.mxu0 0.0
  %199 = vmatpush1.msra.mxu0 0.0
  %200 = vmatprep.subr.mxu0 0.0
  %201 = vmatpush1.msra.mxu0 0.0
  %202 = vmatprep.subr.mxu0 0.0
  %203 = vmatpush1.msra.mxu0 0.0
  %204 = vmatprep.subr.mxu0 0.0
  %205 = vmatpush1.msra.mxu0 0.0
  %206 = vmatprep.subr.mxu0 0.0
  %207 = vmatpush1.msra.mxu0 0.0
  %208 = vmatprep.subr.mxu0 0.0
  %209 = vmatpush1.msra.mxu0 0.0
  %210 = vmatprep.subr.mxu0 0.0
  %211 = vmatpush1.msra.mxu0 0.0
  %212 = vmatprep.subr.mxu0 0.0
  %213 = vmatpush1.msra.mxu0 0.0
  %214 = vmatprep.subr.mxu0 0.0
  %215 = vmatpush1.msra.mxu0 0.0
  %216 = vmatprep.subr.mxu0 0.0
  %217 = vmatpush1.msra.mxu0 0.0
  %218 = vmatprep.subr.mxu0 0.0
  %219 = vmatpush1.msra.mxu0 0.0
  %220 = vmatprep.subr.mxu0 0.0
  %221 = vmatpush1.msra.mxu0 0.0
  %222 = vmatprep.subr.mxu0 0.0
  %223 = vmatpush1.msra.mxu0 0.0
  %224 = vmatprep.subr.mxu0 0.0
  %225 = vmatpush1.msra.mxu0 0.0
  %226 = vmatprep.subr.mxu0 0.0
  %227 = vmatpush1.msra.mxu0 0.0
  %228 = vmatprep.subr.mxu0 0.0
  %229 = vmatpush1.msra.mxu0 0.0
  %230 = vmatprep.subr.mxu0 0.0
  %231 = vmatpush1.msra.mxu0 0.0
  %232 = vmatprep.subr.mxu0 0.0
  %233 = vmatpush1.msra.mxu0 0.0
  %234 = vmatprep.subr.mxu0 0.0
  %235 = vmatpush1.msra.mxu0 0.0
  %236 = vmatprep.subr.mxu0 0.0
  %237 = vmatpush1.msra.mxu0 0.0
  %238 = vmatprep.subr.mxu0 0.0
  %239 = vmatpush1.msra.mxu0 0.0
  %240 = vmatprep.subr.mxu0 0.0
  %241 = vmatpush1.msra.mxu0 0.0
  %242 = vmatprep.subr.mxu0 0.0
  %243 = vmatpush1.msra.mxu0 0.0
  %244 = vmatprep.subr.mxu0 0.0
  %245 = vmatpush1.msra.mxu0 0.0
  %246 = vmatprep.mubr.f32.mxu0 0.0
  %247 = vmatmul.mubr.f32.gmra.mrb[0].mxu0 %v109
  %v248 = vpop.f32.mrb[0].mxu0
  %v249 = vadd.f32 %v105, %v248
  %v250 = vpop.f32.mrb[0].mxu0
  %v251 = vadd.f32 %v105, %v250
  %252 = vdwg.mxu0
  %253 = vmatprep.subr.mxu0 %v26
  %254 = vmatpush1.msra.mxu0 %v25
  %255 = vmatprep.subr.mxu0 %v36
  %256 = vmatpush1.msra.mxu0 %v35
  %257 = vmatprep.subr.mxu0 %v46
  %258 = vmatpush1.msra.mxu0 %v45
  %259 = vmatprep.subr.mxu0 %v56
  %260 = vmatpush1.msra.mxu0 %v55
  %261 = vmatprep.subr.mxu0 %v66
  %262 = vmatpush1.msra.mxu0 %v65
  %263 = vmatprep.subr.mxu0 %v76
  %264 = vmatpush1.msra.mxu0 %v75
  %265 = vmatprep.subr.mxu0 %v86
  %266 = vmatpush1.msra.mxu0 %v85
  %267 = vmatprep.subr.mxu0 %v96
  %268 = vmatpush1.msra.mxu0 %v95
  %269 = vmatprep.subr.mxu0 0.0
  %270 = vmatpush1.msra.mxu0 0.0
  %271 = vmatprep.subr.mxu0 0.0
  %272 = vmatpush1.msra.mxu0 0.0
  %273 = vmatprep.subr.mxu0 0.0
  %274 = vmatpush1.msra.mxu0 0.0
  %275 = vmatprep.subr.mxu0 0.0
  %276 = vmatpush1.msra.mxu0 0.0
  %277 = vmatprep.subr.mxu0 0.0
  %278 = vmatpush1.msra.mxu0 0.0
  %279 = vmatprep.subr.mxu0 0.0
  %280 = vmatpush1.msra.mxu0 0.0
  %281 = vmatprep.subr.mxu0 0.0
  %282 = vmatpush1.msra.mxu0 0.0
  %283 = vmatprep.subr.mxu0 0.0
  %284 = vmatpush1.msra.mxu0 0.0
  %285 = vmatprep.subr.mxu0 0.0
  %286 = vmatpush1.msra.mxu0 0.0
  %287 = vmatprep.subr.mxu0 0.0
  %288 = vmatpush1.msra.mxu0 0.0
  %289 = vmatprep.subr.mxu0 0.0
  %290 = vmatpush1.msra.mxu0 0.0
  %291 = vmatprep.subr.mxu0 0.0
  %292 = vmatpush1.msra.mxu0 0.0
  %293 = vmatprep.subr.mxu0 0.0
  %294 = vmatpush1.msra.mxu0 0.0
  %295 = vmatprep.subr.mxu0 0.0
  %296 = vmatpush1.msra.mxu0 0.0
  %297 = vmatprep.subr.mxu0 0.0
  %298 = vmatpush1.msra.mxu0 0.0
  %299 = vmatprep.subr.mxu0 0.0
  %300 = vmatpush1.msra.mxu0 0.0
  %301 = vmatprep.subr.mxu0 0.0
  %302 = vmatpush1.msra.mxu0 0.0
  %303 = vmatprep.subr.mxu0 0.0
  %304 = vmatpush1.msra.mxu0 0.0
  %305 = vmatprep.subr.mxu0 0.0
  %306 = vmatpush1.msra.mxu0 0.0
  %307 = vmatprep.subr.mxu0 0.0
  %308 = vmatpush1.msra.mxu0 0.0
  %309 = vmatprep.subr.mxu0 0.0
  %310 = vmatpush1.msra.mxu0 0.0
  %311 = vmatprep.subr.mxu0 0.0
  %312 = vmatpush1.msra.mxu0 0.0
  %313 = vmatprep.subr.mxu0 0.0
  %314 = vmatpush1.msra.mxu0 0.0
  %315 = vmatprep.subr.mxu0 0.0
  %316 = vmatpush1.msra.mxu0 0.0
  %317 = vmatprep.mubr.f32.mxu0 0.0
  %318 = vmatmul.mubr.f32.gmra.mrb[0].mxu0 %v109
  %v319 = vpop.f32.mrb[0].mxu0
  %v320 = vadd.f32 %v105, %v319
  %v321 = vpop.f32.mrb[0].mxu0
  %v322 = vadd.f32 %v105, %v321
  %323 = vdwg.mxu0
  %324 = vmatprep.subr.mxu0 %v28
  %325 = vmatpush1.msra.mxu0 %v27
  %326 = vmatprep.subr.mxu0 %v38
  %327 = vmatpush1.msra.mxu0 %v37
  %328 = vmatprep.subr.mxu0 %v48
  %329 = vmatpush1.msra.mxu0 %v47
  %330 = vmatprep.subr.mxu0 %v58
  %331 = vmatpush1.msra.mxu0 %v57
  %332 = vmatprep.subr.mxu0 %v68
  %333 = vmatpush1.msra.mxu0 %v67
  %334 = vmatprep.subr.mxu0 %v78
  %335 = vmatpush1.msra.mxu0 %v77
  %336 = vmatprep.subr.mxu0 %v88
  %337 = vmatpush1.msra.mxu0 %v87
  %338 = vmatprep.subr.mxu0 %v98
  %339 = vmatpush1.msra.mxu0 %v97
  %340 = vmatprep.subr.mxu0 0.0
  %341 = vmatpush1.msra.mxu0 0.0
  %342 = vmatprep.subr.mxu0 0.0
  %343 = vmatpush1.msra.mxu0 0.0
  %344 = vmatprep.subr.mxu0 0.0
  %345 = vmatpush1.msra.mxu0 0.0
  %346 = vmatprep.subr.mxu0 0.0
  %347 = vmatpush1.msra.mxu0 0.0
  %348 = vmatprep.subr.mxu0 0.0
  %349 = vmatpush1.msra.mxu0 0.0
  %350 = vmatprep.subr.mxu0 0.0
  %351 = vmatpush1.msra.mxu0 0.0
  %352 = vmatprep.subr.mxu0 0.0
  %353 = vmatpush1.msra.mxu0 0.0
  %354 = vmatprep.subr.mxu0 0.0
  %355 = vmatpush1.msra.mxu0 0.0
  %356 = vmatprep.subr.mxu0 0.0
  %357 = vmatpush1.msra.mxu0 0.0
  %358 = vmatprep.subr.mxu0 0.0
  %359 = vmatpush1.msra.mxu0 0.0
  %360 = vmatprep.subr.mxu0 0.0
  %361 = vmatpush1.msra.mxu0 0.0
  %362 = vmatprep.subr.mxu0 0.0
  %363 = vmatpush1.msra.mxu0 0.0
  %364 = vmatprep.subr.mxu0 0.0
  %365 = vmatpush1.msra.mxu0 0.0
  %366 = vmatprep.subr.mxu0 0.0
  %367 = vmatpush1.msra.mxu0 0.0
  %368 = vmatprep.subr.mxu0 0.0
  %369 = vmatpush1.msra.mxu0 0.0
  %370 = vmatprep.subr.mxu0 0.0
  %371 = vmatpush1.msra.mxu0 0.0
  %372 = vmatprep.subr.mxu0 0.0
  %373 = vmatpush1.msra.mxu0 0.0
  %374 = vmatprep.subr.mxu0 0.0
  %375 = vmatpush1.msra.mxu0 0.0
  %376 = vmatprep.subr.mxu0 0.0
  %377 = vmatpush1.msra.mxu0 0.0
  %378 = vmatprep.subr.mxu0 0.0
  %379 = vmatpush1.msra.mxu0 0.0
  %380 = vmatprep.subr.mxu0 0.0
  %381 = vmatpush1.msra.mxu0 0.0
  %382 = vmatprep.subr.mxu0 0.0
  %383 = vmatpush1.msra.mxu0 0.0
  %384 = vmatprep.subr.mxu0 0.0
  %385 = vmatpush1.msra.mxu0 0.0
  %386 = vmatprep.subr.mxu0 0.0
  %387 = vmatpush1.msra.mxu0 0.0
  %388 = vmatprep.mubr.f32.mxu0 0.0
  %389 = vmatmul.mubr.f32.gmra.mrb[0].mxu0 %v109
  %v390 = vpop.f32.mrb[0].mxu0
  %v391 = vadd.f32 %v105, %v390
  %v392 = vpop.f32.mrb[0].mxu0
  %v393 = vadd.f32 %v105, %v392
  %394 = vdwg.mxu0
  %395 = vmatprep.subr.mxu0 %v30
  %396 = vmatpush1.msra.mxu0 %v29
  %397 = vmatprep.subr.mxu0 %v40
  %398 = vmatpush1.msra.mxu0 %v39
  %399 = vmatprep.subr.mxu0 %v50
  %400 = vmatpush1.msra.mxu0 %v49
  %401 = vmatprep.subr.mxu0 %v60
  %402 = vmatpush1.msra.mxu0 %v59
  %403 = vmatprep.subr.mxu0 %v70
  %404 = vmatpush1.msra.mxu0 %v69
  %405 = vmatprep.subr.mxu0 %v80
  %406 = vmatpush1.msra.mxu0 %v79
  %407 = vmatprep.subr.mxu0 %v90
  %408 = vmatpush1.msra.mxu0 %v89
  %409 = vmatprep.subr.mxu0 %v100
  %410 = vmatpush1.msra.mxu0 %v99
  %411 = vmatprep.subr.mxu0 0.0
  %412 = vmatpush1.msra.mxu0 0.0
  %413 = vmatprep.subr.mxu0 0.0
  %414 = vmatpush1.msra.mxu0 0.0
  %415 = vmatprep.subr.mxu0 0.0
  %416 = vmatpush1.msra.mxu0 0.0
  %417 = vmatprep.subr.mxu0 0.0
  %418 = vmatpush1.msra.mxu0 0.0
  %419 = vmatprep.subr.mxu0 0.0
  %420 = vmatpush1.msra.mxu0 0.0
  %421 = vmatprep.subr.mxu0 0.0
  %422 = vmatpush1.msra.mxu0 0.0
  %423 = vmatprep.subr.mxu0 0.0
  %424 = vmatpush1.msra.mxu0 0.0
  %425 = vmatprep.subr.mxu0 0.0
  %426 = vmatpush1.msra.mxu0 0.0
  %427 = vmatprep.subr.mxu0 0.0
  %428 = vmatpush1.msra.mxu0 0.0
  %429 = vmatprep.subr.mxu0 0.0
  %430 = vmatpush1.msra.mxu0 0.0
  %431 = vmatprep.subr.mxu0 0.0
  %432 = vmatpush1.msra.mxu0 0.0
  %433 = vmatprep.subr.mxu0 0.0
  %434 = vmatpush1.msra.mxu0 0.0
  %435 = vmatprep.subr.mxu0 0.0
  %436 = vmatpush1.msra.mxu0 0.0
  %437 = vmatprep.subr.mxu0 0.0
  %438 = vmatpush1.msra.mxu0 0.0
  %439 = vmatprep.subr.mxu0 0.0
  %440 = vmatpush1.msra.mxu0 0.0
  %441 = vmatprep.subr.mxu0 0.0
  %442 = vmatpush1.msra.mxu0 0.0
  %443 = vmatprep.subr.mxu0 0.0
  %444 = vmatpush1.msra.mxu0 0.0
  %445 = vmatprep.subr.mxu0 0.0
  %446 = vmatpush1.msra.mxu0 0.0
  %447 = vmatprep.subr.mxu0 0.0
  %448 = vmatpush1.msra.mxu0 0.0
  %449 = vmatprep.subr.mxu0 0.0
  %450 = vmatpush1.msra.mxu0 0.0
  %451 = vmatprep.subr.mxu0 0.0
  %452 = vmatpush1.msra.mxu0 0.0
  %453 = vmatprep.subr.mxu0 0.0
  %454 = vmatpush1.msra.mxu0 0.0
  %455 = vmatprep.subr.mxu0 0.0
  %456 = vmatpush1.msra.mxu0 0.0
  %457 = vmatprep.subr.mxu0 0.0
  %458 = vmatpush1.msra.mxu0 0.0
  %459 = vmatprep.mubr.f32.mxu0 0.0
  %460 = vmatmul.mubr.f32.gmra.mrb[0].mxu0 %v109
  %v461 = vpop.f32.mrb[0].mxu0
  %v462 = vadd.f32 %v105, %v461
  %v463 = vpop.f32.mrb[0].mxu0
  %v464 = vadd.f32 %v105, %v463
  %465 = vdwg.mxu0
  %vm466 = vcmask 1041408
  %v467 = vsel %vm466, %v178, 0.0
  %v468 = vsel %vm466, %v180, 0.0
  %v469 = vadd.f32 %v467, %v468
  %v470 = vsel %vm466, %v249, 0.0
  %v471 = vadd.f32 %v469, %v470
  %v472 = vsel %vm466, %v251, 0.0
  %v473 = vadd.f32 %v471, %v472
  %v474 = vsel %vm466, %v320, 0.0
  %v475 = vadd.f32 %v473, %v474
  %v476 = vsel %vm466, %v322, 0.0
  %v477 = vadd.f32 %v475, %v476
  %v478 = vsel %vm466, %v391, 0.0
  %v479 = vadd.f32 %v477, %v478
  %v480 = vsel %vm466, %v393, 0.0
  %v481 = vadd.f32 %v479, %v480
  %v482 = vsel %vm466, %v462, 0.0
  %v483 = vadd.f32 %v481, %v482
  %vm484 = vcmask 795648
  %v485 = vsel %vm484, %v464, 0.0
  %v486 = vadd.f32 %v483, %v485
  %487 = vadd.xlane.f32.xlu0 %v486
  %v488 = vpop.xlane.xlu0 %487
  %v489 = vrcp.pop 1250.0
  %v490 = vmul.f32 %v488, %v489
  %v491 = vmul.f32 %v178, %v178
  %v492 = vmul.f32 %v180, %v180
  %v493 = vmul.f32 %v249, %v249
  %v494 = vmul.f32 %v251, %v251
  %v495 = vmul.f32 %v320, %v320
  %v496 = vmul.f32 %v322, %v322
  %v497 = vmul.f32 %v391, %v391
  %v498 = vmul.f32 %v393, %v393
  %v499 = vmul.f32 %v462, %v462
  %v500 = vmul.f32 %v464, %v464
  %v501 = vsel %vm466, %v491, 0.0
  %v502 = vsel %vm466, %v492, 0.0
  %v503 = vadd.f32 %v501, %v502
  %v504 = vsel %vm466, %v493, 0.0
  %v505 = vadd.f32 %v503, %v504
  %v506 = vsel %vm466, %v494, 0.0
  %v507 = vadd.f32 %v505, %v506
  %v508 = vsel %vm466, %v495, 0.0
  %v509 = vadd.f32 %v507, %v508
  %v510 = vsel %vm466, %v496, 0.0
  %v511 = vadd.f32 %v509, %v510
  %v512 = vsel %vm466, %v497, 0.0
  %v513 = vadd.f32 %v511, %v512
  %v514 = vsel %vm466, %v498, 0.0
  %v515 = vadd.f32 %v513, %v514
  %v516 = vsel %vm466, %v499, 0.0
  %v517 = vadd.f32 %v515, %v516
  %v518 = vsel %vm484, %v500, 0.0
  %v519 = vadd.f32 %v517, %v518
  %520 = vadd.xlane.f32.xlu0 %v519
  %v521 = vpop.xlane.xlu0 %520
  %v522 = vmul.f32 %v521, %v489
  %v523 = vmul.f32 %v490, %v490
  %v524 = vsub.f32 %v522, %v523
  %v525 = vsub.f32 %v178, %v490
  %v526 = vsub.f32 %v180, %v490
  %v527 = vsub.f32 %v249, %v490
  %v528 = vsub.f32 %v251, %v490
  %v529 = vsub.f32 %v320, %v490
  %v530 = vsub.f32 %v322, %v490
  %v531 = vsub.f32 %v391, %v490
  %v532 = vsub.f32 %v393, %v490
  %v533 = vsub.f32 %v462, %v490
  %v534 = vsub.f32 %v464, %v490
  %v535 = vadd.f32 %v524, 1e-05
  %v536 = vrsqrt.pop %v535
  %v537 = vmul.f32 %v525, %v536
  %v538 = vmul.f32 %v526, %v536
  %v539 = vmul.f32 %v527, %v536
  %v540 = vmul.f32 %v528, %v536
  %v541 = vmul.f32 %v529, %v536
  %v542 = vmul.f32 %v530, %v536
  %v543 = vmul.f32 %v531, %v536
  %v544 = vmul.f32 %v532, %v536
  %v545 = vmul.f32 %v533, %v536
  %v546 = vmul.f32 %v534, %v536
  %v547 = vld [vmem:[%s3] sm:$0x3]
  %549 = vset.pattern.permute.xlu0 0
  %550 = vperm.xlu0 %549, %v547
  %v551 = vpop.permute.xlu0 %550
  %v553 = vmul.f32 %v537, %v551
  %v554 = vmul.f32 %v538, %v551
  %v555 = vmul.f32 %v539, %v551
  %v556 = vmul.f32 %v540, %v551
  %v557 = vmul.f32 %v541, %v551
  %v558 = vmul.f32 %v542, %v551
  %v559 = vmul.f32 %v543, %v551
  %v560 = vmul.f32 %v544, %v551
  %v561 = vmul.f32 %v545, %v551
  %v562 = vmul.f32 %v546, %v551
  %v563 = vld [vmem:[%s4] sm:$0x3]
  %565 = vset.pattern.permute.xlu0 0
  %566 = vperm.xlu0 %565, %v563
  %v567 = vpop.permute.xlu0 %566
  %v569 = vadd.f32 %v553, %v567
  %v570 = vadd.f32 %v554, %v567
  %v571 = vadd.f32 %v555, %v567
  %v572 = vadd.f32 %v556, %v567
  %v573 = vadd.f32 %v557, %v567
  %v574 = vadd.f32 %v558, %v567
  %v575 = vadd.f32 %v559, %v567
  %v576 = vadd.f32 %v560, %v567
  %v577 = vadd.f32 %v561, %v567
  %v578 = vadd.f32 %v562, %v567
  %v579 = vmax.f32 %v569, 0.0
  %v580 = vmax.f32 %v570, 0.0
  %v581 = vmax.f32 %v571, 0.0
  %v582 = vmax.f32 %v572, 0.0
  %v583 = vmax.f32 %v573, 0.0
  %v584 = vmax.f32 %v574, 0.0
  %v585 = vmax.f32 %v575, 0.0
  %v586 = vmax.f32 %v576, 0.0
  %v587 = vmax.f32 %v577, 0.0
  %v588 = vmax.f32 %v578, 0.0
  %v599 = vcombine.low %v579, %v580
  %v600 = vcombine.low %v581, %v582
  %v602 = vunpack.c.l.s4 1983009808
  %v603 = vunpack.c.0.s8 %v602
  %v604 = vlaneseq
  %v605 = vshrl.u32 %v604, 7
  %v606 = vsub.s32 %v603, %v605
  %v607 = vrot.slane %v599, %v606
  %v609 = vunpack.c.l.s4 1983009808
  %v610 = vunpack.c.0.s8 %v609
  %v611 = vlaneseq
  %v612 = vshrl.u32 %v611, 7
  %v613 = vsub.s32 %v610, %v612
  %v614 = vrot.slane %v600, %v613
  %v615 = vcombine.low %v607, %v614
  %v616 = vcombine.low %v583, %v584
  %v617 = vcombine.low %v585, %v586
  %v619 = vunpack.c.l.s4 1983009808
  %v620 = vunpack.c.0.s8 %v619
  %v621 = vlaneseq
  %v622 = vshrl.u32 %v621, 7
  %v623 = vsub.s32 %v620, %v622
  %v624 = vrot.slane %v616, %v623
  %v626 = vunpack.c.l.s4 1983009808
  %v627 = vunpack.c.0.s8 %v626
  %v628 = vlaneseq
  %v629 = vshrl.u32 %v628, 7
  %v630 = vsub.s32 %v627, %v629
  %v631 = vrot.slane %v617, %v630
  %v632 = vcombine.low %v624, %v631
  %v633 = vcombine.low %v587, %v588
  %v635 = vunpack.c.l.s4 1983009808
  %v636 = vunpack.c.0.s8 %v635
  %v637 = vlaneseq
  %v638 = vshrl.u32 %v637, 7
  %v639 = vsub.s32 %v636, %v638
  %v640 = vrot.slane %v633, %v639
  %644 = vst [vmem:[%s5] sm:$0xff] %v615
  %645 = vst [vmem:[%s5 + $0x8] sm:$0xff] %v632
  %vm646 = vcmask 797698
  %vm647 = vmor %vm646, %vm466
  %648 = vst.msk [vmem:[%s5 + $0x10] sm:$0xf] %vm647, %v640
  // Predicated region
  $region22: #{vae_forward.6} parent=0 // pred_check
    _
  $region23: #{vae_forward.6} parent=0 // pred_check_branch
    %650 = sbr.rel (0) target = $region25
  $region24: #{vae_forward.6} parent=0 // pred_region
    _
  $region25: #{vae_forward.6} parent=0 // pred_fallthru
    _
  // Predicated region
  $region26: #{vae_forward.6} parent=0 // pred_check
    _
  $region27: #{vae_forward.6} parent=0 // pred_check_branch
    %652 = sbr.rel (0) target = $region29
  $region28: #{vae_forward.6} parent=0 // pred_region
    _
  $region29: #{vae_forward.6} parent=0 // pred_fallthru
    _

// kernel: vae_forward.7
$region0: #{vae_forward.7}
  #allocation0 [shape = 'u32[]', space=smem, size = 0x4, offset = 0x4, fixed_abs, tag = 'smem constant byte address 0x4 - core index']
  #allocation1 [shape = 'u32[144,128]{1,0:T(1,128)}', space=vmem, size = 0x12000, scoped, tag = 'internal scratch']
  %s0 = inlined_call_operand.vmem [shape: f32[3,32], index: 0, kind: input, shape index: {}]
  %s1 = inlined_call_operand.vmem [shape: f32[32,288], index: 1, kind: input, shape index: {}]
  %s2 = inlined_call_operand.vmem [shape: f32[3,1], index: 2, kind: input, shape index: {}]
  %s3 = inlined_call_operand.vmem [shape: f32[3,1], index: 3, kind: input, shape index: {}]
  %s4 = inlined_call_operand.vmem [shape: f32[3,1], index: 4, kind: input, shape index: {}]
  %s5 = inlined_call_operand.vmem [shape: f32[3,288], index: 5, kind: output, shape index: {}]
  %s6 = sld [smem:[#allocation0]]
  $region30: #{vae_forward.7} parent=0
    _
  %s8 = ssub.s32 1, %s6
  %s9 = scalar_select 0, %s8, %s6
  // Predicated region
  $region2: #{vae_forward.7} parent=0 // pred_check
    _
  $region3: #{vae_forward.7} parent=0 // pred_check_branch
    %11 = sbr.rel (0) target = $region5
  $region4: #{vae_forward.7} parent=0 // pred_region
    _
  $region5: #{vae_forward.7} parent=0 // pred_fallthru
    _
  // Predicated region
  $region6: #{vae_forward.7} parent=0 // pred_check
    _
  $region7: #{vae_forward.7} parent=0 // pred_check_branch
    %13 = sbr.rel (0) target = $region9
  $region8: #{vae_forward.7} parent=0 // pred_region
    _
  $region9: #{vae_forward.7} parent=0 // pred_fallthru
    _
  // Predicated region
  $region10: #{vae_forward.7} parent=0 // pred_check
    _
  $region11: #{vae_forward.7} parent=0 // pred_check_branch
    %15 = sbr.rel (0) target = $region13
  $region12: #{vae_forward.7} parent=0 // pred_region
    _
  $region13: #{vae_forward.7} parent=0 // pred_fallthru
    _
  // Predicated region
  $region14: #{vae_forward.7} parent=0 // pred_check
    _
  $region15: #{vae_forward.7} parent=0 // pred_check_branch
    %17 = sbr.rel (0) target = $region17
  $region16: #{vae_forward.7} parent=0 // pred_region
    _
  $region17: #{vae_forward.7} parent=0 // pred_fallthru
    _
  // Predicated region
  $region18: #{vae_forward.7} parent=0 // pred_check
    _
  $region19: #{vae_forward.7} parent=0 // pred_check_branch
    %19 = sbr.rel (0) target = $region21
  $region20: #{vae_forward.7} parent=0 // pred_region
    _
  $region21: #{vae_forward.7} parent=0 // pred_fallthru
    _
  %v20 = vld [vmem:[%s0] sm:$0x7]
  %v21 = vld [vmem:[%s1] sm:$0xff]
  %v22 = vld [vmem:[%s1 + $0x8] sm:$0xff]
  %v23 = vld [vmem:[%s1 + $0x10] sm:$0xff]
  %v24 = vld [vmem:[%s1 + $0x18] sm:$0xff]
  %v25 = vld [vmem:[%s1 + $0x20] sm:$0xff]
  %v26 = vld [vmem:[%s1 + $0x28] sm:$0xff]
  %v27 = vld [vmem:[%s1 + $0x30] sm:$0xff]
  %v28 = vld [vmem:[%s1 + $0x38] sm:$0xff]
  %v29 = vld [vmem:[%s1 + $0x40] sm:$0xff]
  %v30 = vld [vmem:[%s1 + $0x48] sm:$0xff]
  %v31 = vld [vmem:[%s1 + $0x50] sm:$0xff]
  %v32 = vld [vmem:[%s1 + $0x58] sm:$0xff]
  %v33 = vld [vmem:[%s2] sm:$0x7]
  %35 = vset.pattern.permute.xlu0 0
  %36 = vperm.xlu0 %35, %v33
  %v37 = vpop.permute.xlu0 %36
  %vm39 = vcmask 261120
  %v41 = vsel %vm39, %v20, 0
  %43 = vmatprep.subr.mxu0 %v22
  %44 = vmatpush1.msra.mxu0 %v21
  %45 = vmatprep.subr.mxu0 %v25
  %46 = vmatpush1.msra.mxu0 %v24
  %47 = vmatprep.subr.mxu0 %v28
  %48 = vmatpush1.msra.mxu0 %v27
  %49 = vmatprep.subr.mxu0 %v31
  %50 = vmatpush1.msra.mxu0 %v30
  %51 = vmatprep.subr.mxu0 0.0
  %52 = vmatpush1.msra.mxu0 0.0
  %53 = vmatprep.subr.mxu0 0.0
  %54 = vmatpush1.msra.mxu0 0.0
  %55 = vmatprep.subr.mxu0 0.0
  %56 = vmatpush1.msra.mxu0 0.0
  %57 = vmatprep.subr.mxu0 0.0
  %58 = vmatpush1.msra.mxu0 0.0
  %59 = vmatprep.subr.mxu0 0.0
  %60 = vmatpush1.msra.mxu0 0.0
  %61 = vmatprep.subr.mxu0 0.0
  %62 = vmatpush1.msra.mxu0 0.0
  %63 = vmatprep.subr.mxu0 0.0
  %64 = vmatpush1.msra.mxu0 0.0
  %65 = vmatprep.subr.mxu0 0.0
  %66 = vmatpush1.msra.mxu0 0.0
  %67 = vmatprep.subr.mxu0 0.0
  %68 = vmatpush1.msra.mxu0 0.0
  %69 = vmatprep.subr.mxu0 0.0
  %70 = vmatpush1.msra.mxu0 0.0
  %71 = vmatprep.subr.mxu0 0.0
  %72 = vmatpush1.msra.mxu0 0.0
  %73 = vmatprep.subr.mxu0 0.0
  %74 = vmatpush1.msra.mxu0 0.0
  %75 = vmatprep.subr.mxu0 0.0
  %76 = vmatpush1.msra.mxu0 0.0
  %77 = vmatprep.subr.mxu0 0.0
  %78 = vmatpush1.msra.mxu0 0.0
  %79 = vmatprep.subr.mxu0 0.0
  %80 = vmatpush1.msra.mxu0 0.0
  %81 = vmatprep.subr.mxu0 0.0
  %82 = vmatpush1.msra.mxu0 0.0
  %83 = vmatprep.subr.mxu0 0.0
  %84 = vmatpush1.msra.mxu0 0.0
  %85 = vmatprep.subr.mxu0 0.0
  %86 = vmatpush1.msra.mxu0 0.0
  %87 = vmatprep.subr.mxu0 0.0
  %88 = vmatpush1.msra.mxu0 0.0
  %89 = vmatprep.subr.mxu0 0.0
  %90 = vmatpush1.msra.mxu0 0.0
  %91 = vmatprep.subr.mxu0 0.0
  %92 = vmatpush1.msra.mxu0 0.0
  %93 = vmatprep.subr.mxu0 0.0
  %94 = vmatpush1.msra.mxu0 0.0
  %95 = vmatprep.subr.mxu0 0.0
  %96 = vmatpush1.msra.mxu0 0.0
  %97 = vmatprep.subr.mxu0 0.0
  %98 = vmatpush1.msra.mxu0 0.0
  %99 = vmatprep.subr.mxu0 0.0
  %100 = vmatpush1.msra.mxu0 0.0
  %101 = vmatprep.subr.mxu0 0.0
  %102 = vmatpush1.msra.mxu0 0.0
  %103 = vmatprep.subr.mxu0 0.0
  %104 = vmatpush1.msra.mxu0 0.0
  %105 = vmatprep.subr.mxu0 0.0
  %106 = vmatpush1.msra.mxu0 0.0
  %107 = vmatprep.mubr.f32.mxu0 0.0
  %108 = vmatmul.mubr.f32.gmra.mrb[0].mxu0 %v41
  %v109 = vpop.f32.mrb[0].mxu0
  %v110 = vadd.f32 %v37, %v109
  %v111 = vpop.f32.mrb[0].mxu0
  %v112 = vadd.f32 %v37, %v111
  %113 = vdwg.mxu0
  %114 = vmatprep.subr.mxu0 0.0
  %115 = vmatpush1.msra.mxu0 %v23
  %116 = vmatprep.subr.mxu0 0.0
  %117 = vmatpush1.msra.mxu0 %v26
  %118 = vmatprep.subr.mxu0 0.0
  %119 = vmatpush1.msra.mxu0 %v29
  %120 = vmatprep.subr.mxu0 0.0
  %121 = vmatpush1.msra.mxu0 %v32
  %122 = vmatprep.subr.mxu0 0.0
  %123 = vmatpush1.msra.mxu0 0.0
  %124 = vmatprep.subr.mxu0 0.0
  %125 = vmatpush1.msra.mxu0 0.0
  %126 = vmatprep.subr.mxu0 0.0
  %127 = vmatpush1.msra.mxu0 0.0
  %128 = vmatprep.subr.mxu0 0.0
  %129 = vmatpush1.msra.mxu0 0.0
  %130 = vmatprep.subr.mxu0 0.0
  %131 = vmatpush1.msra.mxu0 0.0
  %132 = vmatprep.subr.mxu0 0.0
  %133 = vmatpush1.msra.mxu0 0.0
  %134 = vmatprep.subr.mxu0 0.0
  %135 = vmatpush1.msra.mxu0 0.0
  %136 = vmatprep.subr.mxu0 0.0
  %137 = vmatpush1.msra.mxu0 0.0
  %138 = vmatprep.subr.mxu0 0.0
  %139 = vmatpush1.msra.mxu0 0.0
  %140 = vmatprep.subr.mxu0 0.0
  %141 = vmatpush1.msra.mxu0 0.0
  %142 = vmatprep.subr.mxu0 0.0
  %143 = vmatpush1.msra.mxu0 0.0
  %144 = vmatprep.subr.mxu0 0.0
  %145 = vmatpush1.msra.mxu0 0.0
  %146 = vmatprep.subr.mxu0 0.0
  %147 = vmatpush1.msra.mxu0 0.0
  %148 = vmatprep.subr.mxu0 0.0
  %149 = vmatpush1.msra.mxu0 0.0
  %150 = vmatprep.subr.mxu0 0.0
  %151 = vmatpush1.msra.mxu0 0.0
  %152 = vmatprep.subr.mxu0 0.0
  %153 = vmatpush1.msra.mxu0 0.0
  %154 = vmatprep.subr.mxu0 0.0
  %155 = vmatpush1.msra.mxu0 0.0
  %156 = vmatprep.subr.mxu0 0.0
  %157 = vmatpush1.msra.mxu0 0.0
  %158 = vmatprep.subr.mxu0 0.0
  %159 = vmatpush1.msra.mxu0 0.0
  %160 = vmatprep.subr.mxu0 0.0
  %161 = vmatpush1.msra.mxu0 0.0
  %162 = vmatprep.subr.mxu0 0.0
  %163 = vmatpush1.msra.mxu0 0.0
  %164 = vmatprep.subr.mxu0 0.0
  %165 = vmatpush1.msra.mxu0 0.0
  %166 = vmatprep.subr.mxu0 0.0
  %167 = vmatpush1.msra.mxu0 0.0
  %168 = vmatprep.subr.mxu0 0.0
  %169 = vmatpush1.msra.mxu0 0.0
  %170 = vmatprep.subr.mxu0 0.0
  %171 = vmatpush1.msra.mxu0 0.0
  %172 = vmatprep.subr.mxu0 0.0
  %173 = vmatpush1.msra.mxu0 0.0
  %174 = vmatprep.subr.mxu0 0.0
  %175 = vmatpush1.msra.mxu0 0.0
  %176 = vmatprep.subr.mxu0 0.0
  %177 = vmatpush1.msra.mxu0 0.0
  %178 = vmatprep.mubr.f32.mxu0 0.0
  %179 = vmatmul.mubr.f32.gmra.mrb[0].mxu0 %v41
  %v180 = vpop.f32.mrb[0].mxu0
  %v181 = vadd.f32 %v37, %v180
  %v182 = vpop.f32.mrb[0].mxu0
  %183 = vdwg.mxu0
  %vm184 = vcmask 1042432
  %v185 = vsel %vm184, %v110, 0.0
  %v186 = vsel %vm184, %v112, 0.0
  %v187 = vadd.f32 %v185, %v186
  %vm188 = vcmask 256000
  %v189 = vsel %vm188, %v181, 0.0
  %v190 = vadd.f32 %v187, %v189
  %191 = vadd.xlane.f32.xlu0 %v190
  %v192 = vpop.xlane.xlu0 %191
  %v193 = vrcp.pop 288.0
  %v194 = vmul.f32 %v192, %v193
  %v195 = vmul.f32 %v110, %v110
  %v196 = vmul.f32 %v112, %v112
  %v197 = vmul.f32 %v181, %v181
  %v198 = vsel %vm184, %v195, 0.0
  %v199 = vsel %vm184, %v196, 0.0
  %v200 = vadd.f32 %v198, %v199
  %v201 = vsel %vm188, %v197, 0.0
  %v202 = vadd.f32 %v200, %v201
  %203 = vadd.xlane.f32.xlu0 %v202
  %v204 = vpop.xlane.xlu0 %203
  %v205 = vmul.f32 %v204, %v193
  %v206 = vmul.f32 %v194, %v194
  %v207 = vsub.f32 %v205, %v206
  %v208 = vsub.f32 %v110, %v194
  %v209 = vsub.f32 %v112, %v194
  %v210 = vsub.f32 %v181, %v194
  %v211 = vadd.f32 %v207, 1e-05
  %v212 = vrsqrt.pop %v211
  %v213 = vmul.f32 %v208, %v212
  %v214 = vmul.f32 %v209, %v212
  %v215 = vmul.f32 %v210, %v212
  %v216 = vld [vmem:[%s3] sm:$0x7]
  %218 = vset.pattern.permute.xlu0 0
  %219 = vperm.xlu0 %218, %v216
  %v220 = vpop.permute.xlu0 %219
  %v222 = vmul.f32 %v213, %v220
  %v223 = vmul.f32 %v214, %v220
  %v224 = vmul.f32 %v215, %v220
  %v225 = vld [vmem:[%s4] sm:$0x7]
  %227 = vset.pattern.permute.xlu0 0
  %228 = vperm.xlu0 %227, %v225
  %v229 = vpop.permute.xlu0 %228
  %v231 = vadd.f32 %v222, %v229
  %v232 = vadd.f32 %v223, %v229
  %v233 = vadd.f32 %v224, %v229
  %v234 = vmax.f32 %v231, 0.0
  %v235 = vmax.f32 %v232, 0.0
  %v236 = vmax.f32 %v233, 0.0
  %v239 = vcombine.low %v234, %v235
  %241 = vst [vmem:[%s5] sm:$0x77] %v239
  %242 = vst.msk [vmem:[%s5 + $0x8] sm:$0x7] %vm188, %v236
  // Predicated region
  $region22: #{vae_forward.7} parent=0 // pred_check
    _
  $region23: #{vae_forward.7} parent=0 // pred_check_branch
    %244 = sbr.rel (0) target = $region25
  $region24: #{vae_forward.7} parent=0 // pred_region
    _
  $region25: #{vae_forward.7} parent=0 // pred_fallthru
    _
  // Predicated region
  $region26: #{vae_forward.7} parent=0 // pred_check
    _
  $region27: #{vae_forward.7} parent=0 // pred_check_branch
    %246 = sbr.rel (0) target = $region29
  $region28: #{vae_forward.7} parent=0 // pred_region
    _
  $region29: #{vae_forward.7} parent=0 // pred_fallthru
    _

// kernel: vae_forward.8
$region0: #{vae_forward.8}
  #allocation0 [shape = 'u32[]', space=smem, size = 0x4, offset = 0x4, fixed_abs, tag = 'smem constant byte address 0x4 - core index']
  #allocation1 [shape = 'u32[144,128]{1,0:T(1,128)}', space=vmem, size = 0x12000, scoped, tag = 'internal scratch']
  %s0 = inlined_call_operand.vmem [shape: f32[27,200], index: 0, kind: input, shape index: {}]
  %s1 = inlined_call_operand.vmem [shape: f32[3,27], index: 1, kind: input, shape index: {}]
  %s2 = inlined_call_operand.vmem [shape: f32[3,1], index: 2, kind: input, shape index: {}]
  %s3 = inlined_call_operand.vmem [shape: f32[3,27], index: 3, kind: input, shape index: {}]
  %s4 = inlined_call_operand.vmem [shape: f32[3,1], index: 4, kind: input, shape index: {}]
  %s5 = inlined_call_operand.vmem [shape: f32[3,200], index: 5, kind: input, shape index: {}]
  %s6 = inlined_call_operand.vmem [shape: f32[3,200], index: 6, kind: output, shape index: {0}]
  %s7 = inlined_call_operand.vmem [shape: f32[3,200], index: 7, kind: output, shape index: {1}]
  %s8 = inlined_call_operand.vmem [shape: f32[3,200], index: 8, kind: output, shape index: {2}]
  %9 = xla_tuple %s6, %s7, %s8
  %s10 = sld [smem:[#allocation0]]
  $region50: #{vae_forward.8} parent=0
    _
  %s12 = ssub.s32 1, %s10
  %s13 = scalar_select 0, %s12, %s10
  // Predicated region
  $region2: #{vae_forward.8} parent=0 // pred_check
    _
  $region3: #{vae_forward.8} parent=0 // pred_check_branch
    %15 = sbr.rel (0) target = $region5
  $region4: #{vae_forward.8} parent=0 // pred_region
    _
  $region5: #{vae_forward.8} parent=0 // pred_fallthru
    _
  // Predicated region
  $region6: #{vae_forward.8} parent=0 // pred_check
    _
  $region7: #{vae_forward.8} parent=0 // pred_check_branch
    %17 = sbr.rel (0) target = $region9
  $region8: #{vae_forward.8} parent=0 // pred_region
    _
  $region9: #{vae_forward.8} parent=0 // pred_fallthru
    _
  // Predicated region
  $region10: #{vae_forward.8} parent=0 // pred_check
    _
  $region11: #{vae_forward.8} parent=0 // pred_check_branch
    %19 = sbr.rel (0) target = $region13
  $region12: #{vae_forward.8} parent=0 // pred_region
    _
  $region13: #{vae_forward.8} parent=0 // pred_fallthru
    _
  // Predicated region
  $region14: #{vae_forward.8} parent=0 // pred_check
    _
  $region15: #{vae_forward.8} parent=0 // pred_check_branch
    %21 = sbr.rel (0) target = $region17
  $region16: #{vae_forward.8} parent=0 // pred_region
    _
  $region17: #{vae_forward.8} parent=0 // pred_fallthru
    _
  // Predicated region
  $region18: #{vae_forward.8} parent=0 // pred_check
    _
  $region19: #{vae_forward.8} parent=0 // pred_check_branch
    %23 = sbr.rel (0) target = $region21
  $region20: #{vae_forward.8} parent=0 // pred_region
    _
  $region21: #{vae_forward.8} parent=0 // pred_fallthru
    _
  // Predicated region
  $region22: #{vae_forward.8} parent=0 // pred_check
    _
  $region23: #{vae_forward.8} parent=0 // pred_check_branch
    %25 = sbr.rel (0) target = $region25
  $region24: #{vae_forward.8} parent=0 // pred_region
    _
  $region25: #{vae_forward.8} parent=0 // pred_fallthru
    _
  %v26 = vld [vmem:[%s0] sm:$0xff]
  %v27 = vld [vmem:[%s0 + $0x8] sm:$0xff]
  %v28 = vld [vmem:[%s0 + $0x10] sm:$0xff]
  %v29 = vld [vmem:[%s0 + $0x18] sm:$0xff]
  %v30 = vld [vmem:[%s0 + $0x20] sm:$0xff]
  %v31 = vld [vmem:[%s0 + $0x28] sm:$0xff]
  %v32 = vld [vmem:[%s0 + $0x30] sm:$0x7]
  %v33 = vld [vmem:[%s0 + $0x38] sm:$0x7]
  %v34 = vld [vmem:[%s1] sm:$0x7]
  %v35 = vld [vmem:[%s2] sm:$0x7]
  %37 = vset.pattern.permute.xlu0 0
  %38 = vperm.xlu0 %37, %v35
  %v39 = vpop.permute.xlu0 %38
  %vm41 = vcmask 220160
  %v43 = vsel %vm41, %v34, 0
  %vm45 = vcmask 1042432
  %v47 = vsel %vm45, %v32, 0
  %v50 = vsel %vm45, %v33, 0
  %52 = vmatprep.subr.mxu0 %v27
  %53 = vmatpush1.msra.mxu0 %v26
  %54 = vmatprep.subr.mxu0 %v29
  %55 = vmatpush1.msra.mxu0 %v28
  %56 = vmatprep.subr.mxu0 %v31
  %57 = vmatpush1.msra.mxu0 %v30
  %58 = vmatprep.subr.mxu0 %v50
  %59 = vmatpush1.msra.mxu0 %v47
  %60 = vmatprep.subr.mxu0 0.0
  %61 = vmatpush1.msra.mxu0 0.0
  %62 = vmatprep.subr.mxu0 0.0
  %63 = vmatpush1.msra.mxu0 0.0
  %64 = vmatprep.subr.mxu0 0.0
  %65 = vmatpush1.msra.mxu0 0.0
  %66 = vmatprep.subr.mxu0 0.0
  %67 = vmatpush1.msra.mxu0 0.0
  %68 = vmatprep.subr.mxu0 0.0
  %69 = vmatpush1.msra.mxu0 0.0
  %70 = vmatprep.subr.mxu0 0.0
  %71 = vmatpush1.msra.mxu0 0.0
  %72 = vmatprep.subr.mxu0 0.0
  %73 = vmatpush1.msra.mxu0 0.0
  %74 = vmatprep.subr.mxu0 0.0
  %75 = vmatpush1.msra.mxu0 0.0
  %76 = vmatprep.subr.mxu0 0.0
  %77 = vmatpush1.msra.mxu0 0.0
  %78 = vmatprep.subr.mxu0 0.0
  %79 = vmatpush1.msra.mxu0 0.0
  %80 = vmatprep.subr.mxu0 0.0
  %81 = vmatpush1.msra.mxu0 0.0
  %82 = vmatprep.subr.mxu0 0.0
  %83 = vmatpush1.msra.mxu0 0.0
  %84 = vmatprep.subr.mxu0 0.0
  %85 = vmatpush1.msra.mxu0 0.0
  %86 = vmatprep.subr.mxu0 0.0
  %87 = vmatpush1.msra.mxu0 0.0
  %88 = vmatprep.subr.mxu0 0.0
  %89 = vmatpush1.msra.mxu0 0.0
  %90 = vmatprep.subr.mxu0 0.0
  %91 = vmatpush1.msra.mxu0 0.0
  %92 = vmatprep.subr.mxu0 0.0
  %93 = vmatpush1.msra.mxu0 0.0
  %94 = vmatprep.subr.mxu0 0.0
  %95 = vmatpush1.msra.mxu0 0.0
  %96 = vmatprep.subr.mxu0 0.0
  %97 = vmatpush1.msra.mxu0 0.0
  %98 = vmatprep.subr.mxu0 0.0
  %99 = vmatpush1.msra.mxu0 0.0
  %100 = vmatprep.subr.mxu0 0.0
  %101 = vmatpush1.msra.mxu0 0.0
  %102 = vmatprep.subr.mxu0 0.0
  %103 = vmatpush1.msra.mxu0 0.0
  %104 = vmatprep.subr.mxu0 0.0
  %105 = vmatpush1.msra.mxu0 0.0
  %106 = vmatprep.subr.mxu0 0.0
  %107 = vmatpush1.msra.mxu0 0.0
  %108 = vmatprep.subr.mxu0 0.0
  %109 = vmatpush1.msra.mxu0 0.0
  %110 = vmatprep.subr.mxu0 0.0
  %111 = vmatpush1.msra.mxu0 0.0
  %112 = vmatprep.subr.mxu0 0.0
  %113 = vmatpush1.msra.mxu0 0.0
  %114 = vmatprep.subr.mxu0 0.0
  %115 = vmatpush1.msra.mxu0 0.0
  %116 = vmatprep.mubr.f32.mxu0 0.0
  %117 = vmatmul.mubr.f32.gmra.mrb[0].mxu0 %v43
  %v118 = vpop.f32.mrb[0].mxu0
  %v119 = vadd.f32 %v39, %v118
  %v120 = vpop.f32.mrb[0].mxu0
  %v121 = vadd.f32 %v39, %v120
  %122 = vdwg.mxu0
  %v123 = vld [vmem:[%s3] sm:$0x7]
  %v124 = vld [vmem:[%s4] sm:$0x7]
  %126 = vset.pattern.permute.xlu0 0
  %127 = vperm.xlu0 %126, %v124
  %v128 = vpop.permute.xlu0 %127
  %v131 = vsel %vm41, %v123, 0
  %133 = vmatprep.subr.mxu0 %v27
  %134 = vmatpush1.msra.mxu0 %v26
  %135 = vmatprep.subr.mxu0 %v29
  %136 = vmatpush1.msra.mxu0 %v28
  %137 = vmatprep.subr.mxu0 %v31
  %138 = vmatpush1.msra.mxu0 %v30
  %139 = vmatprep.subr.mxu0 %v50
  %140 = vmatpush1.msra.mxu0 %v47
  %141 = vmatprep.subr.mxu0 0.0
  %142 = vmatpush1.msra.mxu0 0.0
  %143 = vmatprep.subr.mxu0 0.0
  %144 = vmatpush1.msra.mxu0 0.0
  %145 = vmatprep.subr.mxu0 0.0
  %146 = vmatpush1.msra.mxu0 0.0
  %147 = vmatprep.subr.mxu0 0.0
  %148 = vmatpush1.msra.mxu0 0.0
  %149 = vmatprep.subr.mxu0 0.0
  %150 = vmatpush1.msra.mxu0 0.0
  %151 = vmatprep.subr.mxu0 0.0
  %152 = vmatpush1.msra.mxu0 0.0
  %153 = vmatprep.subr.mxu0 0.0
  %154 = vmatpush1.msra.mxu0 0.0
  %155 = vmatprep.subr.mxu0 0.0
  %156 = vmatpush1.msra.mxu0 0.0
  %157 = vmatprep.subr.mxu0 0.0
  %158 = vmatpush1.msra.mxu0 0.0
  %159 = vmatprep.subr.mxu0 0.0
  %160 = vmatpush1.msra.mxu0 0.0
  %161 = vmatprep.subr.mxu0 0.0
  %162 = vmatpush1.msra.mxu0 0.0
  %163 = vmatprep.subr.mxu0 0.0
  %164 = vmatpush1.msra.mxu0 0.0
  %165 = vmatprep.subr.mxu0 0.0
  %166 = vmatpush1.msra.mxu0 0.0
  %167 = vmatprep.subr.mxu0 0.0
  %168 = vmatpush1.msra.mxu0 0.0
  %169 = vmatprep.subr.mxu0 0.0
  %170 = vmatpush1.msra.mxu0 0.0
  %171 = vmatprep.subr.mxu0 0.0
  %172 = vmatpush1.msra.mxu0 0.0
  %173 = vmatprep.subr.mxu0 0.0
  %174 = vmatpush1.msra.mxu0 0.0
  %175 = vmatprep.subr.mxu0 0.0
  %176 = vmatpush1.msra.mxu0 0.0
  %177 = vmatprep.subr.mxu0 0.0
  %178 = vmatpush1.msra.mxu0 0.0
  %179 = vmatprep.subr.mxu0 0.0
  %180 = vmatpush1.msra.mxu0 0.0
  %181 = vmatprep.subr.mxu0 0.0
  %182 = vmatpush1.msra.mxu0 0.0
  %183 = vmatprep.subr.mxu0 0.0
  %184 = vmatpush1.msra.mxu0 0.0
  %185 = vmatprep.subr.mxu0 0.0
  %186 = vmatpush1.msra.mxu0 0.0
  %187 = vmatprep.subr.mxu0 0.0
  %188 = vmatpush1.msra.mxu0 0.0
  %189 = vmatprep.subr.mxu0 0.0
  %190 = vmatpush1.msra.mxu0 0.0
  %191 = vmatprep.subr.mxu0 0.0
  %192 = vmatpush1.msra.mxu0 0.0
  %193 = vmatprep.subr.mxu0 0.0
  %194 = vmatpush1.msra.mxu0 0.0
  %195 = vmatprep.subr.mxu0 0.0
  %196 = vmatpush1.msra.mxu0 0.0
  %197 = vmatprep.mubr.f32.mxu0 0.0
  %198 = vmatmul.mubr.f32.gmra.mrb[0].mxu0 %v131
  %v199 = vpop.f32.mrb[0].mxu0
  %v200 = vadd.f32 %v128, %v199
  %v201 = vpop.f32.mrb[0].mxu0
  %v202 = vadd.f32 %v128, %v201
  %203 = vdwg.mxu0
  %v206 = vcombine.low %v119, %v121
  %vm208 = vcmask 587780
  %vm209 = vmor %vm208, %vm45
  %210 = vst.msk [vmem:[%s6] sm:$0x77] %vm209, %v206
  %v213 = vcombine.low %v200, %v202
  %215 = vst.msk [vmem:[%s7] sm:$0x77] %vm209, %v213
  %v216 = vmul.f32 %v200, 0.5
  %v217 = vmul.f32 %v202, 0.5
  %v218 = vmul.f32 %v216, 1.442695
  %v219 = vpow.pop %v218
  %v220 = vmul.f32 %v217, 1.442695
  %v221 = vpow.pop %v220
  %v222 = vld [vmem:[%s5] sm:$0x77]
  %v224 = vcombine.high %v222, %v222
  %v226 = vmul.f32 %v219, %v222
  %v227 = vmul.f32 %v221, %v224
  %v228 = vadd.f32 %v226, %v119
  %v229 = vadd.f32 %v227, %v121
  %v232 = vcombine.low %v228, %v229
  %234 = vst.msk [vmem:[%s8] sm:$0x77] %vm209, %v232
  // Predicated region
  $region26: #{vae_forward.8} parent=0 // pred_check
    _
  $region27: #{vae_forward.8} parent=0 // pred_check_branch
    %236 = sbr.rel (0) target = $region29
  $region28: #{vae_forward.8} parent=0 // pred_region
    _
  $region29: #{vae_forward.8} parent=0 // pred_fallthru
    _
  // Predicated region
  $region30: #{vae_forward.8} parent=0 // pred_check
    _
  $region31: #{vae_forward.8} parent=0 // pred_check_branch
    %238 = sbr.rel (0) target = $region33
  $region32: #{vae_forward.8} parent=0 // pred_region
    _
  $region33: #{vae_forward.8} parent=0 // pred_fallthru
    _
  // Predicated region
  $region34: #{vae_forward.8} parent=0 // pred_check
    _
  $region35: #{vae_forward.8} parent=0 // pred_check_branch
    %240 = sbr.rel (0) target = $region37
  $region36: #{vae_forward.8} parent=0 // pred_region
    _
  $region37: #{vae_forward.8} parent=0 // pred_fallthru
    _
  // Predicated region
  $region38: #{vae_forward.8} parent=0 // pred_check
    _
  $region39: #{vae_forward.8} parent=0 // pred_check_branch
    %242 = sbr.rel (0) target = $region41
  $region40: #{vae_forward.8} parent=0 // pred_region
    _
  $region41: #{vae_forward.8} parent=0 // pred_fallthru
    _
  // Predicated region
  $region42: #{vae_forward.8} parent=0 // pred_check
    _
  $region43: #{vae_forward.8} parent=0 // pred_check_branch
    %244 = sbr.rel (0) target = $region45
  $region44: #{vae_forward.8} parent=0 // pred_region
    _
  $region45: #{vae_forward.8} parent=0 // pred_fallthru
    _
  // Predicated region
  $region46: #{vae_forward.8} parent=0 // pred_check
    _
  $region47: #{vae_forward.8} parent=0 // pred_check_branch
    %246 = sbr.rel (0) target = $region49
  $region48: #{vae_forward.8} parent=0 // pred_region
    _
  $region49: #{vae_forward.8} parent=0 // pred_fallthru
    _

// kernel: vae_forward.9
$region0: #{vae_forward.9}
  #allocation0 [shape = 'u32[]', space=smem, size = 0x4, offset = 0x4, fixed_abs, tag = 'smem constant byte address 0x4 - core index']
  #allocation1 [shape = 'u32[144,128]{1,0:T(1,128)}', space=vmem, size = 0x12000, scoped, tag = 'internal scratch']
  %s0 = inlined_call_operand.vmem [shape: f32[3,27], index: 0, kind: input, shape index: {}]
  %s1 = inlined_call_operand.vmem [shape: f32[27,288], index: 1, kind: input, shape index: {}]
  %s2 = inlined_call_operand.vmem [shape: f32[3,1], index: 2, kind: input, shape index: {}]
  %s3 = inlined_call_operand.vmem [shape: f32[3,288], index: 3, kind: output, shape index: {}]
  %s4 = sld [smem:[#allocation0]]
  $region22: #{vae_forward.9} parent=0
    _
  %s6 = ssub.s32 1, %s4
  %s7 = scalar_select 0, %s6, %s4
  // Predicated region
  $region2: #{vae_forward.9} parent=0 // pred_check
    _
  $region3: #{vae_forward.9} parent=0 // pred_check_branch
    %9 = sbr.rel (0) target = $region5
  $region4: #{vae_forward.9} parent=0 // pred_region
    _
  $region5: #{vae_forward.9} parent=0 // pred_fallthru
    _
  // Predicated region
  $region6: #{vae_forward.9} parent=0 // pred_check
    _
  $region7: #{vae_forward.9} parent=0 // pred_check_branch
    %11 = sbr.rel (0) target = $region9
  $region8: #{vae_forward.9} parent=0 // pred_region
    _
  $region9: #{vae_forward.9} parent=0 // pred_fallthru
    _
  // Predicated region
  $region10: #{vae_forward.9} parent=0 // pred_check
    _
  $region11: #{vae_forward.9} parent=0 // pred_check_branch
    %13 = sbr.rel (0) target = $region13
  $region12: #{vae_forward.9} parent=0 // pred_region
    _
  $region13: #{vae_forward.9} parent=0 // pred_fallthru
    _
  %v14 = vld [vmem:[%s0] sm:$0x7]
  %v15 = vld [vmem:[%s1] sm:$0xff]
  %v16 = vld [vmem:[%s1 + $0x8] sm:$0xff]
  %v17 = vld [vmem:[%s1 + $0x10] sm:$0xff]
  %v18 = vld [vmem:[%s1 + $0x18] sm:$0xff]
  %v19 = vld [vmem:[%s1 + $0x20] sm:$0xff]
  %v20 = vld [vmem:[%s1 + $0x28] sm:$0xff]
  %v21 = vld [vmem:[%s1 + $0x30] sm:$0xff]
  %v22 = vld [vmem:[%s1 + $0x38] sm:$0xff]
  %v23 = vld [vmem:[%s1 + $0x40] sm:$0xff]
  %v24 = vld [vmem:[%s1 + $0x48] sm:$0x7]
  %v25 = vld [vmem:[%s1 + $0x50] sm:$0x7]
  %v26 = vld [vmem:[%s1 + $0x58] sm:$0x7]
  %v27 = vld [vmem:[%s2] sm:$0x7]
  %29 = vset.pattern.permute.xlu0 0
  %30 = vperm.xlu0 %29, %v27
  %v31 = vpop.permute.xlu0 %30
  %vm33 = vcmask 220160
  %v35 = vsel %vm33, %v14, 0
  %vm37 = vcmask 1042432
  %v39 = vsel %vm37, %v24, 0
  %v42 = vsel %vm37, %v25, 0
  %v45 = vsel %vm37, %v26, 0
  %47 = vmatprep.subr.mxu0 %v16
  %48 = vmatpush1.msra.mxu0 %v15
  %49 = vmatprep.subr.mxu0 %v19
  %50 = vmatpush1.msra.mxu0 %v18
  %51 = vmatprep.subr.mxu0 %v22
  %52 = vmatpush1.msra.mxu0 %v21
  %53 = vmatprep.subr.mxu0 %v42
  %54 = vmatpush1.msra.mxu0 %v39
  %55 = vmatprep.subr.mxu0 0.0
  %56 = vmatpush1.msra.mxu0 0.0
  %57 = vmatprep.subr.mxu0 0.0
  %58 = vmatpush1.msra.mxu0 0.0
  %59 = vmatprep.subr.mxu0 0.0
  %60 = vmatpush1.msra.mxu0 0.0
  %61 = vmatprep.subr.mxu0 0.0
  %62 = vmatpush1.msra.mxu0 0.0
  %63 = vmatprep.subr.mxu0 0.0
  %64 = vmatpush1.msra.mxu0 0.0
  %65 = vmatprep.subr.mxu0 0.0
  %66 = vmatpush1.msra.mxu0 0.0
  %67 = vmatprep.subr.mxu0 0.0
  %68 = vmatpush1.msra.mxu0 0.0
  %69 = vmatprep.subr.mxu0 0.0
  %70 = vmatpush1.msra.mxu0 0.0
  %71 = vmatprep.subr.mxu0 0.0
  %72 = vmatpush1.msra.mxu0 0.0
  %73 = vmatprep.subr.mxu0 0.0
  %74 = vmatpush1.msra.mxu0 0.0
  %75 = vmatprep.subr.mxu0 0.0
  %76 = vmatpush1.msra.mxu0 0.0
  %77 = vmatprep.subr.mxu0 0.0
  %78 = vmatpush1.msra.mxu0 0.0
  %79 = vmatprep.subr.mxu0 0.0
  %80 = vmatpush1.msra.mxu0 0.0
  %81 = vmatprep.subr.mxu0 0.0
  %82 = vmatpush1.msra.mxu0 0.0
  %83 = vmatprep.subr.mxu0 0.0
  %84 = vmatpush1.msra.mxu0 0.0
  %85 = vmatprep.subr.mxu0 0.0
  %86 = vmatpush1.msra.mxu0 0.0
  %87 = vmatprep.subr.mxu0 0.0
  %88 = vmatpush1.msra.mxu0 0.0
  %89 = vmatprep.subr.mxu0 0.0
  %90 = vmatpush1.msra.mxu0 0.0
  %91 = vmatprep.subr.mxu0 0.0
  %92 = vmatpush1.msra.mxu0 0.0
  %93 = vmatprep.subr.mxu0 0.0
  %94 = vmatpush1.msra.mxu0 0.0
  %95 = vmatprep.subr.mxu0 0.0
  %96 = vmatpush1.msra.mxu0 0.0
  %97 = vmatprep.subr.mxu0 0.0
  %98 = vmatpush1.msra.mxu0 0.0
  %99 = vmatprep.subr.mxu0 0.0
  %100 = vmatpush1.msra.mxu0 0.0
  %101 = vmatprep.subr.mxu0 0.0
  %102 = vmatpush1.msra.mxu0 0.0
  %103 = vmatprep.subr.mxu0 0.0
  %104 = vmatpush1.msra.mxu0 0.0
  %105 = vmatprep.subr.mxu0 0.0
  %106 = vmatpush1.msra.mxu0 0.0
  %107 = vmatprep.subr.mxu0 0.0
  %108 = vmatpush1.msra.mxu0 0.0
  %109 = vmatprep.subr.mxu0 0.0
  %110 = vmatpush1.msra.mxu0 0.0
  %111 = vmatprep.mubr.f32.mxu0 0.0
  %112 = vmatmul.mubr.f32.gmra.mrb[0].mxu0 %v35
  %v113 = vpop.f32.mrb[0].mxu0
  %v114 = vadd.f32 %v31, %v113
  %v115 = vpop.f32.mrb[0].mxu0
  %v116 = vadd.f32 %v31, %v115
  %117 = vdwg.mxu0
  %118 = vmatprep.subr.mxu0 0.0
  %119 = vmatpush1.msra.mxu0 %v17
  %120 = vmatprep.subr.mxu0 0.0
  %121 = vmatpush1.msra.mxu0 %v20
  %122 = vmatprep.subr.mxu0 0.0
  %123 = vmatpush1.msra.mxu0 %v23
  %124 = vmatprep.subr.mxu0 0.0
  %125 = vmatpush1.msra.mxu0 %v45
  %126 = vmatprep.subr.mxu0 0.0
  %127 = vmatpush1.msra.mxu0 0.0
  %128 = vmatprep.subr.mxu0 0.0
  %129 = vmatpush1.msra.mxu0 0.0
  %130 = vmatprep.subr.mxu0 0.0
  %131 = vmatpush1.msra.mxu0 0.0
  %132 = vmatprep.subr.mxu0 0.0
  %133 = vmatpush1.msra.mxu0 0.0
  %134 = vmatprep.subr.mxu0 0.0
  %135 = vmatpush1.msra.mxu0 0.0
  %136 = vmatprep.subr.mxu0 0.0
  %137 = vmatpush1.msra.mxu0 0.0
  %138 = vmatprep.subr.mxu0 0.0
  %139 = vmatpush1.msra.mxu0 0.0
  %140 = vmatprep.subr.mxu0 0.0
  %141 = vmatpush1.msra.mxu0 0.0
  %142 = vmatprep.subr.mxu0 0.0
  %143 = vmatpush1.msra.mxu0 0.0
  %144 = vmatprep.subr.mxu0 0.0
  %145 = vmatpush1.msra.mxu0 0.0
  %146 = vmatprep.subr.mxu0 0.0
  %147 = vmatpush1.msra.mxu0 0.0
  %148 = vmatprep.subr.mxu0 0.0
  %149 = vmatpush1.msra.mxu0 0.0
  %150 = vmatprep.subr.mxu0 0.0
  %151 = vmatpush1.msra.mxu0 0.0
  %152 = vmatprep.subr.mxu0 0.0
  %153 = vmatpush1.msra.mxu0 0.0
  %154 = vmatprep.subr.mxu0 0.0
  %155 = vmatpush1.msra.mxu0 0.0
  %156 = vmatprep.subr.mxu0 0.0
  %157 = vmatpush1.msra.mxu0 0.0
  %158 = vmatprep.subr.mxu0 0.0
  %159 = vmatpush1.msra.mxu0 0.0
  %160 = vmatprep.subr.mxu0 0.0
  %161 = vmatpush1.msra.mxu0 0.0
  %162 = vmatprep.subr.mxu0 0.0
  %163 = vmatpush1.msra.mxu0 0.0
  %164 = vmatprep.subr.mxu0 0.0
  %165 = vmatpush1.msra.mxu0 0.0
  %166 = vmatprep.subr.mxu0 0.0
  %167 = vmatpush1.msra.mxu0 0.0
  %168 = vmatprep.subr.mxu0 0.0
  %169 = vmatpush1.msra.mxu0 0.0
  %170 = vmatprep.subr.mxu0 0.0
  %171 = vmatpush1.msra.mxu0 0.0
  %172 = vmatprep.subr.mxu0 0.0
  %173 = vmatpush1.msra.mxu0 0.0
  %174 = vmatprep.subr.mxu0 0.0
  %175 = vmatpush1.msra.mxu0 0.0
  %176 = vmatprep.subr.mxu0 0.0
  %177 = vmatpush1.msra.mxu0 0.0
  %178 = vmatprep.subr.mxu0 0.0
  %179 = vmatpush1.msra.mxu0 0.0
  %180 = vmatprep.subr.mxu0 0.0
  %181 = vmatpush1.msra.mxu0 0.0
  %182 = vmatprep.mubr.f32.mxu0 0.0
  %183 = vmatmul.mubr.f32.gmra.mrb[0].mxu0 %v35
  %v184 = vpop.f32.mrb[0].mxu0
  %v185 = vadd.f32 %v31, %v184
  %v186 = vpop.f32.mrb[0].mxu0
  %187 = vdwg.mxu0
  %v190 = vcombine.low %v114, %v116
  %192 = vst [vmem:[%s3] sm:$0x77] %v190
  %vm193 = vcmask 256000
  %194 = vst.msk [vmem:[%s3 + $0x8] sm:$0x7] %vm193, %v185
  // Predicated region
  $region14: #{vae_forward.9} parent=0 // pred_check
    _
  $region15: #{vae_forward.9} parent=0 // pred_check_branch
    %196 = sbr.rel (0) target = $region17
  $region16: #{vae_forward.9} parent=0 // pred_region
    _
  $region17: #{vae_forward.9} parent=0 // pred_fallthru
    _
  // Predicated region
  $region18: #{vae_forward.9} parent=0 // pred_check
    _
  $region19: #{vae_forward.9} parent=0 // pred_check_branch
    %198 = sbr.rel (0) target = $region21
  $region20: #{vae_forward.9} parent=0 // pred_region
    _
  $region21: #{vae_forward.9} parent=0 // pred_fallthru
    _

// kernel: vae_forward.10
$region0: #{vae_forward.10}
  #allocation0 [shape = 'u32[]', space=smem, size = 0x4, offset = 0x4, fixed_abs, tag = 'smem constant byte address 0x4 - core index']
  #allocation1 [shape = 'u32[144,128]{1,0:T(1,128)}', space=vmem, size = 0x12000, scoped, tag = 'internal scratch']
  %s0 = inlined_call_operand.vmem [shape: f32[2,48], index: 0, kind: input, shape index: {}]
  %s1 = inlined_call_operand.vmem [shape: f32[48,1352], index: 1, kind: input, shape index: {}]
  %s2 = inlined_call_operand.vmem [shape: f32[2,1], index: 2, kind: input, shape index: {}]
  %s3 = inlined_call_operand.vmem [shape: f32[2,1], index: 3, kind: input, shape index: {}]
  %s4 = inlined_call_operand.vmem [shape: f32[2,1], index: 4, kind: input, shape index: {}]
  %s5 = inlined_call_operand.vmem [shape: f32[2,1352], index: 5, kind: output, shape index: {}]
  %s6 = sld [smem:[#allocation0]]
  $region30: #{vae_forward.10} parent=0
    _
  %s8 = ssub.s32 1, %s6
  %s9 = scalar_select 0, %s8, %s6
  // Predicated region
  $region2: #{vae_forward.10} parent=0 // pred_check
    _
  $region3: #{vae_forward.10} parent=0 // pred_check_branch
    %11 = sbr.rel (0) target = $region5
  $region4: #{vae_forward.10} parent=0 // pred_region
    _
  $region5: #{vae_forward.10} parent=0 // pred_fallthru
    _
  // Predicated region
  $region6: #{vae_forward.10} parent=0 // pred_check
    _
  $region7: #{vae_forward.10} parent=0 // pred_check_branch
    %13 = sbr.rel (0) target = $region9
  $region8: #{vae_forward.10} parent=0 // pred_region
    _
  $region9: #{vae_forward.10} parent=0 // pred_fallthru
    _
  // Predicated region
  $region10: #{vae_forward.10} parent=0 // pred_check
    _
  $region11: #{vae_forward.10} parent=0 // pred_check_branch
    %15 = sbr.rel (0) target = $region13
  $region12: #{vae_forward.10} parent=0 // pred_region
    _
  $region13: #{vae_forward.10} parent=0 // pred_fallthru
    _
  // Predicated region
  $region14: #{vae_forward.10} parent=0 // pred_check
    _
  $region15: #{vae_forward.10} parent=0 // pred_check_branch
    %17 = sbr.rel (0) target = $region17
  $region16: #{vae_forward.10} parent=0 // pred_region
    _
  $region17: #{vae_forward.10} parent=0 // pred_fallthru
    _
  // Predicated region
  $region18: #{vae_forward.10} parent=0 // pred_check
    _
  $region19: #{vae_forward.10} parent=0 // pred_check_branch
    %19 = sbr.rel (0) target = $region21
  $region20: #{vae_forward.10} parent=0 // pred_region
    _
  $region21: #{vae_forward.10} parent=0 // pred_fallthru
    _
  %v20 = vld [vmem:[%s0] sm:$0x3]
  %v21 = vld [vmem:[%s1] sm:$0xff]
  %v22 = vld [vmem:[%s1 + $0x8] sm:$0xff]
  %v23 = vld [vmem:[%s1 + $0x10] sm:$0xff]
  %v24 = vld [vmem:[%s1 + $0x18] sm:$0xff]
  %v25 = vld [vmem:[%s1 + $0x20] sm:$0xff]
  %v26 = vld [vmem:[%s1 + $0x28] sm:$0xff]
  %v27 = vld [vmem:[%s1 + $0x30] sm:$0xff]
  %v28 = vld [vmem:[%s1 + $0x38] sm:$0xff]
  %v29 = vld [vmem:[%s1 + $0x40] sm:$0xff]
  %v30 = vld [vmem:[%s1 + $0x48] sm:$0xff]
  %v31 = vld [vmem:[%s1 + $0x50] sm:$0xff]
  %v32 = vld [vmem:[%s1 + $0x58] sm:$0xff]
  %v33 = vld [vmem:[%s1 + $0x60] sm:$0xff]
  %v34 = vld [vmem:[%s1 + $0x68] sm:$0xff]
  %v35 = vld [vmem:[%s1 + $0x70] sm:$0xff]
  %v36 = vld [vmem:[%s1 + $0x78] sm:$0xff]
  %v37 = vld [vmem:[%s1 + $0x80] sm:$0xff]
  %v38 = vld [vmem:[%s1 + $0x88] sm:$0xff]
  %v39 = vld [vmem:[%s1 + $0x90] sm:$0xff]
  %v40 = vld [vmem:[%s1 + $0x98] sm:$0xff]
  %v41 = vld [vmem:[%s1 + $0xa0] sm:$0xff]
  %v42 = vld [vmem:[%s1 + $0xa8] sm:$0xff]
  %v43 = vld [vmem:[%s1 + $0xb0] sm:$0xff]
  %v44 = vld [vmem:[%s1 + $0xb8] sm:$0xff]
  %v45 = vld [vmem:[%s1 + $0xc0] sm:$0xff]
  %v46 = vld [vmem:[%s1 + $0xc8] sm:$0xff]
  %v47 = vld [vmem:[%s1 + $0xd0] sm:$0xff]
  %v48 = vld [vmem:[%s1 + $0xd8] sm:$0xff]
  %v49 = vld [vmem:[%s1 + $0xe0] sm:$0xff]
  %v50 = vld [vmem:[%s1 + $0xe8] sm:$0xff]
  %v51 = vld [vmem:[%s1 + $0xf0] sm:$0xff]
  %v52 = vld [vmem:[%s1 + $0xf8] sm:$0xff]
  %v53 = vld [vmem:[%s1 + $0x100] sm:$0xff]
  %v54 = vld [vmem:[%s1 + $0x108] sm:$0xff]
  %v55 = vld [vmem:[%s1 + $0x110] sm:$0xff]
  %v56 = vld [vmem:[%s1 + $0x118] sm:$0xff]
  %v57 = vld [vmem:[%s1 + $0x120] sm:$0xff]
  %v58 = vld [vmem:[%s1 + $0x128] sm:$0xff]
  %v59 = vld [vmem:[%s1 + $0x130] sm:$0xff]
  %v60 = vld [vmem:[%s1 + $0x138] sm:$0xff]
  %v61 = vld [vmem:[%s1 + $0x140] sm:$0xff]
  %v62 = vld [vmem:[%s1 + $0x148] sm:$0xff]
  %v63 = vld [vmem:[%s1 + $0x150] sm:$0xff]
  %v64 = vld [vmem:[%s1 + $0x158] sm:$0xff]
  %v65 = vld [vmem:[%s1 + $0x160] sm:$0xff]
  %v66 = vld [vmem:[%s1 + $0x168] sm:$0xff]
  %v67 = vld [vmem:[%s1 + $0x170] sm:$0xff]
  %v68 = vld [vmem:[%s1 + $0x178] sm:$0xff]
  %v69 = vld [vmem:[%s1 + $0x180] sm:$0xff]
  %v70 = vld [vmem:[%s1 + $0x188] sm:$0xff]
  %v71 = vld [vmem:[%s1 + $0x190] sm:$0xff]
  %v72 = vld [vmem:[%s1 + $0x198] sm:$0xff]
  %v73 = vld [vmem:[%s1 + $0x1a0] sm:$0xff]
  %v74 = vld [vmem:[%s1 + $0x1a8] sm:$0xff]
  %v75 = vld [vmem:[%s1 + $0x1b0] sm:$0xff]
  %v76 = vld [vmem:[%s1 + $0x1b8] sm:$0xff]
  %v77 = vld [vmem:[%s1 + $0x1c0] sm:$0xff]
  %v78 = vld [vmem:[%s1 + $0x1c8] sm:$0xff]
  %v79 = vld [vmem:[%s1 + $0x1d0] sm:$0xff]
  %v80 = vld [vmem:[%s1 + $0x1d8] sm:$0xff]
  %v81 = vld [vmem:[%s1 + $0x1e0] sm:$0xff]
  %v82 = vld [vmem:[%s1 + $0x1e8] sm:$0xff]
  %v83 = vld [vmem:[%s1 + $0x1f0] sm:$0xff]
  %v84 = vld [vmem:[%s1 + $0x1f8] sm:$0xff]
  %v85 = vld [vmem:[%s1 + $0x200] sm:$0xff]
  %v86 = vld [vmem:[%s1 + $0x208] sm:$0xff]
  %v87 = vld [vmem:[%s2] sm:$0x3]
  %89 = vset.pattern.permute.xlu0 0
  %90 = vperm.xlu0 %89, %v87
  %v91 = vpop.permute.xlu0 %90
  %vm93 = vcmask 392192
  %v95 = vsel %vm93, %v20, 0
  %97 = vmatprep.subr.mxu0 %v22
  %98 = vmatpush1.msra.mxu0 %v21
  %99 = vmatprep.subr.mxu0 %v33
  %100 = vmatpush1.msra.mxu0 %v32
  %101 = vmatprep.subr.mxu0 %v44
  %102 = vmatpush1.msra.mxu0 %v43
  %103 = vmatprep.subr.mxu0 %v55
  %104 = vmatpush1.msra.mxu0 %v54
  %105 = vmatprep.subr.mxu0 %v66
  %106 = vmatpush1.msra.mxu0 %v65
  %107 = vmatprep.subr.mxu0 %v77
  %108 = vmatpush1.msra.mxu0 %v76
  %109 = vmatprep.subr.mxu0 0.0
  %110 = vmatpush1.msra.mxu0 0.0
  %111 = vmatprep.subr.mxu0 0.0
  %112 = vmatpush1.msra.mxu0 0.0
  %113 = vmatprep.subr.mxu0 0.0
  %114 = vmatpush1.msra.mxu0 0.0
  %115 = vmatprep.subr.mxu0 0.0
  %116 = vmatpush1.msra.mxu0 0.0
  %117 = vmatprep.subr.mxu0 0.0
  %118 = vmatpush1.msra.mxu0 0.0
  %119 = vmatprep.subr.mxu0 0.0
  %120 = vmatpush1.msra.mxu0 0.0
  %121 = vmatprep.subr.mxu0 0.0
  %122 = vmatpush1.msra.mxu0 0.0
  %123 = vmatprep.subr.mxu0 0.0
  %124 = vmatpush1.msra.mxu0 0.0
  %125 = vmatprep.subr.mxu0 0.0
  %126 = vmatpush1.msra.mxu0 0.0
  %127 = vmatprep.subr.mxu0 0.0
  %128 = vmatpush1.msra.mxu0 0.0
  %129 = vmatprep.subr.mxu0 0.0
  %130 = vmatpush1.msra.mxu0 0.0
  %131 = vmatprep.subr.mxu0 0.0
  %132 = vmatpush1.msra.mxu0 0.0
  %133 = vmatprep.subr.mxu0 0.0
  %134 = vmatpush1.msra.mxu0 0.0
  %135 = vmatprep.subr.mxu0 0.0
  %136 = vmatpush1.msra.mxu0 0.0
  %137 = vmatprep.subr.mxu0 0.0
  %138 = vmatpush1.msra.mxu0 0.0
  %139 = vmatprep.subr.mxu0 0.0
  %140 = vmatpush1.msra.mxu0 0.0
  %141 = vmatprep.subr.mxu0 0.0
  %142 = vmatpush1.msra.mxu0 0.0
  %143 = vmatprep.subr.mxu0 0.0
  %144 = vmatpush1.msra.mxu0 0.0
  %145 = vmatprep.subr.mxu0 0.0
  %146 = vmatpush1.msra.mxu0 0.0
  %147 = vmatprep.subr.mxu0 0.0
  %148 = vmatpush1.msra.mxu0 0.0
  %149 = vmatprep.subr.mxu0 0.0
  %150 = vmatpush1.msra.mxu0 0.0
  %151 = vmatprep.subr.mxu0 0.0
  %152 = vmatpush1.msra.mxu0 0.0
  %153 = vmatprep.subr.mxu0 0.0
  %154 = vmatpush1.msra.mxu0 0.0
  %155 = vmatprep.subr.mxu0 0.0
  %156 = vmatpush1.msra.mxu0 0.0
  %157 = vmatprep.subr.mxu0 0.0
  %158 = vmatpush1.msra.mxu0 0.0
  %159 = vmatprep.subr.mxu0 0.0
  %160 = vmatpush1.msra.mxu0 0.0
  %161 = vmatprep.mubr.f32.mxu0 0.0
  %162 = vmatmul.mubr.f32.gmra.mrb[0].mxu0 %v95
  %v163 = vpop.f32.mrb[0].mxu0
  %v164 = vadd.f32 %v91, %v163
  %v165 = vpop.f32.mrb[0].mxu0
  %v166 = vadd.f32 %v91, %v165
  %167 = vdwg.mxu0
  %168 = vmatprep.subr.mxu0 %v24
  %169 = vmatpush1.msra.mxu0 %v23
  %170 = vmatprep.subr.mxu0 %v35
  %171 = vmatpush1.msra.mxu0 %v34
  %172 = vmatprep.subr.mxu0 %v46
  %173 = vmatpush1.msra.mxu0 %v45
  %174 = vmatprep.subr.mxu0 %v57
  %175 = vmatpush1.msra.mxu0 %v56
  %176 = vmatprep.subr.mxu0 %v68
  %177 = vmatpush1.msra.mxu0 %v67
  %178 = vmatprep.subr.mxu0 %v79
  %179 = vmatpush1.msra.mxu0 %v78
  %180 = vmatprep.subr.mxu0 0.0
  %181 = vmatpush1.msra.mxu0 0.0
  %182 = vmatprep.subr.mxu0 0.0
  %183 = vmatpush1.msra.mxu0 0.0
  %184 = vmatprep.subr.mxu0 0.0
  %185 = vmatpush1.msra.mxu0 0.0
  %186 = vmatprep.subr.mxu0 0.0
  %187 = vmatpush1.msra.mxu0 0.0
  %188 = vmatprep.subr.mxu0 0.0
  %189 = vmatpush1.msra.mxu0 0.0
  %190 = vmatprep.subr.mxu0 0.0
  %191 = vmatpush1.msra.mxu0 0.0
  %192 = vmatprep.subr.mxu0 0.0
  %193 = vmatpush1.msra.mxu0 0.0
  %194 = vmatprep.subr.mxu0 0.0
  %195 = vmatpush1.msra.mxu0 0.0
  %196 = vmatprep.subr.mxu0 0.0
  %197 = vmatpush1.msra.mxu0 0.0
  %198 = vmatprep.subr.mxu0 0.0
  %199 = vmatpush1.msra.mxu0 0.0
  %200 = vmatprep.subr.mxu0 0.0
  %201 = vmatpush1.msra.mxu0 0.0
  %202 = vmatprep.subr.mxu0 0.0
  %203 = vmatpush1.msra.mxu0 0.0
  %204 = vmatprep.subr.mxu0 0.0
  %205 = vmatpush1.msra.mxu0 0.0
  %206 = vmatprep.subr.mxu0 0.0
  %207 = vmatpush1.msra.mxu0 0.0
  %208 = vmatprep.subr.mxu0 0.0
  %209 = vmatpush1.msra.mxu0 0.0
  %210 = vmatprep.subr.mxu0 0.0
  %211 = vmatpush1.msra.mxu0 0.0
  %212 = vmatprep.subr.mxu0 0.0
  %213 = vmatpush1.msra.mxu0 0.0
  %214 = vmatprep.subr.mxu0 0.0
  %215 = vmatpush1.msra.mxu0 0.0
  %216 = vmatprep.subr.mxu0 0.0
  %217 = vmatpush1.msra.mxu0 0.0
  %218 = vmatprep.subr.mxu0 0.0
  %219 = vmatpush1.msra.mxu0 0.0
  %220 = vmatprep.subr.mxu0 0.0
  %221 = vmatpush1.msra.mxu0 0.0
  %222 = vmatprep.subr.mxu0 0.0
  %223 = vmatpush1.msra.mxu0 0.0
  %224 = vmatprep.subr.mxu0 0.0
  %225 = vmatpush1.msra.mxu0 0.0
  %226 = vmatprep.subr.mxu0 0.0
  %227 = vmatpush1.msra.mxu0 0.0
  %228 = vmatprep.subr.mxu0 0.0
  %229 = vmatpush1.msra.mxu0 0.0
  %230 = vmatprep.subr.mxu0 0.0
  %231 = vmatpush1.msra.mxu0 0.0
  %232 = vmatprep.mubr.f32.mxu0 0.0
  %233 = vmatmul.mubr.f32.gmra.mrb[0].mxu0 %v95
  %v234 = vpop.f32.mrb[0].mxu0
  %v235 = vadd.f32 %v91, %v234
  %v236 = vpop.f32.mrb[0].mxu0
  %v237 = vadd.f32 %v91, %v236
  %238 = vdwg.mxu0
  %239 = vmatprep.subr.mxu0 %v26
  %240 = vmatpush1.msra.mxu0 %v25
  %241 = vmatprep.subr.mxu0 %v37
  %242 = vmatpush1.msra.mxu0 %v36
  %243 = vmatprep.subr.mxu0 %v48
  %244 = vmatpush1.msra.mxu0 %v47
  %245 = vmatprep.subr.mxu0 %v59
  %246 = vmatpush1.msra.mxu0 %v58
  %247 = vmatprep.subr.mxu0 %v70
  %248 = vmatpush1.msra.mxu0 %v69
  %249 = vmatprep.subr.mxu0 %v81
  %250 = vmatpush1.msra.mxu0 %v80
  %251 = vmatprep.subr.mxu0 0.0
  %252 = vmatpush1.msra.mxu0 0.0
  %253 = vmatprep.subr.mxu0 0.0
  %254 = vmatpush1.msra.mxu0 0.0
  %255 = vmatprep.subr.mxu0 0.0
  %256 = vmatpush1.msra.mxu0 0.0
  %257 = vmatprep.subr.mxu0 0.0
  %258 = vmatpush1.msra.mxu0 0.0
  %259 = vmatprep.subr.mxu0 0.0
  %260 = vmatpush1.msra.mxu0 0.0
  %261 = vmatprep.subr.mxu0 0.0
  %262 = vmatpush1.msra.mxu0 0.0
  %263 = vmatprep.subr.mxu0 0.0
  %264 = vmatpush1.msra.mxu0 0.0
  %265 = vmatprep.subr.mxu0 0.0
  %266 = vmatpush1.msra.mxu0 0.0
  %267 = vmatprep.subr.mxu0 0.0
  %268 = vmatpush1.msra.mxu0 0.0
  %269 = vmatprep.subr.mxu0 0.0
  %270 = vmatpush1.msra.mxu0 0.0
  %271 = vmatprep.subr.mxu0 0.0
  %272 = vmatpush1.msra.mxu0 0.0
  %273 = vmatprep.subr.mxu0 0.0
  %274 = vmatpush1.msra.mxu0 0.0
  %275 = vmatprep.subr.mxu0 0.0
  %276 = vmatpush1.msra.mxu0 0.0
  %277 = vmatprep.subr.mxu0 0.0
  %278 = vmatpush1.msra.mxu0 0.0
  %279 = vmatprep.subr.mxu0 0.0
  %280 = vmatpush1.msra.mxu0 0.0
  %281 = vmatprep.subr.mxu0 0.0
  %282 = vmatpush1.msra.mxu0 0.0
  %283 = vmatprep.subr.mxu0 0.0
  %284 = vmatpush1.msra.mxu0 0.0
  %285 = vmatprep.subr.mxu0 0.0
  %286 = vmatpush1.msra.mxu0 0.0
  %287 = vmatprep.subr.mxu0 0.0
  %288 = vmatpush1.msra.mxu0 0.0
  %289 = vmatprep.subr.mxu0 0.0
  %290 = vmatpush1.msra.mxu0 0.0
  %291 = vmatprep.subr.mxu0 0.0
  %292 = vmatpush1.msra.mxu0 0.0
  %293 = vmatprep.subr.mxu0 0.0
  %294 = vmatpush1.msra.mxu0 0.0
  %295 = vmatprep.subr.mxu0 0.0
  %296 = vmatpush1.msra.mxu0 0.0
  %297 = vmatprep.subr.mxu0 0.0
  %298 = vmatpush1.msra.mxu0 0.0
  %299 = vmatprep.subr.mxu0 0.0
  %300 = vmatpush1.msra.mxu0 0.0
  %301 = vmatprep.subr.mxu0 0.0
  %302 = vmatpush1.msra.mxu0 0.0
  %303 = vmatprep.mubr.f32.mxu0 0.0
  %304 = vmatmul.mubr.f32.gmra.mrb[0].mxu0 %v95
  %v305 = vpop.f32.mrb[0].mxu0
  %v306 = vadd.f32 %v91, %v305
  %v307 = vpop.f32.mrb[0].mxu0
  %v308 = vadd.f32 %v91, %v307
  %309 = vdwg.mxu0
  %310 = vmatprep.subr.mxu0 %v28
  %311 = vmatpush1.msra.mxu0 %v27
  %312 = vmatprep.subr.mxu0 %v39
  %313 = vmatpush1.msra.mxu0 %v38
  %314 = vmatprep.subr.mxu0 %v50
  %315 = vmatpush1.msra.mxu0 %v49
  %316 = vmatprep.subr.mxu0 %v61
  %317 = vmatpush1.msra.mxu0 %v60
  %318 = vmatprep.subr.mxu0 %v72
  %319 = vmatpush1.msra.mxu0 %v71
  %320 = vmatprep.subr.mxu0 %v83
  %321 = vmatpush1.msra.mxu0 %v82
  %322 = vmatprep.subr.mxu0 0.0
  %323 = vmatpush1.msra.mxu0 0.0
  %324 = vmatprep.subr.mxu0 0.0
  %325 = vmatpush1.msra.mxu0 0.0
  %326 = vmatprep.subr.mxu0 0.0
  %327 = vmatpush1.msra.mxu0 0.0
  %328 = vmatprep.subr.mxu0 0.0
  %329 = vmatpush1.msra.mxu0 0.0
  %330 = vmatprep.subr.mxu0 0.0
  %331 = vmatpush1.msra.mxu0 0.0
  %332 = vmatprep.subr.mxu0 0.0
  %333 = vmatpush1.msra.mxu0 0.0
  %334 = vmatprep.subr.mxu0 0.0
  %335 = vmatpush1.msra.mxu0 0.0
  %336 = vmatprep.subr.mxu0 0.0
  %337 = vmatpush1.msra.mxu0 0.0
  %338 = vmatprep.subr.mxu0 0.0
  %339 = vmatpush1.msra.mxu0 0.0
  %340 = vmatprep.subr.mxu0 0.0
  %341 = vmatpush1.msra.mxu0 0.0
  %342 = vmatprep.subr.mxu0 0.0
  %343 = vmatpush1.msra.mxu0 0.0
  %344 = vmatprep.subr.mxu0 0.0
  %345 = vmatpush1.msra.mxu0 0.0
  %346 = vmatprep.subr.mxu0 0.0
  %347 = vmatpush1.msra.mxu0 0.0
  %348 = vmatprep.subr.mxu0 0.0
  %349 = vmatpush1.msra.mxu0 0.0
  %350 = vmatprep.subr.mxu0 0.0
  %351 = vmatpush1.msra.mxu0 0.0
  %352 = vmatprep.subr.mxu0 0.0
  %353 = vmatpush1.msra.mxu0 0.0
  %354 = vmatprep.subr.mxu0 0.0
  %355 = vmatpush1.msra.mxu0 0.0
  %356 = vmatprep.subr.mxu0 0.0
  %357 = vmatpush1.msra.mxu0 0.0
  %358 = vmatprep.subr.mxu0 0.0
  %359 = vmatpush1.msra.mxu0 0.0
  %360 = vmatprep.subr.mxu0 0.0
  %361 = vmatpush1.msra.mxu0 0.0
  %362 = vmatprep.subr.mxu0 0.0
  %363 = vmatpush1.msra.mxu0 0.0
  %364 = vmatprep.subr.mxu0 0.0
  %365 = vmatpush1.msra.mxu0 0.0
  %366 = vmatprep.subr.mxu0 0.0
  %367 = vmatpush1.msra.mxu0 0.0
  %368 = vmatprep.subr.mxu0 0.0
  %369 = vmatpush1.msra.mxu0 0.0
  %370 = vmatprep.subr.mxu0 0.0
  %371 = vmatpush1.msra.mxu0 0.0
  %372 = vmatprep.subr.mxu0 0.0
  %373 = vmatpush1.msra.mxu0 0.0
  %374 = vmatprep.mubr.f32.mxu0 0.0
  %375 = vmatmul.mubr.f32.gmra.mrb[0].mxu0 %v95
  %v376 = vpop.f32.mrb[0].mxu0
  %v377 = vadd.f32 %v91, %v376
  %v378 = vpop.f32.mrb[0].mxu0
  %v379 = vadd.f32 %v91, %v378
  %380 = vdwg.mxu0
  %381 = vmatprep.subr.mxu0 %v30
  %382 = vmatpush1.msra.mxu0 %v29
  %383 = vmatprep.subr.mxu0 %v41
  %384 = vmatpush1.msra.mxu0 %v40
  %385 = vmatprep.subr.mxu0 %v52
  %386 = vmatpush1.msra.mxu0 %v51
  %387 = vmatprep.subr.mxu0 %v63
  %388 = vmatpush1.msra.mxu0 %v62
  %389 = vmatprep.subr.mxu0 %v74
  %390 = vmatpush1.msra.mxu0 %v73
  %391 = vmatprep.subr.mxu0 %v85
  %392 = vmatpush1.msra.mxu0 %v84
  %393 = vmatprep.subr.mxu0 0.0
  %394 = vmatpush1.msra.mxu0 0.0
  %395 = vmatprep.subr.mxu0 0.0
  %396 = vmatpush1.msra.mxu0 0.0
  %397 = vmatprep.subr.mxu0 0.0
  %398 = vmatpush1.msra.mxu0 0.0
  %399 = vmatprep.subr.mxu0 0.0
  %400 = vmatpush1.msra.mxu0 0.0
  %401 = vmatprep.subr.mxu0 0.0
  %402 = vmatpush1.msra.mxu0 0.0
  %403 = vmatprep.subr.mxu0 0.0
  %404 = vmatpush1.msra.mxu0 0.0
  %405 = vmatprep.subr.mxu0 0.0
  %406 = vmatpush1.msra.mxu0 0.0
  %407 = vmatprep.subr.mxu0 0.0
  %408 = vmatpush1.msra.mxu0 0.0
  %409 = vmatprep.subr.mxu0 0.0
  %410 = vmatpush1.msra.mxu0 0.0
  %411 = vmatprep.subr.mxu0 0.0
  %412 = vmatpush1.msra.mxu0 0.0
  %413 = vmatprep.subr.mxu0 0.0
  %414 = vmatpush1.msra.mxu0 0.0
  %415 = vmatprep.subr.mxu0 0.0
  %416 = vmatpush1.msra.mxu0 0.0
  %417 = vmatprep.subr.mxu0 0.0
  %418 = vmatpush1.msra.mxu0 0.0
  %419 = vmatprep.subr.mxu0 0.0
  %420 = vmatpush1.msra.mxu0 0.0
  %421 = vmatprep.subr.mxu0 0.0
  %422 = vmatpush1.msra.mxu0 0.0
  %423 = vmatprep.subr.mxu0 0.0
  %424 = vmatpush1.msra.mxu0 0.0
  %425 = vmatprep.subr.mxu0 0.0
  %426 = vmatpush1.msra.mxu0 0.0
  %427 = vmatprep.subr.mxu0 0.0
  %428 = vmatpush1.msra.mxu0 0.0
  %429 = vmatprep.subr.mxu0 0.0
  %430 = vmatpush1.msra.mxu0 0.0
  %431 = vmatprep.subr.mxu0 0.0
  %432 = vmatpush1.msra.mxu0 0.0
  %433 = vmatprep.subr.mxu0 0.0
  %434 = vmatpush1.msra.mxu0 0.0
  %435 = vmatprep.subr.mxu0 0.0
  %436 = vmatpush1.msra.mxu0 0.0
  %437 = vmatprep.subr.mxu0 0.0
  %438 = vmatpush1.msra.mxu0 0.0
  %439 = vmatprep.subr.mxu0 0.0
  %440 = vmatpush1.msra.mxu0 0.0
  %441 = vmatprep.subr.mxu0 0.0
  %442 = vmatpush1.msra.mxu0 0.0
  %443 = vmatprep.subr.mxu0 0.0
  %444 = vmatpush1.msra.mxu0 0.0
  %445 = vmatprep.mubr.f32.mxu0 0.0
  %446 = vmatmul.mubr.f32.gmra.mrb[0].mxu0 %v95
  %v447 = vpop.f32.mrb[0].mxu0
  %v448 = vadd.f32 %v91, %v447
  %v449 = vpop.f32.mrb[0].mxu0
  %v450 = vadd.f32 %v91, %v449
  %451 = vdwg.mxu0
  %452 = vmatprep.subr.mxu0 0.0
  %453 = vmatpush1.msra.mxu0 %v31
  %454 = vmatprep.subr.mxu0 0.0
  %455 = vmatpush1.msra.mxu0 %v42
  %456 = vmatprep.subr.mxu0 0.0
  %457 = vmatpush1.msra.mxu0 %v53
  %458 = vmatprep.subr.mxu0 0.0
  %459 = vmatpush1.msra.mxu0 %v64
  %460 = vmatprep.subr.mxu0 0.0
  %461 = vmatpush1.msra.mxu0 %v75
  %462 = vmatprep.subr.mxu0 0.0
  %463 = vmatpush1.msra.mxu0 %v86
  %464 = vmatprep.subr.mxu0 0.0
  %465 = vmatpush1.msra.mxu0 0.0
  %466 = vmatprep.subr.mxu0 0.0
  %467 = vmatpush1.msra.mxu0 0.0
  %468 = vmatprep.subr.mxu0 0.0
  %469 = vmatpush1.msra.mxu0 0.0
  %470 = vmatprep.subr.mxu0 0.0
  %471 = vmatpush1.msra.mxu0 0.0
  %472 = vmatprep.subr.mxu0 0.0
  %473 = vmatpush1.msra.mxu0 0.0
  %474 = vmatprep.subr.mxu0 0.0
  %475 = vmatpush1.msra.mxu0 0.0
  %476 = vmatprep.subr.mxu0 0.0
  %477 = vmatpush1.msra.mxu0 0.0
  %478 = vmatprep.subr.mxu0 0.0
  %479 = vmatpush1.msra.mxu0 0.0
  %480 = vmatprep.subr.mxu0 0.0
  %481 = vmatpush1.msra.mxu0 0.0
  %482 = vmatprep.subr.mxu0 0.0
  %483 = vmatpush1.msra.mxu0 0.0
  %484 = vmatprep.subr.mxu0 0.0
  %485 = vmatpush1.msra.mxu0 0.0
  %486 = vmatprep.subr.mxu0 0.0
  %487 = vmatpush1.msra.mxu0 0.0
  %488 = vmatprep.subr.mxu0 0.0
  %489 = vmatpush1.msra.mxu0 0.0
  %490 = vmatprep.subr.mxu0 0.0
  %491 = vmatpush1.msra.mxu0 0.0
  %492 = vmatprep.subr.mxu0 0.0
  %493 = vmatpush1.msra.mxu0 0.0
  %494 = vmatprep.subr.mxu0 0.0
  %495 = vmatpush1.msra.mxu0 0.0
  %496 = vmatprep.subr.mxu0 0.0
  %497 = vmatpush1.msra.mxu0 0.0
  %498 = vmatprep.subr.mxu0 0.0
  %499 = vmatpush1.msra.mxu0 0.0
  %500 = vmatprep.subr.mxu0 0.0
  %501 = vmatpush1.msra.mxu0 0.0
  %502 = vmatprep.subr.mxu0 0.0
  %503 = vmatpush1.msra.mxu0 0.0
  %504 = vmatprep.subr.mxu0 0.0
  %505 = vmatpush1.msra.mxu0 0.0
  %506 = vmatprep.subr.mxu0 0.0
  %507 = vmatpush1.msra.mxu0 0.0
  %508 = vmatprep.subr.mxu0 0.0
  %509 = vmatpush1.msra.mxu0 0.0
  %510 = vmatprep.subr.mxu0 0.0
  %511 = vmatpush1.msra.mxu0 0.0
  %512 = vmatprep.subr.mxu0 0.0
  %513 = vmatpush1.msra.mxu0 0.0
  %514 = vmatprep.subr.mxu0 0.0
  %515 = vmatpush1.msra.mxu0 0.0
  %516 = vmatprep.mubr.f32.mxu0 0.0
  %517 = vmatmul.mubr.f32.gmra.mrb[0].mxu0 %v95
  %v518 = vpop.f32.mrb[0].mxu0
  %v519 = vadd.f32 %v91, %v518
  %v520 = vpop.f32.mrb[0].mxu0
  %521 = vdwg.mxu0
  %vm522 = vcmask 1041408
  %v523 = vsel %vm522, %v164, 0.0
  %v524 = vsel %vm522, %v166, 0.0
  %v525 = vadd.f32 %v523, %v524
  %v526 = vsel %vm522, %v235, 0.0
  %v527 = vadd.f32 %v525, %v526
  %v528 = vsel %vm522, %v237, 0.0
  %v529 = vadd.f32 %v527, %v528
  %v530 = vsel %vm522, %v306, 0.0
  %v531 = vadd.f32 %v529, %v530
  %v532 = vsel %vm522, %v308, 0.0
  %v533 = vadd.f32 %v531, %v532
  %v534 = vsel %vm522, %v377, 0.0
  %v535 = vadd.f32 %v533, %v534
  %v536 = vsel %vm522, %v379, 0.0
  %v537 = vadd.f32 %v535, %v536
  %v538 = vsel %vm522, %v448, 0.0
  %v539 = vadd.f32 %v537, %v538
  %v540 = vsel %vm522, %v450, 0.0
  %v541 = vadd.f32 %v539, %v540
  %vm542 = vcmask 582656
  %v543 = vsel %vm542, %v519, 0.0
  %v544 = vadd.f32 %v541, %v543
  %545 = vadd.xlane.f32.xlu0 %v544
  %v546 = vpop.xlane.xlu0 %545
  %v547 = vrcp.pop 1352.0
  %v548 = vmul.f32 %v546, %v547
  %v549 = vmul.f32 %v164, %v164
  %v550 = vmul.f32 %v166, %v166
  %v551 = vmul.f32 %v235, %v235
  %v552 = vmul.f32 %v237, %v237
  %v553 = vmul.f32 %v306, %v306
  %v554 = vmul.f32 %v308, %v308
  %v555 = vmul.f32 %v377, %v377
  %v556 = vmul.f32 %v379, %v379
  %v557 = vmul.f32 %v448, %v448
  %v558 = vmul.f32 %v450, %v450
  %v559 = vmul.f32 %v519, %v519
  %v560 = vsel %vm522, %v549, 0.0
  %v561 = vsel %vm522, %v550, 0.0
  %v562 = vadd.f32 %v560, %v561
  %v563 = vsel %vm522, %v551, 0.0
  %v564 = vadd.f32 %v562, %v563
  %v565 = vsel %vm522, %v552, 0.0
  %v566 = vadd.f32 %v564, %v565
  %v567 = vsel %vm522, %v553, 0.0
  %v568 = vadd.f32 %v566, %v567
  %v569 = vsel %vm522, %v554, 0.0
  %v570 = vadd.f32 %v568, %v569
  %v571 = vsel %vm522, %v555, 0.0
  %v572 = vadd.f32 %v570, %v571
  %v573 = vsel %vm522, %v556, 0.0
  %v574 = vadd.f32 %v572, %v573
  %v575 = vsel %vm522, %v557, 0.0
  %v576 = vadd.f32 %v574, %v575
  %v577 = vsel %vm522, %v558, 0.0
  %v578 = vadd.f32 %v576, %v577
  %v579 = vsel %vm542, %v559, 0.0
  %v580 = vadd.f32 %v578, %v579
  %581 = vadd.xlane.f32.xlu0 %v580
  %v582 = vpop.xlane.xlu0 %581
  %v583 = vmul.f32 %v582, %v547
  %v584 = vmul.f32 %v548, %v548
  %v585 = vsub.f32 %v583, %v584
  %v586 = vsub.f32 %v164, %v548
  %v587 = vsub.f32 %v166, %v548
  %v588 = vsub.f32 %v235, %v548
  %v589 = vsub.f32 %v237, %v548
  %v590 = vsub.f32 %v306, %v548
  %v591 = vsub.f32 %v308, %v548
  %v592 = vsub.f32 %v377, %v548
  %v593 = vsub.f32 %v379, %v548
  %v594 = vsub.f32 %v448, %v548
  %v595 = vsub.f32 %v450, %v548
  %v596 = vsub.f32 %v519, %v548
  %v597 = vadd.f32 %v585, 1e-05
  %v598 = vrsqrt.pop %v597
  %v599 = vmul.f32 %v586, %v598
  %v600 = vmul.f32 %v587, %v598
  %v601 = vmul.f32 %v588, %v598
  %v602 = vmul.f32 %v589, %v598
  %v603 = vmul.f32 %v590, %v598
  %v604 = vmul.f32 %v591, %v598
  %v605 = vmul.f32 %v592, %v598
  %v606 = vmul.f32 %v593, %v598
  %v607 = vmul.f32 %v594, %v598
  %v608 = vmul.f32 %v595, %v598
  %v609 = vmul.f32 %v596, %v598
  %v610 = vld [vmem:[%s3] sm:$0x3]
  %612 = vset.pattern.permute.xlu0 0
  %613 = vperm.xlu0 %612, %v610
  %v614 = vpop.permute.xlu0 %613
  %v616 = vmul.f32 %v599, %v614
  %v617 = vmul.f32 %v600, %v614
  %v618 = vmul.f32 %v601, %v614
  %v619 = vmul.f32 %v602, %v614
  %v620 = vmul.f32 %v603, %v614
  %v621 = vmul.f32 %v604, %v614
  %v622 = vmul.f32 %v605, %v614
  %v623 = vmul.f32 %v606, %v614
  %v624 = vmul.f32 %v607, %v614
  %v625 = vmul.f32 %v608, %v614
  %v626 = vmul.f32 %v609, %v614
  %v627 = vld [vmem:[%s4] sm:$0x3]
  %629 = vset.pattern.permute.xlu0 0
  %630 = vperm.xlu0 %629, %v627
  %v631 = vpop.permute.xlu0 %630
  %v633 = vadd.f32 %v616, %v631
  %v634 = vadd.f32 %v617, %v631
  %v635 = vadd.f32 %v618, %v631
  %v636 = vadd.f32 %v619, %v631
  %v637 = vadd.f32 %v620, %v631
  %v638 = vadd.f32 %v621, %v631
  %v639 = vadd.f32 %v622, %v631
  %v640 = vadd.f32 %v623, %v631
  %v641 = vadd.f32 %v624, %v631
  %v642 = vadd.f32 %v625, %v631
  %v643 = vadd.f32 %v626, %v631
  %v644 = vmax.f32 %v633, 0.0
  %v645 = vmax.f32 %v634, 0.0
  %v646 = vmax.f32 %v635, 0.0
  %v647 = vmax.f32 %v636, 0.0
  %v648 = vmax.f32 %v637, 0.0
  %v649 = vmax.f32 %v638, 0.0
  %v650 = vmax.f32 %v639, 0.0
  %v651 = vmax.f32 %v640, 0.0
  %v652 = vmax.f32 %v641, 0.0
  %v653 = vmax.f32 %v642, 0.0
  %v654 = vmax.f32 %v643, 0.0
  %v666 = vcombine.low %v644, %v645
  %v667 = vcombine.low %v646, %v647
  %v669 = vunpack.c.l.s4 1983009808
  %v670 = vunpack.c.0.s8 %v669
  %v671 = vlaneseq
  %v672 = vshrl.u32 %v671, 7
  %v673 = vsub.s32 %v670, %v672
  %v674 = vrot.slane %v666, %v673
  %v676 = vunpack.c.l.s4 1983009808
  %v677 = vunpack.c.0.s8 %v676
  %v678 = vlaneseq
  %v679 = vshrl.u32 %v678, 7
  %v680 = vsub.s32 %v677, %v679
  %v681 = vrot.slane %v667, %v680
  %v682 = vcombine.low %v674, %v681
  %v683 = vcombine.low %v648, %v649
  %v684 = vcombine.low %v650, %v651
  %v686 = vunpack.c.l.s4 1983009808
  %v687 = vunpack.c.0.s8 %v686
  %v688 = vlaneseq
  %v689 = vshrl.u32 %v688, 7
  %v690 = vsub.s32 %v687, %v689
  %v691 = vrot.slane %v683, %v690
  %v693 = vunpack.c.l.s4 1983009808
  %v694 = vunpack.c.0.s8 %v693
  %v695 = vlaneseq
  %v696 = vshrl.u32 %v695, 7
  %v697 = vsub.s32 %v694, %v696
  %v698 = vrot.slane %v684, %v697
  %v699 = vcombine.low %v691, %v698
  %v700 = vcombine.low %v652, %v653
  %v702 = vunpack.c.l.s4 1983009808
  %v703 = vunpack.c.0.s8 %v702
  %v704 = vlaneseq
  %v705 = vshrl.u32 %v704, 7
  %v706 = vsub.s32 %v703, %v705
  %v707 = vrot.slane %v700, %v706
  %v709 = vunpack.c.l.s4 1983009808
  %v710 = vunpack.c.0.s8 %v709
  %v711 = vlaneseq
  %v712 = vshrl.u32 %v711, 7
  %v713 = vsub.s32 %v710, %v712
  %v714 = vrot.slane %v654, %v713
  %v715 = vcombine.low %v707, %v714
  %719 = vst [vmem:[%s5] sm:$0xff] %v682
  %720 = vst [vmem:[%s5 + $0x8] sm:$0xff] %v699
  %vm721 = vcmask 1043458
  %vm722 = vmor %vm721, %vm522
  %vm723 = vcmask 586756
  %vm724 = vmor %vm723, %vm722
  %725 = vst.msk [vmem:[%s5 + $0x10] sm:$0x3f] %vm724, %v715
  // Predicated region
  $region22: #{vae_forward.10} parent=0 // pred_check
    _
  $region23: #{vae_forward.10} parent=0 // pred_check_branch
    %727 = sbr.rel (0) target = $region25
  $region24: #{vae_forward.10} parent=0 // pred_region
    _
  $region25: #{vae_forward.10} parent=0 // pred_fallthru
    _
  // Predicated region
  $region26: #{vae_forward.10} parent=0 // pred_check
    _
  $region27: #{vae_forward.10} parent=0 // pred_check_branch
    %729 = sbr.rel (0) target = $region29
  $region28: #{vae_forward.10} parent=0 // pred_region
    _
  $region29: #{vae_forward.10} parent=0 // pred_fallthru
    _

// kernel: vae_forward.11
$region0: #{vae_forward.11}
  #allocation0 [shape = 'u32[]', space=smem, size = 0x4, offset = 0x4, fixed_abs, tag = 'smem constant byte address 0x4 - core index']
  #allocation1 [shape = 'u32[144,128]{1,0:T(1,128)}', space=vmem, size = 0x12000, scoped, tag = 'internal scratch']
  #allocation2 [shape = 'f32[1,1]{1,0:T(1,128)S(1)}', space=vmem, size = 0x200, scoped, tag = 'scoped memory for vae_forward.11']
  %s0 = inlined_call_operand.vmem [shape: f32[1,98], index: 0, kind: input, shape index: {}]
  %s1 = inlined_call_operand.vmem [shape: f32[98,12800], index: 1, kind: input, shape index: {}]
  %s2 = inlined_call_operand.<no memory space> [shape: f32[1,1], index: 2, kind: input, shape index: {}]
  %s3 = inlined_call_operand.vmem [shape: f32[1,12800], index: 3, kind: output, shape index: {}]
  %s4 = sld [smem:[#allocation0]]
  $region22: #{vae_forward.11} parent=0
    _
  %s6 = ssub.s32 1, %s4
  %s7 = scalar_select 0, %s6, %s4
  %v8 = vstv %s2
  %9 = vst [vmem:[#allocation2] sm:$0x1] %v8
  // Predicated region
  $region2: #{vae_forward.11} parent=0 // pred_check
    _
  $region3: #{vae_forward.11} parent=0 // pred_check_branch
    %11 = sbr.rel (0) target = $region5
  $region4: #{vae_forward.11} parent=0 // pred_region
    _
  $region5: #{vae_forward.11} parent=0 // pred_fallthru
    _
  // Predicated region
  $region6: #{vae_forward.11} parent=0 // pred_check
    _
  $region7: #{vae_forward.11} parent=0 // pred_check_branch
    %13 = sbr.rel (0) target = $region9
  $region8: #{vae_forward.11} parent=0 // pred_region
    _
  $region9: #{vae_forward.11} parent=0 // pred_fallthru
    _
  // Predicated region
  $region10: #{vae_forward.11} parent=0 // pred_check
    _
  $region11: #{vae_forward.11} parent=0 // pred_check_branch
    %15 = sbr.rel (0) target = $region13
  $region12: #{vae_forward.11} parent=0 // pred_region
    _
  $region13: #{vae_forward.11} parent=0 // pred_fallthru
    _
  %v16 = vld [vmem:[%s0] sm:$0x1]
  %v17 = vld [vmem:[%s1] sm:$0xff]
  %v18 = vld [vmem:[%s1 + $0x8] sm:$0xff]
  %v19 = vld [vmem:[%s1 + $0x10] sm:$0xff]
  %v20 = vld [vmem:[%s1 + $0x18] sm:$0xff]
  %v21 = vld [vmem:[%s1 + $0x20] sm:$0xff]
  %v22 = vld [vmem:[%s1 + $0x28] sm:$0xff]
  %v23 = vld [vmem:[%s1 + $0x30] sm:$0xff]
  %v24 = vld [vmem:[%s1 + $0x38] sm:$0xff]
  %v25 = vld [vmem:[%s1 + $0x40] sm:$0xff]
  %v26 = vld [vmem:[%s1 + $0x48] sm:$0xff]
  %v27 = vld [vmem:[%s1 + $0x50] sm:$0xff]
  %v28 = vld [vmem:[%s1 + $0x58] sm:$0xff]
  %v29 = vld [vmem:[%s1 + $0x60] sm:$0xff]
  %v30 = vld [vmem:[%s1 + $0x68] sm:$0xff]
  %v31 = vld [vmem:[%s1 + $0x70] sm:$0xff]
  %v32 = vld [vmem:[%s1 + $0x78] sm:$0xff]
  %v33 = vld [vmem:[%s1 + $0x80] sm:$0xff]
  %v34 = vld [vmem:[%s1 + $0x88] sm:$0xff]
  %v35 = vld [vmem:[%s1 + $0x90] sm:$0xff]
  %v36 = vld [vmem:[%s1 + $0x98] sm:$0xff]
  %v37 = vld [vmem:[%s1 + $0xa0] sm:$0xff]
  %v38 = vld [vmem:[%s1 + $0xa8] sm:$0xff]
  %v39 = vld [vmem:[%s1 + $0xb0] sm:$0xff]
  %v40 = vld [vmem:[%s1 + $0xb8] sm:$0xff]
  %v41 = vld [vmem:[%s1 + $0xc0] sm:$0xff]
  %v42 = vld [vmem:[%s1 + $0xc8] sm:$0xff]
  %v43 = vld [vmem:[%s1 + $0xd0] sm:$0xff]
  %v44 = vld [vmem:[%s1 + $0xd8] sm:$0xff]
  %v45 = vld [vmem:[%s1 + $0xe0] sm:$0xff]
  %v46 = vld [vmem:[%s1 + $0xe8] sm:$0xff]
  %v47 = vld [vmem:[%s1 + $0xf0] sm:$0xff]
  %v48 = vld [vmem:[%s1 + $0xf8] sm:$0xff]
  %v49 = vld [vmem:[%s1 + $0x100] sm:$0xff]
  %v50 = vld [vmem:[%s1 + $0x108] sm:$0xff]
  %v51 = vld [vmem:[%s1 + $0x110] sm:$0xff]
  %v52 = vld [vmem:[%s1 + $0x118] sm:$0xff]
  %v53 = vld [vmem:[%s1 + $0x120] sm:$0xff]
  %v54 = vld [vmem:[%s1 + $0x128] sm:$0xff]
  %v55 = vld [vmem:[%s1 + $0x130] sm:$0xff]
  %v56 = vld [vmem:[%s1 + $0x138] sm:$0xff]
  %v57 = vld [vmem:[%s1 + $0x140] sm:$0xff]
  %v58 = vld [vmem:[%s1 + $0x148] sm:$0xff]
  %v59 = vld [vmem:[%s1 + $0x150] sm:$0xff]
  %v60 = vld [vmem:[%s1 + $0x158] sm:$0xff]
  %v61 = vld [vmem:[%s1 + $0x160] sm:$0xff]
  %v62 = vld [vmem:[%s1 + $0x168] sm:$0xff]
  %v63 = vld [vmem:[%s1 + $0x170] sm:$0xff]
  %v64 = vld [vmem:[%s1 + $0x178] sm:$0xff]
  %v65 = vld [vmem:[%s1 + $0x180] sm:$0xff]
  %v66 = vld [vmem:[%s1 + $0x188] sm:$0xff]
  %v67 = vld [vmem:[%s1 + $0x190] sm:$0xff]
  %v68 = vld [vmem:[%s1 + $0x198] sm:$0xff]
  %v69 = vld [vmem:[%s1 + $0x1a0] sm:$0xff]
  %v70 = vld [vmem:[%s1 + $0x1a8] sm:$0xff]
  %v71 = vld [vmem:[%s1 + $0x1b0] sm:$0xff]
  %v72 = vld [vmem:[%s1 + $0x1b8] sm:$0xff]
  %v73 = vld [vmem:[%s1 + $0x1c0] sm:$0xff]
  %v74 = vld [vmem:[%s1 + $0x1c8] sm:$0xff]
  %v75 = vld [vmem:[%s1 + $0x1d0] sm:$0xff]
  %v76 = vld [vmem:[%s1 + $0x1d8] sm:$0xff]
  %v77 = vld [vmem:[%s1 + $0x1e0] sm:$0xff]
  %v78 = vld [vmem:[%s1 + $0x1e8] sm:$0xff]
  %v79 = vld [vmem:[%s1 + $0x1f0] sm:$0xff]
  %v80 = vld [vmem:[%s1 + $0x1f8] sm:$0xff]
  %v81 = vld [vmem:[%s1 + $0x200] sm:$0xff]
  %v82 = vld [vmem:[%s1 + $0x208] sm:$0xff]
  %v83 = vld [vmem:[%s1 + $0x210] sm:$0xff]
  %v84 = vld [vmem:[%s1 + $0x218] sm:$0xff]
  %v85 = vld [vmem:[%s1 + $0x220] sm:$0xff]
  %v86 = vld [vmem:[%s1 + $0x228] sm:$0xff]
  %v87 = vld [vmem:[%s1 + $0x230] sm:$0xff]
  %v88 = vld [vmem:[%s1 + $0x238] sm:$0xff]
  %v89 = vld [vmem:[%s1 + $0x240] sm:$0xff]
  %v90 = vld [vmem:[%s1 + $0x248] sm:$0xff]
  %v91 = vld [vmem:[%s1 + $0x250] sm:$0xff]
  %v92 = vld [vmem:[%s1 + $0x258] sm:$0xff]
  %v93 = vld [vmem:[%s1 + $0x260] sm:$0xff]
  %v94 = vld [vmem:[%s1 + $0x268] sm:$0xff]
  %v95 = vld [vmem:[%s1 + $0x270] sm:$0xff]
  %v96 = vld [vmem:[%s1 + $0x278] sm:$0xff]
  %v97 = vld [vmem:[%s1 + $0x280] sm:$0xff]
  %v98 = vld [vmem:[%s1 + $0x288] sm:$0xff]
  %v99 = vld [vmem:[%s1 + $0x290] sm:$0xff]
  %v100 = vld [vmem:[%s1 + $0x298] sm:$0xff]
  %v101 = vld [vmem:[%s1 + $0x2a0] sm:$0xff]
  %v102 = vld [vmem:[%s1 + $0x2a8] sm:$0xff]
  %v103 = vld [vmem:[%s1 + $0x2b0] sm:$0xff]
  %v104 = vld [vmem:[%s1 + $0x2b8] sm:$0xff]
  %v105 = vld [vmem:[%s1 + $0x2c0] sm:$0xff]
  %v106 = vld [vmem:[%s1 + $0x2c8] sm:$0xff]
  %v107 = vld [vmem:[%s1 + $0x2d0] sm:$0xff]
  %v108 = vld [vmem:[%s1 + $0x2d8] sm:$0xff]
  %v109 = vld [vmem:[%s1 + $0x2e0] sm:$0xff]
  %v110 = vld [vmem:[%s1 + $0x2e8] sm:$0xff]
  %v111 = vld [vmem:[%s1 + $0x2f0] sm:$0xff]
  %v112 = vld [vmem:[%s1 + $0x2f8] sm:$0xff]
  %v113 = vld [vmem:[%s1 + $0x300] sm:$0xff]
  %v114 = vld [vmem:[%s1 + $0x308] sm:$0xff]
  %v115 = vld [vmem:[%s1 + $0x310] sm:$0xff]
  %v116 = vld [vmem:[%s1 + $0x318] sm:$0xff]
  %v117 = vld [vmem:[%s1 + $0x320] sm:$0xff]
  %v118 = vld [vmem:[%s1 + $0x328] sm:$0xff]
  %v119 = vld [vmem:[%s1 + $0x330] sm:$0xff]
  %v120 = vld [vmem:[%s1 + $0x338] sm:$0xff]
  %v121 = vld [vmem:[%s1 + $0x340] sm:$0xff]
  %v122 = vld [vmem:[%s1 + $0x348] sm:$0xff]
  %v123 = vld [vmem:[%s1 + $0x350] sm:$0xff]
  %v124 = vld [vmem:[%s1 + $0x358] sm:$0xff]
  %v125 = vld [vmem:[%s1 + $0x360] sm:$0xff]
  %v126 = vld [vmem:[%s1 + $0x368] sm:$0xff]
  %v127 = vld [vmem:[%s1 + $0x370] sm:$0xff]
  %v128 = vld [vmem:[%s1 + $0x378] sm:$0xff]
  %v129 = vld [vmem:[%s1 + $0x380] sm:$0xff]
  %v130 = vld [vmem:[%s1 + $0x388] sm:$0xff]
  %v131 = vld [vmem:[%s1 + $0x390] sm:$0xff]
  %v132 = vld [vmem:[%s1 + $0x398] sm:$0xff]
  %v133 = vld [vmem:[%s1 + $0x3a0] sm:$0xff]
  %v134 = vld [vmem:[%s1 + $0x3a8] sm:$0xff]
  %v135 = vld [vmem:[%s1 + $0x3b0] sm:$0xff]
  %v136 = vld [vmem:[%s1 + $0x3b8] sm:$0xff]
  %v137 = vld [vmem:[%s1 + $0x3c0] sm:$0xff]
  %v138 = vld [vmem:[%s1 + $0x3c8] sm:$0xff]
  %v139 = vld [vmem:[%s1 + $0x3d0] sm:$0xff]
  %v140 = vld [vmem:[%s1 + $0x3d8] sm:$0xff]
  %v141 = vld [vmem:[%s1 + $0x3e0] sm:$0xff]
  %v142 = vld [vmem:[%s1 + $0x3e8] sm:$0xff]
  %v143 = vld [vmem:[%s1 + $0x3f0] sm:$0xff]
  %v144 = vld [vmem:[%s1 + $0x3f8] sm:$0xff]
  %v145 = vld [vmem:[%s1 + $0x400] sm:$0xff]
  %v146 = vld [vmem:[%s1 + $0x408] sm:$0xff]
  %v147 = vld [vmem:[%s1 + $0x410] sm:$0xff]
  %v148 = vld [vmem:[%s1 + $0x418] sm:$0xff]
  %v149 = vld [vmem:[%s1 + $0x420] sm:$0xff]
  %v150 = vld [vmem:[%s1 + $0x428] sm:$0xff]
  %v151 = vld [vmem:[%s1 + $0x430] sm:$0xff]
  %v152 = vld [vmem:[%s1 + $0x438] sm:$0xff]
  %v153 = vld [vmem:[%s1 + $0x440] sm:$0xff]
  %v154 = vld [vmem:[%s1 + $0x448] sm:$0xff]
  %v155 = vld [vmem:[%s1 + $0x450] sm:$0xff]
  %v156 = vld [vmem:[%s1 + $0x458] sm:$0xff]
  %v157 = vld [vmem:[%s1 + $0x460] sm:$0xff]
  %v158 = vld [vmem:[%s1 + $0x468] sm:$0xff]
  %v159 = vld [vmem:[%s1 + $0x470] sm:$0xff]
  %v160 = vld [vmem:[%s1 + $0x478] sm:$0xff]
  %v161 = vld [vmem:[%s1 + $0x480] sm:$0xff]
  %v162 = vld [vmem:[%s1 + $0x488] sm:$0xff]
  %v163 = vld [vmem:[%s1 + $0x490] sm:$0xff]
  %v164 = vld [vmem:[%s1 + $0x498] sm:$0xff]
  %v165 = vld [vmem:[%s1 + $0x4a0] sm:$0xff]
  %v166 = vld [vmem:[%s1 + $0x4a8] sm:$0xff]
  %v167 = vld [vmem:[%s1 + $0x4b0] sm:$0xff]
  %v168 = vld [vmem:[%s1 + $0x4b8] sm:$0xff]
  %v169 = vld [vmem:[%s1 + $0x4c0] sm:$0xff]
  %v170 = vld [vmem:[%s1 + $0x4c8] sm:$0xff]
  %v171 = vld [vmem:[%s1 + $0x4d0] sm:$0xff]
  %v172 = vld [vmem:[%s1 + $0x4d8] sm:$0xff]
  %v173 = vld [vmem:[%s1 + $0x4e0] sm:$0xff]
  %v174 = vld [vmem:[%s1 + $0x4e8] sm:$0xff]
  %v175 = vld [vmem:[%s1 + $0x4f0] sm:$0xff]
  %v176 = vld [vmem:[%s1 + $0x4f8] sm:$0xff]
  %v177 = vld [vmem:[%s1 + $0x500] sm:$0xff]
  %v178 = vld [vmem:[%s1 + $0x508] sm:$0xff]
  %v179 = vld [vmem:[%s1 + $0x510] sm:$0xff]
  %v180 = vld [vmem:[%s1 + $0x518] sm:$0xff]
  %v181 = vld [vmem:[%s1 + $0x520] sm:$0xff]
  %v182 = vld [vmem:[%s1 + $0x528] sm:$0xff]
  %v183 = vld [vmem:[%s1 + $0x530] sm:$0xff]
  %v184 = vld [vmem:[%s1 + $0x538] sm:$0xff]
  %v185 = vld [vmem:[%s1 + $0x540] sm:$0xff]
  %v186 = vld [vmem:[%s1 + $0x548] sm:$0xff]
  %v187 = vld [vmem:[%s1 + $0x550] sm:$0xff]
  %v188 = vld [vmem:[%s1 + $0x558] sm:$0xff]
  %v189 = vld [vmem:[%s1 + $0x560] sm:$0xff]
  %v190 = vld [vmem:[%s1 + $0x568] sm:$0xff]
  %v191 = vld [vmem:[%s1 + $0x570] sm:$0xff]
  %v192 = vld [vmem:[%s1 + $0x578] sm:$0xff]
  %v193 = vld [vmem:[%s1 + $0x580] sm:$0xff]
  %v194 = vld [vmem:[%s1 + $0x588] sm:$0xff]
  %v195 = vld [vmem:[%s1 + $0x590] sm:$0xff]
  %v196 = vld [vmem:[%s1 + $0x598] sm:$0xff]
  %v197 = vld [vmem:[%s1 + $0x5a0] sm:$0xff]
  %v198 = vld [vmem:[%s1 + $0x5a8] sm:$0xff]
  %v199 = vld [vmem:[%s1 + $0x5b0] sm:$0xff]
  %v200 = vld [vmem:[%s1 + $0x5b8] sm:$0xff]
  %v201 = vld [vmem:[%s1 + $0x5c0] sm:$0xff]
  %v202 = vld [vmem:[%s1 + $0x5c8] sm:$0xff]
  %v203 = vld [vmem:[%s1 + $0x5d0] sm:$0xff]
  %v204 = vld [vmem:[%s1 + $0x5d8] sm:$0xff]
  %v205 = vld [vmem:[%s1 + $0x5e0] sm:$0xff]
  %v206 = vld [vmem:[%s1 + $0x5e8] sm:$0xff]
  %v207 = vld [vmem:[%s1 + $0x5f0] sm:$0xff]
  %v208 = vld [vmem:[%s1 + $0x5f8] sm:$0xff]
  %v209 = vld [vmem:[%s1 + $0x600] sm:$0xff]
  %v210 = vld [vmem:[%s1 + $0x608] sm:$0xff]
  %v211 = vld [vmem:[%s1 + $0x610] sm:$0xff]
  %v212 = vld [vmem:[%s1 + $0x618] sm:$0xff]
  %v213 = vld [vmem:[%s1 + $0x620] sm:$0xff]
  %v214 = vld [vmem:[%s1 + $0x628] sm:$0xff]
  %v215 = vld [vmem:[%s1 + $0x630] sm:$0xff]
  %v216 = vld [vmem:[%s1 + $0x638] sm:$0xff]
  %v217 = vld [vmem:[%s1 + $0x640] sm:$0xff]
  %v218 = vld [vmem:[%s1 + $0x648] sm:$0xff]
  %v219 = vld [vmem:[%s1 + $0x650] sm:$0xff]
  %v220 = vld [vmem:[%s1 + $0x658] sm:$0xff]
  %v221 = vld [vmem:[%s1 + $0x660] sm:$0xff]
  %v222 = vld [vmem:[%s1 + $0x668] sm:$0xff]
  %v223 = vld [vmem:[%s1 + $0x670] sm:$0xff]
  %v224 = vld [vmem:[%s1 + $0x678] sm:$0xff]
  %v225 = vld [vmem:[%s1 + $0x680] sm:$0xff]
  %v226 = vld [vmem:[%s1 + $0x688] sm:$0xff]
  %v227 = vld [vmem:[%s1 + $0x690] sm:$0xff]
  %v228 = vld [vmem:[%s1 + $0x698] sm:$0xff]
  %v229 = vld [vmem:[%s1 + $0x6a0] sm:$0xff]
  %v230 = vld [vmem:[%s1 + $0x6a8] sm:$0xff]
  %v231 = vld [vmem:[%s1 + $0x6b0] sm:$0xff]
  %v232 = vld [vmem:[%s1 + $0x6b8] sm:$0xff]
  %v233 = vld [vmem:[%s1 + $0x6c0] sm:$0xff]
  %v234 = vld [vmem:[%s1 + $0x6c8] sm:$0xff]
  %v235 = vld [vmem:[%s1 + $0x6d0] sm:$0xff]
  %v236 = vld [vmem:[%s1 + $0x6d8] sm:$0xff]
  %v237 = vld [vmem:[%s1 + $0x6e0] sm:$0xff]
  %v238 = vld [vmem:[%s1 + $0x6e8] sm:$0xff]
  %v239 = vld [vmem:[%s1 + $0x6f0] sm:$0xff]
  %v240 = vld [vmem:[%s1 + $0x6f8] sm:$0xff]
  %v241 = vld [vmem:[%s1 + $0x700] sm:$0xff]
  %v242 = vld [vmem:[%s1 + $0x708] sm:$0xff]
  %v243 = vld [vmem:[%s1 + $0x710] sm:$0xff]
  %v244 = vld [vmem:[%s1 + $0x718] sm:$0xff]
  %v245 = vld [vmem:[%s1 + $0x720] sm:$0xff]
  %v246 = vld [vmem:[%s1 + $0x728] sm:$0xff]
  %v247 = vld [vmem:[%s1 + $0x730] sm:$0xff]
  %v248 = vld [vmem:[%s1 + $0x738] sm:$0xff]
  %v249 = vld [vmem:[%s1 + $0x740] sm:$0xff]
  %v250 = vld [vmem:[%s1 + $0x748] sm:$0xff]
  %v251 = vld [vmem:[%s1 + $0x750] sm:$0xff]
  %v252 = vld [vmem:[%s1 + $0x758] sm:$0xff]
  %v253 = vld [vmem:[%s1 + $0x760] sm:$0xff]
  %v254 = vld [vmem:[%s1 + $0x768] sm:$0xff]
  %v255 = vld [vmem:[%s1 + $0x770] sm:$0xff]
  %v256 = vld [vmem:[%s1 + $0x778] sm:$0xff]
  %v257 = vld [vmem:[%s1 + $0x780] sm:$0xff]
  %v258 = vld [vmem:[%s1 + $0x788] sm:$0xff]
  %v259 = vld [vmem:[%s1 + $0x790] sm:$0xff]
  %v260 = vld [vmem:[%s1 + $0x798] sm:$0xff]
  %v261 = vld [vmem:[%s1 + $0x7a0] sm:$0xff]
  %v262 = vld [vmem:[%s1 + $0x7a8] sm:$0xff]
  %v263 = vld [vmem:[%s1 + $0x7b0] sm:$0xff]
  %v264 = vld [vmem:[%s1 + $0x7b8] sm:$0xff]
  %v265 = vld [vmem:[%s1 + $0x7c0] sm:$0xff]
  %v266 = vld [vmem:[%s1 + $0x7c8] sm:$0xff]
  %v267 = vld [vmem:[%s1 + $0x7d0] sm:$0xff]
  %v268 = vld [vmem:[%s1 + $0x7d8] sm:$0xff]
  %v269 = vld [vmem:[%s1 + $0x7e0] sm:$0xff]
  %v270 = vld [vmem:[%s1 + $0x7e8] sm:$0xff]
  %v271 = vld [vmem:[%s1 + $0x7f0] sm:$0xff]
  %v272 = vld [vmem:[%s1 + $0x7f8] sm:$0xff]
  %v273 = vld [vmem:[%s1 + $0x800] sm:$0xff]
  %v274 = vld [vmem:[%s1 + $0x808] sm:$0xff]
  %v275 = vld [vmem:[%s1 + $0x810] sm:$0xff]
  %v276 = vld [vmem:[%s1 + $0x818] sm:$0xff]
  %v277 = vld [vmem:[%s1 + $0x820] sm:$0xff]
  %v278 = vld [vmem:[%s1 + $0x828] sm:$0xff]
  %v279 = vld [vmem:[%s1 + $0x830] sm:$0xff]
  %v280 = vld [vmem:[%s1 + $0x838] sm:$0xff]
  %v281 = vld [vmem:[%s1 + $0x840] sm:$0xff]
  %v282 = vld [vmem:[%s1 + $0x848] sm:$0xff]
  %v283 = vld [vmem:[%s1 + $0x850] sm:$0xff]
  %v284 = vld [vmem:[%s1 + $0x858] sm:$0xff]
  %v285 = vld [vmem:[%s1 + $0x860] sm:$0xff]
  %v286 = vld [vmem:[%s1 + $0x868] sm:$0xff]
  %v287 = vld [vmem:[%s1 + $0x870] sm:$0xff]
  %v288 = vld [vmem:[%s1 + $0x878] sm:$0xff]
  %v289 = vld [vmem:[%s1 + $0x880] sm:$0xff]
  %v290 = vld [vmem:[%s1 + $0x888] sm:$0xff]
  %v291 = vld [vmem:[%s1 + $0x890] sm:$0xff]
  %v292 = vld [vmem:[%s1 + $0x898] sm:$0xff]
  %v293 = vld [vmem:[%s1 + $0x8a0] sm:$0xff]
  %v294 = vld [vmem:[%s1 + $0x8a8] sm:$0xff]
  %v295 = vld [vmem:[%s1 + $0x8b0] sm:$0xff]
  %v296 = vld [vmem:[%s1 + $0x8b8] sm:$0xff]
  %v297 = vld [vmem:[%s1 + $0x8c0] sm:$0xff]
  %v298 = vld [vmem:[%s1 + $0x8c8] sm:$0xff]
  %v299 = vld [vmem:[%s1 + $0x8d0] sm:$0xff]
  %v300 = vld [vmem:[%s1 + $0x8d8] sm:$0xff]
  %v301 = vld [vmem:[%s1 + $0x8e0] sm:$0xff]
  %v302 = vld [vmem:[%s1 + $0x8e8] sm:$0xff]
  %v303 = vld [vmem:[%s1 + $0x8f0] sm:$0xff]
  %v304 = vld [vmem:[%s1 + $0x8f8] sm:$0xff]
  %v305 = vld [vmem:[%s1 + $0x900] sm:$0xff]
  %v306 = vld [vmem:[%s1 + $0x908] sm:$0xff]
  %v307 = vld [vmem:[%s1 + $0x910] sm:$0xff]
  %v308 = vld [vmem:[%s1 + $0x918] sm:$0xff]
  %v309 = vld [vmem:[%s1 + $0x920] sm:$0xff]
  %v310 = vld [vmem:[%s1 + $0x928] sm:$0xff]
  %v311 = vld [vmem:[%s1 + $0x930] sm:$0xff]
  %v312 = vld [vmem:[%s1 + $0x938] sm:$0xff]
  %v313 = vld [vmem:[%s1 + $0x940] sm:$0xff]
  %v314 = vld [vmem:[%s1 + $0x948] sm:$0xff]
  %v315 = vld [vmem:[%s1 + $0x950] sm:$0xff]
  %v316 = vld [vmem:[%s1 + $0x958] sm:$0xff]
  %v317 = vld [vmem:[%s1 + $0x960] sm:$0xff]
  %v318 = vld [vmem:[%s1 + $0x968] sm:$0xff]
  %v319 = vld [vmem:[%s1 + $0x970] sm:$0xff]
  %v320 = vld [vmem:[%s1 + $0x978] sm:$0xff]
  %v321 = vld [vmem:[%s1 + $0x980] sm:$0xff]
  %v322 = vld [vmem:[%s1 + $0x988] sm:$0xff]
  %v323 = vld [vmem:[%s1 + $0x990] sm:$0xff]
  %v324 = vld [vmem:[%s1 + $0x998] sm:$0xff]
  %v325 = vld [vmem:[%s1 + $0x9a0] sm:$0xff]
  %v326 = vld [vmem:[%s1 + $0x9a8] sm:$0xff]
  %v327 = vld [vmem:[%s1 + $0x9b0] sm:$0xff]
  %v328 = vld [vmem:[%s1 + $0x9b8] sm:$0xff]
  %v329 = vld [vmem:[%s1 + $0x9c0] sm:$0xff]
  %v330 = vld [vmem:[%s1 + $0x9c8] sm:$0xff]
  %v331 = vld [vmem:[%s1 + $0x9d0] sm:$0xff]
  %v332 = vld [vmem:[%s1 + $0x9d8] sm:$0xff]
  %v333 = vld [vmem:[%s1 + $0x9e0] sm:$0xff]
  %v334 = vld [vmem:[%s1 + $0x9e8] sm:$0xff]
  %v335 = vld [vmem:[%s1 + $0x9f0] sm:$0xff]
  %v336 = vld [vmem:[%s1 + $0x9f8] sm:$0xff]
  %v337 = vld [vmem:[%s1 + $0xa00] sm:$0xff]
  %v338 = vld [vmem:[%s1 + $0xa08] sm:$0xff]
  %v339 = vld [vmem:[%s1 + $0xa10] sm:$0xff]
  %v340 = vld [vmem:[%s1 + $0xa18] sm:$0xff]
  %v341 = vld [vmem:[%s1 + $0xa20] sm:$0xff]
  %v342 = vld [vmem:[%s1 + $0xa28] sm:$0xff]
  %v343 = vld [vmem:[%s1 + $0xa30] sm:$0xff]
  %v344 = vld [vmem:[%s1 + $0xa38] sm:$0xff]
  %v345 = vld [vmem:[%s1 + $0xa40] sm:$0xff]
  %v346 = vld [vmem:[%s1 + $0xa48] sm:$0xff]
  %v347 = vld [vmem:[%s1 + $0xa50] sm:$0xff]
  %v348 = vld [vmem:[%s1 + $0xa58] sm:$0xff]
  %v349 = vld [vmem:[%s1 + $0xa60] sm:$0xff]
  %v350 = vld [vmem:[%s1 + $0xa68] sm:$0xff]
  %v351 = vld [vmem:[%s1 + $0xa70] sm:$0xff]
  %v352 = vld [vmem:[%s1 + $0xa78] sm:$0xff]
  %v353 = vld [vmem:[%s1 + $0xa80] sm:$0xff]
  %v354 = vld [vmem:[%s1 + $0xa88] sm:$0xff]
  %v355 = vld [vmem:[%s1 + $0xa90] sm:$0xff]
  %v356 = vld [vmem:[%s1 + $0xa98] sm:$0xff]
  %v357 = vld [vmem:[%s1 + $0xaa0] sm:$0xff]
  %v358 = vld [vmem:[%s1 + $0xaa8] sm:$0xff]
  %v359 = vld [vmem:[%s1 + $0xab0] sm:$0xff]
  %v360 = vld [vmem:[%s1 + $0xab8] sm:$0xff]
  %v361 = vld [vmem:[%s1 + $0xac0] sm:$0xff]
  %v362 = vld [vmem:[%s1 + $0xac8] sm:$0xff]
  %v363 = vld [vmem:[%s1 + $0xad0] sm:$0xff]
  %v364 = vld [vmem:[%s1 + $0xad8] sm:$0xff]
  %v365 = vld [vmem:[%s1 + $0xae0] sm:$0xff]
  %v366 = vld [vmem:[%s1 + $0xae8] sm:$0xff]
  %v367 = vld [vmem:[%s1 + $0xaf0] sm:$0xff]
  %v368 = vld [vmem:[%s1 + $0xaf8] sm:$0xff]
  %v369 = vld [vmem:[%s1 + $0xb00] sm:$0xff]
  %v370 = vld [vmem:[%s1 + $0xb08] sm:$0xff]
  %v371 = vld [vmem:[%s1 + $0xb10] sm:$0xff]
  %v372 = vld [vmem:[%s1 + $0xb18] sm:$0xff]
  %v373 = vld [vmem:[%s1 + $0xb20] sm:$0xff]
  %v374 = vld [vmem:[%s1 + $0xb28] sm:$0xff]
  %v375 = vld [vmem:[%s1 + $0xb30] sm:$0xff]
  %v376 = vld [vmem:[%s1 + $0xb38] sm:$0xff]
  %v377 = vld [vmem:[%s1 + $0xb40] sm:$0xff]
  %v378 = vld [vmem:[%s1 + $0xb48] sm:$0xff]
  %v379 = vld [vmem:[%s1 + $0xb50] sm:$0xff]
  %v380 = vld [vmem:[%s1 + $0xb58] sm:$0xff]
  %v381 = vld [vmem:[%s1 + $0xb60] sm:$0xff]
  %v382 = vld [vmem:[%s1 + $0xb68] sm:$0xff]
  %v383 = vld [vmem:[%s1 + $0xb70] sm:$0xff]
  %v384 = vld [vmem:[%s1 + $0xb78] sm:$0xff]
  %v385 = vld [vmem:[%s1 + $0xb80] sm:$0xff]
  %v386 = vld [vmem:[%s1 + $0xb88] sm:$0xff]
  %v387 = vld [vmem:[%s1 + $0xb90] sm:$0xff]
  %v388 = vld [vmem:[%s1 + $0xb98] sm:$0xff]
  %v389 = vld [vmem:[%s1 + $0xba0] sm:$0xff]
  %v390 = vld [vmem:[%s1 + $0xba8] sm:$0xff]
  %v391 = vld [vmem:[%s1 + $0xbb0] sm:$0xff]
  %v392 = vld [vmem:[%s1 + $0xbb8] sm:$0xff]
  %v393 = vld [vmem:[%s1 + $0xbc0] sm:$0xff]
  %v394 = vld [vmem:[%s1 + $0xbc8] sm:$0xff]
  %v395 = vld [vmem:[%s1 + $0xbd0] sm:$0xff]
  %v396 = vld [vmem:[%s1 + $0xbd8] sm:$0xff]
  %v397 = vld [vmem:[%s1 + $0xbe0] sm:$0xff]
  %v398 = vld [vmem:[%s1 + $0xbe8] sm:$0xff]
  %v399 = vld [vmem:[%s1 + $0xbf0] sm:$0xff]
  %v400 = vld [vmem:[%s1 + $0xbf8] sm:$0xff]
  %v401 = vld [vmem:[%s1 + $0xc00] sm:$0xff]
  %v402 = vld [vmem:[%s1 + $0xc08] sm:$0xff]
  %v403 = vld [vmem:[%s1 + $0xc10] sm:$0xff]
  %v404 = vld [vmem:[%s1 + $0xc18] sm:$0xff]
  %v405 = vld [vmem:[%s1 + $0xc20] sm:$0xff]
  %v406 = vld [vmem:[%s1 + $0xc28] sm:$0xff]
  %v407 = vld [vmem:[%s1 + $0xc30] sm:$0xff]
  %v408 = vld [vmem:[%s1 + $0xc38] sm:$0xff]
  %v409 = vld [vmem:[%s1 + $0xc40] sm:$0xff]
  %v410 = vld [vmem:[%s1 + $0xc48] sm:$0xff]
  %v411 = vld [vmem:[%s1 + $0xc50] sm:$0xff]
  %v412 = vld [vmem:[%s1 + $0xc58] sm:$0xff]
  %v413 = vld [vmem:[%s1 + $0xc60] sm:$0xff]
  %v414 = vld [vmem:[%s1 + $0xc68] sm:$0xff]
  %v415 = vld [vmem:[%s1 + $0xc70] sm:$0xff]
  %v416 = vld [vmem:[%s1 + $0xc78] sm:$0xff]
  %v417 = vld [vmem:[%s1 + $0xc80] sm:$0xff]
  %v418 = vld [vmem:[%s1 + $0xc88] sm:$0xff]
  %v419 = vld [vmem:[%s1 + $0xc90] sm:$0xff]
  %v420 = vld [vmem:[%s1 + $0xc98] sm:$0xff]
  %v421 = vld [vmem:[%s1 + $0xca0] sm:$0xff]
  %v422 = vld [vmem:[%s1 + $0xca8] sm:$0xff]
  %v423 = vld [vmem:[%s1 + $0xcb0] sm:$0xff]
  %v424 = vld [vmem:[%s1 + $0xcb8] sm:$0xff]
  %v425 = vld [vmem:[%s1 + $0xcc0] sm:$0xff]
  %v426 = vld [vmem:[%s1 + $0xcc8] sm:$0xff]
  %v427 = vld [vmem:[%s1 + $0xcd0] sm:$0xff]
  %v428 = vld [vmem:[%s1 + $0xcd8] sm:$0xff]
  %v429 = vld [vmem:[%s1 + $0xce0] sm:$0xff]
  %v430 = vld [vmem:[%s1 + $0xce8] sm:$0xff]
  %v431 = vld [vmem:[%s1 + $0xcf0] sm:$0xff]
  %v432 = vld [vmem:[%s1 + $0xcf8] sm:$0xff]
  %v433 = vld [vmem:[%s1 + $0xd00] sm:$0xff]
  %v434 = vld [vmem:[%s1 + $0xd08] sm:$0xff]
  %v435 = vld [vmem:[%s1 + $0xd10] sm:$0xff]
  %v436 = vld [vmem:[%s1 + $0xd18] sm:$0xff]
  %v437 = vld [vmem:[%s1 + $0xd20] sm:$0xff]
  %v438 = vld [vmem:[%s1 + $0xd28] sm:$0xff]
  %v439 = vld [vmem:[%s1 + $0xd30] sm:$0xff]
  %v440 = vld [vmem:[%s1 + $0xd38] sm:$0xff]
  %v441 = vld [vmem:[%s1 + $0xd40] sm:$0xff]
  %v442 = vld [vmem:[%s1 + $0xd48] sm:$0xff]
  %v443 = vld [vmem:[%s1 + $0xd50] sm:$0xff]
  %v444 = vld [vmem:[%s1 + $0xd58] sm:$0xff]
  %v445 = vld [vmem:[%s1 + $0xd60] sm:$0xff]
  %v446 = vld [vmem:[%s1 + $0xd68] sm:$0xff]
  %v447 = vld [vmem:[%s1 + $0xd70] sm:$0xff]
  %v448 = vld [vmem:[%s1 + $0xd78] sm:$0xff]
  %v449 = vld [vmem:[%s1 + $0xd80] sm:$0xff]
  %v450 = vld [vmem:[%s1 + $0xd88] sm:$0xff]
  %v451 = vld [vmem:[%s1 + $0xd90] sm:$0xff]
  %v452 = vld [vmem:[%s1 + $0xd98] sm:$0xff]
  %v453 = vld [vmem:[%s1 + $0xda0] sm:$0xff]
  %v454 = vld [vmem:[%s1 + $0xda8] sm:$0xff]
  %v455 = vld [vmem:[%s1 + $0xdb0] sm:$0xff]
  %v456 = vld [vmem:[%s1 + $0xdb8] sm:$0xff]
  %v457 = vld [vmem:[%s1 + $0xdc0] sm:$0xff]
  %v458 = vld [vmem:[%s1 + $0xdc8] sm:$0xff]
  %v459 = vld [vmem:[%s1 + $0xdd0] sm:$0xff]
  %v460 = vld [vmem:[%s1 + $0xdd8] sm:$0xff]
  %v461 = vld [vmem:[%s1 + $0xde0] sm:$0xff]
  %v462 = vld [vmem:[%s1 + $0xde8] sm:$0xff]
  %v463 = vld [vmem:[%s1 + $0xdf0] sm:$0xff]
  %v464 = vld [vmem:[%s1 + $0xdf8] sm:$0xff]
  %v465 = vld [vmem:[%s1 + $0xe00] sm:$0xff]
  %v466 = vld [vmem:[%s1 + $0xe08] sm:$0xff]
  %v467 = vld [vmem:[%s1 + $0xe10] sm:$0xff]
  %v468 = vld [vmem:[%s1 + $0xe18] sm:$0xff]
  %v469 = vld [vmem:[%s1 + $0xe20] sm:$0xff]
  %v470 = vld [vmem:[%s1 + $0xe28] sm:$0xff]
  %v471 = vld [vmem:[%s1 + $0xe30] sm:$0xff]
  %v472 = vld [vmem:[%s1 + $0xe38] sm:$0xff]
  %v473 = vld [vmem:[%s1 + $0xe40] sm:$0xff]
  %v474 = vld [vmem:[%s1 + $0xe48] sm:$0xff]
  %v475 = vld [vmem:[%s1 + $0xe50] sm:$0xff]
  %v476 = vld [vmem:[%s1 + $0xe58] sm:$0xff]
  %v477 = vld [vmem:[%s1 + $0xe60] sm:$0xff]
  %v478 = vld [vmem:[%s1 + $0xe68] sm:$0xff]
  %v479 = vld [vmem:[%s1 + $0xe70] sm:$0xff]
  %v480 = vld [vmem:[%s1 + $0xe78] sm:$0xff]
  %v481 = vld [vmem:[%s1 + $0xe80] sm:$0xff]
  %v482 = vld [vmem:[%s1 + $0xe88] sm:$0xff]
  %v483 = vld [vmem:[%s1 + $0xe90] sm:$0xff]
  %v484 = vld [vmem:[%s1 + $0xe98] sm:$0xff]
  %v485 = vld [vmem:[%s1 + $0xea0] sm:$0xff]
  %v486 = vld [vmem:[%s1 + $0xea8] sm:$0xff]
  %v487 = vld [vmem:[%s1 + $0xeb0] sm:$0xff]
  %v488 = vld [vmem:[%s1 + $0xeb8] sm:$0xff]
  %v489 = vld [vmem:[%s1 + $0xec0] sm:$0xff]
  %v490 = vld [vmem:[%s1 + $0xec8] sm:$0xff]
  %v491 = vld [vmem:[%s1 + $0xed0] sm:$0xff]
  %v492 = vld [vmem:[%s1 + $0xed8] sm:$0xff]
  %v493 = vld [vmem:[%s1 + $0xee0] sm:$0xff]
  %v494 = vld [vmem:[%s1 + $0xee8] sm:$0xff]
  %v495 = vld [vmem:[%s1 + $0xef0] sm:$0xff]
  %v496 = vld [vmem:[%s1 + $0xef8] sm:$0xff]
  %v497 = vld [vmem:[%s1 + $0xf00] sm:$0xff]
  %v498 = vld [vmem:[%s1 + $0xf08] sm:$0xff]
  %v499 = vld [vmem:[%s1 + $0xf10] sm:$0xff]
  %v500 = vld [vmem:[%s1 + $0xf18] sm:$0xff]
  %v501 = vld [vmem:[%s1 + $0xf20] sm:$0xff]
  %v502 = vld [vmem:[%s1 + $0xf28] sm:$0xff]
  %v503 = vld [vmem:[%s1 + $0xf30] sm:$0xff]
  %v504 = vld [vmem:[%s1 + $0xf38] sm:$0xff]
  %v505 = vld [vmem:[%s1 + $0xf40] sm:$0xff]
  %v506 = vld [vmem:[%s1 + $0xf48] sm:$0xff]
  %v507 = vld [vmem:[%s1 + $0xf50] sm:$0xff]
  %v508 = vld [vmem:[%s1 + $0xf58] sm:$0xff]
  %v509 = vld [vmem:[%s1 + $0xf60] sm:$0xff]
  %v510 = vld [vmem:[%s1 + $0xf68] sm:$0xff]
  %v511 = vld [vmem:[%s1 + $0xf70] sm:$0xff]
  %v512 = vld [vmem:[%s1 + $0xf78] sm:$0xff]
  %v513 = vld [vmem:[%s1 + $0xf80] sm:$0xff]
  %v514 = vld [vmem:[%s1 + $0xf88] sm:$0xff]
  %v515 = vld [vmem:[%s1 + $0xf90] sm:$0xff]
  %v516 = vld [vmem:[%s1 + $0xf98] sm:$0xff]
  %v517 = vld [vmem:[%s1 + $0xfa0] sm:$0xff]
  %v518 = vld [vmem:[%s1 + $0xfa8] sm:$0xff]
  %v519 = vld [vmem:[%s1 + $0xfb0] sm:$0xff]
  %v520 = vld [vmem:[%s1 + $0xfb8] sm:$0xff]
  %v521 = vld [vmem:[%s1 + $0xfc0] sm:$0xff]
  %v522 = vld [vmem:[%s1 + $0xfc8] sm:$0xff]
  %v523 = vld [vmem:[%s1 + $0xfd0] sm:$0xff]
  %v524 = vld [vmem:[%s1 + $0xfd8] sm:$0xff]
  %v525 = vld [vmem:[%s1 + $0xfe0] sm:$0xff]
  %v526 = vld [vmem:[%s1 + $0xfe8] sm:$0xff]
  %v527 = vld [vmem:[%s1 + $0xff0] sm:$0xff]
  %v528 = vld [vmem:[%s1 + $0xff8] sm:$0xff]
  %v529 = vld [vmem:[%s1 + $0x1000] sm:$0xff]
  %v530 = vld [vmem:[%s1 + $0x1008] sm:$0xff]
  %v531 = vld [vmem:[%s1 + $0x1010] sm:$0xff]
  %v532 = vld [vmem:[%s1 + $0x1018] sm:$0xff]
  %v533 = vld [vmem:[%s1 + $0x1020] sm:$0xff]
  %v534 = vld [vmem:[%s1 + $0x1028] sm:$0xff]
  %v535 = vld [vmem:[%s1 + $0x1030] sm:$0xff]
  %v536 = vld [vmem:[%s1 + $0x1038] sm:$0xff]
  %v537 = vld [vmem:[%s1 + $0x1040] sm:$0xff]
  %v538 = vld [vmem:[%s1 + $0x1048] sm:$0xff]
  %v539 = vld [vmem:[%s1 + $0x1050] sm:$0xff]
  %v540 = vld [vmem:[%s1 + $0x1058] sm:$0xff]
  %v541 = vld [vmem:[%s1 + $0x1060] sm:$0xff]
  %v542 = vld [vmem:[%s1 + $0x1068] sm:$0xff]
  %v543 = vld [vmem:[%s1 + $0x1070] sm:$0xff]
  %v544 = vld [vmem:[%s1 + $0x1078] sm:$0xff]
  %v545 = vld [vmem:[%s1 + $0x1080] sm:$0xff]
  %v546 = vld [vmem:[%s1 + $0x1088] sm:$0xff]
  %v547 = vld [vmem:[%s1 + $0x1090] sm:$0xff]
  %v548 = vld [vmem:[%s1 + $0x1098] sm:$0xff]
  %v549 = vld [vmem:[%s1 + $0x10a0] sm:$0xff]
  %v550 = vld [vmem:[%s1 + $0x10a8] sm:$0xff]
  %v551 = vld [vmem:[%s1 + $0x10b0] sm:$0xff]
  %v552 = vld [vmem:[%s1 + $0x10b8] sm:$0xff]
  %v553 = vld [vmem:[%s1 + $0x10c0] sm:$0xff]
  %v554 = vld [vmem:[%s1 + $0x10c8] sm:$0xff]
  %v555 = vld [vmem:[%s1 + $0x10d0] sm:$0xff]
  %v556 = vld [vmem:[%s1 + $0x10d8] sm:$0xff]
  %v557 = vld [vmem:[%s1 + $0x10e0] sm:$0xff]
  %v558 = vld [vmem:[%s1 + $0x10e8] sm:$0xff]
  %v559 = vld [vmem:[%s1 + $0x10f0] sm:$0xff]
  %v560 = vld [vmem:[%s1 + $0x10f8] sm:$0xff]
  %v561 = vld [vmem:[%s1 + $0x1100] sm:$0xff]
  %v562 = vld [vmem:[%s1 + $0x1108] sm:$0xff]
  %v563 = vld [vmem:[%s1 + $0x1110] sm:$0xff]
  %v564 = vld [vmem:[%s1 + $0x1118] sm:$0xff]
  %v565 = vld [vmem:[%s1 + $0x1120] sm:$0xff]
  %v566 = vld [vmem:[%s1 + $0x1128] sm:$0xff]
  %v567 = vld [vmem:[%s1 + $0x1130] sm:$0xff]
  %v568 = vld [vmem:[%s1 + $0x1138] sm:$0xff]
  %v569 = vld [vmem:[%s1 + $0x1140] sm:$0xff]
  %v570 = vld [vmem:[%s1 + $0x1148] sm:$0xff]
  %v571 = vld [vmem:[%s1 + $0x1150] sm:$0xff]
  %v572 = vld [vmem:[%s1 + $0x1158] sm:$0xff]
  %v573 = vld [vmem:[%s1 + $0x1160] sm:$0xff]
  %v574 = vld [vmem:[%s1 + $0x1168] sm:$0xff]
  %v575 = vld [vmem:[%s1 + $0x1170] sm:$0xff]
  %v576 = vld [vmem:[%s1 + $0x1178] sm:$0xff]
  %v577 = vld [vmem:[%s1 + $0x1180] sm:$0xff]
  %v578 = vld [vmem:[%s1 + $0x1188] sm:$0xff]
  %v579 = vld [vmem:[%s1 + $0x1190] sm:$0xff]
  %v580 = vld [vmem:[%s1 + $0x1198] sm:$0xff]
  %v581 = vld [vmem:[%s1 + $0x11a0] sm:$0xff]
  %v582 = vld [vmem:[%s1 + $0x11a8] sm:$0xff]
  %v583 = vld [vmem:[%s1 + $0x11b0] sm:$0xff]
  %v584 = vld [vmem:[%s1 + $0x11b8] sm:$0xff]
  %v585 = vld [vmem:[%s1 + $0x11c0] sm:$0xff]
  %v586 = vld [vmem:[%s1 + $0x11c8] sm:$0xff]
  %v587 = vld [vmem:[%s1 + $0x11d0] sm:$0xff]
  %v588 = vld [vmem:[%s1 + $0x11d8] sm:$0xff]
  %v589 = vld [vmem:[%s1 + $0x11e0] sm:$0xff]
  %v590 = vld [vmem:[%s1 + $0x11e8] sm:$0xff]
  %v591 = vld [vmem:[%s1 + $0x11f0] sm:$0xff]
  %v592 = vld [vmem:[%s1 + $0x11f8] sm:$0xff]
  %v593 = vld [vmem:[%s1 + $0x1200] sm:$0xff]
  %v594 = vld [vmem:[%s1 + $0x1208] sm:$0xff]
  %v595 = vld [vmem:[%s1 + $0x1210] sm:$0xff]
  %v596 = vld [vmem:[%s1 + $0x1218] sm:$0xff]
  %v597 = vld [vmem:[%s1 + $0x1220] sm:$0xff]
  %v598 = vld [vmem:[%s1 + $0x1228] sm:$0xff]
  %v599 = vld [vmem:[%s1 + $0x1230] sm:$0xff]
  %v600 = vld [vmem:[%s1 + $0x1238] sm:$0xff]
  %v601 = vld [vmem:[%s1 + $0x1240] sm:$0xff]
  %v602 = vld [vmem:[%s1 + $0x1248] sm:$0xff]
  %v603 = vld [vmem:[%s1 + $0x1250] sm:$0xff]
  %v604 = vld [vmem:[%s1 + $0x1258] sm:$0xff]
  %v605 = vld [vmem:[%s1 + $0x1260] sm:$0xff]
  %v606 = vld [vmem:[%s1 + $0x1268] sm:$0xff]
  %v607 = vld [vmem:[%s1 + $0x1270] sm:$0xff]
  %v608 = vld [vmem:[%s1 + $0x1278] sm:$0xff]
  %v609 = vld [vmem:[%s1 + $0x1280] sm:$0xff]
  %v610 = vld [vmem:[%s1 + $0x1288] sm:$0xff]
  %v611 = vld [vmem:[%s1 + $0x1290] sm:$0xff]
  %v612 = vld [vmem:[%s1 + $0x1298] sm:$0xff]
  %v613 = vld [vmem:[%s1 + $0x12a0] sm:$0xff]
  %v614 = vld [vmem:[%s1 + $0x12a8] sm:$0xff]
  %v615 = vld [vmem:[%s1 + $0x12b0] sm:$0xff]
  %v616 = vld [vmem:[%s1 + $0x12b8] sm:$0xff]
  %v617 = vld [vmem:[%s1 + $0x12c0] sm:$0xff]
  %v618 = vld [vmem:[%s1 + $0x12c8] sm:$0xff]
  %v619 = vld [vmem:[%s1 + $0x12d0] sm:$0xff]
  %v620 = vld [vmem:[%s1 + $0x12d8] sm:$0xff]
  %v621 = vld [vmem:[%s1 + $0x12e0] sm:$0xff]
  %v622 = vld [vmem:[%s1 + $0x12e8] sm:$0xff]
  %v623 = vld [vmem:[%s1 + $0x12f0] sm:$0xff]
  %v624 = vld [vmem:[%s1 + $0x12f8] sm:$0xff]
  %v625 = vld [vmem:[%s1 + $0x1300] sm:$0xff]
  %v626 = vld [vmem:[%s1 + $0x1308] sm:$0xff]
  %v627 = vld [vmem:[%s1 + $0x1310] sm:$0xff]
  %v628 = vld [vmem:[%s1 + $0x1318] sm:$0xff]
  %v629 = vld [vmem:[%s1 + $0x1320] sm:$0xff]
  %v630 = vld [vmem:[%s1 + $0x1328] sm:$0xff]
  %v631 = vld [vmem:[%s1 + $0x1330] sm:$0xff]
  %v632 = vld [vmem:[%s1 + $0x1338] sm:$0xff]
  %v633 = vld [vmem:[%s1 + $0x1340] sm:$0xff]
  %v634 = vld [vmem:[%s1 + $0x1348] sm:$0xff]
  %v635 = vld [vmem:[%s1 + $0x1350] sm:$0xff]
  %v636 = vld [vmem:[%s1 + $0x1358] sm:$0xff]
  %v637 = vld [vmem:[%s1 + $0x1360] sm:$0xff]
  %v638 = vld [vmem:[%s1 + $0x1368] sm:$0xff]
  %v639 = vld [vmem:[%s1 + $0x1370] sm:$0xff]
  %v640 = vld [vmem:[%s1 + $0x1378] sm:$0xff]
  %v641 = vld [vmem:[%s1 + $0x1380] sm:$0xff]
  %v642 = vld [vmem:[%s1 + $0x1388] sm:$0xff]
  %v643 = vld [vmem:[%s1 + $0x1390] sm:$0xff]
  %v644 = vld [vmem:[%s1 + $0x1398] sm:$0xff]
  %v645 = vld [vmem:[%s1 + $0x13a0] sm:$0xff]
  %v646 = vld [vmem:[%s1 + $0x13a8] sm:$0xff]
  %v647 = vld [vmem:[%s1 + $0x13b0] sm:$0xff]
  %v648 = vld [vmem:[%s1 + $0x13b8] sm:$0xff]
  %v649 = vld [vmem:[%s1 + $0x13c0] sm:$0xff]
  %v650 = vld [vmem:[%s1 + $0x13c8] sm:$0xff]
  %v651 = vld [vmem:[%s1 + $0x13d0] sm:$0xff]
  %v652 = vld [vmem:[%s1 + $0x13d8] sm:$0xff]
  %v653 = vld [vmem:[%s1 + $0x13e0] sm:$0xff]
  %v654 = vld [vmem:[%s1 + $0x13e8] sm:$0xff]
  %v655 = vld [vmem:[%s1 + $0x13f0] sm:$0xff]
  %v656 = vld [vmem:[%s1 + $0x13f8] sm:$0xff]
  %v657 = vld [vmem:[%s1 + $0x1400] sm:$0xff]
  %v658 = vld [vmem:[%s1 + $0x1408] sm:$0xff]
  %v659 = vld [vmem:[%s1 + $0x1410] sm:$0xff]
  %v660 = vld [vmem:[%s1 + $0x1418] sm:$0xff]
  %v661 = vld [vmem:[%s1 + $0x1420] sm:$0xff]
  %v662 = vld [vmem:[%s1 + $0x1428] sm:$0xff]
  %v663 = vld [vmem:[%s1 + $0x1430] sm:$0xff]
  %v664 = vld [vmem:[%s1 + $0x1438] sm:$0xff]
  %v665 = vld [vmem:[%s1 + $0x1440] sm:$0xff]
  %v666 = vld [vmem:[%s1 + $0x1448] sm:$0xff]
  %v667 = vld [vmem:[%s1 + $0x1450] sm:$0xff]
  %v668 = vld [vmem:[%s1 + $0x1458] sm:$0xff]
  %v669 = vld [vmem:[%s1 + $0x1460] sm:$0xff]
  %v670 = vld [vmem:[%s1 + $0x1468] sm:$0xff]
  %v671 = vld [vmem:[%s1 + $0x1470] sm:$0xff]
  %v672 = vld [vmem:[%s1 + $0x1478] sm:$0xff]
  %v673 = vld [vmem:[%s1 + $0x1480] sm:$0xff]
  %v674 = vld [vmem:[%s1 + $0x1488] sm:$0xff]
  %v675 = vld [vmem:[%s1 + $0x1490] sm:$0xff]
  %v676 = vld [vmem:[%s1 + $0x1498] sm:$0xff]
  %v677 = vld [vmem:[%s1 + $0x14a0] sm:$0xff]
  %v678 = vld [vmem:[%s1 + $0x14a8] sm:$0xff]
  %v679 = vld [vmem:[%s1 + $0x14b0] sm:$0xff]
  %v680 = vld [vmem:[%s1 + $0x14b8] sm:$0xff]
  %v681 = vld [vmem:[%s1 + $0x14c0] sm:$0xff]
  %v682 = vld [vmem:[%s1 + $0x14c8] sm:$0xff]
  %v683 = vld [vmem:[%s1 + $0x14d0] sm:$0xff]
  %v684 = vld [vmem:[%s1 + $0x14d8] sm:$0xff]
  %v685 = vld [vmem:[%s1 + $0x14e0] sm:$0xff]
  %v686 = vld [vmem:[%s1 + $0x14e8] sm:$0xff]
  %v687 = vld [vmem:[%s1 + $0x14f0] sm:$0xff]
  %v688 = vld [vmem:[%s1 + $0x14f8] sm:$0xff]
  %v689 = vld [vmem:[%s1 + $0x1500] sm:$0xff]
  %v690 = vld [vmem:[%s1 + $0x1508] sm:$0xff]
  %v691 = vld [vmem:[%s1 + $0x1510] sm:$0xff]
  %v692 = vld [vmem:[%s1 + $0x1518] sm:$0xff]
  %v693 = vld [vmem:[%s1 + $0x1520] sm:$0xff]
  %v694 = vld [vmem:[%s1 + $0x1528] sm:$0xff]
  %v695 = vld [vmem:[%s1 + $0x1530] sm:$0xff]
  %v696 = vld [vmem:[%s1 + $0x1538] sm:$0xff]
  %v697 = vld [vmem:[%s1 + $0x1540] sm:$0xff]
  %v698 = vld [vmem:[%s1 + $0x1548] sm:$0xff]
  %v699 = vld [vmem:[%s1 + $0x1550] sm:$0xff]
  %v700 = vld [vmem:[%s1 + $0x1558] sm:$0xff]
  %v701 = vld [vmem:[%s1 + $0x1560] sm:$0xff]
  %v702 = vld [vmem:[%s1 + $0x1568] sm:$0xff]
  %v703 = vld [vmem:[%s1 + $0x1570] sm:$0xff]
  %v704 = vld [vmem:[%s1 + $0x1578] sm:$0xff]
  %v705 = vld [vmem:[%s1 + $0x1580] sm:$0xff]
  %v706 = vld [vmem:[%s1 + $0x1588] sm:$0xff]
  %v707 = vld [vmem:[%s1 + $0x1590] sm:$0xff]
  %v708 = vld [vmem:[%s1 + $0x1598] sm:$0xff]
  %v709 = vld [vmem:[%s1 + $0x15a0] sm:$0xff]
  %v710 = vld [vmem:[%s1 + $0x15a8] sm:$0xff]
  %v711 = vld [vmem:[%s1 + $0x15b0] sm:$0xff]
  %v712 = vld [vmem:[%s1 + $0x15b8] sm:$0xff]
  %v713 = vld [vmem:[%s1 + $0x15c0] sm:$0xff]
  %v714 = vld [vmem:[%s1 + $0x15c8] sm:$0xff]
  %v715 = vld [vmem:[%s1 + $0x15d0] sm:$0xff]
  %v716 = vld [vmem:[%s1 + $0x15d8] sm:$0xff]
  %v717 = vld [vmem:[%s1 + $0x15e0] sm:$0xff]
  %v718 = vld [vmem:[%s1 + $0x15e8] sm:$0xff]
  %v719 = vld [vmem:[%s1 + $0x15f0] sm:$0xff]
  %v720 = vld [vmem:[%s1 + $0x15f8] sm:$0xff]
  %v721 = vld [vmem:[%s1 + $0x1600] sm:$0xff]
  %v722 = vld [vmem:[%s1 + $0x1608] sm:$0xff]
  %v723 = vld [vmem:[%s1 + $0x1610] sm:$0xff]
  %v724 = vld [vmem:[%s1 + $0x1618] sm:$0xff]
  %v725 = vld [vmem:[%s1 + $0x1620] sm:$0xff]
  %v726 = vld [vmem:[%s1 + $0x1628] sm:$0xff]
  %v727 = vld [vmem:[%s1 + $0x1630] sm:$0xff]
  %v728 = vld [vmem:[%s1 + $0x1638] sm:$0xff]
  %v729 = vld [vmem:[%s1 + $0x1640] sm:$0xff]
  %v730 = vld [vmem:[%s1 + $0x1648] sm:$0xff]
  %v731 = vld [vmem:[%s1 + $0x1650] sm:$0xff]
  %v732 = vld [vmem:[%s1 + $0x1658] sm:$0xff]
  %v733 = vld [vmem:[%s1 + $0x1660] sm:$0xff]
  %v734 = vld [vmem:[%s1 + $0x1668] sm:$0xff]
  %v735 = vld [vmem:[%s1 + $0x1670] sm:$0xff]
  %v736 = vld [vmem:[%s1 + $0x1678] sm:$0xff]
  %v737 = vld [vmem:[%s1 + $0x1680] sm:$0xff]
  %v738 = vld [vmem:[%s1 + $0x1688] sm:$0xff]
  %v739 = vld [vmem:[%s1 + $0x1690] sm:$0xff]
  %v740 = vld [vmem:[%s1 + $0x1698] sm:$0xff]
  %v741 = vld [vmem:[%s1 + $0x16a0] sm:$0xff]
  %v742 = vld [vmem:[%s1 + $0x16a8] sm:$0xff]
  %v743 = vld [vmem:[%s1 + $0x16b0] sm:$0xff]
  %v744 = vld [vmem:[%s1 + $0x16b8] sm:$0xff]
  %v745 = vld [vmem:[%s1 + $0x16c0] sm:$0xff]
  %v746 = vld [vmem:[%s1 + $0x16c8] sm:$0xff]
  %v747 = vld [vmem:[%s1 + $0x16d0] sm:$0xff]
  %v748 = vld [vmem:[%s1 + $0x16d8] sm:$0xff]
  %v749 = vld [vmem:[%s1 + $0x16e0] sm:$0xff]
  %v750 = vld [vmem:[%s1 + $0x16e8] sm:$0xff]
  %v751 = vld [vmem:[%s1 + $0x16f0] sm:$0xff]
  %v752 = vld [vmem:[%s1 + $0x16f8] sm:$0xff]
  %v753 = vld [vmem:[%s1 + $0x1700] sm:$0xff]
  %v754 = vld [vmem:[%s1 + $0x1708] sm:$0xff]
  %v755 = vld [vmem:[%s1 + $0x1710] sm:$0xff]
  %v756 = vld [vmem:[%s1 + $0x1718] sm:$0xff]
  %v757 = vld [vmem:[%s1 + $0x1720] sm:$0xff]
  %v758 = vld [vmem:[%s1 + $0x1728] sm:$0xff]
  %v759 = vld [vmem:[%s1 + $0x1730] sm:$0xff]
  %v760 = vld [vmem:[%s1 + $0x1738] sm:$0xff]
  %v761 = vld [vmem:[%s1 + $0x1740] sm:$0xff]
  %v762 = vld [vmem:[%s1 + $0x1748] sm:$0xff]
  %v763 = vld [vmem:[%s1 + $0x1750] sm:$0xff]
  %v764 = vld [vmem:[%s1 + $0x1758] sm:$0xff]
  %v765 = vld [vmem:[%s1 + $0x1760] sm:$0xff]
  %v766 = vld [vmem:[%s1 + $0x1768] sm:$0xff]
  %v767 = vld [vmem:[%s1 + $0x1770] sm:$0xff]
  %v768 = vld [vmem:[%s1 + $0x1778] sm:$0xff]
  %v769 = vld [vmem:[%s1 + $0x1780] sm:$0xff]
  %v770 = vld [vmem:[%s1 + $0x1788] sm:$0xff]
  %v771 = vld [vmem:[%s1 + $0x1790] sm:$0xff]
  %v772 = vld [vmem:[%s1 + $0x1798] sm:$0xff]
  %v773 = vld [vmem:[%s1 + $0x17a0] sm:$0xff]
  %v774 = vld [vmem:[%s1 + $0x17a8] sm:$0xff]
  %v775 = vld [vmem:[%s1 + $0x17b0] sm:$0xff]
  %v776 = vld [vmem:[%s1 + $0x17b8] sm:$0xff]
  %v777 = vld [vmem:[%s1 + $0x17c0] sm:$0xff]
  %v778 = vld [vmem:[%s1 + $0x17c8] sm:$0xff]
  %v779 = vld [vmem:[%s1 + $0x17d0] sm:$0xff]
  %v780 = vld [vmem:[%s1 + $0x17d8] sm:$0xff]
  %v781 = vld [vmem:[%s1 + $0x17e0] sm:$0xff]
  %v782 = vld [vmem:[%s1 + $0x17e8] sm:$0xff]
  %v783 = vld [vmem:[%s1 + $0x17f0] sm:$0xff]
  %v784 = vld [vmem:[%s1 + $0x17f8] sm:$0xff]
  %v785 = vld [vmem:[%s1 + $0x1800] sm:$0xff]
  %v786 = vld [vmem:[%s1 + $0x1808] sm:$0xff]
  %v787 = vld [vmem:[%s1 + $0x1810] sm:$0xff]
  %v788 = vld [vmem:[%s1 + $0x1818] sm:$0xff]
  %v789 = vld [vmem:[%s1 + $0x1820] sm:$0xff]
  %v790 = vld [vmem:[%s1 + $0x1828] sm:$0xff]
  %v791 = vld [vmem:[%s1 + $0x1830] sm:$0xff]
  %v792 = vld [vmem:[%s1 + $0x1838] sm:$0xff]
  %v793 = vld [vmem:[%s1 + $0x1840] sm:$0xff]
  %v794 = vld [vmem:[%s1 + $0x1848] sm:$0xff]
  %v795 = vld [vmem:[%s1 + $0x1850] sm:$0xff]
  %v796 = vld [vmem:[%s1 + $0x1858] sm:$0xff]
  %v797 = vld [vmem:[%s1 + $0x1860] sm:$0xff]
  %v798 = vld [vmem:[%s1 + $0x1868] sm:$0xff]
  %v799 = vld [vmem:[%s1 + $0x1870] sm:$0xff]
  %v800 = vld [vmem:[%s1 + $0x1878] sm:$0xff]
  %v801 = vld [vmem:[%s1 + $0x1880] sm:$0xff]
  %v802 = vld [vmem:[%s1 + $0x1888] sm:$0xff]
  %v803 = vld [vmem:[%s1 + $0x1890] sm:$0xff]
  %v804 = vld [vmem:[%s1 + $0x1898] sm:$0xff]
  %v805 = vld [vmem:[%s1 + $0x18a0] sm:$0xff]
  %v806 = vld [vmem:[%s1 + $0x18a8] sm:$0xff]
  %v807 = vld [vmem:[%s1 + $0x18b0] sm:$0xff]
  %v808 = vld [vmem:[%s1 + $0x18b8] sm:$0xff]
  %v809 = vld [vmem:[%s1 + $0x18c0] sm:$0xff]
  %v810 = vld [vmem:[%s1 + $0x18c8] sm:$0xff]
  %v811 = vld [vmem:[%s1 + $0x18d0] sm:$0xff]
  %v812 = vld [vmem:[%s1 + $0x18d8] sm:$0xff]
  %v813 = vld [vmem:[%s1 + $0x18e0] sm:$0xff]
  %v814 = vld [vmem:[%s1 + $0x18e8] sm:$0xff]
  %v815 = vld [vmem:[%s1 + $0x18f0] sm:$0xff]
  %v816 = vld [vmem:[%s1 + $0x18f8] sm:$0xff]
  %v817 = vld [vmem:[%s1 + $0x1900] sm:$0xff]
  %v818 = vld [vmem:[%s1 + $0x1908] sm:$0xff]
  %v819 = vld [vmem:[%s1 + $0x1910] sm:$0xff]
  %v820 = vld [vmem:[%s1 + $0x1918] sm:$0xff]
  %v821 = vld [vmem:[%s1 + $0x1920] sm:$0xff]
  %v822 = vld [vmem:[%s1 + $0x1928] sm:$0xff]
  %v823 = vld [vmem:[%s1 + $0x1930] sm:$0xff]
  %v824 = vld [vmem:[%s1 + $0x1938] sm:$0xff]
  %v825 = vld [vmem:[%s1 + $0x1940] sm:$0xff]
  %v826 = vld [vmem:[%s1 + $0x1948] sm:$0xff]
  %v827 = vld [vmem:[%s1 + $0x1950] sm:$0xff]
  %v828 = vld [vmem:[%s1 + $0x1958] sm:$0xff]
  %v829 = vld [vmem:[%s1 + $0x1960] sm:$0xff]
  %v830 = vld [vmem:[%s1 + $0x1968] sm:$0xff]
  %v831 = vld [vmem:[%s1 + $0x1970] sm:$0xff]
  %v832 = vld [vmem:[%s1 + $0x1978] sm:$0xff]
  %v833 = vld [vmem:[%s1 + $0x1980] sm:$0xff]
  %v834 = vld [vmem:[%s1 + $0x1988] sm:$0xff]
  %v835 = vld [vmem:[%s1 + $0x1990] sm:$0xff]
  %v836 = vld [vmem:[%s1 + $0x1998] sm:$0xff]
  %v837 = vld [vmem:[%s1 + $0x19a0] sm:$0xff]
  %v838 = vld [vmem:[%s1 + $0x19a8] sm:$0xff]
  %v839 = vld [vmem:[%s1 + $0x19b0] sm:$0xff]
  %v840 = vld [vmem:[%s1 + $0x19b8] sm:$0xff]
  %v841 = vld [vmem:[%s1 + $0x19c0] sm:$0xff]
  %v842 = vld [vmem:[%s1 + $0x19c8] sm:$0xff]
  %v843 = vld [vmem:[%s1 + $0x19d0] sm:$0xff]
  %v844 = vld [vmem:[%s1 + $0x19d8] sm:$0xff]
  %v845 = vld [vmem:[%s1 + $0x19e0] sm:$0xff]
  %v846 = vld [vmem:[%s1 + $0x19e8] sm:$0xff]
  %v847 = vld [vmem:[%s1 + $0x19f0] sm:$0xff]
  %v848 = vld [vmem:[%s1 + $0x19f8] sm:$0xff]
  %v849 = vld [vmem:[%s1 + $0x1a00] sm:$0xff]
  %v850 = vld [vmem:[%s1 + $0x1a08] sm:$0xff]
  %v851 = vld [vmem:[%s1 + $0x1a10] sm:$0xff]
  %v852 = vld [vmem:[%s1 + $0x1a18] sm:$0xff]
  %v853 = vld [vmem:[%s1 + $0x1a20] sm:$0xff]
  %v854 = vld [vmem:[%s1 + $0x1a28] sm:$0xff]
  %v855 = vld [vmem:[%s1 + $0x1a30] sm:$0xff]
  %v856 = vld [vmem:[%s1 + $0x1a38] sm:$0xff]
  %v857 = vld [vmem:[%s1 + $0x1a40] sm:$0xff]
  %v858 = vld [vmem:[%s1 + $0x1a48] sm:$0xff]
  %v859 = vld [vmem:[%s1 + $0x1a50] sm:$0xff]
  %v860 = vld [vmem:[%s1 + $0x1a58] sm:$0xff]
  %v861 = vld [vmem:[%s1 + $0x1a60] sm:$0xff]
  %v862 = vld [vmem:[%s1 + $0x1a68] sm:$0xff]
  %v863 = vld [vmem:[%s1 + $0x1a70] sm:$0xff]
  %v864 = vld [vmem:[%s1 + $0x1a78] sm:$0xff]
  %v865 = vld [vmem:[%s1 + $0x1a80] sm:$0xff]
  %v866 = vld [vmem:[%s1 + $0x1a88] sm:$0xff]
  %v867 = vld [vmem:[%s1 + $0x1a90] sm:$0xff]
  %v868 = vld [vmem:[%s1 + $0x1a98] sm:$0xff]
  %v869 = vld [vmem:[%s1 + $0x1aa0] sm:$0xff]
  %v870 = vld [vmem:[%s1 + $0x1aa8] sm:$0xff]
  %v871 = vld [vmem:[%s1 + $0x1ab0] sm:$0xff]
  %v872 = vld [vmem:[%s1 + $0x1ab8] sm:$0xff]
  %v873 = vld [vmem:[%s1 + $0x1ac0] sm:$0xff]
  %v874 = vld [vmem:[%s1 + $0x1ac8] sm:$0xff]
  %v875 = vld [vmem:[%s1 + $0x1ad0] sm:$0xff]
  %v876 = vld [vmem:[%s1 + $0x1ad8] sm:$0xff]
  %v877 = vld [vmem:[%s1 + $0x1ae0] sm:$0xff]
  %v878 = vld [vmem:[%s1 + $0x1ae8] sm:$0xff]
  %v879 = vld [vmem:[%s1 + $0x1af0] sm:$0xff]
  %v880 = vld [vmem:[%s1 + $0x1af8] sm:$0xff]
  %v881 = vld [vmem:[%s1 + $0x1b00] sm:$0xff]
  %v882 = vld [vmem:[%s1 + $0x1b08] sm:$0xff]
  %v883 = vld [vmem:[%s1 + $0x1b10] sm:$0xff]
  %v884 = vld [vmem:[%s1 + $0x1b18] sm:$0xff]
  %v885 = vld [vmem:[%s1 + $0x1b20] sm:$0xff]
  %v886 = vld [vmem:[%s1 + $0x1b28] sm:$0xff]
  %v887 = vld [vmem:[%s1 + $0x1b30] sm:$0xff]
  %v888 = vld [vmem:[%s1 + $0x1b38] sm:$0xff]
  %v889 = vld [vmem:[%s1 + $0x1b40] sm:$0xff]
  %v890 = vld [vmem:[%s1 + $0x1b48] sm:$0xff]
  %v891 = vld [vmem:[%s1 + $0x1b50] sm:$0xff]
  %v892 = vld [vmem:[%s1 + $0x1b58] sm:$0xff]
  %v893 = vld [vmem:[%s1 + $0x1b60] sm:$0xff]
  %v894 = vld [vmem:[%s1 + $0x1b68] sm:$0xff]
  %v895 = vld [vmem:[%s1 + $0x1b70] sm:$0xff]
  %v896 = vld [vmem:[%s1 + $0x1b78] sm:$0xff]
  %v897 = vld [vmem:[%s1 + $0x1b80] sm:$0xff]
  %v898 = vld [vmem:[%s1 + $0x1b88] sm:$0xff]
  %v899 = vld [vmem:[%s1 + $0x1b90] sm:$0xff]
  %v900 = vld [vmem:[%s1 + $0x1b98] sm:$0xff]
  %v901 = vld [vmem:[%s1 + $0x1ba0] sm:$0xff]
  %v902 = vld [vmem:[%s1 + $0x1ba8] sm:$0xff]
  %v903 = vld [vmem:[%s1 + $0x1bb0] sm:$0xff]
  %v904 = vld [vmem:[%s1 + $0x1bb8] sm:$0xff]
  %v905 = vld [vmem:[%s1 + $0x1bc0] sm:$0xff]
  %v906 = vld [vmem:[%s1 + $0x1bc8] sm:$0xff]
  %v907 = vld [vmem:[%s1 + $0x1bd0] sm:$0xff]
  %v908 = vld [vmem:[%s1 + $0x1bd8] sm:$0xff]
  %v909 = vld [vmem:[%s1 + $0x1be0] sm:$0xff]
  %v910 = vld [vmem:[%s1 + $0x1be8] sm:$0xff]
  %v911 = vld [vmem:[%s1 + $0x1bf0] sm:$0xff]
  %v912 = vld [vmem:[%s1 + $0x1bf8] sm:$0xff]
  %v913 = vld [vmem:[%s1 + $0x1c00] sm:$0xff]
  %v914 = vld [vmem:[%s1 + $0x1c08] sm:$0xff]
  %v915 = vld [vmem:[%s1 + $0x1c10] sm:$0xff]
  %v916 = vld [vmem:[%s1 + $0x1c18] sm:$0xff]
  %v917 = vld [vmem:[%s1 + $0x1c20] sm:$0xff]
  %v918 = vld [vmem:[%s1 + $0x1c28] sm:$0xff]
  %v919 = vld [vmem:[%s1 + $0x1c30] sm:$0xff]
  %v920 = vld [vmem:[%s1 + $0x1c38] sm:$0xff]
  %v921 = vld [vmem:[%s1 + $0x1c40] sm:$0xff]
  %v922 = vld [vmem:[%s1 + $0x1c48] sm:$0xff]
  %v923 = vld [vmem:[%s1 + $0x1c50] sm:$0xff]
  %v924 = vld [vmem:[%s1 + $0x1c58] sm:$0xff]
  %v925 = vld [vmem:[%s1 + $0x1c60] sm:$0xff]
  %v926 = vld [vmem:[%s1 + $0x1c68] sm:$0xff]
  %v927 = vld [vmem:[%s1 + $0x1c70] sm:$0xff]
  %v928 = vld [vmem:[%s1 + $0x1c78] sm:$0xff]
  %v929 = vld [vmem:[%s1 + $0x1c80] sm:$0xff]
  %v930 = vld [vmem:[%s1 + $0x1c88] sm:$0xff]
  %v931 = vld [vmem:[%s1 + $0x1c90] sm:$0xff]
  %v932 = vld [vmem:[%s1 + $0x1c98] sm:$0xff]
  %v933 = vld [vmem:[%s1 + $0x1ca0] sm:$0xff]
  %v934 = vld [vmem:[%s1 + $0x1ca8] sm:$0xff]
  %v935 = vld [vmem:[%s1 + $0x1cb0] sm:$0xff]
  %v936 = vld [vmem:[%s1 + $0x1cb8] sm:$0xff]
  %v937 = vld [vmem:[%s1 + $0x1cc0] sm:$0xff]
  %v938 = vld [vmem:[%s1 + $0x1cc8] sm:$0xff]
  %v939 = vld [vmem:[%s1 + $0x1cd0] sm:$0xff]
  %v940 = vld [vmem:[%s1 + $0x1cd8] sm:$0xff]
  %v941 = vld [vmem:[%s1 + $0x1ce0] sm:$0xff]
  %v942 = vld [vmem:[%s1 + $0x1ce8] sm:$0xff]
  %v943 = vld [vmem:[%s1 + $0x1cf0] sm:$0xff]
  %v944 = vld [vmem:[%s1 + $0x1cf8] sm:$0xff]
  %v945 = vld [vmem:[%s1 + $0x1d00] sm:$0xff]
  %v946 = vld [vmem:[%s1 + $0x1d08] sm:$0xff]
  %v947 = vld [vmem:[%s1 + $0x1d10] sm:$0xff]
  %v948 = vld [vmem:[%s1 + $0x1d18] sm:$0xff]
  %v949 = vld [vmem:[%s1 + $0x1d20] sm:$0xff]
  %v950 = vld [vmem:[%s1 + $0x1d28] sm:$0xff]
  %v951 = vld [vmem:[%s1 + $0x1d30] sm:$0xff]
  %v952 = vld [vmem:[%s1 + $0x1d38] sm:$0xff]
  %v953 = vld [vmem:[%s1 + $0x1d40] sm:$0xff]
  %v954 = vld [vmem:[%s1 + $0x1d48] sm:$0xff]
  %v955 = vld [vmem:[%s1 + $0x1d50] sm:$0xff]
  %v956 = vld [vmem:[%s1 + $0x1d58] sm:$0xff]
  %v957 = vld [vmem:[%s1 + $0x1d60] sm:$0xff]
  %v958 = vld [vmem:[%s1 + $0x1d68] sm:$0xff]
  %v959 = vld [vmem:[%s1 + $0x1d70] sm:$0xff]
  %v960 = vld [vmem:[%s1 + $0x1d78] sm:$0xff]
  %v961 = vld [vmem:[%s1 + $0x1d80] sm:$0xff]
  %v962 = vld [vmem:[%s1 + $0x1d88] sm:$0xff]
  %v963 = vld [vmem:[%s1 + $0x1d90] sm:$0xff]
  %v964 = vld [vmem:[%s1 + $0x1d98] sm:$0xff]
  %v965 = vld [vmem:[%s1 + $0x1da0] sm:$0xff]
  %v966 = vld [vmem:[%s1 + $0x1da8] sm:$0xff]
  %v967 = vld [vmem:[%s1 + $0x1db0] sm:$0xff]
  %v968 = vld [vmem:[%s1 + $0x1db8] sm:$0xff]
  %v969 = vld [vmem:[%s1 + $0x1dc0] sm:$0xff]
  %v970 = vld [vmem:[%s1 + $0x1dc8] sm:$0xff]
  %v971 = vld [vmem:[%s1 + $0x1dd0] sm:$0xff]
  %v972 = vld [vmem:[%s1 + $0x1dd8] sm:$0xff]
  %v973 = vld [vmem:[%s1 + $0x1de0] sm:$0xff]
  %v974 = vld [vmem:[%s1 + $0x1de8] sm:$0xff]
  %v975 = vld [vmem:[%s1 + $0x1df0] sm:$0xff]
  %v976 = vld [vmem:[%s1 + $0x1df8] sm:$0xff]
  %v977 = vld [vmem:[%s1 + $0x1e00] sm:$0xff]
  %v978 = vld [vmem:[%s1 + $0x1e08] sm:$0xff]
  %v979 = vld [vmem:[%s1 + $0x1e10] sm:$0xff]
  %v980 = vld [vmem:[%s1 + $0x1e18] sm:$0xff]
  %v981 = vld [vmem:[%s1 + $0x1e20] sm:$0xff]
  %v982 = vld [vmem:[%s1 + $0x1e28] sm:$0xff]
  %v983 = vld [vmem:[%s1 + $0x1e30] sm:$0xff]
  %v984 = vld [vmem:[%s1 + $0x1e38] sm:$0xff]
  %v985 = vld [vmem:[%s1 + $0x1e40] sm:$0xff]
  %v986 = vld [vmem:[%s1 + $0x1e48] sm:$0xff]
  %v987 = vld [vmem:[%s1 + $0x1e50] sm:$0xff]
  %v988 = vld [vmem:[%s1 + $0x1e58] sm:$0xff]
  %v989 = vld [vmem:[%s1 + $0x1e60] sm:$0xff]
  %v990 = vld [vmem:[%s1 + $0x1e68] sm:$0xff]
  %v991 = vld [vmem:[%s1 + $0x1e70] sm:$0xff]
  %v992 = vld [vmem:[%s1 + $0x1e78] sm:$0xff]
  %v993 = vld [vmem:[%s1 + $0x1e80] sm:$0xff]
  %v994 = vld [vmem:[%s1 + $0x1e88] sm:$0xff]
  %v995 = vld [vmem:[%s1 + $0x1e90] sm:$0xff]
  %v996 = vld [vmem:[%s1 + $0x1e98] sm:$0xff]
  %v997 = vld [vmem:[%s1 + $0x1ea0] sm:$0xff]
  %v998 = vld [vmem:[%s1 + $0x1ea8] sm:$0xff]
  %v999 = vld [vmem:[%s1 + $0x1eb0] sm:$0xff]
  %v1000 = vld [vmem:[%s1 + $0x1eb8] sm:$0xff]
  %v1001 = vld [vmem:[%s1 + $0x1ec0] sm:$0xff]
  %v1002 = vld [vmem:[%s1 + $0x1ec8] sm:$0xff]
  %v1003 = vld [vmem:[%s1 + $0x1ed0] sm:$0xff]
  %v1004 = vld [vmem:[%s1 + $0x1ed8] sm:$0xff]
  %v1005 = vld [vmem:[%s1 + $0x1ee0] sm:$0xff]
  %v1006 = vld [vmem:[%s1 + $0x1ee8] sm:$0xff]
  %v1007 = vld [vmem:[%s1 + $0x1ef0] sm:$0xff]
  %v1008 = vld [vmem:[%s1 + $0x1ef8] sm:$0xff]
  %v1009 = vld [vmem:[%s1 + $0x1f00] sm:$0xff]
  %v1010 = vld [vmem:[%s1 + $0x1f08] sm:$0xff]
  %v1011 = vld [vmem:[%s1 + $0x1f10] sm:$0xff]
  %v1012 = vld [vmem:[%s1 + $0x1f18] sm:$0xff]
  %v1013 = vld [vmem:[%s1 + $0x1f20] sm:$0xff]
  %v1014 = vld [vmem:[%s1 + $0x1f28] sm:$0xff]
  %v1015 = vld [vmem:[%s1 + $0x1f30] sm:$0xff]
  %v1016 = vld [vmem:[%s1 + $0x1f38] sm:$0xff]
  %v1017 = vld [vmem:[%s1 + $0x1f40] sm:$0xff]
  %v1018 = vld [vmem:[%s1 + $0x1f48] sm:$0xff]
  %v1019 = vld [vmem:[%s1 + $0x1f50] sm:$0xff]
  %v1020 = vld [vmem:[%s1 + $0x1f58] sm:$0xff]
  %v1021 = vld [vmem:[%s1 + $0x1f60] sm:$0xff]
  %v1022 = vld [vmem:[%s1 + $0x1f68] sm:$0xff]
  %v1023 = vld [vmem:[%s1 + $0x1f70] sm:$0xff]
  %v1024 = vld [vmem:[%s1 + $0x1f78] sm:$0xff]
  %v1025 = vld [vmem:[%s1 + $0x1f80] sm:$0xff]
  %v1026 = vld [vmem:[%s1 + $0x1f88] sm:$0xff]
  %v1027 = vld [vmem:[%s1 + $0x1f90] sm:$0xff]
  %v1028 = vld [vmem:[%s1 + $0x1f98] sm:$0xff]
  %v1029 = vld [vmem:[%s1 + $0x1fa0] sm:$0xff]
  %v1030 = vld [vmem:[%s1 + $0x1fa8] sm:$0xff]
  %v1031 = vld [vmem:[%s1 + $0x1fb0] sm:$0xff]
  %v1032 = vld [vmem:[%s1 + $0x1fb8] sm:$0xff]
  %v1033 = vld [vmem:[%s1 + $0x1fc0] sm:$0xff]
  %v1034 = vld [vmem:[%s1 + $0x1fc8] sm:$0xff]
  %v1035 = vld [vmem:[%s1 + $0x1fd0] sm:$0xff]
  %v1036 = vld [vmem:[%s1 + $0x1fd8] sm:$0xff]
  %v1037 = vld [vmem:[%s1 + $0x1fe0] sm:$0xff]
  %v1038 = vld [vmem:[%s1 + $0x1fe8] sm:$0xff]
  %v1039 = vld [vmem:[%s1 + $0x1ff0] sm:$0xff]
  %v1040 = vld [vmem:[%s1 + $0x1ff8] sm:$0xff]
  %v1041 = vld [vmem:[%s1 + $0x2000] sm:$0xff]
  %v1042 = vld [vmem:[%s1 + $0x2008] sm:$0xff]
  %v1043 = vld [vmem:[%s1 + $0x2010] sm:$0xff]
  %v1044 = vld [vmem:[%s1 + $0x2018] sm:$0xff]
  %v1045 = vld [vmem:[%s1 + $0x2020] sm:$0xff]
  %v1046 = vld [vmem:[%s1 + $0x2028] sm:$0xff]
  %v1047 = vld [vmem:[%s1 + $0x2030] sm:$0xff]
  %v1048 = vld [vmem:[%s1 + $0x2038] sm:$0xff]
  %v1049 = vld [vmem:[%s1 + $0x2040] sm:$0xff]
  %v1050 = vld [vmem:[%s1 + $0x2048] sm:$0xff]
  %v1051 = vld [vmem:[%s1 + $0x2050] sm:$0xff]
  %v1052 = vld [vmem:[%s1 + $0x2058] sm:$0xff]
  %v1053 = vld [vmem:[%s1 + $0x2060] sm:$0xff]
  %v1054 = vld [vmem:[%s1 + $0x2068] sm:$0xff]
  %v1055 = vld [vmem:[%s1 + $0x2070] sm:$0xff]
  %v1056 = vld [vmem:[%s1 + $0x2078] sm:$0xff]
  %v1057 = vld [vmem:[%s1 + $0x2080] sm:$0xff]
  %v1058 = vld [vmem:[%s1 + $0x2088] sm:$0xff]
  %v1059 = vld [vmem:[%s1 + $0x2090] sm:$0xff]
  %v1060 = vld [vmem:[%s1 + $0x2098] sm:$0xff]
  %v1061 = vld [vmem:[%s1 + $0x20a0] sm:$0xff]
  %v1062 = vld [vmem:[%s1 + $0x20a8] sm:$0xff]
  %v1063 = vld [vmem:[%s1 + $0x20b0] sm:$0xff]
  %v1064 = vld [vmem:[%s1 + $0x20b8] sm:$0xff]
  %v1065 = vld [vmem:[%s1 + $0x20c0] sm:$0xff]
  %v1066 = vld [vmem:[%s1 + $0x20c8] sm:$0xff]
  %v1067 = vld [vmem:[%s1 + $0x20d0] sm:$0xff]
  %v1068 = vld [vmem:[%s1 + $0x20d8] sm:$0xff]
  %v1069 = vld [vmem:[%s1 + $0x20e0] sm:$0xff]
  %v1070 = vld [vmem:[%s1 + $0x20e8] sm:$0xff]
  %v1071 = vld [vmem:[%s1 + $0x20f0] sm:$0xff]
  %v1072 = vld [vmem:[%s1 + $0x20f8] sm:$0xff]
  %v1073 = vld [vmem:[%s1 + $0x2100] sm:$0xff]
  %v1074 = vld [vmem:[%s1 + $0x2108] sm:$0xff]
  %v1075 = vld [vmem:[%s1 + $0x2110] sm:$0xff]
  %v1076 = vld [vmem:[%s1 + $0x2118] sm:$0xff]
  %v1077 = vld [vmem:[%s1 + $0x2120] sm:$0xff]
  %v1078 = vld [vmem:[%s1 + $0x2128] sm:$0xff]
  %v1079 = vld [vmem:[%s1 + $0x2130] sm:$0xff]
  %v1080 = vld [vmem:[%s1 + $0x2138] sm:$0xff]
  %v1081 = vld [vmem:[%s1 + $0x2140] sm:$0xff]
  %v1082 = vld [vmem:[%s1 + $0x2148] sm:$0xff]
  %v1083 = vld [vmem:[%s1 + $0x2150] sm:$0xff]
  %v1084 = vld [vmem:[%s1 + $0x2158] sm:$0xff]
  %v1085 = vld [vmem:[%s1 + $0x2160] sm:$0xff]
  %v1086 = vld [vmem:[%s1 + $0x2168] sm:$0xff]
  %v1087 = vld [vmem:[%s1 + $0x2170] sm:$0xff]
  %v1088 = vld [vmem:[%s1 + $0x2178] sm:$0xff]
  %v1089 = vld [vmem:[%s1 + $0x2180] sm:$0xff]
  %v1090 = vld [vmem:[%s1 + $0x2188] sm:$0xff]
  %v1091 = vld [vmem:[%s1 + $0x2190] sm:$0xff]
  %v1092 = vld [vmem:[%s1 + $0x2198] sm:$0xff]
  %v1093 = vld [vmem:[%s1 + $0x21a0] sm:$0xff]
  %v1094 = vld [vmem:[%s1 + $0x21a8] sm:$0xff]
  %v1095 = vld [vmem:[%s1 + $0x21b0] sm:$0xff]
  %v1096 = vld [vmem:[%s1 + $0x21b8] sm:$0xff]
  %v1097 = vld [vmem:[%s1 + $0x21c0] sm:$0xff]
  %v1098 = vld [vmem:[%s1 + $0x21c8] sm:$0xff]
  %v1099 = vld [vmem:[%s1 + $0x21d0] sm:$0xff]
  %v1100 = vld [vmem:[%s1 + $0x21d8] sm:$0xff]
  %v1101 = vld [vmem:[%s1 + $0x21e0] sm:$0xff]
  %v1102 = vld [vmem:[%s1 + $0x21e8] sm:$0xff]
  %v1103 = vld [vmem:[%s1 + $0x21f0] sm:$0xff]
  %v1104 = vld [vmem:[%s1 + $0x21f8] sm:$0xff]
  %v1105 = vld [vmem:[%s1 + $0x2200] sm:$0xff]
  %v1106 = vld [vmem:[%s1 + $0x2208] sm:$0xff]
  %v1107 = vld [vmem:[%s1 + $0x2210] sm:$0xff]
  %v1108 = vld [vmem:[%s1 + $0x2218] sm:$0xff]
  %v1109 = vld [vmem:[%s1 + $0x2220] sm:$0xff]
  %v1110 = vld [vmem:[%s1 + $0x2228] sm:$0xff]
  %v1111 = vld [vmem:[%s1 + $0x2230] sm:$0xff]
  %v1112 = vld [vmem:[%s1 + $0x2238] sm:$0xff]
  %v1113 = vld [vmem:[%s1 + $0x2240] sm:$0xff]
  %v1114 = vld [vmem:[%s1 + $0x2248] sm:$0xff]
  %v1115 = vld [vmem:[%s1 + $0x2250] sm:$0xff]
  %v1116 = vld [vmem:[%s1 + $0x2258] sm:$0xff]
  %v1117 = vld [vmem:[%s1 + $0x2260] sm:$0xff]
  %v1118 = vld [vmem:[%s1 + $0x2268] sm:$0xff]
  %v1119 = vld [vmem:[%s1 + $0x2270] sm:$0xff]
  %v1120 = vld [vmem:[%s1 + $0x2278] sm:$0xff]
  %v1121 = vld [vmem:[%s1 + $0x2280] sm:$0xff]
  %v1122 = vld [vmem:[%s1 + $0x2288] sm:$0xff]
  %v1123 = vld [vmem:[%s1 + $0x2290] sm:$0xff]
  %v1124 = vld [vmem:[%s1 + $0x2298] sm:$0xff]
  %v1125 = vld [vmem:[%s1 + $0x22a0] sm:$0xff]
  %v1126 = vld [vmem:[%s1 + $0x22a8] sm:$0xff]
  %v1127 = vld [vmem:[%s1 + $0x22b0] sm:$0xff]
  %v1128 = vld [vmem:[%s1 + $0x22b8] sm:$0xff]
  %v1129 = vld [vmem:[%s1 + $0x22c0] sm:$0xff]
  %v1130 = vld [vmem:[%s1 + $0x22c8] sm:$0xff]
  %v1131 = vld [vmem:[%s1 + $0x22d0] sm:$0xff]
  %v1132 = vld [vmem:[%s1 + $0x22d8] sm:$0xff]
  %v1133 = vld [vmem:[%s1 + $0x22e0] sm:$0xff]
  %v1134 = vld [vmem:[%s1 + $0x22e8] sm:$0xff]
  %v1135 = vld [vmem:[%s1 + $0x22f0] sm:$0xff]
  %v1136 = vld [vmem:[%s1 + $0x22f8] sm:$0xff]
  %v1137 = vld [vmem:[%s1 + $0x2300] sm:$0xff]
  %v1138 = vld [vmem:[%s1 + $0x2308] sm:$0xff]
  %v1139 = vld [vmem:[%s1 + $0x2310] sm:$0xff]
  %v1140 = vld [vmem:[%s1 + $0x2318] sm:$0xff]
  %v1141 = vld [vmem:[%s1 + $0x2320] sm:$0xff]
  %v1142 = vld [vmem:[%s1 + $0x2328] sm:$0xff]
  %v1143 = vld [vmem:[%s1 + $0x2330] sm:$0xff]
  %v1144 = vld [vmem:[%s1 + $0x2338] sm:$0xff]
  %v1145 = vld [vmem:[%s1 + $0x2340] sm:$0xff]
  %v1146 = vld [vmem:[%s1 + $0x2348] sm:$0xff]
  %v1147 = vld [vmem:[%s1 + $0x2350] sm:$0xff]
  %v1148 = vld [vmem:[%s1 + $0x2358] sm:$0xff]
  %v1149 = vld [vmem:[%s1 + $0x2360] sm:$0xff]
  %v1150 = vld [vmem:[%s1 + $0x2368] sm:$0xff]
  %v1151 = vld [vmem:[%s1 + $0x2370] sm:$0xff]
  %v1152 = vld [vmem:[%s1 + $0x2378] sm:$0xff]
  %v1153 = vld [vmem:[%s1 + $0x2380] sm:$0xff]
  %v1154 = vld [vmem:[%s1 + $0x2388] sm:$0xff]
  %v1155 = vld [vmem:[%s1 + $0x2390] sm:$0xff]
  %v1156 = vld [vmem:[%s1 + $0x2398] sm:$0xff]
  %v1157 = vld [vmem:[%s1 + $0x23a0] sm:$0xff]
  %v1158 = vld [vmem:[%s1 + $0x23a8] sm:$0xff]
  %v1159 = vld [vmem:[%s1 + $0x23b0] sm:$0xff]
  %v1160 = vld [vmem:[%s1 + $0x23b8] sm:$0xff]
  %v1161 = vld [vmem:[%s1 + $0x23c0] sm:$0xff]
  %v1162 = vld [vmem:[%s1 + $0x23c8] sm:$0xff]
  %v1163 = vld [vmem:[%s1 + $0x23d0] sm:$0xff]
  %v1164 = vld [vmem:[%s1 + $0x23d8] sm:$0xff]
  %v1165 = vld [vmem:[%s1 + $0x23e0] sm:$0xff]
  %v1166 = vld [vmem:[%s1 + $0x23e8] sm:$0xff]
  %v1167 = vld [vmem:[%s1 + $0x23f0] sm:$0xff]
  %v1168 = vld [vmem:[%s1 + $0x23f8] sm:$0xff]
  %v1169 = vld [vmem:[%s1 + $0x2400] sm:$0xff]
  %v1170 = vld [vmem:[%s1 + $0x2408] sm:$0xff]
  %v1171 = vld [vmem:[%s1 + $0x2410] sm:$0xff]
  %v1172 = vld [vmem:[%s1 + $0x2418] sm:$0xff]
  %v1173 = vld [vmem:[%s1 + $0x2420] sm:$0xff]
  %v1174 = vld [vmem:[%s1 + $0x2428] sm:$0xff]
  %v1175 = vld [vmem:[%s1 + $0x2430] sm:$0xff]
  %v1176 = vld [vmem:[%s1 + $0x2438] sm:$0xff]
  %v1177 = vld [vmem:[%s1 + $0x2440] sm:$0xff]
  %v1178 = vld [vmem:[%s1 + $0x2448] sm:$0xff]
  %v1179 = vld [vmem:[%s1 + $0x2450] sm:$0xff]
  %v1180 = vld [vmem:[%s1 + $0x2458] sm:$0xff]
  %v1181 = vld [vmem:[%s1 + $0x2460] sm:$0xff]
  %v1182 = vld [vmem:[%s1 + $0x2468] sm:$0xff]
  %v1183 = vld [vmem:[%s1 + $0x2470] sm:$0xff]
  %v1184 = vld [vmem:[%s1 + $0x2478] sm:$0xff]
  %v1185 = vld [vmem:[%s1 + $0x2480] sm:$0xff]
  %v1186 = vld [vmem:[%s1 + $0x2488] sm:$0xff]
  %v1187 = vld [vmem:[%s1 + $0x2490] sm:$0xff]
  %v1188 = vld [vmem:[%s1 + $0x2498] sm:$0xff]
  %v1189 = vld [vmem:[%s1 + $0x24a0] sm:$0xff]
  %v1190 = vld [vmem:[%s1 + $0x24a8] sm:$0xff]
  %v1191 = vld [vmem:[%s1 + $0x24b0] sm:$0xff]
  %v1192 = vld [vmem:[%s1 + $0x24b8] sm:$0xff]
  %v1193 = vld [vmem:[%s1 + $0x24c0] sm:$0xff]
  %v1194 = vld [vmem:[%s1 + $0x24c8] sm:$0xff]
  %v1195 = vld [vmem:[%s1 + $0x24d0] sm:$0xff]
  %v1196 = vld [vmem:[%s1 + $0x24d8] sm:$0xff]
  %v1197 = vld [vmem:[%s1 + $0x24e0] sm:$0xff]
  %v1198 = vld [vmem:[%s1 + $0x24e8] sm:$0xff]
  %v1199 = vld [vmem:[%s1 + $0x24f0] sm:$0xff]
  %v1200 = vld [vmem:[%s1 + $0x24f8] sm:$0xff]
  %v1201 = vld [vmem:[%s1 + $0x2500] sm:$0xff]
  %v1202 = vld [vmem:[%s1 + $0x2508] sm:$0xff]
  %v1203 = vld [vmem:[%s1 + $0x2510] sm:$0xff]
  %v1204 = vld [vmem:[%s1 + $0x2518] sm:$0xff]
  %v1205 = vld [vmem:[%s1 + $0x2520] sm:$0xff]
  %v1206 = vld [vmem:[%s1 + $0x2528] sm:$0xff]
  %v1207 = vld [vmem:[%s1 + $0x2530] sm:$0xff]
  %v1208 = vld [vmem:[%s1 + $0x2538] sm:$0xff]
  %v1209 = vld [vmem:[%s1 + $0x2540] sm:$0xff]
  %v1210 = vld [vmem:[%s1 + $0x2548] sm:$0xff]
  %v1211 = vld [vmem:[%s1 + $0x2550] sm:$0xff]
  %v1212 = vld [vmem:[%s1 + $0x2558] sm:$0xff]
  %v1213 = vld [vmem:[%s1 + $0x2560] sm:$0xff]
  %v1214 = vld [vmem:[%s1 + $0x2568] sm:$0xff]
  %v1215 = vld [vmem:[%s1 + $0x2570] sm:$0xff]
  %v1216 = vld [vmem:[%s1 + $0x2578] sm:$0xff]
  %v1217 = vld [vmem:[%s1 + $0x2580] sm:$0x3]
  %v1218 = vld [vmem:[%s1 + $0x2588] sm:$0x3]
  %v1219 = vld [vmem:[%s1 + $0x2590] sm:$0x3]
  %v1220 = vld [vmem:[%s1 + $0x2598] sm:$0x3]
  %v1221 = vld [vmem:[%s1 + $0x25a0] sm:$0x3]
  %v1222 = vld [vmem:[%s1 + $0x25a8] sm:$0x3]
  %v1223 = vld [vmem:[%s1 + $0x25b0] sm:$0x3]
  %v1224 = vld [vmem:[%s1 + $0x25b8] sm:$0x3]
  %v1225 = vld [vmem:[%s1 + $0x25c0] sm:$0x3]
  %v1226 = vld [vmem:[%s1 + $0x25c8] sm:$0x3]
  %v1227 = vld [vmem:[%s1 + $0x25d0] sm:$0x3]
  %v1228 = vld [vmem:[%s1 + $0x25d8] sm:$0x3]
  %v1229 = vld [vmem:[%s1 + $0x25e0] sm:$0x3]
  %v1230 = vld [vmem:[%s1 + $0x25e8] sm:$0x3]
  %v1231 = vld [vmem:[%s1 + $0x25f0] sm:$0x3]
  %v1232 = vld [vmem:[%s1 + $0x25f8] sm:$0x3]
  %v1233 = vld [vmem:[%s1 + $0x2600] sm:$0x3]
  %v1234 = vld [vmem:[%s1 + $0x2608] sm:$0x3]
  %v1235 = vld [vmem:[%s1 + $0x2610] sm:$0x3]
  %v1236 = vld [vmem:[%s1 + $0x2618] sm:$0x3]
  %v1237 = vld [vmem:[%s1 + $0x2620] sm:$0x3]
  %v1238 = vld [vmem:[%s1 + $0x2628] sm:$0x3]
  %v1239 = vld [vmem:[%s1 + $0x2630] sm:$0x3]
  %v1240 = vld [vmem:[%s1 + $0x2638] sm:$0x3]
  %v1241 = vld [vmem:[%s1 + $0x2640] sm:$0x3]
  %v1242 = vld [vmem:[%s1 + $0x2648] sm:$0x3]
  %v1243 = vld [vmem:[%s1 + $0x2650] sm:$0x3]
  %v1244 = vld [vmem:[%s1 + $0x2658] sm:$0x3]
  %v1245 = vld [vmem:[%s1 + $0x2660] sm:$0x3]
  %v1246 = vld [vmem:[%s1 + $0x2668] sm:$0x3]
  %v1247 = vld [vmem:[%s1 + $0x2670] sm:$0x3]
  %v1248 = vld [vmem:[%s1 + $0x2678] sm:$0x3]
  %v1249 = vld [vmem:[%s1 + $0x2680] sm:$0x3]
  %v1250 = vld [vmem:[%s1 + $0x2688] sm:$0x3]
  %v1251 = vld [vmem:[%s1 + $0x2690] sm:$0x3]
  %v1252 = vld [vmem:[%s1 + $0x2698] sm:$0x3]
  %v1253 = vld [vmem:[%s1 + $0x26a0] sm:$0x3]
  %v1254 = vld [vmem:[%s1 + $0x26a8] sm:$0x3]
  %v1255 = vld [vmem:[%s1 + $0x26b0] sm:$0x3]
  %v1256 = vld [vmem:[%s1 + $0x26b8] sm:$0x3]
  %v1257 = vld [vmem:[%s1 + $0x26c0] sm:$0x3]
  %v1258 = vld [vmem:[%s1 + $0x26c8] sm:$0x3]
  %v1259 = vld [vmem:[%s1 + $0x26d0] sm:$0x3]
  %v1260 = vld [vmem:[%s1 + $0x26d8] sm:$0x3]
  %v1261 = vld [vmem:[%s1 + $0x26e0] sm:$0x3]
  %v1262 = vld [vmem:[%s1 + $0x26e8] sm:$0x3]
  %v1263 = vld [vmem:[%s1 + $0x26f0] sm:$0x3]
  %v1264 = vld [vmem:[%s1 + $0x26f8] sm:$0x3]
  %v1265 = vld [vmem:[%s1 + $0x2700] sm:$0x3]
  %v1266 = vld [vmem:[%s1 + $0x2708] sm:$0x3]
  %v1267 = vld [vmem:[%s1 + $0x2710] sm:$0x3]
  %v1268 = vld [vmem:[%s1 + $0x2718] sm:$0x3]
  %v1269 = vld [vmem:[%s1 + $0x2720] sm:$0x3]
  %v1270 = vld [vmem:[%s1 + $0x2728] sm:$0x3]
  %v1271 = vld [vmem:[%s1 + $0x2730] sm:$0x3]
  %v1272 = vld [vmem:[%s1 + $0x2738] sm:$0x3]
  %v1273 = vld [vmem:[%s1 + $0x2740] sm:$0x3]
  %v1274 = vld [vmem:[%s1 + $0x2748] sm:$0x3]
  %v1275 = vld [vmem:[%s1 + $0x2750] sm:$0x3]
  %v1276 = vld [vmem:[%s1 + $0x2758] sm:$0x3]
  %v1277 = vld [vmem:[%s1 + $0x2760] sm:$0x3]
  %v1278 = vld [vmem:[%s1 + $0x2768] sm:$0x3]
  %v1279 = vld [vmem:[%s1 + $0x2770] sm:$0x3]
  %v1280 = vld [vmem:[%s1 + $0x2778] sm:$0x3]
  %v1281 = vld [vmem:[%s1 + $0x2780] sm:$0x3]
  %v1282 = vld [vmem:[%s1 + $0x2788] sm:$0x3]
  %v1283 = vld [vmem:[%s1 + $0x2790] sm:$0x3]
  %v1284 = vld [vmem:[%s1 + $0x2798] sm:$0x3]
  %v1285 = vld [vmem:[%s1 + $0x27a0] sm:$0x3]
  %v1286 = vld [vmem:[%s1 + $0x27a8] sm:$0x3]
  %v1287 = vld [vmem:[%s1 + $0x27b0] sm:$0x3]
  %v1288 = vld [vmem:[%s1 + $0x27b8] sm:$0x3]
  %v1289 = vld [vmem:[%s1 + $0x27c0] sm:$0x3]
  %v1290 = vld [vmem:[%s1 + $0x27c8] sm:$0x3]
  %v1291 = vld [vmem:[%s1 + $0x27d0] sm:$0x3]
  %v1292 = vld [vmem:[%s1 + $0x27d8] sm:$0x3]
  %v1293 = vld [vmem:[%s1 + $0x27e0] sm:$0x3]
  %v1294 = vld [vmem:[%s1 + $0x27e8] sm:$0x3]
  %v1295 = vld [vmem:[%s1 + $0x27f0] sm:$0x3]
  %v1296 = vld [vmem:[%s1 + $0x27f8] sm:$0x3]
  %v1297 = vld [vmem:[%s1 + $0x2800] sm:$0x3]
  %v1298 = vld [vmem:[%s1 + $0x2808] sm:$0x3]
  %v1299 = vld [vmem:[%s1 + $0x2810] sm:$0x3]
  %v1300 = vld [vmem:[%s1 + $0x2818] sm:$0x3]
  %v1301 = vld [vmem:[%s1 + $0x2820] sm:$0x3]
  %v1302 = vld [vmem:[%s1 + $0x2828] sm:$0x3]
  %v1303 = vld [vmem:[%s1 + $0x2830] sm:$0x3]
  %v1304 = vld [vmem:[%s1 + $0x2838] sm:$0x3]
  %v1305 = vld [vmem:[%s1 + $0x2840] sm:$0x3]
  %v1306 = vld [vmem:[%s1 + $0x2848] sm:$0x3]
  %v1307 = vld [vmem:[%s1 + $0x2850] sm:$0x3]
  %v1308 = vld [vmem:[%s1 + $0x2858] sm:$0x3]
  %v1309 = vld [vmem:[%s1 + $0x2860] sm:$0x3]
  %v1310 = vld [vmem:[%s1 + $0x2868] sm:$0x3]
  %v1311 = vld [vmem:[%s1 + $0x2870] sm:$0x3]
  %v1312 = vld [vmem:[%s1 + $0x2878] sm:$0x3]
  %v1313 = vld [vmem:[%s1 + $0x2880] sm:$0x3]
  %v1314 = vld [vmem:[%s1 + $0x2888] sm:$0x3]
  %v1315 = vld [vmem:[%s1 + $0x2890] sm:$0x3]
  %v1316 = vld [vmem:[%s1 + $0x2898] sm:$0x3]
  %v1317 = vld [vmem:[#allocation2] sm:$0x1]
  %1319 = vset.pattern.permute.xlu0 0
  %1320 = vperm.xlu0 %1319, %v1317
  %v1321 = vpop.permute.xlu0 %1320
  %v1323 = vlaneseq
  %v1324 = vshrl.u32 %v1323, 7
  %v1325 = vsub.s32 0, %v1324
  %v1326 = vrot.slane %v1321, %v1325
  %vm1327 = vcmask 801792
  %v1329 = vsel %vm1327, %v16, 0
  %vm1331 = vcmask 1041408
  %v1333 = vsel %vm1331, %v1217, 0
  %v1336 = vsel %vm1331, %v1218, 0
  %v1339 = vsel %vm1331, %v1219, 0
  %v1342 = vsel %vm1331, %v1220, 0
  %v1345 = vsel %vm1331, %v1221, 0
  %v1348 = vsel %vm1331, %v1222, 0
  %v1351 = vsel %vm1331, %v1223, 0
  %v1354 = vsel %vm1331, %v1224, 0
  %v1357 = vsel %vm1331, %v1225, 0
  %v1360 = vsel %vm1331, %v1226, 0
  %v1363 = vsel %vm1331, %v1227, 0
  %v1366 = vsel %vm1331, %v1228, 0
  %v1369 = vsel %vm1331, %v1229, 0
  %v1372 = vsel %vm1331, %v1230, 0
  %v1375 = vsel %vm1331, %v1231, 0
  %v1378 = vsel %vm1331, %v1232, 0
  %v1381 = vsel %vm1331, %v1233, 0
  %v1384 = vsel %vm1331, %v1234, 0
  %v1387 = vsel %vm1331, %v1235, 0
  %v1390 = vsel %vm1331, %v1236, 0
  %v1393 = vsel %vm1331, %v1237, 0
  %v1396 = vsel %vm1331, %v1238, 0
  %v1399 = vsel %vm1331, %v1239, 0
  %v1402 = vsel %vm1331, %v1240, 0
  %v1405 = vsel %vm1331, %v1241, 0
  %v1408 = vsel %vm1331, %v1242, 0
  %v1411 = vsel %vm1331, %v1243, 0
  %v1414 = vsel %vm1331, %v1244, 0
  %v1417 = vsel %vm1331, %v1245, 0
  %v1420 = vsel %vm1331, %v1246, 0
  %v1423 = vsel %vm1331, %v1247, 0
  %v1426 = vsel %vm1331, %v1248, 0
  %v1429 = vsel %vm1331, %v1249, 0
  %v1432 = vsel %vm1331, %v1250, 0
  %v1435 = vsel %vm1331, %v1251, 0
  %v1438 = vsel %vm1331, %v1252, 0
  %v1441 = vsel %vm1331, %v1253, 0
  %v1444 = vsel %vm1331, %v1254, 0
  %v1447 = vsel %vm1331, %v1255, 0
  %v1450 = vsel %vm1331, %v1256, 0
  %v1453 = vsel %vm1331, %v1257, 0
  %v1456 = vsel %vm1331, %v1258, 0
  %v1459 = vsel %vm1331, %v1259, 0
  %v1462 = vsel %vm1331, %v1260, 0
  %v1465 = vsel %vm1331, %v1261, 0
  %v1468 = vsel %vm1331, %v1262, 0
  %v1471 = vsel %vm1331, %v1263, 0
  %v1474 = vsel %vm1331, %v1264, 0
  %v1477 = vsel %vm1331, %v1265, 0
  %v1480 = vsel %vm1331, %v1266, 0
  %v1483 = vsel %vm1331, %v1267, 0
  %v1486 = vsel %vm1331, %v1268, 0
  %v1489 = vsel %vm1331, %v1269, 0
  %v1492 = vsel %vm1331, %v1270, 0
  %v1495 = vsel %vm1331, %v1271, 0
  %v1498 = vsel %vm1331, %v1272, 0
  %v1501 = vsel %vm1331, %v1273, 0
  %v1504 = vsel %vm1331, %v1274, 0
  %v1507 = vsel %vm1331, %v1275, 0
  %v1510 = vsel %vm1331, %v1276, 0
  %v1513 = vsel %vm1331, %v1277, 0
  %v1516 = vsel %vm1331, %v1278, 0
  %v1519 = vsel %vm1331, %v1279, 0
  %v1522 = vsel %vm1331, %v1280, 0
  %v1525 = vsel %vm1331, %v1281, 0
  %v1528 = vsel %vm1331, %v1282, 0
  %v1531 = vsel %vm1331, %v1283, 0
  %v1534 = vsel %vm1331, %v1284, 0
  %v1537 = vsel %vm1331, %v1285, 0
  %v1540 = vsel %vm1331, %v1286, 0
  %v1543 = vsel %vm1331, %v1287, 0
  %v1546 = vsel %vm1331, %v1288, 0
  %v1549 = vsel %vm1331, %v1289, 0
  %v1552 = vsel %vm1331, %v1290, 0
  %v1555 = vsel %vm1331, %v1291, 0
  %v1558 = vsel %vm1331, %v1292, 0
  %v1561 = vsel %vm1331, %v1293, 0
  %v1564 = vsel %vm1331, %v1294, 0
  %v1567 = vsel %vm1331, %v1295, 0
  %v1570 = vsel %vm1331, %v1296, 0
  %v1573 = vsel %vm1331, %v1297, 0
  %v1576 = vsel %vm1331, %v1298, 0
  %v1579 = vsel %vm1331, %v1299, 0
  %v1582 = vsel %vm1331, %v1300, 0
  %v1585 = vsel %vm1331, %v1301, 0
  %v1588 = vsel %vm1331, %v1302, 0
  %v1591 = vsel %vm1331, %v1303, 0
  %v1594 = vsel %vm1331, %v1304, 0
  %v1597 = vsel %vm1331, %v1305, 0
  %v1600 = vsel %vm1331, %v1306, 0
  %v1603 = vsel %vm1331, %v1307, 0
  %v1606 = vsel %vm1331, %v1308, 0
  %v1609 = vsel %vm1331, %v1309, 0
  %v1612 = vsel %vm1331, %v1310, 0
  %v1615 = vsel %vm1331, %v1311, 0
  %v1618 = vsel %vm1331, %v1312, 0
  %v1621 = vsel %vm1331, %v1313, 0
  %v1624 = vsel %vm1331, %v1314, 0
  %v1627 = vsel %vm1331, %v1315, 0
  %v1630 = vsel %vm1331, %v1316, 0
  %1632 = vmatprep.subr.mxu0 %v18
  %1633 = vmatpush1.msra.mxu0 %v17
  %1634 = vmatprep.subr.mxu0 %v118
  %1635 = vmatpush1.msra.mxu0 %v117
  %1636 = vmatprep.subr.mxu0 %v218
  %1637 = vmatpush1.msra.mxu0 %v217
  %1638 = vmatprep.subr.mxu0 %v318
  %1639 = vmatpush1.msra.mxu0 %v317
  %1640 = vmatprep.subr.mxu0 %v418
  %1641 = vmatpush1.msra.mxu0 %v417
  %1642 = vmatprep.subr.mxu0 %v518
  %1643 = vmatpush1.msra.mxu0 %v517
  %1644 = vmatprep.subr.mxu0 %v618
  %1645 = vmatpush1.msra.mxu0 %v617
  %1646 = vmatprep.subr.mxu0 %v718
  %1647 = vmatpush1.msra.mxu0 %v717
  %1648 = vmatprep.subr.mxu0 %v818
  %1649 = vmatpush1.msra.mxu0 %v817
  %1650 = vmatprep.subr.mxu0 %v918
  %1651 = vmatpush1.msra.mxu0 %v917
  %1652 = vmatprep.subr.mxu0 %v1018
  %1653 = vmatpush1.msra.mxu0 %v1017
  %1654 = vmatprep.subr.mxu0 %v1118
  %1655 = vmatpush1.msra.mxu0 %v1117
  %1656 = vmatprep.subr.mxu0 %v1336
  %1657 = vmatpush1.msra.mxu0 %v1333
  %1658 = vmatprep.subr.mxu0 0.0
  %1659 = vmatpush1.msra.mxu0 0.0
  %1660 = vmatprep.subr.mxu0 0.0
  %1661 = vmatpush1.msra.mxu0 0.0
  %1662 = vmatprep.subr.mxu0 0.0
  %1663 = vmatpush1.msra.mxu0 0.0
  %1664 = vmatprep.subr.mxu0 0.0
  %1665 = vmatpush1.msra.mxu0 0.0
  %1666 = vmatprep.subr.mxu0 0.0
  %1667 = vmatpush1.msra.mxu0 0.0
  %1668 = vmatprep.subr.mxu0 0.0
  %1669 = vmatpush1.msra.mxu0 0.0
  %1670 = vmatprep.subr.mxu0 0.0
  %1671 = vmatpush1.msra.mxu0 0.0
  %1672 = vmatprep.subr.mxu0 0.0
  %1673 = vmatpush1.msra.mxu0 0.0
  %1674 = vmatprep.subr.mxu0 0.0
  %1675 = vmatpush1.msra.mxu0 0.0
  %1676 = vmatprep.subr.mxu0 0.0
  %1677 = vmatpush1.msra.mxu0 0.0
  %1678 = vmatprep.subr.mxu0 0.0
  %1679 = vmatpush1.msra.mxu0 0.0
  %1680 = vmatprep.subr.mxu0 0.0
  %1681 = vmatpush1.msra.mxu0 0.0
  %1682 = vmatprep.subr.mxu0 0.0
  %1683 = vmatpush1.msra.mxu0 0.0
  %1684 = vmatprep.subr.mxu0 0.0
  %1685 = vmatpush1.msra.mxu0 0.0
  %1686 = vmatprep.subr.mxu0 0.0
  %1687 = vmatpush1.msra.mxu0 0.0
  %1688 = vmatprep.subr.mxu0 0.0
  %1689 = vmatpush1.msra.mxu0 0.0
  %1690 = vmatprep.subr.mxu0 0.0
  %1691 = vmatpush1.msra.mxu0 0.0
  %1692 = vmatprep.subr.mxu0 0.0
  %1693 = vmatpush1.msra.mxu0 0.0
  %1694 = vmatprep.subr.mxu0 0.0
  %1695 = vmatpush1.msra.mxu0 0.0
  %1696 = vmatprep.mubr.f32.mxu0 0.0
  %1697 = vmatmul.mubr.f32.gmra.mrb[0].mxu0 %v1329
  %v1698 = vpop.f32.mrb[0].mxu0
  %v1699 = vadd.f32 %v1326, %v1698
  %v1700 = vpop.f32.mrb[0].mxu0
  %v1701 = vadd.f32 %v1326, %v1700
  %1702 = vdwg.mxu0
  %1703 = vmatprep.subr.mxu0 %v20
  %1704 = vmatpush1.msra.mxu0 %v19
  %1705 = vmatprep.subr.mxu0 %v120
  %1706 = vmatpush1.msra.mxu0 %v119
  %1707 = vmatprep.subr.mxu0 %v220
  %1708 = vmatpush1.msra.mxu0 %v219
  %1709 = vmatprep.subr.mxu0 %v320
  %1710 = vmatpush1.msra.mxu0 %v319
  %1711 = vmatprep.subr.mxu0 %v420
  %1712 = vmatpush1.msra.mxu0 %v419
  %1713 = vmatprep.subr.mxu0 %v520
  %1714 = vmatpush1.msra.mxu0 %v519
  %1715 = vmatprep.subr.mxu0 %v620
  %1716 = vmatpush1.msra.mxu0 %v619
  %1717 = vmatprep.subr.mxu0 %v720
  %1718 = vmatpush1.msra.mxu0 %v719
  %1719 = vmatprep.subr.mxu0 %v820
  %1720 = vmatpush1.msra.mxu0 %v819
  %1721 = vmatprep.subr.mxu0 %v920
  %1722 = vmatpush1.msra.mxu0 %v919
  %1723 = vmatprep.subr.mxu0 %v1020
  %1724 = vmatpush1.msra.mxu0 %v1019
  %1725 = vmatprep.subr.mxu0 %v1120
  %1726 = vmatpush1.msra.mxu0 %v1119
  %1727 = vmatprep.subr.mxu0 %v1342
  %1728 = vmatpush1.msra.mxu0 %v1339
  %1729 = vmatprep.subr.mxu0 0.0
  %1730 = vmatpush1.msra.mxu0 0.0
  %1731 = vmatprep.subr.mxu0 0.0
  %1732 = vmatpush1.msra.mxu0 0.0
  %1733 = vmatprep.subr.mxu0 0.0
  %1734 = vmatpush1.msra.mxu0 0.0
  %1735 = vmatprep.subr.mxu0 0.0
  %1736 = vmatpush1.msra.mxu0 0.0
  %1737 = vmatprep.subr.mxu0 0.0
  %1738 = vmatpush1.msra.mxu0 0.0
  %1739 = vmatprep.subr.mxu0 0.0
  %1740 = vmatpush1.msra.mxu0 0.0
  %1741 = vmatprep.subr.mxu0 0.0
  %1742 = vmatpush1.msra.mxu0 0.0
  %1743 = vmatprep.subr.mxu0 0.0
  %1744 = vmatpush1.msra.mxu0 0.0
  %1745 = vmatprep.subr.mxu0 0.0
  %1746 = vmatpush1.msra.mxu0 0.0
  %1747 = vmatprep.subr.mxu0 0.0
  %1748 = vmatpush1.msra.mxu0 0.0
  %1749 = vmatprep.subr.mxu0 0.0
  %1750 = vmatpush1.msra.mxu0 0.0
  %1751 = vmatprep.subr.mxu0 0.0
  %1752 = vmatpush1.msra.mxu0 0.0
  %1753 = vmatprep.subr.mxu0 0.0
  %1754 = vmatpush1.msra.mxu0 0.0
  %1755 = vmatprep.subr.mxu0 0.0
  %1756 = vmatpush1.msra.mxu0 0.0
  %1757 = vmatprep.subr.mxu0 0.0
  %1758 = vmatpush1.msra.mxu0 0.0
  %1759 = vmatprep.subr.mxu0 0.0
  %1760 = vmatpush1.msra.mxu0 0.0
  %1761 = vmatprep.subr.mxu0 0.0
  %1762 = vmatpush1.msra.mxu0 0.0
  %1763 = vmatprep.subr.mxu0 0.0
  %1764 = vmatpush1.msra.mxu0 0.0
  %1765 = vmatprep.subr.mxu0 0.0
  %1766 = vmatpush1.msra.mxu0 0.0
  %1767 = vmatprep.mubr.f32.mxu0 0.0
  %1768 = vmatmul.mubr.f32.gmra.mrb[0].mxu0 %v1329
  %v1769 = vpop.f32.mrb[0].mxu0
  %v1770 = vadd.f32 %v1326, %v1769
  %v1771 = vpop.f32.mrb[0].mxu0
  %v1772 = vadd.f32 %v1326, %v1771
  %1773 = vdwg.mxu0
  %1774 = vmatprep.subr.mxu0 %v22
  %1775 = vmatpush1.msra.mxu0 %v21
  %1776 = vmatprep.subr.mxu0 %v122
  %1777 = vmatpush1.msra.mxu0 %v121
  %1778 = vmatprep.subr.mxu0 %v222
  %1779 = vmatpush1.msra.mxu0 %v221
  %1780 = vmatprep.subr.mxu0 %v322
  %1781 = vmatpush1.msra.mxu0 %v321
  %1782 = vmatprep.subr.mxu0 %v422
  %1783 = vmatpush1.msra.mxu0 %v421
  %1784 = vmatprep.subr.mxu0 %v522
  %1785 = vmatpush1.msra.mxu0 %v521
  %1786 = vmatprep.subr.mxu0 %v622
  %1787 = vmatpush1.msra.mxu0 %v621
  %1788 = vmatprep.subr.mxu0 %v722
  %1789 = vmatpush1.msra.mxu0 %v721
  %1790 = vmatprep.subr.mxu0 %v822
  %1791 = vmatpush1.msra.mxu0 %v821
  %1792 = vmatprep.subr.mxu0 %v922
  %1793 = vmatpush1.msra.mxu0 %v921
  %1794 = vmatprep.subr.mxu0 %v1022
  %1795 = vmatpush1.msra.mxu0 %v1021
  %1796 = vmatprep.subr.mxu0 %v1122
  %1797 = vmatpush1.msra.mxu0 %v1121
  %1798 = vmatprep.subr.mxu0 %v1348
  %1799 = vmatpush1.msra.mxu0 %v1345
  %1800 = vmatprep.subr.mxu0 0.0
  %1801 = vmatpush1.msra.mxu0 0.0
  %1802 = vmatprep.subr.mxu0 0.0
  %1803 = vmatpush1.msra.mxu0 0.0
  %1804 = vmatprep.subr.mxu0 0.0
  %1805 = vmatpush1.msra.mxu0 0.0
  %1806 = vmatprep.subr.mxu0 0.0
  %1807 = vmatpush1.msra.mxu0 0.0
  %1808 = vmatprep.subr.mxu0 0.0
  %1809 = vmatpush1.msra.mxu0 0.0
  %1810 = vmatprep.subr.mxu0 0.0
  %1811 = vmatpush1.msra.mxu0 0.0
  %1812 = vmatprep.subr.mxu0 0.0
  %1813 = vmatpush1.msra.mxu0 0.0
  %1814 = vmatprep.subr.mxu0 0.0
  %1815 = vmatpush1.msra.mxu0 0.0
  %1816 = vmatprep.subr.mxu0 0.0
  %1817 = vmatpush1.msra.mxu0 0.0
  %1818 = vmatprep.subr.mxu0 0.0
  %1819 = vmatpush1.msra.mxu0 0.0
  %1820 = vmatprep.subr.mxu0 0.0
  %1821 = vmatpush1.msra.mxu0 0.0
  %1822 = vmatprep.subr.mxu0 0.0
  %1823 = vmatpush1.msra.mxu0 0.0
  %1824 = vmatprep.subr.mxu0 0.0
  %1825 = vmatpush1.msra.mxu0 0.0
  %1826 = vmatprep.subr.mxu0 0.0
  %1827 = vmatpush1.msra.mxu0 0.0
  %1828 = vmatprep.subr.mxu0 0.0
  %1829 = vmatpush1.msra.mxu0 0.0
  %1830 = vmatprep.subr.mxu0 0.0
  %1831 = vmatpush1.msra.mxu0 0.0
  %1832 = vmatprep.subr.mxu0 0.0
  %1833 = vmatpush1.msra.mxu0 0.0
  %1834 = vmatprep.subr.mxu0 0.0
  %1835 = vmatpush1.msra.mxu0 0.0
  %1836 = vmatprep.subr.mxu0 0.0
  %1837 = vmatpush1.msra.mxu0 0.0
  %1838 = vmatprep.mubr.f32.mxu0 0.0
  %1839 = vmatmul.mubr.f32.gmra.mrb[0].mxu0 %v1329
  %v1840 = vpop.f32.mrb[0].mxu0
  %v1841 = vadd.f32 %v1326, %v1840
  %v1842 = vpop.f32.mrb[0].mxu0
  %v1843 = vadd.f32 %v1326, %v1842
  %1844 = vdwg.mxu0
  %1845 = vmatprep.subr.mxu0 %v24
  %1846 = vmatpush1.msra.mxu0 %v23
  %1847 = vmatprep.subr.mxu0 %v124
  %1848 = vmatpush1.msra.mxu0 %v123
  %1849 = vmatprep.subr.mxu0 %v224
  %1850 = vmatpush1.msra.mxu0 %v223
  %1851 = vmatprep.subr.mxu0 %v324
  %1852 = vmatpush1.msra.mxu0 %v323
  %1853 = vmatprep.subr.mxu0 %v424
  %1854 = vmatpush1.msra.mxu0 %v423
  %1855 = vmatprep.subr.mxu0 %v524
  %1856 = vmatpush1.msra.mxu0 %v523
  %1857 = vmatprep.subr.mxu0 %v624
  %1858 = vmatpush1.msra.mxu0 %v623
  %1859 = vmatprep.subr.mxu0 %v724
  %1860 = vmatpush1.msra.mxu0 %v723
  %1861 = vmatprep.subr.mxu0 %v824
  %1862 = vmatpush1.msra.mxu0 %v823
  %1863 = vmatprep.subr.mxu0 %v924
  %1864 = vmatpush1.msra.mxu0 %v923
  %1865 = vmatprep.subr.mxu0 %v1024
  %1866 = vmatpush1.msra.mxu0 %v1023
  %1867 = vmatprep.subr.mxu0 %v1124
  %1868 = vmatpush1.msra.mxu0 %v1123
  %1869 = vmatprep.subr.mxu0 %v1354
  %1870 = vmatpush1.msra.mxu0 %v1351
  %1871 = vmatprep.subr.mxu0 0.0
  %1872 = vmatpush1.msra.mxu0 0.0
  %1873 = vmatprep.subr.mxu0 0.0
  %1874 = vmatpush1.msra.mxu0 0.0
  %1875 = vmatprep.subr.mxu0 0.0
  %1876 = vmatpush1.msra.mxu0 0.0
  %1877 = vmatprep.subr.mxu0 0.0
  %1878 = vmatpush1.msra.mxu0 0.0
  %1879 = vmatprep.subr.mxu0 0.0
  %1880 = vmatpush1.msra.mxu0 0.0
  %1881 = vmatprep.subr.mxu0 0.0
  %1882 = vmatpush1.msra.mxu0 0.0
  %1883 = vmatprep.subr.mxu0 0.0
  %1884 = vmatpush1.msra.mxu0 0.0
  %1885 = vmatprep.subr.mxu0 0.0
  %1886 = vmatpush1.msra.mxu0 0.0
  %1887 = vmatprep.subr.mxu0 0.0
  %1888 = vmatpush1.msra.mxu0 0.0
  %1889 = vmatprep.subr.mxu0 0.0
  %1890 = vmatpush1.msra.mxu0 0.0
  %1891 = vmatprep.subr.mxu0 0.0
  %1892 = vmatpush1.msra.mxu0 0.0
  %1893 = vmatprep.subr.mxu0 0.0
  %1894 = vmatpush1.msra.mxu0 0.0
  %1895 = vmatprep.subr.mxu0 0.0
  %1896 = vmatpush1.msra.mxu0 0.0
  %1897 = vmatprep.subr.mxu0 0.0
  %1898 = vmatpush1.msra.mxu0 0.0
  %1899 = vmatprep.subr.mxu0 0.0
  %1900 = vmatpush1.msra.mxu0 0.0
  %1901 = vmatprep.subr.mxu0 0.0
  %1902 = vmatpush1.msra.mxu0 0.0
  %1903 = vmatprep.subr.mxu0 0.0
  %1904 = vmatpush1.msra.mxu0 0.0
  %1905 = vmatprep.subr.mxu0 0.0
  %1906 = vmatpush1.msra.mxu0 0.0
  %1907 = vmatprep.subr.mxu0 0.0
  %1908 = vmatpush1.msra.mxu0 0.0
  %1909 = vmatprep.mubr.f32.mxu0 0.0
  %1910 = vmatmul.mubr.f32.gmra.mrb[0].mxu0 %v1329
  %v1911 = vpop.f32.mrb[0].mxu0
  %v1912 = vadd.f32 %v1326, %v1911
  %v1913 = vpop.f32.mrb[0].mxu0
  %v1914 = vadd.f32 %v1326, %v1913
  %1915 = vdwg.mxu0
  %1916 = vmatprep.subr.mxu0 %v26
  %1917 = vmatpush1.msra.mxu0 %v25
  %1918 = vmatprep.subr.mxu0 %v126
  %1919 = vmatpush1.msra.mxu0 %v125
  %1920 = vmatprep.subr.mxu0 %v226
  %1921 = vmatpush1.msra.mxu0 %v225
  %1922 = vmatprep.subr.mxu0 %v326
  %1923 = vmatpush1.msra.mxu0 %v325
  %1924 = vmatprep.subr.mxu0 %v426
  %1925 = vmatpush1.msra.mxu0 %v425
  %1926 = vmatprep.subr.mxu0 %v526
  %1927 = vmatpush1.msra.mxu0 %v525
  %1928 = vmatprep.subr.mxu0 %v626
  %1929 = vmatpush1.msra.mxu0 %v625
  %1930 = vmatprep.subr.mxu0 %v726
  %1931 = vmatpush1.msra.mxu0 %v725
  %1932 = vmatprep.subr.mxu0 %v826
  %1933 = vmatpush1.msra.mxu0 %v825
  %1934 = vmatprep.subr.mxu0 %v926
  %1935 = vmatpush1.msra.mxu0 %v925
  %1936 = vmatprep.subr.mxu0 %v1026
  %1937 = vmatpush1.msra.mxu0 %v1025
  %1938 = vmatprep.subr.mxu0 %v1126
  %1939 = vmatpush1.msra.mxu0 %v1125
  %1940 = vmatprep.subr.mxu0 %v1360
  %1941 = vmatpush1.msra.mxu0 %v1357
  %1942 = vmatprep.subr.mxu0 0.0
  %1943 = vmatpush1.msra.mxu0 0.0
  %1944 = vmatprep.subr.mxu0 0.0
  %1945 = vmatpush1.msra.mxu0 0.0
  %1946 = vmatprep.subr.mxu0 0.0
  %1947 = vmatpush1.msra.mxu0 0.0
  %1948 = vmatprep.subr.mxu0 0.0
  %1949 = vmatpush1.msra.mxu0 0.0
  %1950 = vmatprep.subr.mxu0 0.0
  %1951 = vmatpush1.msra.mxu0 0.0
  %1952 = vmatprep.subr.mxu0 0.0
  %1953 = vmatpush1.msra.mxu0 0.0
  %1954 = vmatprep.subr.mxu0 0.0
  %1955 = vmatpush1.msra.mxu0 0.0
  %1956 = vmatprep.subr.mxu0 0.0
  %1957 = vmatpush1.msra.mxu0 0.0
  %1958 = vmatprep.subr.mxu0 0.0
  %1959 = vmatpush1.msra.mxu0 0.0
  %1960 = vmatprep.subr.mxu0 0.0
  %1961 = vmatpush1.msra.mxu0 0.0
  %1962 = vmatprep.subr.mxu0 0.0
  %1963 = vmatpush1.msra.mxu0 0.0
  %1964 = vmatprep.subr.mxu0 0.0
  %1965 = vmatpush1.msra.mxu0 0.0
  %1966 = vmatprep.subr.mxu0 0.0
  %1967 = vmatpush1.msra.mxu0 0.0
  %1968 = vmatprep.subr.mxu0 0.0
  %1969 = vmatpush1.msra.mxu0 0.0
  %1970 = vmatprep.subr.mxu0 0.0
  %1971 = vmatpush1.msra.mxu0 0.0
  %1972 = vmatprep.subr.mxu0 0.0
  %1973 = vmatpush1.msra.mxu0 0.0
  %1974 = vmatprep.subr.mxu0 0.0
  %1975 = vmatpush1.msra.mxu0 0.0
  %1976 = vmatprep.subr.mxu0 0.0
  %1977 = vmatpush1.msra.mxu0 0.0
  %1978 = vmatprep.subr.mxu0 0.0
  %1979 = vmatpush1.msra.mxu0 0.0
  %1980 = vmatprep.mubr.f32.mxu0 0.0
  %1981 = vmatmul.mubr.f32.gmra.mrb[0].mxu0 %v1329
  %v1982 = vpop.f32.mrb[0].mxu0
  %v1983 = vadd.f32 %v1326, %v1982
  %v1984 = vpop.f32.mrb[0].mxu0
  %v1985 = vadd.f32 %v1326, %v1984
  %1986 = vdwg.mxu0
  %1987 = vmatprep.subr.mxu0 %v28
  %1988 = vmatpush1.msra.mxu0 %v27
  %1989 = vmatprep.subr.mxu0 %v128
  %1990 = vmatpush1.msra.mxu0 %v127
  %1991 = vmatprep.subr.mxu0 %v228
  %1992 = vmatpush1.msra.mxu0 %v227
  %1993 = vmatprep.subr.mxu0 %v328
  %1994 = vmatpush1.msra.mxu0 %v327
  %1995 = vmatprep.subr.mxu0 %v428
  %1996 = vmatpush1.msra.mxu0 %v427
  %1997 = vmatprep.subr.mxu0 %v528
  %1998 = vmatpush1.msra.mxu0 %v527
  %1999 = vmatprep.subr.mxu0 %v628
  %2000 = vmatpush1.msra.mxu0 %v627
  %2001 = vmatprep.subr.mxu0 %v728
  %2002 = vmatpush1.msra.mxu0 %v727
  %2003 = vmatprep.subr.mxu0 %v828
  %2004 = vmatpush1.msra.mxu0 %v827
  %2005 = vmatprep.subr.mxu0 %v928
  %2006 = vmatpush1.msra.mxu0 %v927
  %2007 = vmatprep.subr.mxu0 %v1028
  %2008 = vmatpush1.msra.mxu0 %v1027
  %2009 = vmatprep.subr.mxu0 %v1128
  %2010 = vmatpush1.msra.mxu0 %v1127
  %2011 = vmatprep.subr.mxu0 %v1366
  %2012 = vmatpush1.msra.mxu0 %v1363
  %2013 = vmatprep.subr.mxu0 0.0
  %2014 = vmatpush1.msra.mxu0 0.0
  %2015 = vmatprep.subr.mxu0 0.0
  %2016 = vmatpush1.msra.mxu0 0.0
  %2017 = vmatprep.subr.mxu0 0.0
  %2018 = vmatpush1.msra.mxu0 0.0
  %2019 = vmatprep.subr.mxu0 0.0
  %2020 = vmatpush1.msra.mxu0 0.0
  %2021 = vmatprep.subr.mxu0 0.0
  %2022 = vmatpush1.msra.mxu0 0.0
  %2023 = vmatprep.subr.mxu0 0.0
  %2024 = vmatpush1.msra.mxu0 0.0
  %2025 = vmatprep.subr.mxu0 0.0
  %2026 = vmatpush1.msra.mxu0 0.0
  %2027 = vmatprep.subr.mxu0 0.0
  %2028 = vmatpush1.msra.mxu0 0.0
  %2029 = vmatprep.subr.mxu0 0.0
  %2030 = vmatpush1.msra.mxu0 0.0
  %2031 = vmatprep.subr.mxu0 0.0
  %2032 = vmatpush1.msra.mxu0 0.0
  %2033 = vmatprep.subr.mxu0 0.0
  %2034 = vmatpush1.msra.mxu0 0.0
  %2035 = vmatprep.subr.mxu0 0.0
  %2036 = vmatpush1.msra.mxu0 0.0
  %2037 = vmatprep.subr.mxu0 0.0
  %2038 = vmatpush1.msra.mxu0 0.0
  %2039 = vmatprep.subr.mxu0 0.0
  %2040 = vmatpush1.msra.mxu0 0.0
  %2041 = vmatprep.subr.mxu0 0.0
  %2042 = vmatpush1.msra.mxu0 0.0
  %2043 = vmatprep.subr.mxu0 0.0
  %2044 = vmatpush1.msra.mxu0 0.0
  %2045 = vmatprep.subr.mxu0 0.0
  %2046 = vmatpush1.msra.mxu0 0.0
  %2047 = vmatprep.subr.mxu0 0.0
  %2048 = vmatpush1.msra.mxu0 0.0
  %2049 = vmatprep.subr.mxu0 0.0
  %2050 = vmatpush1.msra.mxu0 0.0
  %2051 = vmatprep.mubr.f32.mxu0 0.0
  %2052 = vmatmul.mubr.f32.gmra.mrb[0].mxu0 %v1329
  %v2053 = vpop.f32.mrb[0].mxu0
  %v2054 = vadd.f32 %v1326, %v2053
  %v2055 = vpop.f32.mrb[0].mxu0
  %v2056 = vadd.f32 %v1326, %v2055
  %2057 = vdwg.mxu0
  %2058 = vmatprep.subr.mxu0 %v30
  %2059 = vmatpush1.msra.mxu0 %v29
  %2060 = vmatprep.subr.mxu0 %v130
  %2061 = vmatpush1.msra.mxu0 %v129
  %2062 = vmatprep.subr.mxu0 %v230
  %2063 = vmatpush1.msra.mxu0 %v229
  %2064 = vmatprep.subr.mxu0 %v330
  %2065 = vmatpush1.msra.mxu0 %v329
  %2066 = vmatprep.subr.mxu0 %v430
  %2067 = vmatpush1.msra.mxu0 %v429
  %2068 = vmatprep.subr.mxu0 %v530
  %2069 = vmatpush1.msra.mxu0 %v529
  %2070 = vmatprep.subr.mxu0 %v630
  %2071 = vmatpush1.msra.mxu0 %v629
  %2072 = vmatprep.subr.mxu0 %v730
  %2073 = vmatpush1.msra.mxu0 %v729
  %2074 = vmatprep.subr.mxu0 %v830
  %2075 = vmatpush1.msra.mxu0 %v829
  %2076 = vmatprep.subr.mxu0 %v930
  %2077 = vmatpush1.msra.mxu0 %v929
  %2078 = vmatprep.subr.mxu0 %v1030
  %2079 = vmatpush1.msra.mxu0 %v1029
  %2080 = vmatprep.subr.mxu0 %v1130
  %2081 = vmatpush1.msra.mxu0 %v1129
  %2082 = vmatprep.subr.mxu0 %v1372
  %2083 = vmatpush1.msra.mxu0 %v1369
  %2084 = vmatprep.subr.mxu0 0.0
  %2085 = vmatpush1.msra.mxu0 0.0
  %2086 = vmatprep.subr.mxu0 0.0
  %2087 = vmatpush1.msra.mxu0 0.0
  %2088 = vmatprep.subr.mxu0 0.0
  %2089 = vmatpush1.msra.mxu0 0.0
  %2090 = vmatprep.subr.mxu0 0.0
  %2091 = vmatpush1.msra.mxu0 0.0
  %2092 = vmatprep.subr.mxu0 0.0
  %2093 = vmatpush1.msra.mxu0 0.0
  %2094 = vmatprep.subr.mxu0 0.0
  %2095 = vmatpush1.msra.mxu0 0.0
  %2096 = vmatprep.subr.mxu0 0.0
  %2097 = vmatpush1.msra.mxu0 0.0
  %2098 = vmatprep.subr.mxu0 0.0
  %2099 = vmatpush1.msra.mxu0 0.0
  %2100 = vmatprep.subr.mxu0 0.0
  %2101 = vmatpush1.msra.mxu0 0.0
  %2102 = vmatprep.subr.mxu0 0.0
  %2103 = vmatpush1.msra.mxu0 0.0
  %2104 = vmatprep.subr.mxu0 0.0
  %2105 = vmatpush1.msra.mxu0 0.0
  %2106 = vmatprep.subr.mxu0 0.0
  %2107 = vmatpush1.msra.mxu0 0.0
  %2108 = vmatprep.subr.mxu0 0.0
  %2109 = vmatpush1.msra.mxu0 0.0
  %2110 = vmatprep.subr.mxu0 0.0
  %2111 = vmatpush1.msra.mxu0 0.0
  %2112 = vmatprep.subr.mxu0 0.0
  %2113 = vmatpush1.msra.mxu0 0.0
  %2114 = vmatprep.subr.mxu0 0.0
  %2115 = vmatpush1.msra.mxu0 0.0
  %2116 = vmatprep.subr.mxu0 0.0
  %2117 = vmatpush1.msra.mxu0 0.0
  %2118 = vmatprep.subr.mxu0 0.0
  %2119 = vmatpush1.msra.mxu0 0.0
  %2120 = vmatprep.subr.mxu0 0.0
  %2121 = vmatpush1.msra.mxu0 0.0
  %2122 = vmatprep.mubr.f32.mxu0 0.0
  %2123 = vmatmul.mubr.f32.gmra.mrb[0].mxu0 %v1329
  %v2124 = vpop.f32.mrb[0].mxu0
  %v2125 = vadd.f32 %v1326, %v2124
  %v2126 = vpop.f32.mrb[0].mxu0
  %v2127 = vadd.f32 %v1326, %v2126
  %2128 = vdwg.mxu0
  %2129 = vmatprep.subr.mxu0 %v32
  %2130 = vmatpush1.msra.mxu0 %v31
  %2131 = vmatprep.subr.mxu0 %v132
  %2132 = vmatpush1.msra.mxu0 %v131
  %2133 = vmatprep.subr.mxu0 %v232
  %2134 = vmatpush1.msra.mxu0 %v231
  %2135 = vmatprep.subr.mxu0 %v332
  %2136 = vmatpush1.msra.mxu0 %v331
  %2137 = vmatprep.subr.mxu0 %v432
  %2138 = vmatpush1.msra.mxu0 %v431
  %2139 = vmatprep.subr.mxu0 %v532
  %2140 = vmatpush1.msra.mxu0 %v531
  %2141 = vmatprep.subr.mxu0 %v632
  %2142 = vmatpush1.msra.mxu0 %v631
  %2143 = vmatprep.subr.mxu0 %v732
  %2144 = vmatpush1.msra.mxu0 %v731
  %2145 = vmatprep.subr.mxu0 %v832
  %2146 = vmatpush1.msra.mxu0 %v831
  %2147 = vmatprep.subr.mxu0 %v932
  %2148 = vmatpush1.msra.mxu0 %v931
  %2149 = vmatprep.subr.mxu0 %v1032
  %2150 = vmatpush1.msra.mxu0 %v1031
  %2151 = vmatprep.subr.mxu0 %v1132
  %2152 = vmatpush1.msra.mxu0 %v1131
  %2153 = vmatprep.subr.mxu0 %v1378
  %2154 = vmatpush1.msra.mxu0 %v1375
  %2155 = vmatprep.subr.mxu0 0.0
  %2156 = vmatpush1.msra.mxu0 0.0
  %2157 = vmatprep.subr.mxu0 0.0
  %2158 = vmatpush1.msra.mxu0 0.0
  %2159 = vmatprep.subr.mxu0 0.0
  %2160 = vmatpush1.msra.mxu0 0.0
  %2161 = vmatprep.subr.mxu0 0.0
  %2162 = vmatpush1.msra.mxu0 0.0
  %2163 = vmatprep.subr.mxu0 0.0
  %2164 = vmatpush1.msra.mxu0 0.0
  %2165 = vmatprep.subr.mxu0 0.0
  %2166 = vmatpush1.msra.mxu0 0.0
  %2167 = vmatprep.subr.mxu0 0.0
  %2168 = vmatpush1.msra.mxu0 0.0
  %2169 = vmatprep.subr.mxu0 0.0
  %2170 = vmatpush1.msra.mxu0 0.0
  %2171 = vmatprep.subr.mxu0 0.0
  %2172 = vmatpush1.msra.mxu0 0.0
  %2173 = vmatprep.subr.mxu0 0.0
  %2174 = vmatpush1.msra.mxu0 0.0
  %2175 = vmatprep.subr.mxu0 0.0
  %2176 = vmatpush1.msra.mxu0 0.0
  %2177 = vmatprep.subr.mxu0 0.0
  %2178 = vmatpush1.msra.mxu0 0.0
  %2179 = vmatprep.subr.mxu0 0.0
  %2180 = vmatpush1.msra.mxu0 0.0
  %2181 = vmatprep.subr.mxu0 0.0
  %2182 = vmatpush1.msra.mxu0 0.0
  %2183 = vmatprep.subr.mxu0 0.0
  %2184 = vmatpush1.msra.mxu0 0.0
  %2185 = vmatprep.subr.mxu0 0.0
  %2186 = vmatpush1.msra.mxu0 0.0
  %2187 = vmatprep.subr.mxu0 0.0
  %2188 = vmatpush1.msra.mxu0 0.0
  %2189 = vmatprep.subr.mxu0 0.0
  %2190 = vmatpush1.msra.mxu0 0.0
  %2191 = vmatprep.subr.mxu0 0.0
  %2192 = vmatpush1.msra.mxu0 0.0
  %2193 = vmatprep.mubr.f32.mxu0 0.0
  %2194 = vmatmul.mubr.f32.gmra.mrb[0].mxu0 %v1329
  %v2195 = vpop.f32.mrb[0].mxu0
  %v2196 = vadd.f32 %v1326, %v2195
  %v2197 = vpop.f32.mrb[0].mxu0
  %v2198 = vadd.f32 %v1326, %v2197
  %2199 = vdwg.mxu0
  %2200 = vmatprep.subr.mxu0 %v34
  %2201 = vmatpush1.msra.mxu0 %v33
  %2202 = vmatprep.subr.mxu0 %v134
  %2203 = vmatpush1.msra.mxu0 %v133
  %2204 = vmatprep.subr.mxu0 %v234
  %2205 = vmatpush1.msra.mxu0 %v233
  %2206 = vmatprep.subr.mxu0 %v334
  %2207 = vmatpush1.msra.mxu0 %v333
  %2208 = vmatprep.subr.mxu0 %v434
  %2209 = vmatpush1.msra.mxu0 %v433
  %2210 = vmatprep.subr.mxu0 %v534
  %2211 = vmatpush1.msra.mxu0 %v533
  %2212 = vmatprep.subr.mxu0 %v634
  %2213 = vmatpush1.msra.mxu0 %v633
  %2214 = vmatprep.subr.mxu0 %v734
  %2215 = vmatpush1.msra.mxu0 %v733
  %2216 = vmatprep.subr.mxu0 %v834
  %2217 = vmatpush1.msra.mxu0 %v833
  %2218 = vmatprep.subr.mxu0 %v934
  %2219 = vmatpush1.msra.mxu0 %v933
  %2220 = vmatprep.subr.mxu0 %v1034
  %2221 = vmatpush1.msra.mxu0 %v1033
  %2222 = vmatprep.subr.mxu0 %v1134
  %2223 = vmatpush1.msra.mxu0 %v1133
  %2224 = vmatprep.subr.mxu0 %v1384
  %2225 = vmatpush1.msra.mxu0 %v1381
  %2226 = vmatprep.subr.mxu0 0.0
  %2227 = vmatpush1.msra.mxu0 0.0
  %2228 = vmatprep.subr.mxu0 0.0
  %2229 = vmatpush1.msra.mxu0 0.0
  %2230 = vmatprep.subr.mxu0 0.0
  %2231 = vmatpush1.msra.mxu0 0.0
  %2232 = vmatprep.subr.mxu0 0.0
  %2233 = vmatpush1.msra.mxu0 0.0
  %2234 = vmatprep.subr.mxu0 0.0
  %2235 = vmatpush1.msra.mxu0 0.0
  %2236 = vmatprep.subr.mxu0 0.0
  %2237 = vmatpush1.msra.mxu0 0.0
  %2238 = vmatprep.subr.mxu0 0.0
  %2239 = vmatpush1.msra.mxu0 0.0
  %2240 = vmatprep.subr.mxu0 0.0
  %2241 = vmatpush1.msra.mxu0 0.0
  %2242 = vmatprep.subr.mxu0 0.0
  %2243 = vmatpush1.msra.mxu0 0.0
  %2244 = vmatprep.subr.mxu0 0.0
  %2245 = vmatpush1.msra.mxu0 0.0
  %2246 = vmatprep.subr.mxu0 0.0
  %2247 = vmatpush1.msra.mxu0 0.0
  %2248 = vmatprep.subr.mxu0 0.0
  %2249 = vmatpush1.msra.mxu0 0.0
  %2250 = vmatprep.subr.mxu0 0.0
  %2251 = vmatpush1.msra.mxu0 0.0
  %2252 = vmatprep.subr.mxu0 0.0
  %2253 = vmatpush1.msra.mxu0 0.0
  %2254 = vmatprep.subr.mxu0 0.0
  %2255 = vmatpush1.msra.mxu0 0.0
  %2256 = vmatprep.subr.mxu0 0.0
  %2257 = vmatpush1.msra.mxu0 0.0
  %2258 = vmatprep.subr.mxu0 0.0
  %2259 = vmatpush1.msra.mxu0 0.0
  %2260 = vmatprep.subr.mxu0 0.0
  %2261 = vmatpush1.msra.mxu0 0.0
  %2262 = vmatprep.subr.mxu0 0.0
  %2263 = vmatpush1.msra.mxu0 0.0
  %2264 = vmatprep.mubr.f32.mxu0 0.0
  %2265 = vmatmul.mubr.f32.gmra.mrb[0].mxu0 %v1329
  %v2266 = vpop.f32.mrb[0].mxu0
  %v2267 = vadd.f32 %v1326, %v2266
  %v2268 = vpop.f32.mrb[0].mxu0
  %v2269 = vadd.f32 %v1326, %v2268
  %2270 = vdwg.mxu0
  %2271 = vmatprep.subr.mxu0 %v36
  %2272 = vmatpush1.msra.mxu0 %v35
  %2273 = vmatprep.subr.mxu0 %v136
  %2274 = vmatpush1.msra.mxu0 %v135
  %2275 = vmatprep.subr.mxu0 %v236
  %2276 = vmatpush1.msra.mxu0 %v235
  %2277 = vmatprep.subr.mxu0 %v336
  %2278 = vmatpush1.msra.mxu0 %v335
  %2279 = vmatprep.subr.mxu0 %v436
  %2280 = vmatpush1.msra.mxu0 %v435
  %2281 = vmatprep.subr.mxu0 %v536
  %2282 = vmatpush1.msra.mxu0 %v535
  %2283 = vmatprep.subr.mxu0 %v636
  %2284 = vmatpush1.msra.mxu0 %v635
  %2285 = vmatprep.subr.mxu0 %v736
  %2286 = vmatpush1.msra.mxu0 %v735
  %2287 = vmatprep.subr.mxu0 %v836
  %2288 = vmatpush1.msra.mxu0 %v835
  %2289 = vmatprep.subr.mxu0 %v936
  %2290 = vmatpush1.msra.mxu0 %v935
  %2291 = vmatprep.subr.mxu0 %v1036
  %2292 = vmatpush1.msra.mxu0 %v1035
  %2293 = vmatprep.subr.mxu0 %v1136
  %2294 = vmatpush1.msra.mxu0 %v1135
  %2295 = vmatprep.subr.mxu0 %v1390
  %2296 = vmatpush1.msra.mxu0 %v1387
  %2297 = vmatprep.subr.mxu0 0.0
  %2298 = vmatpush1.msra.mxu0 0.0
  %2299 = vmatprep.subr.mxu0 0.0
  %2300 = vmatpush1.msra.mxu0 0.0
  %2301 = vmatprep.subr.mxu0 0.0
  %2302 = vmatpush1.msra.mxu0 0.0
  %2303 = vmatprep.subr.mxu0 0.0
  %2304 = vmatpush1.msra.mxu0 0.0
  %2305 = vmatprep.subr.mxu0 0.0
  %2306 = vmatpush1.msra.mxu0 0.0
  %2307 = vmatprep.subr.mxu0 0.0
  %2308 = vmatpush1.msra.mxu0 0.0
  %2309 = vmatprep.subr.mxu0 0.0
  %2310 = vmatpush1.msra.mxu0 0.0
  %2311 = vmatprep.subr.mxu0 0.0
  %2312 = vmatpush1.msra.mxu0 0.0
  %2313 = vmatprep.subr.mxu0 0.0
  %2314 = vmatpush1.msra.mxu0 0.0
  %2315 = vmatprep.subr.mxu0 0.0
  %2316 = vmatpush1.msra.mxu0 0.0
  %2317 = vmatprep.subr.mxu0 0.0
  %2318 = vmatpush1.msra.mxu0 0.0
  %2319 = vmatprep.subr.mxu0 0.0
  %2320 = vmatpush1.msra.mxu0 0.0
  %2321 = vmatprep.subr.mxu0 0.0
  %2322 = vmatpush1.msra.mxu0 0.0
  %2323 = vmatprep.subr.mxu0 0.0
  %2324 = vmatpush1.msra.mxu0 0.0
  %2325 = vmatprep.subr.mxu0 0.0
  %2326 = vmatpush1.msra.mxu0 0.0
  %2327 = vmatprep.subr.mxu0 0.0
  %2328 = vmatpush1.msra.mxu0 0.0
  %2329 = vmatprep.subr.mxu0 0.0
  %2330 = vmatpush1.msra.mxu0 0.0
  %2331 = vmatprep.subr.mxu0 0.0
  %2332 = vmatpush1.msra.mxu0 0.0
  %2333 = vmatprep.subr.mxu0 0.0
  %2334 = vmatpush1.msra.mxu0 0.0
  %2335 = vmatprep.mubr.f32.mxu0 0.0
  %2336 = vmatmul.mubr.f32.gmra.mrb[0].mxu0 %v1329
  %v2337 = vpop.f32.mrb[0].mxu0
  %v2338 = vadd.f32 %v1326, %v2337
  %v2339 = vpop.f32.mrb[0].mxu0
  %v2340 = vadd.f32 %v1326, %v2339
  %2341 = vdwg.mxu0
  %2342 = vmatprep.subr.mxu0 %v38
  %2343 = vmatpush1.msra.mxu0 %v37
  %2344 = vmatprep.subr.mxu0 %v138
  %2345 = vmatpush1.msra.mxu0 %v137
  %2346 = vmatprep.subr.mxu0 %v238
  %2347 = vmatpush1.msra.mxu0 %v237
  %2348 = vmatprep.subr.mxu0 %v338
  %2349 = vmatpush1.msra.mxu0 %v337
  %2350 = vmatprep.subr.mxu0 %v438
  %2351 = vmatpush1.msra.mxu0 %v437
  %2352 = vmatprep.subr.mxu0 %v538
  %2353 = vmatpush1.msra.mxu0 %v537
  %2354 = vmatprep.subr.mxu0 %v638
  %2355 = vmatpush1.msra.mxu0 %v637
  %2356 = vmatprep.subr.mxu0 %v738
  %2357 = vmatpush1.msra.mxu0 %v737
  %2358 = vmatprep.subr.mxu0 %v838
  %2359 = vmatpush1.msra.mxu0 %v837
  %2360 = vmatprep.subr.mxu0 %v938
  %2361 = vmatpush1.msra.mxu0 %v937
  %2362 = vmatprep.subr.mxu0 %v1038
  %2363 = vmatpush1.msra.mxu0 %v1037
  %2364 = vmatprep.subr.mxu0 %v1138
  %2365 = vmatpush1.msra.mxu0 %v1137
  %2366 = vmatprep.subr.mxu0 %v1396
  %2367 = vmatpush1.msra.mxu0 %v1393
  %2368 = vmatprep.subr.mxu0 0.0
  %2369 = vmatpush1.msra.mxu0 0.0
  %2370 = vmatprep.subr.mxu0 0.0
  %2371 = vmatpush1.msra.mxu0 0.0
  %2372 = vmatprep.subr.mxu0 0.0
  %2373 = vmatpush1.msra.mxu0 0.0
  %2374 = vmatprep.subr.mxu0 0.0
  %2375 = vmatpush1.msra.mxu0 0.0
  %2376 = vmatprep.subr.mxu0 0.0
  %2377 = vmatpush1.msra.mxu0 0.0
  %2378 = vmatprep.subr.mxu0 0.0
  %2379 = vmatpush1.msra.mxu0 0.0
  %2380 = vmatprep.subr.mxu0 0.0
  %2381 = vmatpush1.msra.mxu0 0.0
  %2382 = vmatprep.subr.mxu0 0.0
  %2383 = vmatpush1.msra.mxu0 0.0
  %2384 = vmatprep.subr.mxu0 0.0
  %2385 = vmatpush1.msra.mxu0 0.0
  %2386 = vmatprep.subr.mxu0 0.0
  %2387 = vmatpush1.msra.mxu0 0.0
  %2388 = vmatprep.subr.mxu0 0.0
  %2389 = vmatpush1.msra.mxu0 0.0
  %2390 = vmatprep.subr.mxu0 0.0
  %2391 = vmatpush1.msra.mxu0 0.0
  %2392 = vmatprep.subr.mxu0 0.0
  %2393 = vmatpush1.msra.mxu0 0.0
  %2394 = vmatprep.subr.mxu0 0.0
  %2395 = vmatpush1.msra.mxu0 0.0
  %2396 = vmatprep.subr.mxu0 0.0
  %2397 = vmatpush1.msra.mxu0 0.0
  %2398 = vmatprep.subr.mxu0 0.0
  %2399 = vmatpush1.msra.mxu0 0.0
  %2400 = vmatprep.subr.mxu0 0.0
  %2401 = vmatpush1.msra.mxu0 0.0
  %2402 = vmatprep.subr.mxu0 0.0
  %2403 = vmatpush1.msra.mxu0 0.0
  %2404 = vmatprep.subr.mxu0 0.0
  %2405 = vmatpush1.msra.mxu0 0.0
  %2406 = vmatprep.mubr.f32.mxu0 0.0
  %2407 = vmatmul.mubr.f32.gmra.mrb[0].mxu0 %v1329
  %v2408 = vpop.f32.mrb[0].mxu0
  %v2409 = vadd.f32 %v1326, %v2408
  %v2410 = vpop.f32.mrb[0].mxu0
  %v2411 = vadd.f32 %v1326, %v2410
  %2412 = vdwg.mxu0
  %2413 = vmatprep.subr.mxu0 %v40
  %2414 = vmatpush1.msra.mxu0 %v39
  %2415 = vmatprep.subr.mxu0 %v140
  %2416 = vmatpush1.msra.mxu0 %v139
  %2417 = vmatprep.subr.mxu0 %v240
  %2418 = vmatpush1.msra.mxu0 %v239
  %2419 = vmatprep.subr.mxu0 %v340
  %2420 = vmatpush1.msra.mxu0 %v339
  %2421 = vmatprep.subr.mxu0 %v440
  %2422 = vmatpush1.msra.mxu0 %v439
  %2423 = vmatprep.subr.mxu0 %v540
  %2424 = vmatpush1.msra.mxu0 %v539
  %2425 = vmatprep.subr.mxu0 %v640
  %2426 = vmatpush1.msra.mxu0 %v639
  %2427 = vmatprep.subr.mxu0 %v740
  %2428 = vmatpush1.msra.mxu0 %v739
  %2429 = vmatprep.subr.mxu0 %v840
  %2430 = vmatpush1.msra.mxu0 %v839
  %2431 = vmatprep.subr.mxu0 %v940
  %2432 = vmatpush1.msra.mxu0 %v939
  %2433 = vmatprep.subr.mxu0 %v1040
  %2434 = vmatpush1.msra.mxu0 %v1039
  %2435 = vmatprep.subr.mxu0 %v1140
  %2436 = vmatpush1.msra.mxu0 %v1139
  %2437 = vmatprep.subr.mxu0 %v1402
  %2438 = vmatpush1.msra.mxu0 %v1399
  %2439 = vmatprep.subr.mxu0 0.0
  %2440 = vmatpush1.msra.mxu0 0.0
  %2441 = vmatprep.subr.mxu0 0.0
  %2442 = vmatpush1.msra.mxu0 0.0
  %2443 = vmatprep.subr.mxu0 0.0
  %2444 = vmatpush1.msra.mxu0 0.0
  %2445 = vmatprep.subr.mxu0 0.0
  %2446 = vmatpush1.msra.mxu0 0.0
  %2447 = vmatprep.subr.mxu0 0.0
  %2448 = vmatpush1.msra.mxu0 0.0
  %2449 = vmatprep.subr.mxu0 0.0
  %2450 = vmatpush1.msra.mxu0 0.0
  %2451 = vmatprep.subr.mxu0 0.0
  %2452 = vmatpush1.msra.mxu0 0.0
  %2453 = vmatprep.subr.mxu0 0.0
  %2454 = vmatpush1.msra.mxu0 0.0
  %2455 = vmatprep.subr.mxu0 0.0
  %2456 = vmatpush1.msra.mxu0 0.0
  %2457 = vmatprep.subr.mxu0 0.0
  %2458 = vmatpush1.msra.mxu0 0.0
  %2459 = vmatprep.subr.mxu0 0.0
  %2460 = vmatpush1.msra.mxu0 0.0
  %2461 = vmatprep.subr.mxu0 0.0
  %2462 = vmatpush1.msra.mxu0 0.0
  %2463 = vmatprep.subr.mxu0 0.0
  %2464 = vmatpush1.msra.mxu0 0.0
  %2465 = vmatprep.subr.mxu0 0.0
  %2466 = vmatpush1.msra.mxu0 0.0
  %2467 = vmatprep.subr.mxu0 0.0
  %2468 = vmatpush1.msra.mxu0 0.0
  %2469 = vmatprep.subr.mxu0 0.0
  %2470 = vmatpush1.msra.mxu0 0.0
  %2471 = vmatprep.subr.mxu0 0.0
  %2472 = vmatpush1.msra.mxu0 0.0
  %2473 = vmatprep.subr.mxu0 0.0
  %2474 = vmatpush1.msra.mxu0 0.0
  %2475 = vmatprep.subr.mxu0 0.0
  %2476 = vmatpush1.msra.mxu0 0.0
  %2477 = vmatprep.mubr.f32.mxu0 0.0
  %2478 = vmatmul.mubr.f32.gmra.mrb[0].mxu0 %v1329
  %v2479 = vpop.f32.mrb[0].mxu0
  %v2480 = vadd.f32 %v1326, %v2479
  %v2481 = vpop.f32.mrb[0].mxu0
  %v2482 = vadd.f32 %v1326, %v2481
  %2483 = vdwg.mxu0
  %2484 = vmatprep.subr.mxu0 %v42
  %2485 = vmatpush1.msra.mxu0 %v41
  %2486 = vmatprep.subr.mxu0 %v142
  %2487 = vmatpush1.msra.mxu0 %v141
  %2488 = vmatprep.subr.mxu0 %v242
  %2489 = vmatpush1.msra.mxu0 %v241
  %2490 = vmatprep.subr.mxu0 %v342
  %2491 = vmatpush1.msra.mxu0 %v341
  %2492 = vmatprep.subr.mxu0 %v442
  %2493 = vmatpush1.msra.mxu0 %v441
  %2494 = vmatprep.subr.mxu0 %v542
  %2495 = vmatpush1.msra.mxu0 %v541
  %2496 = vmatprep.subr.mxu0 %v642
  %2497 = vmatpush1.msra.mxu0 %v641
  %2498 = vmatprep.subr.mxu0 %v742
  %2499 = vmatpush1.msra.mxu0 %v741
  %2500 = vmatprep.subr.mxu0 %v842
  %2501 = vmatpush1.msra.mxu0 %v841
  %2502 = vmatprep.subr.mxu0 %v942
  %2503 = vmatpush1.msra.mxu0 %v941
  %2504 = vmatprep.subr.mxu0 %v1042
  %2505 = vmatpush1.msra.mxu0 %v1041
  %2506 = vmatprep.subr.mxu0 %v1142
  %2507 = vmatpush1.msra.mxu0 %v1141
  %2508 = vmatprep.subr.mxu0 %v1408
  %2509 = vmatpush1.msra.mxu0 %v1405
  %2510 = vmatprep.subr.mxu0 0.0
  %2511 = vmatpush1.msra.mxu0 0.0
  %2512 = vmatprep.subr.mxu0 0.0
  %2513 = vmatpush1.msra.mxu0 0.0
  %2514 = vmatprep.subr.mxu0 0.0
  %2515 = vmatpush1.msra.mxu0 0.0
  %2516 = vmatprep.subr.mxu0 0.0
  %2517 = vmatpush1.msra.mxu0 0.0
  %2518 = vmatprep.subr.mxu0 0.0
  %2519 = vmatpush1.msra.mxu0 0.0
  %2520 = vmatprep.subr.mxu0 0.0
  %2521 = vmatpush1.msra.mxu0 0.0
  %2522 = vmatprep.subr.mxu0 0.0
  %2523 = vmatpush1.msra.mxu0 0.0
  %2524 = vmatprep.subr.mxu0 0.0
  %2525 = vmatpush1.msra.mxu0 0.0
  %2526 = vmatprep.subr.mxu0 0.0
  %2527 = vmatpush1.msra.mxu0 0.0
  %2528 = vmatprep.subr.mxu0 0.0
  %2529 = vmatpush1.msra.mxu0 0.0
  %2530 = vmatprep.subr.mxu0 0.0
  %2531 = vmatpush1.msra.mxu0 0.0
  %2532 = vmatprep.subr.mxu0 0.0
  %2533 = vmatpush1.msra.mxu0 0.0
  %2534 = vmatprep.subr.mxu0 0.0
  %2535 = vmatpush1.msra.mxu0 0.0
  %2536 = vmatprep.subr.mxu0 0.0
  %2537 = vmatpush1.msra.mxu0 0.0
  %2538 = vmatprep.subr.mxu0 0.0
  %2539 = vmatpush1.msra.mxu0 0.0
  %2540 = vmatprep.subr.mxu0 0.0
  %2541 = vmatpush1.msra.mxu0 0.0
  %2542 = vmatprep.subr.mxu0 0.0
  %2543 = vmatpush1.msra.mxu0 0.0
  %2544 = vmatprep.subr.mxu0 0.0
  %2545 = vmatpush1.msra.mxu0 0.0
  %2546 = vmatprep.subr.mxu0 0.0
  %2547 = vmatpush1.msra.mxu0 0.0
  %2548 = vmatprep.mubr.f32.mxu0 0.0
  %2549 = vmatmul.mubr.f32.gmra.mrb[0].mxu0 %v1329
  %v2550 = vpop.f32.mrb[0].mxu0
  %v2551 = vadd.f32 %v1326, %v2550
  %v2552 = vpop.f32.mrb[0].mxu0
  %v2553 = vadd.f32 %v1326, %v2552
  %2554 = vdwg.mxu0
  %2555 = vmatprep.subr.mxu0 %v44
  %2556 = vmatpush1.msra.mxu0 %v43
  %2557 = vmatprep.subr.mxu0 %v144
  %2558 = vmatpush1.msra.mxu0 %v143
  %2559 = vmatprep.subr.mxu0 %v244
  %2560 = vmatpush1.msra.mxu0 %v243
  %2561 = vmatprep.subr.mxu0 %v344
  %2562 = vmatpush1.msra.mxu0 %v343
  %2563 = vmatprep.subr.mxu0 %v444
  %2564 = vmatpush1.msra.mxu0 %v443
  %2565 = vmatprep.subr.mxu0 %v544
  %2566 = vmatpush1.msra.mxu0 %v543
  %2567 = vmatprep.subr.mxu0 %v644
  %2568 = vmatpush1.msra.mxu0 %v643
  %2569 = vmatprep.subr.mxu0 %v744
  %2570 = vmatpush1.msra.mxu0 %v743
  %2571 = vmatprep.subr.mxu0 %v844
  %2572 = vmatpush1.msra.mxu0 %v843
  %2573 = vmatprep.subr.mxu0 %v944
  %2574 = vmatpush1.msra.mxu0 %v943
  %2575 = vmatprep.subr.mxu0 %v1044
  %2576 = vmatpush1.msra.mxu0 %v1043
  %2577 = vmatprep.subr.mxu0 %v1144
  %2578 = vmatpush1.msra.mxu0 %v1143
  %2579 = vmatprep.subr.mxu0 %v1414
  %2580 = vmatpush1.msra.mxu0 %v1411
  %2581 = vmatprep.subr.mxu0 0.0
  %2582 = vmatpush1.msra.mxu0 0.0
  %2583 = vmatprep.subr.mxu0 0.0
  %2584 = vmatpush1.msra.mxu0 0.0
  %2585 = vmatprep.subr.mxu0 0.0
  %2586 = vmatpush1.msra.mxu0 0.0
  %2587 = vmatprep.subr.mxu0 0.0
  %2588 = vmatpush1.msra.mxu0 0.0
  %2589 = vmatprep.subr.mxu0 0.0
  %2590 = vmatpush1.msra.mxu0 0.0
  %2591 = vmatprep.subr.mxu0 0.0
  %2592 = vmatpush1.msra.mxu0 0.0
  %2593 = vmatprep.subr.mxu0 0.0
  %2594 = vmatpush1.msra.mxu0 0.0
  %2595 = vmatprep.subr.mxu0 0.0
  %2596 = vmatpush1.msra.mxu0 0.0
  %2597 = vmatprep.subr.mxu0 0.0
  %2598 = vmatpush1.msra.mxu0 0.0
  %2599 = vmatprep.subr.mxu0 0.0
  %2600 = vmatpush1.msra.mxu0 0.0
  %2601 = vmatprep.subr.mxu0 0.0
  %2602 = vmatpush1.msra.mxu0 0.0
  %2603 = vmatprep.subr.mxu0 0.0
  %2604 = vmatpush1.msra.mxu0 0.0
  %2605 = vmatprep.subr.mxu0 0.0
  %2606 = vmatpush1.msra.mxu0 0.0
  %2607 = vmatprep.subr.mxu0 0.0
  %2608 = vmatpush1.msra.mxu0 0.0
  %2609 = vmatprep.subr.mxu0 0.0
  %2610 = vmatpush1.msra.mxu0 0.0
  %2611 = vmatprep.subr.mxu0 0.0
  %2612 = vmatpush1.msra.mxu0 0.0
  %2613 = vmatprep.subr.mxu0 0.0
  %2614 = vmatpush1.msra.mxu0 0.0
  %2615 = vmatprep.subr.mxu0 0.0
  %2616 = vmatpush1.msra.mxu0 0.0
  %2617 = vmatprep.subr.mxu0 0.0
  %2618 = vmatpush1.msra.mxu0 0.0
  %2619 = vmatprep.mubr.f32.mxu0 0.0
  %2620 = vmatmul.mubr.f32.gmra.mrb[0].mxu0 %v1329
  %v2621 = vpop.f32.mrb[0].mxu0
  %v2622 = vadd.f32 %v1326, %v2621
  %v2623 = vpop.f32.mrb[0].mxu0
  %v2624 = vadd.f32 %v1326, %v2623
  %2625 = vdwg.mxu0
  %2626 = vmatprep.subr.mxu0 %v46
  %2627 = vmatpush1.msra.mxu0 %v45
  %2628 = vmatprep.subr.mxu0 %v146
  %2629 = vmatpush1.msra.mxu0 %v145
  %2630 = vmatprep.subr.mxu0 %v246
  %2631 = vmatpush1.msra.mxu0 %v245
  %2632 = vmatprep.subr.mxu0 %v346
  %2633 = vmatpush1.msra.mxu0 %v345
  %2634 = vmatprep.subr.mxu0 %v446
  %2635 = vmatpush1.msra.mxu0 %v445
  %2636 = vmatprep.subr.mxu0 %v546
  %2637 = vmatpush1.msra.mxu0 %v545
  %2638 = vmatprep.subr.mxu0 %v646
  %2639 = vmatpush1.msra.mxu0 %v645
  %2640 = vmatprep.subr.mxu0 %v746
  %2641 = vmatpush1.msra.mxu0 %v745
  %2642 = vmatprep.subr.mxu0 %v846
  %2643 = vmatpush1.msra.mxu0 %v845
  %2644 = vmatprep.subr.mxu0 %v946
  %2645 = vmatpush1.msra.mxu0 %v945
  %2646 = vmatprep.subr.mxu0 %v1046
  %2647 = vmatpush1.msra.mxu0 %v1045
  %2648 = vmatprep.subr.mxu0 %v1146
  %2649 = vmatpush1.msra.mxu0 %v1145
  %2650 = vmatprep.subr.mxu0 %v1420
  %2651 = vmatpush1.msra.mxu0 %v1417
  %2652 = vmatprep.subr.mxu0 0.0
  %2653 = vmatpush1.msra.mxu0 0.0
  %2654 = vmatprep.subr.mxu0 0.0
  %2655 = vmatpush1.msra.mxu0 0.0
  %2656 = vmatprep.subr.mxu0 0.0
  %2657 = vmatpush1.msra.mxu0 0.0
  %2658 = vmatprep.subr.mxu0 0.0
  %2659 = vmatpush1.msra.mxu0 0.0
  %2660 = vmatprep.subr.mxu0 0.0
  %2661 = vmatpush1.msra.mxu0 0.0
  %2662 = vmatprep.subr.mxu0 0.0
  %2663 = vmatpush1.msra.mxu0 0.0
  %2664 = vmatprep.subr.mxu0 0.0
  %2665 = vmatpush1.msra.mxu0 0.0
  %2666 = vmatprep.subr.mxu0 0.0
  %2667 = vmatpush1.msra.mxu0 0.0
  %2668 = vmatprep.subr.mxu0 0.0
  %2669 = vmatpush1.msra.mxu0 0.0
  %2670 = vmatprep.subr.mxu0 0.0
  %2671 = vmatpush1.msra.mxu0 0.0
  %2672 = vmatprep.subr.mxu0 0.0
  %2673 = vmatpush1.msra.mxu0 0.0
  %2674 = vmatprep.subr.mxu0 0.0
  %2675 = vmatpush1.msra.mxu0 0.0
  %2676 = vmatprep.subr.mxu0 0.0
  %2677 = vmatpush1.msra.mxu0 0.0
  %2678 = vmatprep.subr.mxu0 0.0
  %2679 = vmatpush1.msra.mxu0 0.0
  %2680 = vmatprep.subr.mxu0 0.0
  %2681 = vmatpush1.msra.mxu0 0.0
  %2682 = vmatprep.subr.mxu0 0.0
  %2683 = vmatpush1.msra.mxu0 0.0
  %2684 = vmatprep.subr.mxu0 0.0
  %2685 = vmatpush1.msra.mxu0 0.0
  %2686 = vmatprep.subr.mxu0 0.0
  %2687 = vmatpush1.msra.mxu0 0.0
  %2688 = vmatprep.subr.mxu0 0.0
  %2689 = vmatpush1.msra.mxu0 0.0
  %2690 = vmatprep.mubr.f32.mxu0 0.0
  %2691 = vmatmul.mubr.f32.gmra.mrb[0].mxu0 %v1329
  %v2692 = vpop.f32.mrb[0].mxu0
  %v2693 = vadd.f32 %v1326, %v2692
  %v2694 = vpop.f32.mrb[0].mxu0
  %v2695 = vadd.f32 %v1326, %v2694
  %2696 = vdwg.mxu0
  %2697 = vmatprep.subr.mxu0 %v48
  %2698 = vmatpush1.msra.mxu0 %v47
  %2699 = vmatprep.subr.mxu0 %v148
  %2700 = vmatpush1.msra.mxu0 %v147
  %2701 = vmatprep.subr.mxu0 %v248
  %2702 = vmatpush1.msra.mxu0 %v247
  %2703 = vmatprep.subr.mxu0 %v348
  %2704 = vmatpush1.msra.mxu0 %v347
  %2705 = vmatprep.subr.mxu0 %v448
  %2706 = vmatpush1.msra.mxu0 %v447
  %2707 = vmatprep.subr.mxu0 %v548
  %2708 = vmatpush1.msra.mxu0 %v547
  %2709 = vmatprep.subr.mxu0 %v648
  %2710 = vmatpush1.msra.mxu0 %v647
  %2711 = vmatprep.subr.mxu0 %v748
  %2712 = vmatpush1.msra.mxu0 %v747
  %2713 = vmatprep.subr.mxu0 %v848
  %2714 = vmatpush1.msra.mxu0 %v847
  %2715 = vmatprep.subr.mxu0 %v948
  %2716 = vmatpush1.msra.mxu0 %v947
  %2717 = vmatprep.subr.mxu0 %v1048
  %2718 = vmatpush1.msra.mxu0 %v1047
  %2719 = vmatprep.subr.mxu0 %v1148
  %2720 = vmatpush1.msra.mxu0 %v1147
  %2721 = vmatprep.subr.mxu0 %v1426
  %2722 = vmatpush1.msra.mxu0 %v1423
  %2723 = vmatprep.subr.mxu0 0.0
  %2724 = vmatpush1.msra.mxu0 0.0
  %2725 = vmatprep.subr.mxu0 0.0
  %2726 = vmatpush1.msra.mxu0 0.0
  %2727 = vmatprep.subr.mxu0 0.0
  %2728 = vmatpush1.msra.mxu0 0.0
  %2729 = vmatprep.subr.mxu0 0.0
  %2730 = vmatpush1.msra.mxu0 0.0
  %2731 = vmatprep.subr.mxu0 0.0
  %2732 = vmatpush1.msra.mxu0 0.0
  %2733 = vmatprep.subr.mxu0 0.0
  %2734 = vmatpush1.msra.mxu0 0.0
  %2735 = vmatprep.subr.mxu0 0.0
  %2736 = vmatpush1.msra.mxu0 0.0
  %2737 = vmatprep.subr.mxu0 0.0
  %2738 = vmatpush1.msra.mxu0 0.0
  %2739 = vmatprep.subr.mxu0 0.0
  %2740 = vmatpush1.msra.mxu0 0.0
  %2741 = vmatprep.subr.mxu0 0.0
  %2742 = vmatpush1.msra.mxu0 0.0
  %2743 = vmatprep.subr.mxu0 0.0
  %2744 = vmatpush1.msra.mxu0 0.0
  %2745 = vmatprep.subr.mxu0 0.0
  %2746 = vmatpush1.msra.mxu0 0.0
  %2747 = vmatprep.subr.mxu0 0.0
  %2748 = vmatpush1.msra.mxu0 0.0
  %2749 = vmatprep.subr.mxu0 0.0
  %2750 = vmatpush1.msra.mxu0 0.0
  %2751 = vmatprep.subr.mxu0 0.0
  %2752 = vmatpush1.msra.mxu0 0.0
  %2753 = vmatprep.subr.mxu0 0.0
  %2754 = vmatpush1.msra.mxu0 0.0
  %2755 = vmatprep.subr.mxu0 0.0
  %2756 = vmatpush1.msra.mxu0 0.0
  %2757 = vmatprep.subr.mxu0 0.0
  %2758 = vmatpush1.msra.mxu0 0.0
  %2759 = vmatprep.subr.mxu0 0.0
  %2760 = vmatpush1.msra.mxu0 0.0
  %2761 = vmatprep.mubr.f32.mxu0 0.0
  %2762 = vmatmul.mubr.f32.gmra.mrb[0].mxu0 %v1329
  %v2763 = vpop.f32.mrb[0].mxu0
  %v2764 = vadd.f32 %v1326, %v2763
  %v2765 = vpop.f32.mrb[0].mxu0
  %v2766 = vadd.f32 %v1326, %v2765
  %2767 = vdwg.mxu0
  %2768 = vmatprep.subr.mxu0 %v50
  %2769 = vmatpush1.msra.mxu0 %v49
  %2770 = vmatprep.subr.mxu0 %v150
  %2771 = vmatpush1.msra.mxu0 %v149
  %2772 = vmatprep.subr.mxu0 %v250
  %2773 = vmatpush1.msra.mxu0 %v249
  %2774 = vmatprep.subr.mxu0 %v350
  %2775 = vmatpush1.msra.mxu0 %v349
  %2776 = vmatprep.subr.mxu0 %v450
  %2777 = vmatpush1.msra.mxu0 %v449
  %2778 = vmatprep.subr.mxu0 %v550
  %2779 = vmatpush1.msra.mxu0 %v549
  %2780 = vmatprep.subr.mxu0 %v650
  %2781 = vmatpush1.msra.mxu0 %v649
  %2782 = vmatprep.subr.mxu0 %v750
  %2783 = vmatpush1.msra.mxu0 %v749
  %2784 = vmatprep.subr.mxu0 %v850
  %2785 = vmatpush1.msra.mxu0 %v849
  %2786 = vmatprep.subr.mxu0 %v950
  %2787 = vmatpush1.msra.mxu0 %v949
  %2788 = vmatprep.subr.mxu0 %v1050
  %2789 = vmatpush1.msra.mxu0 %v1049
  %2790 = vmatprep.subr.mxu0 %v1150
  %2791 = vmatpush1.msra.mxu0 %v1149
  %2792 = vmatprep.subr.mxu0 %v1432
  %2793 = vmatpush1.msra.mxu0 %v1429
  %2794 = vmatprep.subr.mxu0 0.0
  %2795 = vmatpush1.msra.mxu0 0.0
  %2796 = vmatprep.subr.mxu0 0.0
  %2797 = vmatpush1.msra.mxu0 0.0
  %2798 = vmatprep.subr.mxu0 0.0
  %2799 = vmatpush1.msra.mxu0 0.0
  %2800 = vmatprep.subr.mxu0 0.0
  %2801 = vmatpush1.msra.mxu0 0.0
  %2802 = vmatprep.subr.mxu0 0.0
  %2803 = vmatpush1.msra.mxu0 0.0
  %2804 = vmatprep.subr.mxu0 0.0
  %2805 = vmatpush1.msra.mxu0 0.0
  %2806 = vmatprep.subr.mxu0 0.0
  %2807 = vmatpush1.msra.mxu0 0.0
  %2808 = vmatprep.subr.mxu0 0.0
  %2809 = vmatpush1.msra.mxu0 0.0
  %2810 = vmatprep.subr.mxu0 0.0
  %2811 = vmatpush1.msra.mxu0 0.0
  %2812 = vmatprep.subr.mxu0 0.0
  %2813 = vmatpush1.msra.mxu0 0.0
  %2814 = vmatprep.subr.mxu0 0.0
  %2815 = vmatpush1.msra.mxu0 0.0
  %2816 = vmatprep.subr.mxu0 0.0
  %2817 = vmatpush1.msra.mxu0 0.0
  %2818 = vmatprep.subr.mxu0 0.0
  %2819 = vmatpush1.msra.mxu0 0.0
  %2820 = vmatprep.subr.mxu0 0.0
  %2821 = vmatpush1.msra.mxu0 0.0
  %2822 = vmatprep.subr.mxu0 0.0
  %2823 = vmatpush1.msra.mxu0 0.0
  %2824 = vmatprep.subr.mxu0 0.0
  %2825 = vmatpush1.msra.mxu0 0.0
  %2826 = vmatprep.subr.mxu0 0.0
  %2827 = vmatpush1.msra.mxu0 0.0
  %2828 = vmatprep.subr.mxu0 0.0
  %2829 = vmatpush1.msra.mxu0 0.0
  %2830 = vmatprep.subr.mxu0 0.0
  %2831 = vmatpush1.msra.mxu0 0.0
  %2832 = vmatprep.mubr.f32.mxu0 0.0
  %2833 = vmatmul.mubr.f32.gmra.mrb[0].mxu0 %v1329
  %v2834 = vpop.f32.mrb[0].mxu0
  %v2835 = vadd.f32 %v1326, %v2834
  %v2836 = vpop.f32.mrb[0].mxu0
  %v2837 = vadd.f32 %v1326, %v2836
  %2838 = vdwg.mxu0
  %2839 = vmatprep.subr.mxu0 %v52
  %2840 = vmatpush1.msra.mxu0 %v51
  %2841 = vmatprep.subr.mxu0 %v152
  %2842 = vmatpush1.msra.mxu0 %v151
  %2843 = vmatprep.subr.mxu0 %v252
  %2844 = vmatpush1.msra.mxu0 %v251
  %2845 = vmatprep.subr.mxu0 %v352
  %2846 = vmatpush1.msra.mxu0 %v351
  %2847 = vmatprep.subr.mxu0 %v452
  %2848 = vmatpush1.msra.mxu0 %v451
  %2849 = vmatprep.subr.mxu0 %v552
  %2850 = vmatpush1.msra.mxu0 %v551
  %2851 = vmatprep.subr.mxu0 %v652
  %2852 = vmatpush1.msra.mxu0 %v651
  %2853 = vmatprep.subr.mxu0 %v752
  %2854 = vmatpush1.msra.mxu0 %v751
  %2855 = vmatprep.subr.mxu0 %v852
  %2856 = vmatpush1.msra.mxu0 %v851
  %2857 = vmatprep.subr.mxu0 %v952
  %2858 = vmatpush1.msra.mxu0 %v951
  %2859 = vmatprep.subr.mxu0 %v1052
  %2860 = vmatpush1.msra.mxu0 %v1051
  %2861 = vmatprep.subr.mxu0 %v1152
  %2862 = vmatpush1.msra.mxu0 %v1151
  %2863 = vmatprep.subr.mxu0 %v1438
  %2864 = vmatpush1.msra.mxu0 %v1435
  %2865 = vmatprep.subr.mxu0 0.0
  %2866 = vmatpush1.msra.mxu0 0.0
  %2867 = vmatprep.subr.mxu0 0.0
  %2868 = vmatpush1.msra.mxu0 0.0
  %2869 = vmatprep.subr.mxu0 0.0
  %2870 = vmatpush1.msra.mxu0 0.0
  %2871 = vmatprep.subr.mxu0 0.0
  %2872 = vmatpush1.msra.mxu0 0.0
  %2873 = vmatprep.subr.mxu0 0.0
  %2874 = vmatpush1.msra.mxu0 0.0
  %2875 = vmatprep.subr.mxu0 0.0
  %2876 = vmatpush1.msra.mxu0 0.0
  %2877 = vmatprep.subr.mxu0 0.0
  %2878 = vmatpush1.msra.mxu0 0.0
  %2879 = vmatprep.subr.mxu0 0.0
  %2880 = vmatpush1.msra.mxu0 0.0
  %2881 = vmatprep.subr.mxu0 0.0
  %2882 = vmatpush1.msra.mxu0 0.0
  %2883 = vmatprep.subr.mxu0 0.0
  %2884 = vmatpush1.msra.mxu0 0.0
  %2885 = vmatprep.subr.mxu0 0.0
  %2886 = vmatpush1.msra.mxu0 0.0
  %2887 = vmatprep.subr.mxu0 0.0
  %2888 = vmatpush1.msra.mxu0 0.0
  %2889 = vmatprep.subr.mxu0 0.0
  %2890 = vmatpush1.msra.mxu0 0.0
  %2891 = vmatprep.subr.mxu0 0.0
  %2892 = vmatpush1.msra.mxu0 0.0
  %2893 = vmatprep.subr.mxu0 0.0
  %2894 = vmatpush1.msra.mxu0 0.0
  %2895 = vmatprep.subr.mxu0 0.0
  %2896 = vmatpush1.msra.mxu0 0.0
  %2897 = vmatprep.subr.mxu0 0.0
  %2898 = vmatpush1.msra.mxu0 0.0
  %2899 = vmatprep.subr.mxu0 0.0
  %2900 = vmatpush1.msra.mxu0 0.0
  %2901 = vmatprep.subr.mxu0 0.0
  %2902 = vmatpush1.msra.mxu0 0.0
  %2903 = vmatprep.mubr.f32.mxu0 0.0
  %2904 = vmatmul.mubr.f32.gmra.mrb[0].mxu0 %v1329
  %v2905 = vpop.f32.mrb[0].mxu0
  %v2906 = vadd.f32 %v1326, %v2905
  %v2907 = vpop.f32.mrb[0].mxu0
  %v2908 = vadd.f32 %v1326, %v2907
  %2909 = vdwg.mxu0
  %2910 = vmatprep.subr.mxu0 %v54
  %2911 = vmatpush1.msra.mxu0 %v53
  %2912 = vmatprep.subr.mxu0 %v154
  %2913 = vmatpush1.msra.mxu0 %v153
  %2914 = vmatprep.subr.mxu0 %v254
  %2915 = vmatpush1.msra.mxu0 %v253
  %2916 = vmatprep.subr.mxu0 %v354
  %2917 = vmatpush1.msra.mxu0 %v353
  %2918 = vmatprep.subr.mxu0 %v454
  %2919 = vmatpush1.msra.mxu0 %v453
  %2920 = vmatprep.subr.mxu0 %v554
  %2921 = vmatpush1.msra.mxu0 %v553
  %2922 = vmatprep.subr.mxu0 %v654
  %2923 = vmatpush1.msra.mxu0 %v653
  %2924 = vmatprep.subr.mxu0 %v754
  %2925 = vmatpush1.msra.mxu0 %v753
  %2926 = vmatprep.subr.mxu0 %v854
  %2927 = vmatpush1.msra.mxu0 %v853
  %2928 = vmatprep.subr.mxu0 %v954
  %2929 = vmatpush1.msra.mxu0 %v953
  %2930 = vmatprep.subr.mxu0 %v1054
  %2931 = vmatpush1.msra.mxu0 %v1053
  %2932 = vmatprep.subr.mxu0 %v1154
  %2933 = vmatpush1.msra.mxu0 %v1153
  %2934 = vmatprep.subr.mxu0 %v1444
  %2935 = vmatpush1.msra.mxu0 %v1441
  %2936 = vmatprep.subr.mxu0 0.0
  %2937 = vmatpush1.msra.mxu0 0.0
  %2938 = vmatprep.subr.mxu0 0.0
  %2939 = vmatpush1.msra.mxu0 0.0
  %2940 = vmatprep.subr.mxu0 0.0
  %2941 = vmatpush1.msra.mxu0 0.0
  %2942 = vmatprep.subr.mxu0 0.0
  %2943 = vmatpush1.msra.mxu0 0.0
  %2944 = vmatprep.subr.mxu0 0.0
  %2945 = vmatpush1.msra.mxu0 0.0
  %2946 = vmatprep.subr.mxu0 0.0
  %2947 = vmatpush1.msra.mxu0 0.0
  %2948 = vmatprep.subr.mxu0 0.0
  %2949 = vmatpush1.msra.mxu0 0.0
  %2950 = vmatprep.subr.mxu0 0.0
  %2951 = vmatpush1.msra.mxu0 0.0
  %2952 = vmatprep.subr.mxu0 0.0
  %2953 = vmatpush1.msra.mxu0 0.0
  %2954 = vmatprep.subr.mxu0 0.0
  %2955 = vmatpush1.msra.mxu0 0.0
  %2956 = vmatprep.subr.mxu0 0.0
  %2957 = vmatpush1.msra.mxu0 0.0
  %2958 = vmatprep.subr.mxu0 0.0
  %2959 = vmatpush1.msra.mxu0 0.0
  %2960 = vmatprep.subr.mxu0 0.0
  %2961 = vmatpush1.msra.mxu0 0.0
  %2962 = vmatprep.subr.mxu0 0.0
  %2963 = vmatpush1.msra.mxu0 0.0
  %2964 = vmatprep.subr.mxu0 0.0
  %2965 = vmatpush1.msra.mxu0 0.0
  %2966 = vmatprep.subr.mxu0 0.0
  %2967 = vmatpush1.msra.mxu0 0.0
  %2968 = vmatprep.subr.mxu0 0.0
  %2969 = vmatpush1.msra.mxu0 0.0
  %2970 = vmatprep.subr.mxu0 0.0
  %2971 = vmatpush1.msra.mxu0 0.0
  %2972 = vmatprep.subr.mxu0 0.0
  %2973 = vmatpush1.msra.mxu0 0.0
  %2974 = vmatprep.mubr.f32.mxu0 0.0
  %2975 = vmatmul.mubr.f32.gmra.mrb[0].mxu0 %v1329
  %v2976 = vpop.f32.mrb[0].mxu0
  %v2977 = vadd.f32 %v1326, %v2976
  %v2978 = vpop.f32.mrb[0].mxu0
  %v2979 = vadd.f32 %v1326, %v2978
  %2980 = vdwg.mxu0
  %2981 = vmatprep.subr.mxu0 %v56
  %2982 = vmatpush1.msra.mxu0 %v55
  %2983 = vmatprep.subr.mxu0 %v156
  %2984 = vmatpush1.msra.mxu0 %v155
  %2985 = vmatprep.subr.mxu0 %v256
  %2986 = vmatpush1.msra.mxu0 %v255
  %2987 = vmatprep.subr.mxu0 %v356
  %2988 = vmatpush1.msra.mxu0 %v355
  %2989 = vmatprep.subr.mxu0 %v456
  %2990 = vmatpush1.msra.mxu0 %v455
  %2991 = vmatprep.subr.mxu0 %v556
  %2992 = vmatpush1.msra.mxu0 %v555
  %2993 = vmatprep.subr.mxu0 %v656
  %2994 = vmatpush1.msra.mxu0 %v655
  %2995 = vmatprep.subr.mxu0 %v756
  %2996 = vmatpush1.msra.mxu0 %v755
  %2997 = vmatprep.subr.mxu0 %v856
  %2998 = vmatpush1.msra.mxu0 %v855
  %2999 = vmatprep.subr.mxu0 %v956
  %3000 = vmatpush1.msra.mxu0 %v955
  %3001 = vmatprep.subr.mxu0 %v1056
  %3002 = vmatpush1.msra.mxu0 %v1055
  %3003 = vmatprep.subr.mxu0 %v1156
  %3004 = vmatpush1.msra.mxu0 %v1155
  %3005 = vmatprep.subr.mxu0 %v1450
  %3006 = vmatpush1.msra.mxu0 %v1447
  %3007 = vmatprep.subr.mxu0 0.0
  %3008 = vmatpush1.msra.mxu0 0.0
  %3009 = vmatprep.subr.mxu0 0.0
  %3010 = vmatpush1.msra.mxu0 0.0
  %3011 = vmatprep.subr.mxu0 0.0
  %3012 = vmatpush1.msra.mxu0 0.0
  %3013 = vmatprep.subr.mxu0 0.0
  %3014 = vmatpush1.msra.mxu0 0.0
  %3015 = vmatprep.subr.mxu0 0.0
  %3016 = vmatpush1.msra.mxu0 0.0
  %3017 = vmatprep.subr.mxu0 0.0
  %3018 = vmatpush1.msra.mxu0 0.0
  %3019 = vmatprep.subr.mxu0 0.0
  %3020 = vmatpush1.msra.mxu0 0.0
  %3021 = vmatprep.subr.mxu0 0.0
  %3022 = vmatpush1.msra.mxu0 0.0
  %3023 = vmatprep.subr.mxu0 0.0
  %3024 = vmatpush1.msra.mxu0 0.0
  %3025 = vmatprep.subr.mxu0 0.0
  %3026 = vmatpush1.msra.mxu0 0.0
  %3027 = vmatprep.subr.mxu0 0.0
  %3028 = vmatpush1.msra.mxu0 0.0
  %3029 = vmatprep.subr.mxu0 0.0
  %3030 = vmatpush1.msra.mxu0 0.0
  %3031 = vmatprep.subr.mxu0 0.0
  %3032 = vmatpush1.msra.mxu0 0.0
  %3033 = vmatprep.subr.mxu0 0.0
  %3034 = vmatpush1.msra.mxu0 0.0
  %3035 = vmatprep.subr.mxu0 0.0
  %3036 = vmatpush1.msra.mxu0 0.0
  %3037 = vmatprep.subr.mxu0 0.0
  %3038 = vmatpush1.msra.mxu0 0.0
  %3039 = vmatprep.subr.mxu0 0.0
  %3040 = vmatpush1.msra.mxu0 0.0
  %3041 = vmatprep.subr.mxu0 0.0
  %3042 = vmatpush1.msra.mxu0 0.0
  %3043 = vmatprep.subr.mxu0 0.0
  %3044 = vmatpush1.msra.mxu0 0.0
  %3045 = vmatprep.mubr.f32.mxu0 0.0
  %3046 = vmatmul.mubr.f32.gmra.mrb[0].mxu0 %v1329
  %v3047 = vpop.f32.mrb[0].mxu0
  %v3048 = vadd.f32 %v1326, %v3047
  %v3049 = vpop.f32.mrb[0].mxu0
  %v3050 = vadd.f32 %v1326, %v3049
  %3051 = vdwg.mxu0
  %3052 = vmatprep.subr.mxu0 %v58
  %3053 = vmatpush1.msra.mxu0 %v57
  %3054 = vmatprep.subr.mxu0 %v158
  %3055 = vmatpush1.msra.mxu0 %v157
  %3056 = vmatprep.subr.mxu0 %v258
  %3057 = vmatpush1.msra.mxu0 %v257
  %3058 = vmatprep.subr.mxu0 %v358
  %3059 = vmatpush1.msra.mxu0 %v357
  %3060 = vmatprep.subr.mxu0 %v458
  %3061 = vmatpush1.msra.mxu0 %v457
  %3062 = vmatprep.subr.mxu0 %v558
  %3063 = vmatpush1.msra.mxu0 %v557
  %3064 = vmatprep.subr.mxu0 %v658
  %3065 = vmatpush1.msra.mxu0 %v657
  %3066 = vmatprep.subr.mxu0 %v758
  %3067 = vmatpush1.msra.mxu0 %v757
  %3068 = vmatprep.subr.mxu0 %v858
  %3069 = vmatpush1.msra.mxu0 %v857
  %3070 = vmatprep.subr.mxu0 %v958
  %3071 = vmatpush1.msra.mxu0 %v957
  %3072 = vmatprep.subr.mxu0 %v1058
  %3073 = vmatpush1.msra.mxu0 %v1057
  %3074 = vmatprep.subr.mxu0 %v1158
  %3075 = vmatpush1.msra.mxu0 %v1157
  %3076 = vmatprep.subr.mxu0 %v1456
  %3077 = vmatpush1.msra.mxu0 %v1453
  %3078 = vmatprep.subr.mxu0 0.0
  %3079 = vmatpush1.msra.mxu0 0.0
  %3080 = vmatprep.subr.mxu0 0.0
  %3081 = vmatpush1.msra.mxu0 0.0
  %3082 = vmatprep.subr.mxu0 0.0
  %3083 = vmatpush1.msra.mxu0 0.0
  %3084 = vmatprep.subr.mxu0 0.0
  %3085 = vmatpush1.msra.mxu0 0.0
  %3086 = vmatprep.subr.mxu0 0.0
  %3087 = vmatpush1.msra.mxu0 0.0
  %3088 = vmatprep.subr.mxu0 0.0
  %3089 = vmatpush1.msra.mxu0 0.0
  %3090 = vmatprep.subr.mxu0 0.0
  %3091 = vmatpush1.msra.mxu0 0.0
  %3092 = vmatprep.subr.mxu0 0.0
  %3093 = vmatpush1.msra.mxu0 0.0
  %3094 = vmatprep.subr.mxu0 0.0
  %3095 = vmatpush1.msra.mxu0 0.0
  %3096 = vmatprep.subr.mxu0 0.0
  %3097 = vmatpush1.msra.mxu0 0.0
  %3098 = vmatprep.subr.mxu0 0.0
  %3099 = vmatpush1.msra.mxu0 0.0
  %3100 = vmatprep.subr.mxu0 0.0
  %3101 = vmatpush1.msra.mxu0 0.0
  %3102 = vmatprep.subr.mxu0 0.0
  %3103 = vmatpush1.msra.mxu0 0.0
  %3104 = vmatprep.subr.mxu0 0.0
  %3105 = vmatpush1.msra.mxu0 0.0
  %3106 = vmatprep.subr.mxu0 0.0
  %3107 = vmatpush1.msra.mxu0 0.0
  %3108 = vmatprep.subr.mxu0 0.0
  %3109 = vmatpush1.msra.mxu0 0.0
  %3110 = vmatprep.subr.mxu0 0.0
  %3111 = vmatpush1.msra.mxu0 0.0
  %3112 = vmatprep.subr.mxu0 0.0
  %3113 = vmatpush1.msra.mxu0 0.0
  %3114 = vmatprep.subr.mxu0 0.0
  %3115 = vmatpush1.msra.mxu0 0.0
  %3116 = vmatprep.mubr.f32.mxu0 0.0
  %3117 = vmatmul.mubr.f32.gmra.mrb[0].mxu0 %v1329
  %v3118 = vpop.f32.mrb[0].mxu0
  %v3119 = vadd.f32 %v1326, %v3118
  %v3120 = vpop.f32.mrb[0].mxu0
  %v3121 = vadd.f32 %v1326, %v3120
  %3122 = vdwg.mxu0
  %3123 = vmatprep.subr.mxu0 %v60
  %3124 = vmatpush1.msra.mxu0 %v59
  %3125 = vmatprep.subr.mxu0 %v160
  %3126 = vmatpush1.msra.mxu0 %v159
  %3127 = vmatprep.subr.mxu0 %v260
  %3128 = vmatpush1.msra.mxu0 %v259
  %3129 = vmatprep.subr.mxu0 %v360
  %3130 = vmatpush1.msra.mxu0 %v359
  %3131 = vmatprep.subr.mxu0 %v460
  %3132 = vmatpush1.msra.mxu0 %v459
  %3133 = vmatprep.subr.mxu0 %v560
  %3134 = vmatpush1.msra.mxu0 %v559
  %3135 = vmatprep.subr.mxu0 %v660
  %3136 = vmatpush1.msra.mxu0 %v659
  %3137 = vmatprep.subr.mxu0 %v760
  %3138 = vmatpush1.msra.mxu0 %v759
  %3139 = vmatprep.subr.mxu0 %v860
  %3140 = vmatpush1.msra.mxu0 %v859
  %3141 = vmatprep.subr.mxu0 %v960
  %3142 = vmatpush1.msra.mxu0 %v959
  %3143 = vmatprep.subr.mxu0 %v1060
  %3144 = vmatpush1.msra.mxu0 %v1059
  %3145 = vmatprep.subr.mxu0 %v1160
  %3146 = vmatpush1.msra.mxu0 %v1159
  %3147 = vmatprep.subr.mxu0 %v1462
  %3148 = vmatpush1.msra.mxu0 %v1459
  %3149 = vmatprep.subr.mxu0 0.0
  %3150 = vmatpush1.msra.mxu0 0.0
  %3151 = vmatprep.subr.mxu0 0.0
  %3152 = vmatpush1.msra.mxu0 0.0
  %3153 = vmatprep.subr.mxu0 0.0
  %3154 = vmatpush1.msra.mxu0 0.0
  %3155 = vmatprep.subr.mxu0 0.0
  %3156 = vmatpush1.msra.mxu0 0.0
  %3157 = vmatprep.subr.mxu0 0.0
  %3158 = vmatpush1.msra.mxu0 0.0
  %3159 = vmatprep.subr.mxu0 0.0
  %3160 = vmatpush1.msra.mxu0 0.0
  %3161 = vmatprep.subr.mxu0 0.0
  %3162 = vmatpush1.msra.mxu0 0.0
  %3163 = vmatprep.subr.mxu0 0.0
  %3164 = vmatpush1.msra.mxu0 0.0
  %3165 = vmatprep.subr.mxu0 0.0
  %3166 = vmatpush1.msra.mxu0 0.0
  %3167 = vmatprep.subr.mxu0 0.0
  %3168 = vmatpush1.msra.mxu0 0.0
  %3169 = vmatprep.subr.mxu0 0.0
  %3170 = vmatpush1.msra.mxu0 0.0
  %3171 = vmatprep.subr.mxu0 0.0
  %3172 = vmatpush1.msra.mxu0 0.0
  %3173 = vmatprep.subr.mxu0 0.0
  %3174 = vmatpush1.msra.mxu0 0.0
  %3175 = vmatprep.subr.mxu0 0.0
  %3176 = vmatpush1.msra.mxu0 0.0
  %3177 = vmatprep.subr.mxu0 0.0
  %3178 = vmatpush1.msra.mxu0 0.0
  %3179 = vmatprep.subr.mxu0 0.0
  %3180 = vmatpush1.msra.mxu0 0.0
  %3181 = vmatprep.subr.mxu0 0.0
  %3182 = vmatpush1.msra.mxu0 0.0
  %3183 = vmatprep.subr.mxu0 0.0
  %3184 = vmatpush1.msra.mxu0 0.0
  %3185 = vmatprep.subr.mxu0 0.0
  %3186 = vmatpush1.msra.mxu0 0.0
  %3187 = vmatprep.mubr.f32.mxu0 0.0
  %3188 = vmatmul.mubr.f32.gmra.mrb[0].mxu0 %v1329
  %v3189 = vpop.f32.mrb[0].mxu0
  %v3190 = vadd.f32 %v1326, %v3189
  %v3191 = vpop.f32.mrb[0].mxu0
  %v3192 = vadd.f32 %v1326, %v3191
  %3193 = vdwg.mxu0
  %3194 = vmatprep.subr.mxu0 %v62
  %3195 = vmatpush1.msra.mxu0 %v61
  %3196 = vmatprep.subr.mxu0 %v162
  %3197 = vmatpush1.msra.mxu0 %v161
  %3198 = vmatprep.subr.mxu0 %v262
  %3199 = vmatpush1.msra.mxu0 %v261
  %3200 = vmatprep.subr.mxu0 %v362
  %3201 = vmatpush1.msra.mxu0 %v361
  %3202 = vmatprep.subr.mxu0 %v462
  %3203 = vmatpush1.msra.mxu0 %v461
  %3204 = vmatprep.subr.mxu0 %v562
  %3205 = vmatpush1.msra.mxu0 %v561
  %3206 = vmatprep.subr.mxu0 %v662
  %3207 = vmatpush1.msra.mxu0 %v661
  %3208 = vmatprep.subr.mxu0 %v762
  %3209 = vmatpush1.msra.mxu0 %v761
  %3210 = vmatprep.subr.mxu0 %v862
  %3211 = vmatpush1.msra.mxu0 %v861
  %3212 = vmatprep.subr.mxu0 %v962
  %3213 = vmatpush1.msra.mxu0 %v961
  %3214 = vmatprep.subr.mxu0 %v1062
  %3215 = vmatpush1.msra.mxu0 %v1061
  %3216 = vmatprep.subr.mxu0 %v1162
  %3217 = vmatpush1.msra.mxu0 %v1161
  %3218 = vmatprep.subr.mxu0 %v1468
  %3219 = vmatpush1.msra.mxu0 %v1465
  %3220 = vmatprep.subr.mxu0 0.0
  %3221 = vmatpush1.msra.mxu0 0.0
  %3222 = vmatprep.subr.mxu0 0.0
  %3223 = vmatpush1.msra.mxu0 0.0
  %3224 = vmatprep.subr.mxu0 0.0
  %3225 = vmatpush1.msra.mxu0 0.0
  %3226 = vmatprep.subr.mxu0 0.0
  %3227 = vmatpush1.msra.mxu0 0.0
  %3228 = vmatprep.subr.mxu0 0.0
  %3229 = vmatpush1.msra.mxu0 0.0
  %3230 = vmatprep.subr.mxu0 0.0
  %3231 = vmatpush1.msra.mxu0 0.0
  %3232 = vmatprep.subr.mxu0 0.0
  %3233 = vmatpush1.msra.mxu0 0.0
  %3234 = vmatprep.subr.mxu0 0.0
  %3235 = vmatpush1.msra.mxu0 0.0
  %3236 = vmatprep.subr.mxu0 0.0
  %3237 = vmatpush1.msra.mxu0 0.0
  %3238 = vmatprep.subr.mxu0 0.0
  %3239 = vmatpush1.msra.mxu0 0.0
  %3240 = vmatprep.subr.mxu0 0.0
  %3241 = vmatpush1.msra.mxu0 0.0
  %3242 = vmatprep.subr.mxu0 0.0
  %3243 = vmatpush1.msra.mxu0 0.0
  %3244 = vmatprep.subr.mxu0 0.0
  %3245 = vmatpush1.msra.mxu0 0.0
  %3246 = vmatprep.subr.mxu0 0.0
  %3247 = vmatpush1.msra.mxu0 0.0
  %3248 = vmatprep.subr.mxu0 0.0
  %3249 = vmatpush1.msra.mxu0 0.0
  %3250 = vmatprep.subr.mxu0 0.0
  %3251 = vmatpush1.msra.mxu0 0.0
  %3252 = vmatprep.subr.mxu0 0.0
  %3253 = vmatpush1.msra.mxu0 0.0
  %3254 = vmatprep.subr.mxu0 0.0
  %3255 = vmatpush1.msra.mxu0 0.0
  %3256 = vmatprep.subr.mxu0 0.0
  %3257 = vmatpush1.msra.mxu0 0.0
  %3258 = vmatprep.mubr.f32.mxu0 0.0
  %3259 = vmatmul.mubr.f32.gmra.mrb[0].mxu0 %v1329
  %v3260 = vpop.f32.mrb[0].mxu0
  %v3261 = vadd.f32 %v1326, %v3260
  %v3262 = vpop.f32.mrb[0].mxu0
  %v3263 = vadd.f32 %v1326, %v3262
  %3264 = vdwg.mxu0
  %3265 = vmatprep.subr.mxu0 %v64
  %3266 = vmatpush1.msra.mxu0 %v63
  %3267 = vmatprep.subr.mxu0 %v164
  %3268 = vmatpush1.msra.mxu0 %v163
  %3269 = vmatprep.subr.mxu0 %v264
  %3270 = vmatpush1.msra.mxu0 %v263
  %3271 = vmatprep.subr.mxu0 %v364
  %3272 = vmatpush1.msra.mxu0 %v363
  %3273 = vmatprep.subr.mxu0 %v464
  %3274 = vmatpush1.msra.mxu0 %v463
  %3275 = vmatprep.subr.mxu0 %v564
  %3276 = vmatpush1.msra.mxu0 %v563
  %3277 = vmatprep.subr.mxu0 %v664
  %3278 = vmatpush1.msra.mxu0 %v663
  %3279 = vmatprep.subr.mxu0 %v764
  %3280 = vmatpush1.msra.mxu0 %v763
  %3281 = vmatprep.subr.mxu0 %v864
  %3282 = vmatpush1.msra.mxu0 %v863
  %3283 = vmatprep.subr.mxu0 %v964
  %3284 = vmatpush1.msra.mxu0 %v963
  %3285 = vmatprep.subr.mxu0 %v1064
  %3286 = vmatpush1.msra.mxu0 %v1063
  %3287 = vmatprep.subr.mxu0 %v1164
  %3288 = vmatpush1.msra.mxu0 %v1163
  %3289 = vmatprep.subr.mxu0 %v1474
  %3290 = vmatpush1.msra.mxu0 %v1471
  %3291 = vmatprep.subr.mxu0 0.0
  %3292 = vmatpush1.msra.mxu0 0.0
  %3293 = vmatprep.subr.mxu0 0.0
  %3294 = vmatpush1.msra.mxu0 0.0
  %3295 = vmatprep.subr.mxu0 0.0
  %3296 = vmatpush1.msra.mxu0 0.0
  %3297 = vmatprep.subr.mxu0 0.0
  %3298 = vmatpush1.msra.mxu0 0.0
  %3299 = vmatprep.subr.mxu0 0.0
  %3300 = vmatpush1.msra.mxu0 0.0
  %3301 = vmatprep.subr.mxu0 0.0
  %3302 = vmatpush1.msra.mxu0 0.0
  %3303 = vmatprep.subr.mxu0 0.0
  %3304 = vmatpush1.msra.mxu0 0.0
  %3305 = vmatprep.subr.mxu0 0.0
  %3306 = vmatpush1.msra.mxu0 0.0
  %3307 = vmatprep.subr.mxu0 0.0
  %3308 = vmatpush1.msra.mxu0 0.0
  %3309 = vmatprep.subr.mxu0 0.0
  %3310 = vmatpush1.msra.mxu0 0.0
  %3311 = vmatprep.subr.mxu0 0.0
  %3312 = vmatpush1.msra.mxu0 0.0
  %3313 = vmatprep.subr.mxu0 0.0
  %3314 = vmatpush1.msra.mxu0 0.0
  %3315 = vmatprep.subr.mxu0 0.0
  %3316 = vmatpush1.msra.mxu0 0.0
  %3317 = vmatprep.subr.mxu0 0.0
  %3318 = vmatpush1.msra.mxu0 0.0
  %3319 = vmatprep.subr.mxu0 0.0
  %3320 = vmatpush1.msra.mxu0 0.0
  %3321 = vmatprep.subr.mxu0 0.0
  %3322 = vmatpush1.msra.mxu0 0.0
  %3323 = vmatprep.subr.mxu0 0.0
  %3324 = vmatpush1.msra.mxu0 0.0
  %3325 = vmatprep.subr.mxu0 0.0
  %3326 = vmatpush1.msra.mxu0 0.0
  %3327 = vmatprep.subr.mxu0 0.0
  %3328 = vmatpush1.msra.mxu0 0.0
  %3329 = vmatprep.mubr.f32.mxu0 0.0
  %3330 = vmatmul.mubr.f32.gmra.mrb[0].mxu0 %v1329
  %v3331 = vpop.f32.mrb[0].mxu0
  %v3332 = vadd.f32 %v1326, %v3331
  %v3333 = vpop.f32.mrb[0].mxu0
  %v3334 = vadd.f32 %v1326, %v3333
  %3335 = vdwg.mxu0
  %3336 = vmatprep.subr.mxu0 %v66
  %3337 = vmatpush1.msra.mxu0 %v65
  %3338 = vmatprep.subr.mxu0 %v166
  %3339 = vmatpush1.msra.mxu0 %v165
  %3340 = vmatprep.subr.mxu0 %v266
  %3341 = vmatpush1.msra.mxu0 %v265
  %3342 = vmatprep.subr.mxu0 %v366
  %3343 = vmatpush1.msra.mxu0 %v365
  %3344 = vmatprep.subr.mxu0 %v466
  %3345 = vmatpush1.msra.mxu0 %v465
  %3346 = vmatprep.subr.mxu0 %v566
  %3347 = vmatpush1.msra.mxu0 %v565
  %3348 = vmatprep.subr.mxu0 %v666
  %3349 = vmatpush1.msra.mxu0 %v665
  %3350 = vmatprep.subr.mxu0 %v766
  %3351 = vmatpush1.msra.mxu0 %v765
  %3352 = vmatprep.subr.mxu0 %v866
  %3353 = vmatpush1.msra.mxu0 %v865
  %3354 = vmatprep.subr.mxu0 %v966
  %3355 = vmatpush1.msra.mxu0 %v965
  %3356 = vmatprep.subr.mxu0 %v1066
  %3357 = vmatpush1.msra.mxu0 %v1065
  %3358 = vmatprep.subr.mxu0 %v1166
  %3359 = vmatpush1.msra.mxu0 %v1165
  %3360 = vmatprep.subr.mxu0 %v1480
  %3361 = vmatpush1.msra.mxu0 %v1477
  %3362 = vmatprep.subr.mxu0 0.0
  %3363 = vmatpush1.msra.mxu0 0.0
  %3364 = vmatprep.subr.mxu0 0.0
  %3365 = vmatpush1.msra.mxu0 0.0
  %3366 = vmatprep.subr.mxu0 0.0
  %3367 = vmatpush1.msra.mxu0 0.0
  %3368 = vmatprep.subr.mxu0 0.0
  %3369 = vmatpush1.msra.mxu0 0.0
  %3370 = vmatprep.subr.mxu0 0.0
  %3371 = vmatpush1.msra.mxu0 0.0
  %3372 = vmatprep.subr.mxu0 0.0
  %3373 = vmatpush1.msra.mxu0 0.0
  %3374 = vmatprep.subr.mxu0 0.0
  %3375 = vmatpush1.msra.mxu0 0.0
  %3376 = vmatprep.subr.mxu0 0.0
  %3377 = vmatpush1.msra.mxu0 0.0
  %3378 = vmatprep.subr.mxu0 0.0
  %3379 = vmatpush1.msra.mxu0 0.0
  %3380 = vmatprep.subr.mxu0 0.0
  %3381 = vmatpush1.msra.mxu0 0.0
  %3382 = vmatprep.subr.mxu0 0.0
  %3383 = vmatpush1.msra.mxu0 0.0
  %3384 = vmatprep.subr.mxu0 0.0
  %3385 = vmatpush1.msra.mxu0 0.0
  %3386 = vmatprep.subr.mxu0 0.0
  %3387 = vmatpush1.msra.mxu0 0.0
  %3388 = vmatprep.subr.mxu0 0.0
  %3389 = vmatpush1.msra.mxu0 0.0
  %3390 = vmatprep.subr.mxu0 0.0
  %3391 = vmatpush1.msra.mxu0 0.0
  %3392 = vmatprep.subr.mxu0 0.0
  %3393 = vmatpush1.msra.mxu0 0.0
  %3394 = vmatprep.subr.mxu0 0.0
  %3395 = vmatpush1.msra.mxu0 0.0
  %3396 = vmatprep.subr.mxu0 0.0
  %3397 = vmatpush1.msra.mxu0 0.0
  %3398 = vmatprep.subr.mxu0 0.0
  %3399 = vmatpush1.msra.mxu0 0.0
  %3400 = vmatprep.mubr.f32.mxu0 0.0
  %3401 = vmatmul.mubr.f32.gmra.mrb[0].mxu0 %v1329
  %v3402 = vpop.f32.mrb[0].mxu0
  %v3403 = vadd.f32 %v1326, %v3402
  %v3404 = vpop.f32.mrb[0].mxu0
  %v3405 = vadd.f32 %v1326, %v3404
  %3406 = vdwg.mxu0
  %3407 = vmatprep.subr.mxu0 %v68
  %3408 = vmatpush1.msra.mxu0 %v67
  %3409 = vmatprep.subr.mxu0 %v168
  %3410 = vmatpush1.msra.mxu0 %v167
  %3411 = vmatprep.subr.mxu0 %v268
  %3412 = vmatpush1.msra.mxu0 %v267
  %3413 = vmatprep.subr.mxu0 %v368
  %3414 = vmatpush1.msra.mxu0 %v367
  %3415 = vmatprep.subr.mxu0 %v468
  %3416 = vmatpush1.msra.mxu0 %v467
  %3417 = vmatprep.subr.mxu0 %v568
  %3418 = vmatpush1.msra.mxu0 %v567
  %3419 = vmatprep.subr.mxu0 %v668
  %3420 = vmatpush1.msra.mxu0 %v667
  %3421 = vmatprep.subr.mxu0 %v768
  %3422 = vmatpush1.msra.mxu0 %v767
  %3423 = vmatprep.subr.mxu0 %v868
  %3424 = vmatpush1.msra.mxu0 %v867
  %3425 = vmatprep.subr.mxu0 %v968
  %3426 = vmatpush1.msra.mxu0 %v967
  %3427 = vmatprep.subr.mxu0 %v1068
  %3428 = vmatpush1.msra.mxu0 %v1067
  %3429 = vmatprep.subr.mxu0 %v1168
  %3430 = vmatpush1.msra.mxu0 %v1167
  %3431 = vmatprep.subr.mxu0 %v1486
  %3432 = vmatpush1.msra.mxu0 %v1483
  %3433 = vmatprep.subr.mxu0 0.0
  %3434 = vmatpush1.msra.mxu0 0.0
  %3435 = vmatprep.subr.mxu0 0.0
  %3436 = vmatpush1.msra.mxu0 0.0
  %3437 = vmatprep.subr.mxu0 0.0
  %3438 = vmatpush1.msra.mxu0 0.0
  %3439 = vmatprep.subr.mxu0 0.0
  %3440 = vmatpush1.msra.mxu0 0.0
  %3441 = vmatprep.subr.mxu0 0.0
  %3442 = vmatpush1.msra.mxu0 0.0
  %3443 = vmatprep.subr.mxu0 0.0
  %3444 = vmatpush1.msra.mxu0 0.0
  %3445 = vmatprep.subr.mxu0 0.0
  %3446 = vmatpush1.msra.mxu0 0.0
  %3447 = vmatprep.subr.mxu0 0.0
  %3448 = vmatpush1.msra.mxu0 0.0
  %3449 = vmatprep.subr.mxu0 0.0
  %3450 = vmatpush1.msra.mxu0 0.0
  %3451 = vmatprep.subr.mxu0 0.0
  %3452 = vmatpush1.msra.mxu0 0.0
  %3453 = vmatprep.subr.mxu0 0.0
  %3454 = vmatpush1.msra.mxu0 0.0
  %3455 = vmatprep.subr.mxu0 0.0
  %3456 = vmatpush1.msra.mxu0 0.0
  %3457 = vmatprep.subr.mxu0 0.0
  %3458 = vmatpush1.msra.mxu0 0.0
  %3459 = vmatprep.subr.mxu0 0.0
  %3460 = vmatpush1.msra.mxu0 0.0
  %3461 = vmatprep.subr.mxu0 0.0
  %3462 = vmatpush1.msra.mxu0 0.0
  %3463 = vmatprep.subr.mxu0 0.0
  %3464 = vmatpush1.msra.mxu0 0.0
  %3465 = vmatprep.subr.mxu0 0.0
  %3466 = vmatpush1.msra.mxu0 0.0
  %3467 = vmatprep.subr.mxu0 0.0
  %3468 = vmatpush1.msra.mxu0 0.0
  %3469 = vmatprep.subr.mxu0 0.0
  %3470 = vmatpush1.msra.mxu0 0.0
  %3471 = vmatprep.mubr.f32.mxu0 0.0
  %3472 = vmatmul.mubr.f32.gmra.mrb[0].mxu0 %v1329
  %v3473 = vpop.f32.mrb[0].mxu0
  %v3474 = vadd.f32 %v1326, %v3473
  %v3475 = vpop.f32.mrb[0].mxu0
  %v3476 = vadd.f32 %v1326, %v3475
  %3477 = vdwg.mxu0
  %3478 = vmatprep.subr.mxu0 %v70
  %3479 = vmatpush1.msra.mxu0 %v69
  %3480 = vmatprep.subr.mxu0 %v170
  %3481 = vmatpush1.msra.mxu0 %v169
  %3482 = vmatprep.subr.mxu0 %v270
  %3483 = vmatpush1.msra.mxu0 %v269
  %3484 = vmatprep.subr.mxu0 %v370
  %3485 = vmatpush1.msra.mxu0 %v369
  %3486 = vmatprep.subr.mxu0 %v470
  %3487 = vmatpush1.msra.mxu0 %v469
  %3488 = vmatprep.subr.mxu0 %v570
  %3489 = vmatpush1.msra.mxu0 %v569
  %3490 = vmatprep.subr.mxu0 %v670
  %3491 = vmatpush1.msra.mxu0 %v669
  %3492 = vmatprep.subr.mxu0 %v770
  %3493 = vmatpush1.msra.mxu0 %v769
  %3494 = vmatprep.subr.mxu0 %v870
  %3495 = vmatpush1.msra.mxu0 %v869
  %3496 = vmatprep.subr.mxu0 %v970
  %3497 = vmatpush1.msra.mxu0 %v969
  %3498 = vmatprep.subr.mxu0 %v1070
  %3499 = vmatpush1.msra.mxu0 %v1069
  %3500 = vmatprep.subr.mxu0 %v1170
  %3501 = vmatpush1.msra.mxu0 %v1169
  %3502 = vmatprep.subr.mxu0 %v1492
  %3503 = vmatpush1.msra.mxu0 %v1489
  %3504 = vmatprep.subr.mxu0 0.0
  %3505 = vmatpush1.msra.mxu0 0.0
  %3506 = vmatprep.subr.mxu0 0.0
  %3507 = vmatpush1.msra.mxu0 0.0
  %3508 = vmatprep.subr.mxu0 0.0
  %3509 = vmatpush1.msra.mxu0 0.0
  %3510 = vmatprep.subr.mxu0 0.0
  %3511 = vmatpush1.msra.mxu0 0.0
  %3512 = vmatprep.subr.mxu0 0.0
  %3513 = vmatpush1.msra.mxu0 0.0
  %3514 = vmatprep.subr.mxu0 0.0
  %3515 = vmatpush1.msra.mxu0 0.0
  %3516 = vmatprep.subr.mxu0 0.0
  %3517 = vmatpush1.msra.mxu0 0.0
  %3518 = vmatprep.subr.mxu0 0.0
  %3519 = vmatpush1.msra.mxu0 0.0
  %3520 = vmatprep.subr.mxu0 0.0
  %3521 = vmatpush1.msra.mxu0 0.0
  %3522 = vmatprep.subr.mxu0 0.0
  %3523 = vmatpush1.msra.mxu0 0.0
  %3524 = vmatprep.subr.mxu0 0.0
  %3525 = vmatpush1.msra.mxu0 0.0
  %3526 = vmatprep.subr.mxu0 0.0
  %3527 = vmatpush1.msra.mxu0 0.0
  %3528 = vmatprep.subr.mxu0 0.0
  %3529 = vmatpush1.msra.mxu0 0.0
  %3530 = vmatprep.subr.mxu0 0.0
  %3531 = vmatpush1.msra.mxu0 0.0
  %3532 = vmatprep.subr.mxu0 0.0
  %3533 = vmatpush1.msra.mxu0 0.0
  %3534 = vmatprep.subr.mxu0 0.0
  %3535 = vmatpush1.msra.mxu0 0.0
  %3536 = vmatprep.subr.mxu0 0.0
  %3537 = vmatpush1.msra.mxu0 0.0
  %3538 = vmatprep.subr.mxu0 0.0
  %3539 = vmatpush1.msra.mxu0 0.0
  %3540 = vmatprep.subr.mxu0 0.0
  %3541 = vmatpush1.msra.mxu0 0.0
  %3542 = vmatprep.mubr.f32.mxu0 0.0
  %3543 = vmatmul.mubr.f32.gmra.mrb[0].mxu0 %v1329
  %v3544 = vpop.f32.mrb[0].mxu0
  %v3545 = vadd.f32 %v1326, %v3544
  %v3546 = vpop.f32.mrb[0].mxu0
  %v3547 = vadd.f32 %v1326, %v3546
  %3548 = vdwg.mxu0
  %3549 = vmatprep.subr.mxu0 %v72
  %3550 = vmatpush1.msra.mxu0 %v71
  %3551 = vmatprep.subr.mxu0 %v172
  %3552 = vmatpush1.msra.mxu0 %v171
  %3553 = vmatprep.subr.mxu0 %v272
  %3554 = vmatpush1.msra.mxu0 %v271
  %3555 = vmatprep.subr.mxu0 %v372
  %3556 = vmatpush1.msra.mxu0 %v371
  %3557 = vmatprep.subr.mxu0 %v472
  %3558 = vmatpush1.msra.mxu0 %v471
  %3559 = vmatprep.subr.mxu0 %v572
  %3560 = vmatpush1.msra.mxu0 %v571
  %3561 = vmatprep.subr.mxu0 %v672
  %3562 = vmatpush1.msra.mxu0 %v671
  %3563 = vmatprep.subr.mxu0 %v772
  %3564 = vmatpush1.msra.mxu0 %v771
  %3565 = vmatprep.subr.mxu0 %v872
  %3566 = vmatpush1.msra.mxu0 %v871
  %3567 = vmatprep.subr.mxu0 %v972
  %3568 = vmatpush1.msra.mxu0 %v971
  %3569 = vmatprep.subr.mxu0 %v1072
  %3570 = vmatpush1.msra.mxu0 %v1071
  %3571 = vmatprep.subr.mxu0 %v1172
  %3572 = vmatpush1.msra.mxu0 %v1171
  %3573 = vmatprep.subr.mxu0 %v1498
  %3574 = vmatpush1.msra.mxu0 %v1495
  %3575 = vmatprep.subr.mxu0 0.0
  %3576 = vmatpush1.msra.mxu0 0.0
  %3577 = vmatprep.subr.mxu0 0.0
  %3578 = vmatpush1.msra.mxu0 0.0
  %3579 = vmatprep.subr.mxu0 0.0
  %3580 = vmatpush1.msra.mxu0 0.0
  %3581 = vmatprep.subr.mxu0 0.0
  %3582 = vmatpush1.msra.mxu0 0.0
  %3583 = vmatprep.subr.mxu0 0.0
  %3584 = vmatpush1.msra.mxu0 0.0
  %3585 = vmatprep.subr.mxu0 0.0
  %3586 = vmatpush1.msra.mxu0 0.0
  %3587 = vmatprep.subr.mxu0 0.0
  %3588 = vmatpush1.msra.mxu0 0.0
  %3589 = vmatprep.subr.mxu0 0.0
  %3590 = vmatpush1.msra.mxu0 0.0
  %3591 = vmatprep.subr.mxu0 0.0
  %3592 = vmatpush1.msra.mxu0 0.0
  %3593 = vmatprep.subr.mxu0 0.0
  %3594 = vmatpush1.msra.mxu0 0.0
  %3595 = vmatprep.subr.mxu0 0.0
  %3596 = vmatpush1.msra.mxu0 0.0
  %3597 = vmatprep.subr.mxu0 0.0
  %3598 = vmatpush1.msra.mxu0 0.0
  %3599 = vmatprep.subr.mxu0 0.0
  %3600 = vmatpush1.msra.mxu0 0.0
  %3601 = vmatprep.subr.mxu0 0.0
  %3602 = vmatpush1.msra.mxu0 0.0
  %3603 = vmatprep.subr.mxu0 0.0
  %3604 = vmatpush1.msra.mxu0 0.0
  %3605 = vmatprep.subr.mxu0 0.0
  %3606 = vmatpush1.msra.mxu0 0.0
  %3607 = vmatprep.subr.mxu0 0.0
  %3608 = vmatpush1.msra.mxu0 0.0
  %3609 = vmatprep.subr.mxu0 0.0
  %3610 = vmatpush1.msra.mxu0 0.0
  %3611 = vmatprep.subr.mxu0 0.0
  %3612 = vmatpush1.msra.mxu0 0.0
  %3613 = vmatprep.mubr.f32.mxu0 0.0
  %3614 = vmatmul.mubr.f32.gmra.mrb[0].mxu0 %v1329
  %v3615 = vpop.f32.mrb[0].mxu0
  %v3616 = vadd.f32 %v1326, %v3615
  %v3617 = vpop.f32.mrb[0].mxu0
  %v3618 = vadd.f32 %v1326, %v3617
  %3619 = vdwg.mxu0
  %3620 = vmatprep.subr.mxu0 %v74
  %3621 = vmatpush1.msra.mxu0 %v73
  %3622 = vmatprep.subr.mxu0 %v174
  %3623 = vmatpush1.msra.mxu0 %v173
  %3624 = vmatprep.subr.mxu0 %v274
  %3625 = vmatpush1.msra.mxu0 %v273
  %3626 = vmatprep.subr.mxu0 %v374
  %3627 = vmatpush1.msra.mxu0 %v373
  %3628 = vmatprep.subr.mxu0 %v474
  %3629 = vmatpush1.msra.mxu0 %v473
  %3630 = vmatprep.subr.mxu0 %v574
  %3631 = vmatpush1.msra.mxu0 %v573
  %3632 = vmatprep.subr.mxu0 %v674
  %3633 = vmatpush1.msra.mxu0 %v673
  %3634 = vmatprep.subr.mxu0 %v774
  %3635 = vmatpush1.msra.mxu0 %v773
  %3636 = vmatprep.subr.mxu0 %v874
  %3637 = vmatpush1.msra.mxu0 %v873
  %3638 = vmatprep.subr.mxu0 %v974
  %3639 = vmatpush1.msra.mxu0 %v973
  %3640 = vmatprep.subr.mxu0 %v1074
  %3641 = vmatpush1.msra.mxu0 %v1073
  %3642 = vmatprep.subr.mxu0 %v1174
  %3643 = vmatpush1.msra.mxu0 %v1173
  %3644 = vmatprep.subr.mxu0 %v1504
  %3645 = vmatpush1.msra.mxu0 %v1501
  %3646 = vmatprep.subr.mxu0 0.0
  %3647 = vmatpush1.msra.mxu0 0.0
  %3648 = vmatprep.subr.mxu0 0.0
  %3649 = vmatpush1.msra.mxu0 0.0
  %3650 = vmatprep.subr.mxu0 0.0
  %3651 = vmatpush1.msra.mxu0 0.0
  %3652 = vmatprep.subr.mxu0 0.0
  %3653 = vmatpush1.msra.mxu0 0.0
  %3654 = vmatprep.subr.mxu0 0.0
  %3655 = vmatpush1.msra.mxu0 0.0
  %3656 = vmatprep.subr.mxu0 0.0
  %3657 = vmatpush1.msra.mxu0 0.0
  %3658 = vmatprep.subr.mxu0 0.0
  %3659 = vmatpush1.msra.mxu0 0.0
  %3660 = vmatprep.subr.mxu0 0.0
  %3661 = vmatpush1.msra.mxu0 0.0
  %3662 = vmatprep.subr.mxu0 0.0
  %3663 = vmatpush1.msra.mxu0 0.0
  %3664 = vmatprep.subr.mxu0 0.0
  %3665 = vmatpush1.msra.mxu0 0.0
  %3666 = vmatprep.subr.mxu0 0.0
  %3667 = vmatpush1.msra.mxu0 0.0
  %3668 = vmatprep.subr.mxu0 0.0
  %3669 = vmatpush1.msra.mxu0 0.0
  %3670 = vmatprep.subr.mxu0 0.0
  %3671 = vmatpush1.msra.mxu0 0.0
  %3672 = vmatprep.subr.mxu0 0.0
  %3673 = vmatpush1.msra.mxu0 0.0
  %3674 = vmatprep.subr.mxu0 0.0
  %3675 = vmatpush1.msra.mxu0 0.0
  %3676 = vmatprep.subr.mxu0 0.0
  %3677 = vmatpush1.msra.mxu0 0.0
  %3678 = vmatprep.subr.mxu0 0.0
  %3679 = vmatpush1.msra.mxu0 0.0
  %3680 = vmatprep.subr.mxu0 0.0
  %3681 = vmatpush1.msra.mxu0 0.0
  %3682 = vmatprep.subr.mxu0 0.0
  %3683 = vmatpush1.msra.mxu0 0.0
  %3684 = vmatprep.mubr.f32.mxu0 0.0
  %3685 = vmatmul.mubr.f32.gmra.mrb[0].mxu0 %v1329
  %v3686 = vpop.f32.mrb[0].mxu0
  %v3687 = vadd.f32 %v1326, %v3686
  %v3688 = vpop.f32.mrb[0].mxu0
  %v3689 = vadd.f32 %v1326, %v3688
  %3690 = vdwg.mxu0
  %3691 = vmatprep.subr.mxu0 %v76
  %3692 = vmatpush1.msra.mxu0 %v75
  %3693 = vmatprep.subr.mxu0 %v176
  %3694 = vmatpush1.msra.mxu0 %v175
  %3695 = vmatprep.subr.mxu0 %v276
  %3696 = vmatpush1.msra.mxu0 %v275
  %3697 = vmatprep.subr.mxu0 %v376
  %3698 = vmatpush1.msra.mxu0 %v375
  %3699 = vmatprep.subr.mxu0 %v476
  %3700 = vmatpush1.msra.mxu0 %v475
  %3701 = vmatprep.subr.mxu0 %v576
  %3702 = vmatpush1.msra.mxu0 %v575
  %3703 = vmatprep.subr.mxu0 %v676
  %3704 = vmatpush1.msra.mxu0 %v675
  %3705 = vmatprep.subr.mxu0 %v776
  %3706 = vmatpush1.msra.mxu0 %v775
  %3707 = vmatprep.subr.mxu0 %v876
  %3708 = vmatpush1.msra.mxu0 %v875
  %3709 = vmatprep.subr.mxu0 %v976
  %3710 = vmatpush1.msra.mxu0 %v975
  %3711 = vmatprep.subr.mxu0 %v1076
  %3712 = vmatpush1.msra.mxu0 %v1075
  %3713 = vmatprep.subr.mxu0 %v1176
  %3714 = vmatpush1.msra.mxu0 %v1175
  %3715 = vmatprep.subr.mxu0 %v1510
  %3716 = vmatpush1.msra.mxu0 %v1507
  %3717 = vmatprep.subr.mxu0 0.0
  %3718 = vmatpush1.msra.mxu0 0.0
  %3719 = vmatprep.subr.mxu0 0.0
  %3720 = vmatpush1.msra.mxu0 0.0
  %3721 = vmatprep.subr.mxu0 0.0
  %3722 = vmatpush1.msra.mxu0 0.0
  %3723 = vmatprep.subr.mxu0 0.0
  %3724 = vmatpush1.msra.mxu0 0.0
  %3725 = vmatprep.subr.mxu0 0.0
  %3726 = vmatpush1.msra.mxu0 0.0
  %3727 = vmatprep.subr.mxu0 0.0
  %3728 = vmatpush1.msra.mxu0 0.0
  %3729 = vmatprep.subr.mxu0 0.0
  %3730 = vmatpush1.msra.mxu0 0.0
  %3731 = vmatprep.subr.mxu0 0.0
  %3732 = vmatpush1.msra.mxu0 0.0
  %3733 = vmatprep.subr.mxu0 0.0
  %3734 = vmatpush1.msra.mxu0 0.0
  %3735 = vmatprep.subr.mxu0 0.0
  %3736 = vmatpush1.msra.mxu0 0.0
  %3737 = vmatprep.subr.mxu0 0.0
  %3738 = vmatpush1.msra.mxu0 0.0
  %3739 = vmatprep.subr.mxu0 0.0
  %3740 = vmatpush1.msra.mxu0 0.0
  %3741 = vmatprep.subr.mxu0 0.0
  %3742 = vmatpush1.msra.mxu0 0.0
  %3743 = vmatprep.subr.mxu0 0.0
  %3744 = vmatpush1.msra.mxu0 0.0
  %3745 = vmatprep.subr.mxu0 0.0
  %3746 = vmatpush1.msra.mxu0 0.0
  %3747 = vmatprep.subr.mxu0 0.0
  %3748 = vmatpush1.msra.mxu0 0.0
  %3749 = vmatprep.subr.mxu0 0.0
  %3750 = vmatpush1.msra.mxu0 0.0
  %3751 = vmatprep.subr.mxu0 0.0
  %3752 = vmatpush1.msra.mxu0 0.0
  %3753 = vmatprep.subr.mxu0 0.0
  %3754 = vmatpush1.msra.mxu0 0.0
  %3755 = vmatprep.mubr.f32.mxu0 0.0
  %3756 = vmatmul.mubr.f32.gmra.mrb[0].mxu0 %v1329
  %v3757 = vpop.f32.mrb[0].mxu0
  %v3758 = vadd.f32 %v1326, %v3757
  %v3759 = vpop.f32.mrb[0].mxu0
  %v3760 = vadd.f32 %v1326, %v3759
  %3761 = vdwg.mxu0
  %3762 = vmatprep.subr.mxu0 %v78
  %3763 = vmatpush1.msra.mxu0 %v77
  %3764 = vmatprep.subr.mxu0 %v178
  %3765 = vmatpush1.msra.mxu0 %v177
  %3766 = vmatprep.subr.mxu0 %v278
  %3767 = vmatpush1.msra.mxu0 %v277
  %3768 = vmatprep.subr.mxu0 %v378
  %3769 = vmatpush1.msra.mxu0 %v377
  %3770 = vmatprep.subr.mxu0 %v478
  %3771 = vmatpush1.msra.mxu0 %v477
  %3772 = vmatprep.subr.mxu0 %v578
  %3773 = vmatpush1.msra.mxu0 %v577
  %3774 = vmatprep.subr.mxu0 %v678
  %3775 = vmatpush1.msra.mxu0 %v677
  %3776 = vmatprep.subr.mxu0 %v778
  %3777 = vmatpush1.msra.mxu0 %v777
  %3778 = vmatprep.subr.mxu0 %v878
  %3779 = vmatpush1.msra.mxu0 %v877
  %3780 = vmatprep.subr.mxu0 %v978
  %3781 = vmatpush1.msra.mxu0 %v977
  %3782 = vmatprep.subr.mxu0 %v1078
  %3783 = vmatpush1.msra.mxu0 %v1077
  %3784 = vmatprep.subr.mxu0 %v1178
  %3785 = vmatpush1.msra.mxu0 %v1177
  %3786 = vmatprep.subr.mxu0 %v1516
  %3787 = vmatpush1.msra.mxu0 %v1513
  %3788 = vmatprep.subr.mxu0 0.0
  %3789 = vmatpush1.msra.mxu0 0.0
  %3790 = vmatprep.subr.mxu0 0.0
  %3791 = vmatpush1.msra.mxu0 0.0
  %3792 = vmatprep.subr.mxu0 0.0
  %3793 = vmatpush1.msra.mxu0 0.0
  %3794 = vmatprep.subr.mxu0 0.0
  %3795 = vmatpush1.msra.mxu0 0.0
  %3796 = vmatprep.subr.mxu0 0.0
  %3797 = vmatpush1.msra.mxu0 0.0
  %3798 = vmatprep.subr.mxu0 0.0
  %3799 = vmatpush1.msra.mxu0 0.0
  %3800 = vmatprep.subr.mxu0 0.0
  %3801 = vmatpush1.msra.mxu0 0.0
  %3802 = vmatprep.subr.mxu0 0.0
  %3803 = vmatpush1.msra.mxu0 0.0
  %3804 = vmatprep.subr.mxu0 0.0
  %3805 = vmatpush1.msra.mxu0 0.0
  %3806 = vmatprep.subr.mxu0 0.0
  %3807 = vmatpush1.msra.mxu0 0.0
  %3808 = vmatprep.subr.mxu0 0.0
  %3809 = vmatpush1.msra.mxu0 0.0
  %3810 = vmatprep.subr.mxu0 0.0
  %3811 = vmatpush1.msra.mxu0 0.0
  %3812 = vmatprep.subr.mxu0 0.0
  %3813 = vmatpush1.msra.mxu0 0.0
  %3814 = vmatprep.subr.mxu0 0.0
  %3815 = vmatpush1.msra.mxu0 0.0
  %3816 = vmatprep.subr.mxu0 0.0
  %3817 = vmatpush1.msra.mxu0 0.0
  %3818 = vmatprep.subr.mxu0 0.0
  %3819 = vmatpush1.msra.mxu0 0.0
  %3820 = vmatprep.subr.mxu0 0.0
  %3821 = vmatpush1.msra.mxu0 0.0
  %3822 = vmatprep.subr.mxu0 0.0
  %3823 = vmatpush1.msra.mxu0 0.0
  %3824 = vmatprep.subr.mxu0 0.0
  %3825 = vmatpush1.msra.mxu0 0.0
  %3826 = vmatprep.mubr.f32.mxu0 0.0
  %3827 = vmatmul.mubr.f32.gmra.mrb[0].mxu0 %v1329
  %v3828 = vpop.f32.mrb[0].mxu0
  %v3829 = vadd.f32 %v1326, %v3828
  %v3830 = vpop.f32.mrb[0].mxu0
  %v3831 = vadd.f32 %v1326, %v3830
  %3832 = vdwg.mxu0
  %3833 = vmatprep.subr.mxu0 %v80
  %3834 = vmatpush1.msra.mxu0 %v79
  %3835 = vmatprep.subr.mxu0 %v180
  %3836 = vmatpush1.msra.mxu0 %v179
  %3837 = vmatprep.subr.mxu0 %v280
  %3838 = vmatpush1.msra.mxu0 %v279
  %3839 = vmatprep.subr.mxu0 %v380
  %3840 = vmatpush1.msra.mxu0 %v379
  %3841 = vmatprep.subr.mxu0 %v480
  %3842 = vmatpush1.msra.mxu0 %v479
  %3843 = vmatprep.subr.mxu0 %v580
  %3844 = vmatpush1.msra.mxu0 %v579
  %3845 = vmatprep.subr.mxu0 %v680
  %3846 = vmatpush1.msra.mxu0 %v679
  %3847 = vmatprep.subr.mxu0 %v780
  %3848 = vmatpush1.msra.mxu0 %v779
  %3849 = vmatprep.subr.mxu0 %v880
  %3850 = vmatpush1.msra.mxu0 %v879
  %3851 = vmatprep.subr.mxu0 %v980
  %3852 = vmatpush1.msra.mxu0 %v979
  %3853 = vmatprep.subr.mxu0 %v1080
  %3854 = vmatpush1.msra.mxu0 %v1079
  %3855 = vmatprep.subr.mxu0 %v1180
  %3856 = vmatpush1.msra.mxu0 %v1179
  %3857 = vmatprep.subr.mxu0 %v1522
  %3858 = vmatpush1.msra.mxu0 %v1519
  %3859 = vmatprep.subr.mxu0 0.0
  %3860 = vmatpush1.msra.mxu0 0.0
  %3861 = vmatprep.subr.mxu0 0.0
  %3862 = vmatpush1.msra.mxu0 0.0
  %3863 = vmatprep.subr.mxu0 0.0
  %3864 = vmatpush1.msra.mxu0 0.0
  %3865 = vmatprep.subr.mxu0 0.0
  %3866 = vmatpush1.msra.mxu0 0.0
  %3867 = vmatprep.subr.mxu0 0.0
  %3868 = vmatpush1.msra.mxu0 0.0
  %3869 = vmatprep.subr.mxu0 0.0
  %3870 = vmatpush1.msra.mxu0 0.0
  %3871 = vmatprep.subr.mxu0 0.0
  %3872 = vmatpush1.msra.mxu0 0.0
  %3873 = vmatprep.subr.mxu0 0.0
  %3874 = vmatpush1.msra.mxu0 0.0
  %3875 = vmatprep.subr.mxu0 0.0
  %3876 = vmatpush1.msra.mxu0 0.0
  %3877 = vmatprep.subr.mxu0 0.0
  %3878 = vmatpush1.msra.mxu0 0.0
  %3879 = vmatprep.subr.mxu0 0.0
  %3880 = vmatpush1.msra.mxu0 0.0
  %3881 = vmatprep.subr.mxu0 0.0
  %3882 = vmatpush1.msra.mxu0 0.0
  %3883 = vmatprep.subr.mxu0 0.0
  %3884 = vmatpush1.msra.mxu0 0.0
  %3885 = vmatprep.subr.mxu0 0.0
  %3886 = vmatpush1.msra.mxu0 0.0
  %3887 = vmatprep.subr.mxu0 0.0
  %3888 = vmatpush1.msra.mxu0 0.0
  %3889 = vmatprep.subr.mxu0 0.0
  %3890 = vmatpush1.msra.mxu0 0.0
  %3891 = vmatprep.subr.mxu0 0.0
  %3892 = vmatpush1.msra.mxu0 0.0
  %3893 = vmatprep.subr.mxu0 0.0
  %3894 = vmatpush1.msra.mxu0 0.0
  %3895 = vmatprep.subr.mxu0 0.0
  %3896 = vmatpush1.msra.mxu0 0.0
  %3897 = vmatprep.mubr.f32.mxu0 0.0
  %3898 = vmatmul.mubr.f32.gmra.mrb[0].mxu0 %v1329
  %v3899 = vpop.f32.mrb[0].mxu0
  %v3900 = vadd.f32 %v1326, %v3899
  %v3901 = vpop.f32.mrb[0].mxu0
  %v3902 = vadd.f32 %v1326, %v3901
  %3903 = vdwg.mxu0
  %3904 = vmatprep.subr.mxu0 %v82
  %3905 = vmatpush1.msra.mxu0 %v81
  %3906 = vmatprep.subr.mxu0 %v182
  %3907 = vmatpush1.msra.mxu0 %v181
  %3908 = vmatprep.subr.mxu0 %v282
  %3909 = vmatpush1.msra.mxu0 %v281
  %3910 = vmatprep.subr.mxu0 %v382
  %3911 = vmatpush1.msra.mxu0 %v381
  %3912 = vmatprep.subr.mxu0 %v482
  %3913 = vmatpush1.msra.mxu0 %v481
  %3914 = vmatprep.subr.mxu0 %v582
  %3915 = vmatpush1.msra.mxu0 %v581
  %3916 = vmatprep.subr.mxu0 %v682
  %3917 = vmatpush1.msra.mxu0 %v681
  %3918 = vmatprep.subr.mxu0 %v782
  %3919 = vmatpush1.msra.mxu0 %v781
  %3920 = vmatprep.subr.mxu0 %v882
  %3921 = vmatpush1.msra.mxu0 %v881
  %3922 = vmatprep.subr.mxu0 %v982
  %3923 = vmatpush1.msra.mxu0 %v981
  %3924 = vmatprep.subr.mxu0 %v1082
  %3925 = vmatpush1.msra.mxu0 %v1081
  %3926 = vmatprep.subr.mxu0 %v1182
  %3927 = vmatpush1.msra.mxu0 %v1181
  %3928 = vmatprep.subr.mxu0 %v1528
  %3929 = vmatpush1.msra.mxu0 %v1525
  %3930 = vmatprep.subr.mxu0 0.0
  %3931 = vmatpush1.msra.mxu0 0.0
  %3932 = vmatprep.subr.mxu0 0.0
  %3933 = vmatpush1.msra.mxu0 0.0
  %3934 = vmatprep.subr.mxu0 0.0
  %3935 = vmatpush1.msra.mxu0 0.0
  %3936 = vmatprep.subr.mxu0 0.0
  %3937 = vmatpush1.msra.mxu0 0.0
  %3938 = vmatprep.subr.mxu0 0.0
  %3939 = vmatpush1.msra.mxu0 0.0
  %3940 = vmatprep.subr.mxu0 0.0
  %3941 = vmatpush1.msra.mxu0 0.0
  %3942 = vmatprep.subr.mxu0 0.0
  %3943 = vmatpush1.msra.mxu0 0.0
  %3944 = vmatprep.subr.mxu0 0.0
  %3945 = vmatpush1.msra.mxu0 0.0
  %3946 = vmatprep.subr.mxu0 0.0
  %3947 = vmatpush1.msra.mxu0 0.0
  %3948 = vmatprep.subr.mxu0 0.0
  %3949 = vmatpush1.msra.mxu0 0.0
  %3950 = vmatprep.subr.mxu0 0.0
  %3951 = vmatpush1.msra.mxu0 0.0
  %3952 = vmatprep.subr.mxu0 0.0
  %3953 = vmatpush1.msra.mxu0 0.0
  %3954 = vmatprep.subr.mxu0 0.0
  %3955 = vmatpush1.msra.mxu0 0.0
  %3956 = vmatprep.subr.mxu0 0.0
  %3957 = vmatpush1.msra.mxu0 0.0
  %3958 = vmatprep.subr.mxu0 0.0
  %3959 = vmatpush1.msra.mxu0 0.0
  %3960 = vmatprep.subr.mxu0 0.0
  %3961 = vmatpush1.msra.mxu0 0.0
  %3962 = vmatprep.subr.mxu0 0.0
  %3963 = vmatpush1.msra.mxu0 0.0
  %3964 = vmatprep.subr.mxu0 0.0
  %3965 = vmatpush1.msra.mxu0 0.0
  %3966 = vmatprep.subr.mxu0 0.0
  %3967 = vmatpush1.msra.mxu0 0.0
  %3968 = vmatprep.mubr.f32.mxu0 0.0
  %3969 = vmatmul.mubr.f32.gmra.mrb[0].mxu0 %v1329
  %v3970 = vpop.f32.mrb[0].mxu0
  %v3971 = vadd.f32 %v1326, %v3970
  %v3972 = vpop.f32.mrb[0].mxu0
  %v3973 = vadd.f32 %v1326, %v3972
  %3974 = vdwg.mxu0
  %3975 = vmatprep.subr.mxu0 %v84
  %3976 = vmatpush1.msra.mxu0 %v83
  %3977 = vmatprep.subr.mxu0 %v184
  %3978 = vmatpush1.msra.mxu0 %v183
  %3979 = vmatprep.subr.mxu0 %v284
  %3980 = vmatpush1.msra.mxu0 %v283
  %3981 = vmatprep.subr.mxu0 %v384
  %3982 = vmatpush1.msra.mxu0 %v383
  %3983 = vmatprep.subr.mxu0 %v484
  %3984 = vmatpush1.msra.mxu0 %v483
  %3985 = vmatprep.subr.mxu0 %v584
  %3986 = vmatpush1.msra.mxu0 %v583
  %3987 = vmatprep.subr.mxu0 %v684
  %3988 = vmatpush1.msra.mxu0 %v683
  %3989 = vmatprep.subr.mxu0 %v784
  %3990 = vmatpush1.msra.mxu0 %v783
  %3991 = vmatprep.subr.mxu0 %v884
  %3992 = vmatpush1.msra.mxu0 %v883
  %3993 = vmatprep.subr.mxu0 %v984
  %3994 = vmatpush1.msra.mxu0 %v983
  %3995 = vmatprep.subr.mxu0 %v1084
  %3996 = vmatpush1.msra.mxu0 %v1083
  %3997 = vmatprep.subr.mxu0 %v1184
  %3998 = vmatpush1.msra.mxu0 %v1183
  %3999 = vmatprep.subr.mxu0 %v1534
  %4000 = vmatpush1.msra.mxu0 %v1531
  %4001 = vmatprep.subr.mxu0 0.0
  %4002 = vmatpush1.msra.mxu0 0.0
  %4003 = vmatprep.subr.mxu0 0.0
  %4004 = vmatpush1.msra.mxu0 0.0
  %4005 = vmatprep.subr.mxu0 0.0
  %4006 = vmatpush1.msra.mxu0 0.0
  %4007 = vmatprep.subr.mxu0 0.0
  %4008 = vmatpush1.msra.mxu0 0.0
  %4009 = vmatprep.subr.mxu0 0.0
  %4010 = vmatpush1.msra.mxu0 0.0
  %4011 = vmatprep.subr.mxu0 0.0
  %4012 = vmatpush1.msra.mxu0 0.0
  %4013 = vmatprep.subr.mxu0 0.0
  %4014 = vmatpush1.msra.mxu0 0.0
  %4015 = vmatprep.subr.mxu0 0.0
  %4016 = vmatpush1.msra.mxu0 0.0
  %4017 = vmatprep.subr.mxu0 0.0
  %4018 = vmatpush1.msra.mxu0 0.0
  %4019 = vmatprep.subr.mxu0 0.0
  %4020 = vmatpush1.msra.mxu0 0.0
  %4021 = vmatprep.subr.mxu0 0.0
  %4022 = vmatpush1.msra.mxu0 0.0
  %4023 = vmatprep.subr.mxu0 0.0
  %4024 = vmatpush1.msra.mxu0 0.0
  %4025 = vmatprep.subr.mxu0 0.0
  %4026 = vmatpush1.msra.mxu0 0.0
  %4027 = vmatprep.subr.mxu0 0.0
  %4028 = vmatpush1.msra.mxu0 0.0
  %4029 = vmatprep.subr.mxu0 0.0
  %4030 = vmatpush1.msra.mxu0 0.0
  %4031 = vmatprep.subr.mxu0 0.0
  %4032 = vmatpush1.msra.mxu0 0.0
  %4033 = vmatprep.subr.mxu0 0.0
  %4034 = vmatpush1.msra.mxu0 0.0
  %4035 = vmatprep.subr.mxu0 0.0
  %4036 = vmatpush1.msra.mxu0 0.0
  %4037 = vmatprep.subr.mxu0 0.0
  %4038 = vmatpush1.msra.mxu0 0.0
  %4039 = vmatprep.mubr.f32.mxu0 0.0
  %4040 = vmatmul.mubr.f32.gmra.mrb[0].mxu0 %v1329
  %v4041 = vpop.f32.mrb[0].mxu0
  %v4042 = vadd.f32 %v1326, %v4041
  %v4043 = vpop.f32.mrb[0].mxu0
  %v4044 = vadd.f32 %v1326, %v4043
  %4045 = vdwg.mxu0
  %4046 = vmatprep.subr.mxu0 %v86
  %4047 = vmatpush1.msra.mxu0 %v85
  %4048 = vmatprep.subr.mxu0 %v186
  %4049 = vmatpush1.msra.mxu0 %v185
  %4050 = vmatprep.subr.mxu0 %v286
  %4051 = vmatpush1.msra.mxu0 %v285
  %4052 = vmatprep.subr.mxu0 %v386
  %4053 = vmatpush1.msra.mxu0 %v385
  %4054 = vmatprep.subr.mxu0 %v486
  %4055 = vmatpush1.msra.mxu0 %v485
  %4056 = vmatprep.subr.mxu0 %v586
  %4057 = vmatpush1.msra.mxu0 %v585
  %4058 = vmatprep.subr.mxu0 %v686
  %4059 = vmatpush1.msra.mxu0 %v685
  %4060 = vmatprep.subr.mxu0 %v786
  %4061 = vmatpush1.msra.mxu0 %v785
  %4062 = vmatprep.subr.mxu0 %v886
  %4063 = vmatpush1.msra.mxu0 %v885
  %4064 = vmatprep.subr.mxu0 %v986
  %4065 = vmatpush1.msra.mxu0 %v985
  %4066 = vmatprep.subr.mxu0 %v1086
  %4067 = vmatpush1.msra.mxu0 %v1085
  %4068 = vmatprep.subr.mxu0 %v1186
  %4069 = vmatpush1.msra.mxu0 %v1185
  %4070 = vmatprep.subr.mxu0 %v1540
  %4071 = vmatpush1.msra.mxu0 %v1537
  %4072 = vmatprep.subr.mxu0 0.0
  %4073 = vmatpush1.msra.mxu0 0.0
  %4074 = vmatprep.subr.mxu0 0.0
  %4075 = vmatpush1.msra.mxu0 0.0
  %4076 = vmatprep.subr.mxu0 0.0
  %4077 = vmatpush1.msra.mxu0 0.0
  %4078 = vmatprep.subr.mxu0 0.0
  %4079 = vmatpush1.msra.mxu0 0.0
  %4080 = vmatprep.subr.mxu0 0.0
  %4081 = vmatpush1.msra.mxu0 0.0
  %4082 = vmatprep.subr.mxu0 0.0
  %4083 = vmatpush1.msra.mxu0 0.0
  %4084 = vmatprep.subr.mxu0 0.0
  %4085 = vmatpush1.msra.mxu0 0.0
  %4086 = vmatprep.subr.mxu0 0.0
  %4087 = vmatpush1.msra.mxu0 0.0
  %4088 = vmatprep.subr.mxu0 0.0
  %4089 = vmatpush1.msra.mxu0 0.0
  %4090 = vmatprep.subr.mxu0 0.0
  %4091 = vmatpush1.msra.mxu0 0.0
  %4092 = vmatprep.subr.mxu0 0.0
  %4093 = vmatpush1.msra.mxu0 0.0
  %4094 = vmatprep.subr.mxu0 0.0
  %4095 = vmatpush1.msra.mxu0 0.0
  %4096 = vmatprep.subr.mxu0 0.0
  %4097 = vmatpush1.msra.mxu0 0.0
  %4098 = vmatprep.subr.mxu0 0.0
  %4099 = vmatpush1.msra.mxu0 0.0
  %4100 = vmatprep.subr.mxu0 0.0
  %4101 = vmatpush1.msra.mxu0 0.0
  %4102 = vmatprep.subr.mxu0 0.0
  %4103 = vmatpush1.msra.mxu0 0.0
  %4104 = vmatprep.subr.mxu0 0.0
  %4105 = vmatpush1.msra.mxu0 0.0
  %4106 = vmatprep.subr.mxu0 0.0
  %4107 = vmatpush1.msra.mxu0 0.0
  %4108 = vmatprep.subr.mxu0 0.0
  %4109 = vmatpush1.msra.mxu0 0.0
  %4110 = vmatprep.mubr.f32.mxu0 0.0
  %4111 = vmatmul.mubr.f32.gmra.mrb[0].mxu0 %v1329
  %v4112 = vpop.f32.mrb[0].mxu0
  %v4113 = vadd.f32 %v1326, %v4112
  %v4114 = vpop.f32.mrb[0].mxu0
  %v4115 = vadd.f32 %v1326, %v4114
  %4116 = vdwg.mxu0
  %4117 = vmatprep.subr.mxu0 %v88
  %4118 = vmatpush1.msra.mxu0 %v87
  %4119 = vmatprep.subr.mxu0 %v188
  %4120 = vmatpush1.msra.mxu0 %v187
  %4121 = vmatprep.subr.mxu0 %v288
  %4122 = vmatpush1.msra.mxu0 %v287
  %4123 = vmatprep.subr.mxu0 %v388
  %4124 = vmatpush1.msra.mxu0 %v387
  %4125 = vmatprep.subr.mxu0 %v488
  %4126 = vmatpush1.msra.mxu0 %v487
  %4127 = vmatprep.subr.mxu0 %v588
  %4128 = vmatpush1.msra.mxu0 %v587
  %4129 = vmatprep.subr.mxu0 %v688
  %4130 = vmatpush1.msra.mxu0 %v687
  %4131 = vmatprep.subr.mxu0 %v788
  %4132 = vmatpush1.msra.mxu0 %v787
  %4133 = vmatprep.subr.mxu0 %v888
  %4134 = vmatpush1.msra.mxu0 %v887
  %4135 = vmatprep.subr.mxu0 %v988
  %4136 = vmatpush1.msra.mxu0 %v987
  %4137 = vmatprep.subr.mxu0 %v1088
  %4138 = vmatpush1.msra.mxu0 %v1087
  %4139 = vmatprep.subr.mxu0 %v1188
  %4140 = vmatpush1.msra.mxu0 %v1187
  %4141 = vmatprep.subr.mxu0 %v1546
  %4142 = vmatpush1.msra.mxu0 %v1543
  %4143 = vmatprep.subr.mxu0 0.0
  %4144 = vmatpush1.msra.mxu0 0.0
  %4145 = vmatprep.subr.mxu0 0.0
  %4146 = vmatpush1.msra.mxu0 0.0
  %4147 = vmatprep.subr.mxu0 0.0
  %4148 = vmatpush1.msra.mxu0 0.0
  %4149 = vmatprep.subr.mxu0 0.0
  %4150 = vmatpush1.msra.mxu0 0.0
  %4151 = vmatprep.subr.mxu0 0.0
  %4152 = vmatpush1.msra.mxu0 0.0
  %4153 = vmatprep.subr.mxu0 0.0
  %4154 = vmatpush1.msra.mxu0 0.0
  %4155 = vmatprep.subr.mxu0 0.0
  %4156 = vmatpush1.msra.mxu0 0.0
  %4157 = vmatprep.subr.mxu0 0.0
  %4158 = vmatpush1.msra.mxu0 0.0
  %4159 = vmatprep.subr.mxu0 0.0
  %4160 = vmatpush1.msra.mxu0 0.0
  %4161 = vmatprep.subr.mxu0 0.0
  %4162 = vmatpush1.msra.mxu0 0.0
  %4163 = vmatprep.subr.mxu0 0.0
  %4164 = vmatpush1.msra.mxu0 0.0
  %4165 = vmatprep.subr.mxu0 0.0
  %4166 = vmatpush1.msra.mxu0 0.0
  %4167 = vmatprep.subr.mxu0 0.0
  %4168 = vmatpush1.msra.mxu0 0.0
  %4169 = vmatprep.subr.mxu0 0.0
  %4170 = vmatpush1.msra.mxu0 0.0
  %4171 = vmatprep.subr.mxu0 0.0
  %4172 = vmatpush1.msra.mxu0 0.0
  %4173 = vmatprep.subr.mxu0 0.0
  %4174 = vmatpush1.msra.mxu0 0.0
  %4175 = vmatprep.subr.mxu0 0.0
  %4176 = vmatpush1.msra.mxu0 0.0
  %4177 = vmatprep.subr.mxu0 0.0
  %4178 = vmatpush1.msra.mxu0 0.0
  %4179 = vmatprep.subr.mxu0 0.0
  %4180 = vmatpush1.msra.mxu0 0.0
  %4181 = vmatprep.mubr.f32.mxu0 0.0
  %4182 = vmatmul.mubr.f32.gmra.mrb[0].mxu0 %v1329
  %v4183 = vpop.f32.mrb[0].mxu0
  %v4184 = vadd.f32 %v1326, %v4183
  %v4185 = vpop.f32.mrb[0].mxu0
  %v4186 = vadd.f32 %v1326, %v4185
  %4187 = vdwg.mxu0
  %4188 = vmatprep.subr.mxu0 %v90
  %4189 = vmatpush1.msra.mxu0 %v89
  %4190 = vmatprep.subr.mxu0 %v190
  %4191 = vmatpush1.msra.mxu0 %v189
  %4192 = vmatprep.subr.mxu0 %v290
  %4193 = vmatpush1.msra.mxu0 %v289
  %4194 = vmatprep.subr.mxu0 %v390
  %4195 = vmatpush1.msra.mxu0 %v389
  %4196 = vmatprep.subr.mxu0 %v490
  %4197 = vmatpush1.msra.mxu0 %v489
  %4198 = vmatprep.subr.mxu0 %v590
  %4199 = vmatpush1.msra.mxu0 %v589
  %4200 = vmatprep.subr.mxu0 %v690
  %4201 = vmatpush1.msra.mxu0 %v689
  %4202 = vmatprep.subr.mxu0 %v790
  %4203 = vmatpush1.msra.mxu0 %v789
  %4204 = vmatprep.subr.mxu0 %v890
  %4205 = vmatpush1.msra.mxu0 %v889
  %4206 = vmatprep.subr.mxu0 %v990
  %4207 = vmatpush1.msra.mxu0 %v989
  %4208 = vmatprep.subr.mxu0 %v1090
  %4209 = vmatpush1.msra.mxu0 %v1089
  %4210 = vmatprep.subr.mxu0 %v1190
  %4211 = vmatpush1.msra.mxu0 %v1189
  %4212 = vmatprep.subr.mxu0 %v1552
  %4213 = vmatpush1.msra.mxu0 %v1549
  %4214 = vmatprep.subr.mxu0 0.0
  %4215 = vmatpush1.msra.mxu0 0.0
  %4216 = vmatprep.subr.mxu0 0.0
  %4217 = vmatpush1.msra.mxu0 0.0
  %4218 = vmatprep.subr.mxu0 0.0
  %4219 = vmatpush1.msra.mxu0 0.0
  %4220 = vmatprep.subr.mxu0 0.0
  %4221 = vmatpush1.msra.mxu0 0.0
  %4222 = vmatprep.subr.mxu0 0.0
  %4223 = vmatpush1.msra.mxu0 0.0
  %4224 = vmatprep.subr.mxu0 0.0
  %4225 = vmatpush1.msra.mxu0 0.0
  %4226 = vmatprep.subr.mxu0 0.0
  %4227 = vmatpush1.msra.mxu0 0.0
  %4228 = vmatprep.subr.mxu0 0.0
  %4229 = vmatpush1.msra.mxu0 0.0
  %4230 = vmatprep.subr.mxu0 0.0
  %4231 = vmatpush1.msra.mxu0 0.0
  %4232 = vmatprep.subr.mxu0 0.0
  %4233 = vmatpush1.msra.mxu0 0.0
  %4234 = vmatprep.subr.mxu0 0.0
  %4235 = vmatpush1.msra.mxu0 0.0
  %4236 = vmatprep.subr.mxu0 0.0
  %4237 = vmatpush1.msra.mxu0 0.0
  %4238 = vmatprep.subr.mxu0 0.0
  %4239 = vmatpush1.msra.mxu0 0.0
  %4240 = vmatprep.subr.mxu0 0.0
  %4241 = vmatpush1.msra.mxu0 0.0
  %4242 = vmatprep.subr.mxu0 0.0
  %4243 = vmatpush1.msra.mxu0 0.0
  %4244 = vmatprep.subr.mxu0 0.0
  %4245 = vmatpush1.msra.mxu0 0.0
  %4246 = vmatprep.subr.mxu0 0.0
  %4247 = vmatpush1.msra.mxu0 0.0
  %4248 = vmatprep.subr.mxu0 0.0
  %4249 = vmatpush1.msra.mxu0 0.0
  %4250 = vmatprep.subr.mxu0 0.0
  %4251 = vmatpush1.msra.mxu0 0.0
  %4252 = vmatprep.mubr.f32.mxu0 0.0
  %4253 = vmatmul.mubr.f32.gmra.mrb[0].mxu0 %v1329
  %v4254 = vpop.f32.mrb[0].mxu0
  %v4255 = vadd.f32 %v1326, %v4254
  %v4256 = vpop.f32.mrb[0].mxu0
  %v4257 = vadd.f32 %v1326, %v4256
  %4258 = vdwg.mxu0
  %4259 = vmatprep.subr.mxu0 %v92
  %4260 = vmatpush1.msra.mxu0 %v91
  %4261 = vmatprep.subr.mxu0 %v192
  %4262 = vmatpush1.msra.mxu0 %v191
  %4263 = vmatprep.subr.mxu0 %v292
  %4264 = vmatpush1.msra.mxu0 %v291
  %4265 = vmatprep.subr.mxu0 %v392
  %4266 = vmatpush1.msra.mxu0 %v391
  %4267 = vmatprep.subr.mxu0 %v492
  %4268 = vmatpush1.msra.mxu0 %v491
  %4269 = vmatprep.subr.mxu0 %v592
  %4270 = vmatpush1.msra.mxu0 %v591
  %4271 = vmatprep.subr.mxu0 %v692
  %4272 = vmatpush1.msra.mxu0 %v691
  %4273 = vmatprep.subr.mxu0 %v792
  %4274 = vmatpush1.msra.mxu0 %v791
  %4275 = vmatprep.subr.mxu0 %v892
  %4276 = vmatpush1.msra.mxu0 %v891
  %4277 = vmatprep.subr.mxu0 %v992
  %4278 = vmatpush1.msra.mxu0 %v991
  %4279 = vmatprep.subr.mxu0 %v1092
  %4280 = vmatpush1.msra.mxu0 %v1091
  %4281 = vmatprep.subr.mxu0 %v1192
  %4282 = vmatpush1.msra.mxu0 %v1191
  %4283 = vmatprep.subr.mxu0 %v1558
  %4284 = vmatpush1.msra.mxu0 %v1555
  %4285 = vmatprep.subr.mxu0 0.0
  %4286 = vmatpush1.msra.mxu0 0.0
  %4287 = vmatprep.subr.mxu0 0.0
  %4288 = vmatpush1.msra.mxu0 0.0
  %4289 = vmatprep.subr.mxu0 0.0
  %4290 = vmatpush1.msra.mxu0 0.0
  %4291 = vmatprep.subr.mxu0 0.0
  %4292 = vmatpush1.msra.mxu0 0.0
  %4293 = vmatprep.subr.mxu0 0.0
  %4294 = vmatpush1.msra.mxu0 0.0
  %4295 = vmatprep.subr.mxu0 0.0
  %4296 = vmatpush1.msra.mxu0 0.0
  %4297 = vmatprep.subr.mxu0 0.0
  %4298 = vmatpush1.msra.mxu0 0.0
  %4299 = vmatprep.subr.mxu0 0.0
  %4300 = vmatpush1.msra.mxu0 0.0
  %4301 = vmatprep.subr.mxu0 0.0
  %4302 = vmatpush1.msra.mxu0 0.0
  %4303 = vmatprep.subr.mxu0 0.0
  %4304 = vmatpush1.msra.mxu0 0.0
  %4305 = vmatprep.subr.mxu0 0.0
  %4306 = vmatpush1.msra.mxu0 0.0
  %4307 = vmatprep.subr.mxu0 0.0
  %4308 = vmatpush1.msra.mxu0 0.0
  %4309 = vmatprep.subr.mxu0 0.0
  %4310 = vmatpush1.msra.mxu0 0.0
  %4311 = vmatprep.subr.mxu0 0.0
  %4312 = vmatpush1.msra.mxu0 0.0
  %4313 = vmatprep.subr.mxu0 0.0
  %4314 = vmatpush1.msra.mxu0 0.0
  %4315 = vmatprep.subr.mxu0 0.0
  %4316 = vmatpush1.msra.mxu0 0.0
  %4317 = vmatprep.subr.mxu0 0.0
  %4318 = vmatpush1.msra.mxu0 0.0
  %4319 = vmatprep.subr.mxu0 0.0
  %4320 = vmatpush1.msra.mxu0 0.0
  %4321 = vmatprep.subr.mxu0 0.0
  %4322 = vmatpush1.msra.mxu0 0.0
  %4323 = vmatprep.mubr.f32.mxu0 0.0
  %4324 = vmatmul.mubr.f32.gmra.mrb[0].mxu0 %v1329
  %v4325 = vpop.f32.mrb[0].mxu0
  %v4326 = vadd.f32 %v1326, %v4325
  %v4327 = vpop.f32.mrb[0].mxu0
  %v4328 = vadd.f32 %v1326, %v4327
  %4329 = vdwg.mxu0
  %4330 = vmatprep.subr.mxu0 %v94
  %4331 = vmatpush1.msra.mxu0 %v93
  %4332 = vmatprep.subr.mxu0 %v194
  %4333 = vmatpush1.msra.mxu0 %v193
  %4334 = vmatprep.subr.mxu0 %v294
  %4335 = vmatpush1.msra.mxu0 %v293
  %4336 = vmatprep.subr.mxu0 %v394
  %4337 = vmatpush1.msra.mxu0 %v393
  %4338 = vmatprep.subr.mxu0 %v494
  %4339 = vmatpush1.msra.mxu0 %v493
  %4340 = vmatprep.subr.mxu0 %v594
  %4341 = vmatpush1.msra.mxu0 %v593
  %4342 = vmatprep.subr.mxu0 %v694
  %4343 = vmatpush1.msra.mxu0 %v693
  %4344 = vmatprep.subr.mxu0 %v794
  %4345 = vmatpush1.msra.mxu0 %v793
  %4346 = vmatprep.subr.mxu0 %v894
  %4347 = vmatpush1.msra.mxu0 %v893
  %4348 = vmatprep.subr.mxu0 %v994
  %4349 = vmatpush1.msra.mxu0 %v993
  %4350 = vmatprep.subr.mxu0 %v1094
  %4351 = vmatpush1.msra.mxu0 %v1093
  %4352 = vmatprep.subr.mxu0 %v1194
  %4353 = vmatpush1.msra.mxu0 %v1193
  %4354 = vmatprep.subr.mxu0 %v1564
  %4355 = vmatpush1.msra.mxu0 %v1561
  %4356 = vmatprep.subr.mxu0 0.0
  %4357 = vmatpush1.msra.mxu0 0.0
  %4358 = vmatprep.subr.mxu0 0.0
  %4359 = vmatpush1.msra.mxu0 0.0
  %4360 = vmatprep.subr.mxu0 0.0
  %4361 = vmatpush1.msra.mxu0 0.0
  %4362 = vmatprep.subr.mxu0 0.0
  %4363 = vmatpush1.msra.mxu0 0.0
  %4364 = vmatprep.subr.mxu0 0.0
  %4365 = vmatpush1.msra.mxu0 0.0
  %4366 = vmatprep.subr.mxu0 0.0
  %4367 = vmatpush1.msra.mxu0 0.0
  %4368 = vmatprep.subr.mxu0 0.0
  %4369 = vmatpush1.msra.mxu0 0.0
  %4370 = vmatprep.subr.mxu0 0.0
  %4371 = vmatpush1.msra.mxu0 0.0
  %4372 = vmatprep.subr.mxu0 0.0
  %4373 = vmatpush1.msra.mxu0 0.0
  %4374 = vmatprep.subr.mxu0 0.0
  %4375 = vmatpush1.msra.mxu0 0.0
  %4376 = vmatprep.subr.mxu0 0.0
  %4377 = vmatpush1.msra.mxu0 0.0
  %4378 = vmatprep.subr.mxu0 0.0
  %4379 = vmatpush1.msra.mxu0 0.0
  %4380 = vmatprep.subr.mxu0 0.0
  %4381 = vmatpush1.msra.mxu0 0.0
  %4382 = vmatprep.subr.mxu0 0.0
  %4383 = vmatpush1.msra.mxu0 0.0
  %4384 = vmatprep.subr.mxu0 0.0
  %4385 = vmatpush1.msra.mxu0 0.0
  %4386 = vmatprep.subr.mxu0 0.0
  %4387 = vmatpush1.msra.mxu0 0.0
  %4388 = vmatprep.subr.mxu0 0.0
  %4389 = vmatpush1.msra.mxu0 0.0
  %4390 = vmatprep.subr.mxu0 0.0
  %4391 = vmatpush1.msra.mxu0 0.0
  %4392 = vmatprep.subr.mxu0 0.0
  %4393 = vmatpush1.msra.mxu0 0.0
  %4394 = vmatprep.mubr.f32.mxu0 0.0
  %4395 = vmatmul.mubr.f32.gmra.mrb[0].mxu0 %v1329
  %v4396 = vpop.f32.mrb[0].mxu0
  %v4397 = vadd.f32 %v1326, %v4396
  %v4398 = vpop.f32.mrb[0].mxu0
  %v4399 = vadd.f32 %v1326, %v4398
  %4400 = vdwg.mxu0
  %4401 = vmatprep.subr.mxu0 %v96
  %4402 = vmatpush1.msra.mxu0 %v95
  %4403 = vmatprep.subr.mxu0 %v196
  %4404 = vmatpush1.msra.mxu0 %v195
  %4405 = vmatprep.subr.mxu0 %v296
  %4406 = vmatpush1.msra.mxu0 %v295
  %4407 = vmatprep.subr.mxu0 %v396
  %4408 = vmatpush1.msra.mxu0 %v395
  %4409 = vmatprep.subr.mxu0 %v496
  %4410 = vmatpush1.msra.mxu0 %v495
  %4411 = vmatprep.subr.mxu0 %v596
  %4412 = vmatpush1.msra.mxu0 %v595
  %4413 = vmatprep.subr.mxu0 %v696
  %4414 = vmatpush1.msra.mxu0 %v695
  %4415 = vmatprep.subr.mxu0 %v796
  %4416 = vmatpush1.msra.mxu0 %v795
  %4417 = vmatprep.subr.mxu0 %v896
  %4418 = vmatpush1.msra.mxu0 %v895
  %4419 = vmatprep.subr.mxu0 %v996
  %4420 = vmatpush1.msra.mxu0 %v995
  %4421 = vmatprep.subr.mxu0 %v1096
  %4422 = vmatpush1.msra.mxu0 %v1095
  %4423 = vmatprep.subr.mxu0 %v1196
  %4424 = vmatpush1.msra.mxu0 %v1195
  %4425 = vmatprep.subr.mxu0 %v1570
  %4426 = vmatpush1.msra.mxu0 %v1567
  %4427 = vmatprep.subr.mxu0 0.0
  %4428 = vmatpush1.msra.mxu0 0.0
  %4429 = vmatprep.subr.mxu0 0.0
  %4430 = vmatpush1.msra.mxu0 0.0
  %4431 = vmatprep.subr.mxu0 0.0
  %4432 = vmatpush1.msra.mxu0 0.0
  %4433 = vmatprep.subr.mxu0 0.0
  %4434 = vmatpush1.msra.mxu0 0.0
  %4435 = vmatprep.subr.mxu0 0.0
  %4436 = vmatpush1.msra.mxu0 0.0
  %4437 = vmatprep.subr.mxu0 0.0
  %4438 = vmatpush1.msra.mxu0 0.0
  %4439 = vmatprep.subr.mxu0 0.0
  %4440 = vmatpush1.msra.mxu0 0.0
  %4441 = vmatprep.subr.mxu0 0.0
  %4442 = vmatpush1.msra.mxu0 0.0
  %4443 = vmatprep.subr.mxu0 0.0
  %4444 = vmatpush1.msra.mxu0 0.0
  %4445 = vmatprep.subr.mxu0 0.0
  %4446 = vmatpush1.msra.mxu0 0.0
  %4447 = vmatprep.subr.mxu0 0.0
  %4448 = vmatpush1.msra.mxu0 0.0
  %4449 = vmatprep.subr.mxu0 0.0
  %4450 = vmatpush1.msra.mxu0 0.0
  %4451 = vmatprep.subr.mxu0 0.0
  %4452 = vmatpush1.msra.mxu0 0.0
  %4453 = vmatprep.subr.mxu0 0.0
  %4454 = vmatpush1.msra.mxu0 0.0
  %4455 = vmatprep.subr.mxu0 0.0
  %4456 = vmatpush1.msra.mxu0 0.0
  %4457 = vmatprep.subr.mxu0 0.0
  %4458 = vmatpush1.msra.mxu0 0.0
  %4459 = vmatprep.subr.mxu0 0.0
  %4460 = vmatpush1.msra.mxu0 0.0
  %4461 = vmatprep.subr.mxu0 0.0
  %4462 = vmatpush1.msra.mxu0 0.0
  %4463 = vmatprep.subr.mxu0 0.0
  %4464 = vmatpush1.msra.mxu0 0.0
  %4465 = vmatprep.mubr.f32.mxu0 0.0
  %4466 = vmatmul.mubr.f32.gmra.mrb[0].mxu0 %v1329
  %v4467 = vpop.f32.mrb[0].mxu0
  %v4468 = vadd.f32 %v1326, %v4467
  %v4469 = vpop.f32.mrb[0].mxu0
  %v4470 = vadd.f32 %v1326, %v4469
  %4471 = vdwg.mxu0
  %4472 = vmatprep.subr.mxu0 %v98
  %4473 = vmatpush1.msra.mxu0 %v97
  %4474 = vmatprep.subr.mxu0 %v198
  %4475 = vmatpush1.msra.mxu0 %v197
  %4476 = vmatprep.subr.mxu0 %v298
  %4477 = vmatpush1.msra.mxu0 %v297
  %4478 = vmatprep.subr.mxu0 %v398
  %4479 = vmatpush1.msra.mxu0 %v397
  %4480 = vmatprep.subr.mxu0 %v498
  %4481 = vmatpush1.msra.mxu0 %v497
  %4482 = vmatprep.subr.mxu0 %v598
  %4483 = vmatpush1.msra.mxu0 %v597
  %4484 = vmatprep.subr.mxu0 %v698
  %4485 = vmatpush1.msra.mxu0 %v697
  %4486 = vmatprep.subr.mxu0 %v798
  %4487 = vmatpush1.msra.mxu0 %v797
  %4488 = vmatprep.subr.mxu0 %v898
  %4489 = vmatpush1.msra.mxu0 %v897
  %4490 = vmatprep.subr.mxu0 %v998
  %4491 = vmatpush1.msra.mxu0 %v997
  %4492 = vmatprep.subr.mxu0 %v1098
  %4493 = vmatpush1.msra.mxu0 %v1097
  %4494 = vmatprep.subr.mxu0 %v1198
  %4495 = vmatpush1.msra.mxu0 %v1197
  %4496 = vmatprep.subr.mxu0 %v1576
  %4497 = vmatpush1.msra.mxu0 %v1573
  %4498 = vmatprep.subr.mxu0 0.0
  %4499 = vmatpush1.msra.mxu0 0.0
  %4500 = vmatprep.subr.mxu0 0.0
  %4501 = vmatpush1.msra.mxu0 0.0
  %4502 = vmatprep.subr.mxu0 0.0
  %4503 = vmatpush1.msra.mxu0 0.0
  %4504 = vmatprep.subr.mxu0 0.0
  %4505 = vmatpush1.msra.mxu0 0.0
  %4506 = vmatprep.subr.mxu0 0.0
  %4507 = vmatpush1.msra.mxu0 0.0
  %4508 = vmatprep.subr.mxu0 0.0
  %4509 = vmatpush1.msra.mxu0 0.0
  %4510 = vmatprep.subr.mxu0 0.0
  %4511 = vmatpush1.msra.mxu0 0.0
  %4512 = vmatprep.subr.mxu0 0.0
  %4513 = vmatpush1.msra.mxu0 0.0
  %4514 = vmatprep.subr.mxu0 0.0
  %4515 = vmatpush1.msra.mxu0 0.0
  %4516 = vmatprep.subr.mxu0 0.0
  %4517 = vmatpush1.msra.mxu0 0.0
  %4518 = vmatprep.subr.mxu0 0.0
  %4519 = vmatpush1.msra.mxu0 0.0
  %4520 = vmatprep.subr.mxu0 0.0
  %4521 = vmatpush1.msra.mxu0 0.0
  %4522 = vmatprep.subr.mxu0 0.0
  %4523 = vmatpush1.msra.mxu0 0.0
  %4524 = vmatprep.subr.mxu0 0.0
  %4525 = vmatpush1.msra.mxu0 0.0
  %4526 = vmatprep.subr.mxu0 0.0
  %4527 = vmatpush1.msra.mxu0 0.0
  %4528 = vmatprep.subr.mxu0 0.0
  %4529 = vmatpush1.msra.mxu0 0.0
  %4530 = vmatprep.subr.mxu0 0.0
  %4531 = vmatpush1.msra.mxu0 0.0
  %4532 = vmatprep.subr.mxu0 0.0
  %4533 = vmatpush1.msra.mxu0 0.0
  %4534 = vmatprep.subr.mxu0 0.0
  %4535 = vmatpush1.msra.mxu0 0.0
  %4536 = vmatprep.mubr.f32.mxu0 0.0
  %4537 = vmatmul.mubr.f32.gmra.mrb[0].mxu0 %v1329
  %v4538 = vpop.f32.mrb[0].mxu0
  %v4539 = vadd.f32 %v1326, %v4538
  %v4540 = vpop.f32.mrb[0].mxu0
  %v4541 = vadd.f32 %v1326, %v4540
  %4542 = vdwg.mxu0
  %4543 = vmatprep.subr.mxu0 %v100
  %4544 = vmatpush1.msra.mxu0 %v99
  %4545 = vmatprep.subr.mxu0 %v200
  %4546 = vmatpush1.msra.mxu0 %v199
  %4547 = vmatprep.subr.mxu0 %v300
  %4548 = vmatpush1.msra.mxu0 %v299
  %4549 = vmatprep.subr.mxu0 %v400
  %4550 = vmatpush1.msra.mxu0 %v399
  %4551 = vmatprep.subr.mxu0 %v500
  %4552 = vmatpush1.msra.mxu0 %v499
  %4553 = vmatprep.subr.mxu0 %v600
  %4554 = vmatpush1.msra.mxu0 %v599
  %4555 = vmatprep.subr.mxu0 %v700
  %4556 = vmatpush1.msra.mxu0 %v699
  %4557 = vmatprep.subr.mxu0 %v800
  %4558 = vmatpush1.msra.mxu0 %v799
  %4559 = vmatprep.subr.mxu0 %v900
  %4560 = vmatpush1.msra.mxu0 %v899
  %4561 = vmatprep.subr.mxu0 %v1000
  %4562 = vmatpush1.msra.mxu0 %v999
  %4563 = vmatprep.subr.mxu0 %v1100
  %4564 = vmatpush1.msra.mxu0 %v1099
  %4565 = vmatprep.subr.mxu0 %v1200
  %4566 = vmatpush1.msra.mxu0 %v1199
  %4567 = vmatprep.subr.mxu0 %v1582
  %4568 = vmatpush1.msra.mxu0 %v1579
  %4569 = vmatprep.subr.mxu0 0.0
  %4570 = vmatpush1.msra.mxu0 0.0
  %4571 = vmatprep.subr.mxu0 0.0
  %4572 = vmatpush1.msra.mxu0 0.0
  %4573 = vmatprep.subr.mxu0 0.0
  %4574 = vmatpush1.msra.mxu0 0.0
  %4575 = vmatprep.subr.mxu0 0.0
  %4576 = vmatpush1.msra.mxu0 0.0
  %4577 = vmatprep.subr.mxu0 0.0
  %4578 = vmatpush1.msra.mxu0 0.0
  %4579 = vmatprep.subr.mxu0 0.0
  %4580 = vmatpush1.msra.mxu0 0.0
  %4581 = vmatprep.subr.mxu0 0.0
  %4582 = vmatpush1.msra.mxu0 0.0
  %4583 = vmatprep.subr.mxu0 0.0
  %4584 = vmatpush1.msra.mxu0 0.0
  %4585 = vmatprep.subr.mxu0 0.0
  %4586 = vmatpush1.msra.mxu0 0.0
  %4587 = vmatprep.subr.mxu0 0.0
  %4588 = vmatpush1.msra.mxu0 0.0
  %4589 = vmatprep.subr.mxu0 0.0
  %4590 = vmatpush1.msra.mxu0 0.0
  %4591 = vmatprep.subr.mxu0 0.0
  %4592 = vmatpush1.msra.mxu0 0.0
  %4593 = vmatprep.subr.mxu0 0.0
  %4594 = vmatpush1.msra.mxu0 0.0
  %4595 = vmatprep.subr.mxu0 0.0
  %4596 = vmatpush1.msra.mxu0 0.0
  %4597 = vmatprep.subr.mxu0 0.0
  %4598 = vmatpush1.msra.mxu0 0.0
  %4599 = vmatprep.subr.mxu0 0.0
  %4600 = vmatpush1.msra.mxu0 0.0
  %4601 = vmatprep.subr.mxu0 0.0
  %4602 = vmatpush1.msra.mxu0 0.0
  %4603 = vmatprep.subr.mxu0 0.0
  %4604 = vmatpush1.msra.mxu0 0.0
  %4605 = vmatprep.subr.mxu0 0.0
  %4606 = vmatpush1.msra.mxu0 0.0
  %4607 = vmatprep.mubr.f32.mxu0 0.0
  %4608 = vmatmul.mubr.f32.gmra.mrb[0].mxu0 %v1329
  %v4609 = vpop.f32.mrb[0].mxu0
  %v4610 = vadd.f32 %v1326, %v4609
  %v4611 = vpop.f32.mrb[0].mxu0
  %v4612 = vadd.f32 %v1326, %v4611
  %4613 = vdwg.mxu0
  %4614 = vmatprep.subr.mxu0 %v102
  %4615 = vmatpush1.msra.mxu0 %v101
  %4616 = vmatprep.subr.mxu0 %v202
  %4617 = vmatpush1.msra.mxu0 %v201
  %4618 = vmatprep.subr.mxu0 %v302
  %4619 = vmatpush1.msra.mxu0 %v301
  %4620 = vmatprep.subr.mxu0 %v402
  %4621 = vmatpush1.msra.mxu0 %v401
  %4622 = vmatprep.subr.mxu0 %v502
  %4623 = vmatpush1.msra.mxu0 %v501
  %4624 = vmatprep.subr.mxu0 %v602
  %4625 = vmatpush1.msra.mxu0 %v601
  %4626 = vmatprep.subr.mxu0 %v702
  %4627 = vmatpush1.msra.mxu0 %v701
  %4628 = vmatprep.subr.mxu0 %v802
  %4629 = vmatpush1.msra.mxu0 %v801
  %4630 = vmatprep.subr.mxu0 %v902
  %4631 = vmatpush1.msra.mxu0 %v901
  %4632 = vmatprep.subr.mxu0 %v1002
  %4633 = vmatpush1.msra.mxu0 %v1001
  %4634 = vmatprep.subr.mxu0 %v1102
  %4635 = vmatpush1.msra.mxu0 %v1101
  %4636 = vmatprep.subr.mxu0 %v1202
  %4637 = vmatpush1.msra.mxu0 %v1201
  %4638 = vmatprep.subr.mxu0 %v1588
  %4639 = vmatpush1.msra.mxu0 %v1585
  %4640 = vmatprep.subr.mxu0 0.0
  %4641 = vmatpush1.msra.mxu0 0.0
  %4642 = vmatprep.subr.mxu0 0.0
  %4643 = vmatpush1.msra.mxu0 0.0
  %4644 = vmatprep.subr.mxu0 0.0
  %4645 = vmatpush1.msra.mxu0 0.0
  %4646 = vmatprep.subr.mxu0 0.0
  %4647 = vmatpush1.msra.mxu0 0.0
  %4648 = vmatprep.subr.mxu0 0.0
  %4649 = vmatpush1.msra.mxu0 0.0
  %4650 = vmatprep.subr.mxu0 0.0
  %4651 = vmatpush1.msra.mxu0 0.0
  %4652 = vmatprep.subr.mxu0 0.0
  %4653 = vmatpush1.msra.mxu0 0.0
  %4654 = vmatprep.subr.mxu0 0.0
  %4655 = vmatpush1.msra.mxu0 0.0
  %4656 = vmatprep.subr.mxu0 0.0
  %4657 = vmatpush1.msra.mxu0 0.0
  %4658 = vmatprep.subr.mxu0 0.0
  %4659 = vmatpush1.msra.mxu0 0.0
  %4660 = vmatprep.subr.mxu0 0.0
  %4661 = vmatpush1.msra.mxu0 0.0
  %4662 = vmatprep.subr.mxu0 0.0
  %4663 = vmatpush1.msra.mxu0 0.0
  %4664 = vmatprep.subr.mxu0 0.0
  %4665 = vmatpush1.msra.mxu0 0.0
  %4666 = vmatprep.subr.mxu0 0.0
  %4667 = vmatpush1.msra.mxu0 0.0
  %4668 = vmatprep.subr.mxu0 0.0
  %4669 = vmatpush1.msra.mxu0 0.0
  %4670 = vmatprep.subr.mxu0 0.0
  %4671 = vmatpush1.msra.mxu0 0.0
  %4672 = vmatprep.subr.mxu0 0.0
  %4673 = vmatpush1.msra.mxu0 0.0
  %4674 = vmatprep.subr.mxu0 0.0
  %4675 = vmatpush1.msra.mxu0 0.0
  %4676 = vmatprep.subr.mxu0 0.0
  %4677 = vmatpush1.msra.mxu0 0.0
  %4678 = vmatprep.mubr.f32.mxu0 0.0
  %4679 = vmatmul.mubr.f32.gmra.mrb[0].mxu0 %v1329
  %v4680 = vpop.f32.mrb[0].mxu0
  %v4681 = vadd.f32 %v1326, %v4680
  %v4682 = vpop.f32.mrb[0].mxu0
  %v4683 = vadd.f32 %v1326, %v4682
  %4684 = vdwg.mxu0
  %4685 = vmatprep.subr.mxu0 %v104
  %4686 = vmatpush1.msra.mxu0 %v103
  %4687 = vmatprep.subr.mxu0 %v204
  %4688 = vmatpush1.msra.mxu0 %v203
  %4689 = vmatprep.subr.mxu0 %v304
  %4690 = vmatpush1.msra.mxu0 %v303
  %4691 = vmatprep.subr.mxu0 %v404
  %4692 = vmatpush1.msra.mxu0 %v403
  %4693 = vmatprep.subr.mxu0 %v504
  %4694 = vmatpush1.msra.mxu0 %v503
  %4695 = vmatprep.subr.mxu0 %v604
  %4696 = vmatpush1.msra.mxu0 %v603
  %4697 = vmatprep.subr.mxu0 %v704
  %4698 = vmatpush1.msra.mxu0 %v703
  %4699 = vmatprep.subr.mxu0 %v804
  %4700 = vmatpush1.msra.mxu0 %v803
  %4701 = vmatprep.subr.mxu0 %v904
  %4702 = vmatpush1.msra.mxu0 %v903
  %4703 = vmatprep.subr.mxu0 %v1004
  %4704 = vmatpush1.msra.mxu0 %v1003
  %4705 = vmatprep.subr.mxu0 %v1104
  %4706 = vmatpush1.msra.mxu0 %v1103
  %4707 = vmatprep.subr.mxu0 %v1204
  %4708 = vmatpush1.msra.mxu0 %v1203
  %4709 = vmatprep.subr.mxu0 %v1594
  %4710 = vmatpush1.msra.mxu0 %v1591
  %4711 = vmatprep.subr.mxu0 0.0
  %4712 = vmatpush1.msra.mxu0 0.0
  %4713 = vmatprep.subr.mxu0 0.0
  %4714 = vmatpush1.msra.mxu0 0.0
  %4715 = vmatprep.subr.mxu0 0.0
  %4716 = vmatpush1.msra.mxu0 0.0
  %4717 = vmatprep.subr.mxu0 0.0
  %4718 = vmatpush1.msra.mxu0 0.0
  %4719 = vmatprep.subr.mxu0 0.0
  %4720 = vmatpush1.msra.mxu0 0.0
  %4721 = vmatprep.subr.mxu0 0.0
  %4722 = vmatpush1.msra.mxu0 0.0
  %4723 = vmatprep.subr.mxu0 0.0
  %4724 = vmatpush1.msra.mxu0 0.0
  %4725 = vmatprep.subr.mxu0 0.0
  %4726 = vmatpush1.msra.mxu0 0.0
  %4727 = vmatprep.subr.mxu0 0.0
  %4728 = vmatpush1.msra.mxu0 0.0
  %4729 = vmatprep.subr.mxu0 0.0
  %4730 = vmatpush1.msra.mxu0 0.0
  %4731 = vmatprep.subr.mxu0 0.0
  %4732 = vmatpush1.msra.mxu0 0.0
  %4733 = vmatprep.subr.mxu0 0.0
  %4734 = vmatpush1.msra.mxu0 0.0
  %4735 = vmatprep.subr.mxu0 0.0
  %4736 = vmatpush1.msra.mxu0 0.0
  %4737 = vmatprep.subr.mxu0 0.0
  %4738 = vmatpush1.msra.mxu0 0.0
  %4739 = vmatprep.subr.mxu0 0.0
  %4740 = vmatpush1.msra.mxu0 0.0
  %4741 = vmatprep.subr.mxu0 0.0
  %4742 = vmatpush1.msra.mxu0 0.0
  %4743 = vmatprep.subr.mxu0 0.0
  %4744 = vmatpush1.msra.mxu0 0.0
  %4745 = vmatprep.subr.mxu0 0.0
  %4746 = vmatpush1.msra.mxu0 0.0
  %4747 = vmatprep.subr.mxu0 0.0
  %4748 = vmatpush1.msra.mxu0 0.0
  %4749 = vmatprep.mubr.f32.mxu0 0.0
  %4750 = vmatmul.mubr.f32.gmra.mrb[0].mxu0 %v1329
  %v4751 = vpop.f32.mrb[0].mxu0
  %v4752 = vadd.f32 %v1326, %v4751
  %v4753 = vpop.f32.mrb[0].mxu0
  %v4754 = vadd.f32 %v1326, %v4753
  %4755 = vdwg.mxu0
  %4756 = vmatprep.subr.mxu0 %v106
  %4757 = vmatpush1.msra.mxu0 %v105
  %4758 = vmatprep.subr.mxu0 %v206
  %4759 = vmatpush1.msra.mxu0 %v205
  %4760 = vmatprep.subr.mxu0 %v306
  %4761 = vmatpush1.msra.mxu0 %v305
  %4762 = vmatprep.subr.mxu0 %v406
  %4763 = vmatpush1.msra.mxu0 %v405
  %4764 = vmatprep.subr.mxu0 %v506
  %4765 = vmatpush1.msra.mxu0 %v505
  %4766 = vmatprep.subr.mxu0 %v606
  %4767 = vmatpush1.msra.mxu0 %v605
  %4768 = vmatprep.subr.mxu0 %v706
  %4769 = vmatpush1.msra.mxu0 %v705
  %4770 = vmatprep.subr.mxu0 %v806
  %4771 = vmatpush1.msra.mxu0 %v805
  %4772 = vmatprep.subr.mxu0 %v906
  %4773 = vmatpush1.msra.mxu0 %v905
  %4774 = vmatprep.subr.mxu0 %v1006
  %4775 = vmatpush1.msra.mxu0 %v1005
  %4776 = vmatprep.subr.mxu0 %v1106
  %4777 = vmatpush1.msra.mxu0 %v1105
  %4778 = vmatprep.subr.mxu0 %v1206
  %4779 = vmatpush1.msra.mxu0 %v1205
  %4780 = vmatprep.subr.mxu0 %v1600
  %4781 = vmatpush1.msra.mxu0 %v1597
  %4782 = vmatprep.subr.mxu0 0.0
  %4783 = vmatpush1.msra.mxu0 0.0
  %4784 = vmatprep.subr.mxu0 0.0
  %4785 = vmatpush1.msra.mxu0 0.0
  %4786 = vmatprep.subr.mxu0 0.0
  %4787 = vmatpush1.msra.mxu0 0.0
  %4788 = vmatprep.subr.mxu0 0.0
  %4789 = vmatpush1.msra.mxu0 0.0
  %4790 = vmatprep.subr.mxu0 0.0
  %4791 = vmatpush1.msra.mxu0 0.0
  %4792 = vmatprep.subr.mxu0 0.0
  %4793 = vmatpush1.msra.mxu0 0.0
  %4794 = vmatprep.subr.mxu0 0.0
  %4795 = vmatpush1.msra.mxu0 0.0
  %4796 = vmatprep.subr.mxu0 0.0
  %4797 = vmatpush1.msra.mxu0 0.0
  %4798 = vmatprep.subr.mxu0 0.0
  %4799 = vmatpush1.msra.mxu0 0.0
  %4800 = vmatprep.subr.mxu0 0.0
  %4801 = vmatpush1.msra.mxu0 0.0
  %4802 = vmatprep.subr.mxu0 0.0
  %4803 = vmatpush1.msra.mxu0 0.0
  %4804 = vmatprep.subr.mxu0 0.0
  %4805 = vmatpush1.msra.mxu0 0.0
  %4806 = vmatprep.subr.mxu0 0.0
  %4807 = vmatpush1.msra.mxu0 0.0
  %4808 = vmatprep.subr.mxu0 0.0
  %4809 = vmatpush1.msra.mxu0 0.0
  %4810 = vmatprep.subr.mxu0 0.0
  %4811 = vmatpush1.msra.mxu0 0.0
  %4812 = vmatprep.subr.mxu0 0.0
  %4813 = vmatpush1.msra.mxu0 0.0
  %4814 = vmatprep.subr.mxu0 0.0
  %4815 = vmatpush1.msra.mxu0 0.0
  %4816 = vmatprep.subr.mxu0 0.0
  %4817 = vmatpush1.msra.mxu0 0.0
  %4818 = vmatprep.subr.mxu0 0.0
  %4819 = vmatpush1.msra.mxu0 0.0
  %4820 = vmatprep.mubr.f32.mxu0 0.0
  %4821 = vmatmul.mubr.f32.gmra.mrb[0].mxu0 %v1329
  %v4822 = vpop.f32.mrb[0].mxu0
  %v4823 = vadd.f32 %v1326, %v4822
  %v4824 = vpop.f32.mrb[0].mxu0
  %v4825 = vadd.f32 %v1326, %v4824
  %4826 = vdwg.mxu0
  %4827 = vmatprep.subr.mxu0 %v108
  %4828 = vmatpush1.msra.mxu0 %v107
  %4829 = vmatprep.subr.mxu0 %v208
  %4830 = vmatpush1.msra.mxu0 %v207
  %4831 = vmatprep.subr.mxu0 %v308
  %4832 = vmatpush1.msra.mxu0 %v307
  %4833 = vmatprep.subr.mxu0 %v408
  %4834 = vmatpush1.msra.mxu0 %v407
  %4835 = vmatprep.subr.mxu0 %v508
  %4836 = vmatpush1.msra.mxu0 %v507
  %4837 = vmatprep.subr.mxu0 %v608
  %4838 = vmatpush1.msra.mxu0 %v607
  %4839 = vmatprep.subr.mxu0 %v708
  %4840 = vmatpush1.msra.mxu0 %v707
  %4841 = vmatprep.subr.mxu0 %v808
  %4842 = vmatpush1.msra.mxu0 %v807
  %4843 = vmatprep.subr.mxu0 %v908
  %4844 = vmatpush1.msra.mxu0 %v907
  %4845 = vmatprep.subr.mxu0 %v1008
  %4846 = vmatpush1.msra.mxu0 %v1007
  %4847 = vmatprep.subr.mxu0 %v1108
  %4848 = vmatpush1.msra.mxu0 %v1107
  %4849 = vmatprep.subr.mxu0 %v1208
  %4850 = vmatpush1.msra.mxu0 %v1207
  %4851 = vmatprep.subr.mxu0 %v1606
  %4852 = vmatpush1.msra.mxu0 %v1603
  %4853 = vmatprep.subr.mxu0 0.0
  %4854 = vmatpush1.msra.mxu0 0.0
  %4855 = vmatprep.subr.mxu0 0.0
  %4856 = vmatpush1.msra.mxu0 0.0
  %4857 = vmatprep.subr.mxu0 0.0
  %4858 = vmatpush1.msra.mxu0 0.0
  %4859 = vmatprep.subr.mxu0 0.0
  %4860 = vmatpush1.msra.mxu0 0.0
  %4861 = vmatprep.subr.mxu0 0.0
  %4862 = vmatpush1.msra.mxu0 0.0
  %4863 = vmatprep.subr.mxu0 0.0
  %4864 = vmatpush1.msra.mxu0 0.0
  %4865 = vmatprep.subr.mxu0 0.0
  %4866 = vmatpush1.msra.mxu0 0.0
  %4867 = vmatprep.subr.mxu0 0.0
  %4868 = vmatpush1.msra.mxu0 0.0
  %4869 = vmatprep.subr.mxu0 0.0
  %4870 = vmatpush1.msra.mxu0 0.0
  %4871 = vmatprep.subr.mxu0 0.0
  %4872 = vmatpush1.msra.mxu0 0.0
  %4873 = vmatprep.subr.mxu0 0.0
  %4874 = vmatpush1.msra.mxu0 0.0
  %4875 = vmatprep.subr.mxu0 0.0
  %4876 = vmatpush1.msra.mxu0 0.0
  %4877 = vmatprep.subr.mxu0 0.0
  %4878 = vmatpush1.msra.mxu0 0.0
  %4879 = vmatprep.subr.mxu0 0.0
  %4880 = vmatpush1.msra.mxu0 0.0
  %4881 = vmatprep.subr.mxu0 0.0
  %4882 = vmatpush1.msra.mxu0 0.0
  %4883 = vmatprep.subr.mxu0 0.0
  %4884 = vmatpush1.msra.mxu0 0.0
  %4885 = vmatprep.subr.mxu0 0.0
  %4886 = vmatpush1.msra.mxu0 0.0
  %4887 = vmatprep.subr.mxu0 0.0
  %4888 = vmatpush1.msra.mxu0 0.0
  %4889 = vmatprep.subr.mxu0 0.0
  %4890 = vmatpush1.msra.mxu0 0.0
  %4891 = vmatprep.mubr.f32.mxu0 0.0
  %4892 = vmatmul.mubr.f32.gmra.mrb[0].mxu0 %v1329
  %v4893 = vpop.f32.mrb[0].mxu0
  %v4894 = vadd.f32 %v1326, %v4893
  %v4895 = vpop.f32.mrb[0].mxu0
  %v4896 = vadd.f32 %v1326, %v4895
  %4897 = vdwg.mxu0
  %4898 = vmatprep.subr.mxu0 %v110
  %4899 = vmatpush1.msra.mxu0 %v109
  %4900 = vmatprep.subr.mxu0 %v210
  %4901 = vmatpush1.msra.mxu0 %v209
  %4902 = vmatprep.subr.mxu0 %v310
  %4903 = vmatpush1.msra.mxu0 %v309
  %4904 = vmatprep.subr.mxu0 %v410
  %4905 = vmatpush1.msra.mxu0 %v409
  %4906 = vmatprep.subr.mxu0 %v510
  %4907 = vmatpush1.msra.mxu0 %v509
  %4908 = vmatprep.subr.mxu0 %v610
  %4909 = vmatpush1.msra.mxu0 %v609
  %4910 = vmatprep.subr.mxu0 %v710
  %4911 = vmatpush1.msra.mxu0 %v709
  %4912 = vmatprep.subr.mxu0 %v810
  %4913 = vmatpush1.msra.mxu0 %v809
  %4914 = vmatprep.subr.mxu0 %v910
  %4915 = vmatpush1.msra.mxu0 %v909
  %4916 = vmatprep.subr.mxu0 %v1010
  %4917 = vmatpush1.msra.mxu0 %v1009
  %4918 = vmatprep.subr.mxu0 %v1110
  %4919 = vmatpush1.msra.mxu0 %v1109
  %4920 = vmatprep.subr.mxu0 %v1210
  %4921 = vmatpush1.msra.mxu0 %v1209
  %4922 = vmatprep.subr.mxu0 %v1612
  %4923 = vmatpush1.msra.mxu0 %v1609
  %4924 = vmatprep.subr.mxu0 0.0
  %4925 = vmatpush1.msra.mxu0 0.0
  %4926 = vmatprep.subr.mxu0 0.0
  %4927 = vmatpush1.msra.mxu0 0.0
  %4928 = vmatprep.subr.mxu0 0.0
  %4929 = vmatpush1.msra.mxu0 0.0
  %4930 = vmatprep.subr.mxu0 0.0
  %4931 = vmatpush1.msra.mxu0 0.0
  %4932 = vmatprep.subr.mxu0 0.0
  %4933 = vmatpush1.msra.mxu0 0.0
  %4934 = vmatprep.subr.mxu0 0.0
  %4935 = vmatpush1.msra.mxu0 0.0
  %4936 = vmatprep.subr.mxu0 0.0
  %4937 = vmatpush1.msra.mxu0 0.0
  %4938 = vmatprep.subr.mxu0 0.0
  %4939 = vmatpush1.msra.mxu0 0.0
  %4940 = vmatprep.subr.mxu0 0.0
  %4941 = vmatpush1.msra.mxu0 0.0
  %4942 = vmatprep.subr.mxu0 0.0
  %4943 = vmatpush1.msra.mxu0 0.0
  %4944 = vmatprep.subr.mxu0 0.0
  %4945 = vmatpush1.msra.mxu0 0.0
  %4946 = vmatprep.subr.mxu0 0.0
  %4947 = vmatpush1.msra.mxu0 0.0
  %4948 = vmatprep.subr.mxu0 0.0
  %4949 = vmatpush1.msra.mxu0 0.0
  %4950 = vmatprep.subr.mxu0 0.0
  %4951 = vmatpush1.msra.mxu0 0.0
  %4952 = vmatprep.subr.mxu0 0.0
  %4953 = vmatpush1.msra.mxu0 0.0
  %4954 = vmatprep.subr.mxu0 0.0
  %4955 = vmatpush1.msra.mxu0 0.0
  %4956 = vmatprep.subr.mxu0 0.0
  %4957 = vmatpush1.msra.mxu0 0.0
  %4958 = vmatprep.subr.mxu0 0.0
  %4959 = vmatpush1.msra.mxu0 0.0
  %4960 = vmatprep.subr.mxu0 0.0
  %4961 = vmatpush1.msra.mxu0 0.0
  %4962 = vmatprep.mubr.f32.mxu0 0.0
  %4963 = vmatmul.mubr.f32.gmra.mrb[0].mxu0 %v1329
  %v4964 = vpop.f32.mrb[0].mxu0
  %v4965 = vadd.f32 %v1326, %v4964
  %v4966 = vpop.f32.mrb[0].mxu0
  %v4967 = vadd.f32 %v1326, %v4966
  %4968 = vdwg.mxu0
  %4969 = vmatprep.subr.mxu0 %v112
  %4970 = vmatpush1.msra.mxu0 %v111
  %4971 = vmatprep.subr.mxu0 %v212
  %4972 = vmatpush1.msra.mxu0 %v211
  %4973 = vmatprep.subr.mxu0 %v312
  %4974 = vmatpush1.msra.mxu0 %v311
  %4975 = vmatprep.subr.mxu0 %v412
  %4976 = vmatpush1.msra.mxu0 %v411
  %4977 = vmatprep.subr.mxu0 %v512
  %4978 = vmatpush1.msra.mxu0 %v511
  %4979 = vmatprep.subr.mxu0 %v612
  %4980 = vmatpush1.msra.mxu0 %v611
  %4981 = vmatprep.subr.mxu0 %v712
  %4982 = vmatpush1.msra.mxu0 %v711
  %4983 = vmatprep.subr.mxu0 %v812
  %4984 = vmatpush1.msra.mxu0 %v811
  %4985 = vmatprep.subr.mxu0 %v912
  %4986 = vmatpush1.msra.mxu0 %v911
  %4987 = vmatprep.subr.mxu0 %v1012
  %4988 = vmatpush1.msra.mxu0 %v1011
  %4989 = vmatprep.subr.mxu0 %v1112
  %4990 = vmatpush1.msra.mxu0 %v1111
  %4991 = vmatprep.subr.mxu0 %v1212
  %4992 = vmatpush1.msra.mxu0 %v1211
  %4993 = vmatprep.subr.mxu0 %v1618
  %4994 = vmatpush1.msra.mxu0 %v1615
  %4995 = vmatprep.subr.mxu0 0.0
  %4996 = vmatpush1.msra.mxu0 0.0
  %4997 = vmatprep.subr.mxu0 0.0
  %4998 = vmatpush1.msra.mxu0 0.0
  %4999 = vmatprep.subr.mxu0 0.0
  %5000 = vmatpush1.msra.mxu0 0.0
  %5001 = vmatprep.subr.mxu0 0.0
  %5002 = vmatpush1.msra.mxu0 0.0
  %5003 = vmatprep.subr.mxu0 0.0
  %5004 = vmatpush1.msra.mxu0 0.0
  %5005 = vmatprep.subr.mxu0 0.0
  %5006 = vmatpush1.msra.mxu0 0.0
  %5007 = vmatprep.subr.mxu0 0.0
  %5008 = vmatpush1.msra.mxu0 0.0
  %5009 = vmatprep.subr.mxu0 0.0
  %5010 = vmatpush1.msra.mxu0 0.0
  %5011 = vmatprep.subr.mxu0 0.0
  %5012 = vmatpush1.msra.mxu0 0.0
  %5013 = vmatprep.subr.mxu0 0.0
  %5014 = vmatpush1.msra.mxu0 0.0
  %5015 = vmatprep.subr.mxu0 0.0
  %5016 = vmatpush1.msra.mxu0 0.0
  %5017 = vmatprep.subr.mxu0 0.0
  %5018 = vmatpush1.msra.mxu0 0.0
  %5019 = vmatprep.subr.mxu0 0.0
  %5020 = vmatpush1.msra.mxu0 0.0
  %5021 = vmatprep.subr.mxu0 0.0
  %5022 = vmatpush1.msra.mxu0 0.0
  %5023 = vmatprep.subr.mxu0 0.0
  %5024 = vmatpush1.msra.mxu0 0.0
  %5025 = vmatprep.subr.mxu0 0.0
  %5026 = vmatpush1.msra.mxu0 0.0
  %5027 = vmatprep.subr.mxu0 0.0
  %5028 = vmatpush1.msra.mxu0 0.0
  %5029 = vmatprep.subr.mxu0 0.0
  %5030 = vmatpush1.msra.mxu0 0.0
  %5031 = vmatprep.subr.mxu0 0.0
  %5032 = vmatpush1.msra.mxu0 0.0
  %5033 = vmatprep.mubr.f32.mxu0 0.0
  %5034 = vmatmul.mubr.f32.gmra.mrb[0].mxu0 %v1329
  %v5035 = vpop.f32.mrb[0].mxu0
  %v5036 = vadd.f32 %v1326, %v5035
  %v5037 = vpop.f32.mrb[0].mxu0
  %v5038 = vadd.f32 %v1326, %v5037
  %5039 = vdwg.mxu0
  %5040 = vmatprep.subr.mxu0 %v114
  %5041 = vmatpush1.msra.mxu0 %v113
  %5042 = vmatprep.subr.mxu0 %v214
  %5043 = vmatpush1.msra.mxu0 %v213
  %5044 = vmatprep.subr.mxu0 %v314
  %5045 = vmatpush1.msra.mxu0 %v313
  %5046 = vmatprep.subr.mxu0 %v414
  %5047 = vmatpush1.msra.mxu0 %v413
  %5048 = vmatprep.subr.mxu0 %v514
  %5049 = vmatpush1.msra.mxu0 %v513
  %5050 = vmatprep.subr.mxu0 %v614
  %5051 = vmatpush1.msra.mxu0 %v613
  %5052 = vmatprep.subr.mxu0 %v714
  %5053 = vmatpush1.msra.mxu0 %v713
  %5054 = vmatprep.subr.mxu0 %v814
  %5055 = vmatpush1.msra.mxu0 %v813
  %5056 = vmatprep.subr.mxu0 %v914
  %5057 = vmatpush1.msra.mxu0 %v913
  %5058 = vmatprep.subr.mxu0 %v1014
  %5059 = vmatpush1.msra.mxu0 %v1013
  %5060 = vmatprep.subr.mxu0 %v1114
  %5061 = vmatpush1.msra.mxu0 %v1113
  %5062 = vmatprep.subr.mxu0 %v1214
  %5063 = vmatpush1.msra.mxu0 %v1213
  %5064 = vmatprep.subr.mxu0 %v1624
  %5065 = vmatpush1.msra.mxu0 %v1621
  %5066 = vmatprep.subr.mxu0 0.0
  %5067 = vmatpush1.msra.mxu0 0.0
  %5068 = vmatprep.subr.mxu0 0.0
  %5069 = vmatpush1.msra.mxu0 0.0
  %5070 = vmatprep.subr.mxu0 0.0
  %5071 = vmatpush1.msra.mxu0 0.0
  %5072 = vmatprep.subr.mxu0 0.0
  %5073 = vmatpush1.msra.mxu0 0.0
  %5074 = vmatprep.subr.mxu0 0.0
  %5075 = vmatpush1.msra.mxu0 0.0
  %5076 = vmatprep.subr.mxu0 0.0
  %5077 = vmatpush1.msra.mxu0 0.0
  %5078 = vmatprep.subr.mxu0 0.0
  %5079 = vmatpush1.msra.mxu0 0.0
  %5080 = vmatprep.subr.mxu0 0.0
  %5081 = vmatpush1.msra.mxu0 0.0
  %5082 = vmatprep.subr.mxu0 0.0
  %5083 = vmatpush1.msra.mxu0 0.0
  %5084 = vmatprep.subr.mxu0 0.0
  %5085 = vmatpush1.msra.mxu0 0.0
  %5086 = vmatprep.subr.mxu0 0.0
  %5087 = vmatpush1.msra.mxu0 0.0
  %5088 = vmatprep.subr.mxu0 0.0
  %5089 = vmatpush1.msra.mxu0 0.0
  %5090 = vmatprep.subr.mxu0 0.0
  %5091 = vmatpush1.msra.mxu0 0.0
  %5092 = vmatprep.subr.mxu0 0.0
  %5093 = vmatpush1.msra.mxu0 0.0
  %5094 = vmatprep.subr.mxu0 0.0
  %5095 = vmatpush1.msra.mxu0 0.0
  %5096 = vmatprep.subr.mxu0 0.0
  %5097 = vmatpush1.msra.mxu0 0.0
  %5098 = vmatprep.subr.mxu0 0.0
  %5099 = vmatpush1.msra.mxu0 0.0
  %5100 = vmatprep.subr.mxu0 0.0
  %5101 = vmatpush1.msra.mxu0 0.0
  %5102 = vmatprep.subr.mxu0 0.0
  %5103 = vmatpush1.msra.mxu0 0.0
  %5104 = vmatprep.mubr.f32.mxu0 0.0
  %5105 = vmatmul.mubr.f32.gmra.mrb[0].mxu0 %v1329
  %v5106 = vpop.f32.mrb[0].mxu0
  %v5107 = vadd.f32 %v1326, %v5106
  %v5108 = vpop.f32.mrb[0].mxu0
  %v5109 = vadd.f32 %v1326, %v5108
  %5110 = vdwg.mxu0
  %5111 = vmatprep.subr.mxu0 %v116
  %5112 = vmatpush1.msra.mxu0 %v115
  %5113 = vmatprep.subr.mxu0 %v216
  %5114 = vmatpush1.msra.mxu0 %v215
  %5115 = vmatprep.subr.mxu0 %v316
  %5116 = vmatpush1.msra.mxu0 %v315
  %5117 = vmatprep.subr.mxu0 %v416
  %5118 = vmatpush1.msra.mxu0 %v415
  %5119 = vmatprep.subr.mxu0 %v516
  %5120 = vmatpush1.msra.mxu0 %v515
  %5121 = vmatprep.subr.mxu0 %v616
  %5122 = vmatpush1.msra.mxu0 %v615
  %5123 = vmatprep.subr.mxu0 %v716
  %5124 = vmatpush1.msra.mxu0 %v715
  %5125 = vmatprep.subr.mxu0 %v816
  %5126 = vmatpush1.msra.mxu0 %v815
  %5127 = vmatprep.subr.mxu0 %v916
  %5128 = vmatpush1.msra.mxu0 %v915
  %5129 = vmatprep.subr.mxu0 %v1016
  %5130 = vmatpush1.msra.mxu0 %v1015
  %5131 = vmatprep.subr.mxu0 %v1116
  %5132 = vmatpush1.msra.mxu0 %v1115
  %5133 = vmatprep.subr.mxu0 %v1216
  %5134 = vmatpush1.msra.mxu0 %v1215
  %5135 = vmatprep.subr.mxu0 %v1630
  %5136 = vmatpush1.msra.mxu0 %v1627
  %5137 = vmatprep.subr.mxu0 0.0
  %5138 = vmatpush1.msra.mxu0 0.0
  %5139 = vmatprep.subr.mxu0 0.0
  %5140 = vmatpush1.msra.mxu0 0.0
  %5141 = vmatprep.subr.mxu0 0.0
  %5142 = vmatpush1.msra.mxu0 0.0
  %5143 = vmatprep.subr.mxu0 0.0
  %5144 = vmatpush1.msra.mxu0 0.0
  %5145 = vmatprep.subr.mxu0 0.0
  %5146 = vmatpush1.msra.mxu0 0.0
  %5147 = vmatprep.subr.mxu0 0.0
  %5148 = vmatpush1.msra.mxu0 0.0
  %5149 = vmatprep.subr.mxu0 0.0
  %5150 = vmatpush1.msra.mxu0 0.0
  %5151 = vmatprep.subr.mxu0 0.0
  %5152 = vmatpush1.msra.mxu0 0.0
  %5153 = vmatprep.subr.mxu0 0.0
  %5154 = vmatpush1.msra.mxu0 0.0
  %5155 = vmatprep.subr.mxu0 0.0
  %5156 = vmatpush1.msra.mxu0 0.0
  %5157 = vmatprep.subr.mxu0 0.0
  %5158 = vmatpush1.msra.mxu0 0.0
  %5159 = vmatprep.subr.mxu0 0.0
  %5160 = vmatpush1.msra.mxu0 0.0
  %5161 = vmatprep.subr.mxu0 0.0
  %5162 = vmatpush1.msra.mxu0 0.0
  %5163 = vmatprep.subr.mxu0 0.0
  %5164 = vmatpush1.msra.mxu0 0.0
  %5165 = vmatprep.subr.mxu0 0.0
  %5166 = vmatpush1.msra.mxu0 0.0
  %5167 = vmatprep.subr.mxu0 0.0
  %5168 = vmatpush1.msra.mxu0 0.0
  %5169 = vmatprep.subr.mxu0 0.0
  %5170 = vmatpush1.msra.mxu0 0.0
  %5171 = vmatprep.subr.mxu0 0.0
  %5172 = vmatpush1.msra.mxu0 0.0
  %5173 = vmatprep.subr.mxu0 0.0
  %5174 = vmatpush1.msra.mxu0 0.0
  %5175 = vmatprep.mubr.f32.mxu0 0.0
  %5176 = vmatmul.mubr.f32.gmra.mrb[0].mxu0 %v1329
  %v5177 = vpop.f32.mrb[0].mxu0
  %v5178 = vadd.f32 %v1326, %v5177
  %v5179 = vpop.f32.mrb[0].mxu0
  %v5180 = vadd.f32 %v1326, %v5179
  %5181 = vdwg.mxu0
  %v5182 = vsub.f32 0.0, %v1699
  %v5183 = vsub.f32 0.0, %v1701
  %v5184 = vsub.f32 0.0, %v1770
  %v5185 = vsub.f32 0.0, %v1772
  %v5186 = vsub.f32 0.0, %v1841
  %v5187 = vsub.f32 0.0, %v1843
  %v5188 = vsub.f32 0.0, %v1912
  %v5189 = vsub.f32 0.0, %v1914
  %v5190 = vsub.f32 0.0, %v1983
  %v5191 = vsub.f32 0.0, %v1985
  %v5192 = vsub.f32 0.0, %v2054
  %v5193 = vsub.f32 0.0, %v2056
  %v5194 = vsub.f32 0.0, %v2125
  %v5195 = vsub.f32 0.0, %v2127
  %v5196 = vsub.f32 0.0, %v2196
  %v5197 = vsub.f32 0.0, %v2198
  %v5198 = vsub.f32 0.0, %v2267
  %v5199 = vsub.f32 0.0, %v2269
  %v5200 = vsub.f32 0.0, %v2338
  %v5201 = vsub.f32 0.0, %v2340
  %v5202 = vsub.f32 0.0, %v2409
  %v5203 = vsub.f32 0.0, %v2411
  %v5204 = vsub.f32 0.0, %v2480
  %v5205 = vsub.f32 0.0, %v2482
  %v5206 = vsub.f32 0.0, %v2551
  %v5207 = vsub.f32 0.0, %v2553
  %v5208 = vsub.f32 0.0, %v2622
  %v5209 = vsub.f32 0.0, %v2624
  %v5210 = vsub.f32 0.0, %v2693
  %v5211 = vsub.f32 0.0, %v2695
  %v5212 = vsub.f32 0.0, %v2764
  %v5213 = vsub.f32 0.0, %v2766
  %v5214 = vsub.f32 0.0, %v2835
  %v5215 = vsub.f32 0.0, %v2837
  %v5216 = vsub.f32 0.0, %v2906
  %v5217 = vsub.f32 0.0, %v2908
  %v5218 = vsub.f32 0.0, %v2977
  %v5219 = vsub.f32 0.0, %v2979
  %v5220 = vsub.f32 0.0, %v3048
  %v5221 = vsub.f32 0.0, %v3050
  %v5222 = vsub.f32 0.0, %v3119
  %v5223 = vsub.f32 0.0, %v3121
  %v5224 = vsub.f32 0.0, %v3190
  %v5225 = vsub.f32 0.0, %v3192
  %v5226 = vsub.f32 0.0, %v3261
  %v5227 = vsub.f32 0.0, %v3263
  %v5228 = vsub.f32 0.0, %v3332
  %v5229 = vsub.f32 0.0, %v3334
  %v5230 = vsub.f32 0.0, %v3403
  %v5231 = vsub.f32 0.0, %v3405
  %v5232 = vsub.f32 0.0, %v3474
  %v5233 = vsub.f32 0.0, %v3476
  %v5234 = vsub.f32 0.0, %v3545
  %v5235 = vsub.f32 0.0, %v3547
  %v5236 = vsub.f32 0.0, %v3616
  %v5237 = vsub.f32 0.0, %v3618
  %v5238 = vsub.f32 0.0, %v3687
  %v5239 = vsub.f32 0.0, %v3689
  %v5240 = vsub.f32 0.0, %v3758
  %v5241 = vsub.f32 0.0, %v3760
  %v5242 = vsub.f32 0.0, %v3829
  %v5243 = vsub.f32 0.0, %v3831
  %v5244 = vsub.f32 0.0, %v3900
  %v5245 = vsub.f32 0.0, %v3902
  %v5246 = vsub.f32 0.0, %v3971
  %v5247 = vsub.f32 0.0, %v3973
  %v5248 = vsub.f32 0.0, %v4042
  %v5249 = vsub.f32 0.0, %v4044
  %v5250 = vsub.f32 0.0, %v4113
  %v5251 = vsub.f32 0.0, %v4115
  %v5252 = vsub.f32 0.0, %v4184
  %v5253 = vsub.f32 0.0, %v4186
  %v5254 = vsub.f32 0.0, %v4255
  %v5255 = vsub.f32 0.0, %v4257
  %v5256 = vsub.f32 0.0, %v4326
  %v5257 = vsub.f32 0.0, %v4328
  %v5258 = vsub.f32 0.0, %v4397
  %v5259 = vsub.f32 0.0, %v4399
  %v5260 = vsub.f32 0.0, %v4468
  %v5261 = vsub.f32 0.0, %v4470
  %v5262 = vsub.f32 0.0, %v4539
  %v5263 = vsub.f32 0.0, %v4541
  %v5264 = vsub.f32 0.0, %v4610
  %v5265 = vsub.f32 0.0, %v4612
  %v5266 = vsub.f32 0.0, %v4681
  %v5267 = vsub.f32 0.0, %v4683
  %v5268 = vsub.f32 0.0, %v4752
  %v5269 = vsub.f32 0.0, %v4754
  %v5270 = vsub.f32 0.0, %v4823
  %v5271 = vsub.f32 0.0, %v4825
  %v5272 = vsub.f32 0.0, %v4894
  %v5273 = vsub.f32 0.0, %v4896
  %v5274 = vsub.f32 0.0, %v4965
  %v5275 = vsub.f32 0.0, %v4967
  %v5276 = vsub.f32 0.0, %v5036
  %v5277 = vsub.f32 0.0, %v5038
  %v5278 = vsub.f32 0.0, %v5107
  %v5279 = vsub.f32 0.0, %v5109
  %v5280 = vsub.f32 0.0, %v5178
  %v5281 = vsub.f32 0.0, %v5180
  %v5282 = vmul.f32 %v5182, 1.442695
  %v5283 = vpow.pop %v5282
  %v5284 = vmul.f32 %v5183, 1.442695
  %v5285 = vpow.pop %v5284
  %v5286 = vmul.f32 %v5184, 1.442695
  %v5287 = vpow.pop %v5286
  %v5288 = vmul.f32 %v5185, 1.442695
  %v5289 = vpow.pop %v5288
  %v5290 = vmul.f32 %v5186, 1.442695
  %v5291 = vpow.pop %v5290
  %v5292 = vmul.f32 %v5187, 1.442695
  %v5293 = vpow.pop %v5292
  %v5294 = vmul.f32 %v5188, 1.442695
  %v5295 = vpow.pop %v5294
  %v5296 = vmul.f32 %v5189, 1.442695
  %v5297 = vpow.pop %v5296
  %v5298 = vmul.f32 %v5190, 1.442695
  %v5299 = vpow.pop %v5298
  %v5300 = vmul.f32 %v5191, 1.442695
  %v5301 = vpow.pop %v5300
  %v5302 = vmul.f32 %v5192, 1.442695
  %v5303 = vpow.pop %v5302
  %v5304 = vmul.f32 %v5193, 1.442695
  %v5305 = vpow.pop %v5304
  %v5306 = vmul.f32 %v5194, 1.442695
  %v5307 = vpow.pop %v5306
  %v5308 = vmul.f32 %v5195, 1.442695
  %v5309 = vpow.pop %v5308
  %v5310 = vmul.f32 %v5196, 1.442695
  %v5311 = vpow.pop %v5310
  %v5312 = vmul.f32 %v5197, 1.442695
  %v5313 = vpow.pop %v5312
  %v5314 = vmul.f32 %v5198, 1.442695
  %v5315 = vpow.pop %v5314
  %v5316 = vmul.f32 %v5199, 1.442695
  %v5317 = vpow.pop %v5316
  %v5318 = vmul.f32 %v5200, 1.442695
  %v5319 = vpow.pop %v5318
  %v5320 = vmul.f32 %v5201, 1.442695
  %v5321 = vpow.pop %v5320
  %v5322 = vmul.f32 %v5202, 1.442695
  %v5323 = vpow.pop %v5322
  %v5324 = vmul.f32 %v5203, 1.442695
  %v5325 = vpow.pop %v5324
  %v5326 = vmul.f32 %v5204, 1.442695
  %v5327 = vpow.pop %v5326
  %v5328 = vmul.f32 %v5205, 1.442695
  %v5329 = vpow.pop %v5328
  %v5330 = vmul.f32 %v5206, 1.442695
  %v5331 = vpow.pop %v5330
  %v5332 = vmul.f32 %v5207, 1.442695
  %v5333 = vpow.pop %v5332
  %v5334 = vmul.f32 %v5208, 1.442695
  %v5335 = vpow.pop %v5334
  %v5336 = vmul.f32 %v5209, 1.442695
  %v5337 = vpow.pop %v5336
  %v5338 = vmul.f32 %v5210, 1.442695
  %v5339 = vpow.pop %v5338
  %v5340 = vmul.f32 %v5211, 1.442695
  %v5341 = vpow.pop %v5340
  %v5342 = vmul.f32 %v5212, 1.442695
  %v5343 = vpow.pop %v5342
  %v5344 = vmul.f32 %v5213, 1.442695
  %v5345 = vpow.pop %v5344
  %v5346 = vmul.f32 %v5214, 1.442695
  %v5347 = vpow.pop %v5346
  %v5348 = vmul.f32 %v5215, 1.442695
  %v5349 = vpow.pop %v5348
  %v5350 = vmul.f32 %v5216, 1.442695
  %v5351 = vpow.pop %v5350
  %v5352 = vmul.f32 %v5217, 1.442695
  %v5353 = vpow.pop %v5352
  %v5354 = vmul.f32 %v5218, 1.442695
  %v5355 = vpow.pop %v5354
  %v5356 = vmul.f32 %v5219, 1.442695
  %v5357 = vpow.pop %v5356
  %v5358 = vmul.f32 %v5220, 1.442695
  %v5359 = vpow.pop %v5358
  %v5360 = vmul.f32 %v5221, 1.442695
  %v5361 = vpow.pop %v5360
  %v5362 = vmul.f32 %v5222, 1.442695
  %v5363 = vpow.pop %v5362
  %v5364 = vmul.f32 %v5223, 1.442695
  %v5365 = vpow.pop %v5364
  %v5366 = vmul.f32 %v5224, 1.442695
  %v5367 = vpow.pop %v5366
  %v5368 = vmul.f32 %v5225, 1.442695
  %v5369 = vpow.pop %v5368
  %v5370 = vmul.f32 %v5226, 1.442695
  %v5371 = vpow.pop %v5370
  %v5372 = vmul.f32 %v5227, 1.442695
  %v5373 = vpow.pop %v5372
  %v5374 = vmul.f32 %v5228, 1.442695
  %v5375 = vpow.pop %v5374
  %v5376 = vmul.f32 %v5229, 1.442695
  %v5377 = vpow.pop %v5376
  %v5378 = vmul.f32 %v5230, 1.442695
  %v5379 = vpow.pop %v5378
  %v5380 = vmul.f32 %v5231, 1.442695
  %v5381 = vpow.pop %v5380
  %v5382 = vmul.f32 %v5232, 1.442695
  %v5383 = vpow.pop %v5382
  %v5384 = vmul.f32 %v5233, 1.442695
  %v5385 = vpow.pop %v5384
  %v5386 = vmul.f32 %v5234, 1.442695
  %v5387 = vpow.pop %v5386
  %v5388 = vmul.f32 %v5235, 1.442695
  %v5389 = vpow.pop %v5388
  %v5390 = vmul.f32 %v5236, 1.442695
  %v5391 = vpow.pop %v5390
  %v5392 = vmul.f32 %v5237, 1.442695
  %v5393 = vpow.pop %v5392
  %v5394 = vmul.f32 %v5238, 1.442695
  %v5395 = vpow.pop %v5394
  %v5396 = vmul.f32 %v5239, 1.442695
  %v5397 = vpow.pop %v5396
  %v5398 = vmul.f32 %v5240, 1.442695
  %v5399 = vpow.pop %v5398
  %v5400 = vmul.f32 %v5241, 1.442695
  %v5401 = vpow.pop %v5400
  %v5402 = vmul.f32 %v5242, 1.442695
  %v5403 = vpow.pop %v5402
  %v5404 = vmul.f32 %v5243, 1.442695
  %v5405 = vpow.pop %v5404
  %v5406 = vmul.f32 %v5244, 1.442695
  %v5407 = vpow.pop %v5406
  %v5408 = vmul.f32 %v5245, 1.442695
  %v5409 = vpow.pop %v5408
  %v5410 = vmul.f32 %v5246, 1.442695
  %v5411 = vpow.pop %v5410
  %v5412 = vmul.f32 %v5247, 1.442695
  %v5413 = vpow.pop %v5412
  %v5414 = vmul.f32 %v5248, 1.442695
  %v5415 = vpow.pop %v5414
  %v5416 = vmul.f32 %v5249, 1.442695
  %v5417 = vpow.pop %v5416
  %v5418 = vmul.f32 %v5250, 1.442695
  %v5419 = vpow.pop %v5418
  %v5420 = vmul.f32 %v5251, 1.442695
  %v5421 = vpow.pop %v5420
  %v5422 = vmul.f32 %v5252, 1.442695
  %v5423 = vpow.pop %v5422
  %v5424 = vmul.f32 %v5253, 1.442695
  %v5425 = vpow.pop %v5424
  %v5426 = vmul.f32 %v5254, 1.442695
  %v5427 = vpow.pop %v5426
  %v5428 = vmul.f32 %v5255, 1.442695
  %v5429 = vpow.pop %v5428
  %v5430 = vmul.f32 %v5256, 1.442695
  %v5431 = vpow.pop %v5430
  %v5432 = vmul.f32 %v5257, 1.442695
  %v5433 = vpow.pop %v5432
  %v5434 = vmul.f32 %v5258, 1.442695
  %v5435 = vpow.pop %v5434
  %v5436 = vmul.f32 %v5259, 1.442695
  %v5437 = vpow.pop %v5436
  %v5438 = vmul.f32 %v5260, 1.442695
  %v5439 = vpow.pop %v5438
  %v5440 = vmul.f32 %v5261, 1.442695
  %v5441 = vpow.pop %v5440
  %v5442 = vmul.f32 %v5262, 1.442695
  %v5443 = vpow.pop %v5442
  %v5444 = vmul.f32 %v5263, 1.442695
  %v5445 = vpow.pop %v5444
  %v5446 = vmul.f32 %v5264, 1.442695
  %v5447 = vpow.pop %v5446
  %v5448 = vmul.f32 %v5265, 1.442695
  %v5449 = vpow.pop %v5448
  %v5450 = vmul.f32 %v5266, 1.442695
  %v5451 = vpow.pop %v5450
  %v5452 = vmul.f32 %v5267, 1.442695
  %v5453 = vpow.pop %v5452
  %v5454 = vmul.f32 %v5268, 1.442695
  %v5455 = vpow.pop %v5454
  %v5456 = vmul.f32 %v5269, 1.442695
  %v5457 = vpow.pop %v5456
  %v5458 = vmul.f32 %v5270, 1.442695
  %v5459 = vpow.pop %v5458
  %v5460 = vmul.f32 %v5271, 1.442695
  %v5461 = vpow.pop %v5460
  %v5462 = vmul.f32 %v5272, 1.442695
  %v5463 = vpow.pop %v5462
  %v5464 = vmul.f32 %v5273, 1.442695
  %v5465 = vpow.pop %v5464
  %v5466 = vmul.f32 %v5274, 1.442695
  %v5467 = vpow.pop %v5466
  %v5468 = vmul.f32 %v5275, 1.442695
  %v5469 = vpow.pop %v5468
  %v5470 = vmul.f32 %v5276, 1.442695
  %v5471 = vpow.pop %v5470
  %v5472 = vmul.f32 %v5277, 1.442695
  %v5473 = vpow.pop %v5472
  %v5474 = vmul.f32 %v5278, 1.442695
  %v5475 = vpow.pop %v5474
  %v5476 = vmul.f32 %v5279, 1.442695
  %v5477 = vpow.pop %v5476
  %v5478 = vmul.f32 %v5280, 1.442695
  %v5479 = vpow.pop %v5478
  %v5480 = vmul.f32 %v5281, 1.442695
  %v5481 = vpow.pop %v5480
  %v5482 = vadd.f32 %v5283, 1.0
  %v5483 = vadd.f32 %v5285, 1.0
  %v5484 = vadd.f32 %v5287, 1.0
  %v5485 = vadd.f32 %v5289, 1.0
  %v5486 = vadd.f32 %v5291, 1.0
  %v5487 = vadd.f32 %v5293, 1.0
  %v5488 = vadd.f32 %v5295, 1.0
  %v5489 = vadd.f32 %v5297, 1.0
  %v5490 = vadd.f32 %v5299, 1.0
  %v5491 = vadd.f32 %v5301, 1.0
  %v5492 = vadd.f32 %v5303, 1.0
  %v5493 = vadd.f32 %v5305, 1.0
  %v5494 = vadd.f32 %v5307, 1.0
  %v5495 = vadd.f32 %v5309, 1.0
  %v5496 = vadd.f32 %v5311, 1.0
  %v5497 = vadd.f32 %v5313, 1.0
  %v5498 = vadd.f32 %v5315, 1.0
  %v5499 = vadd.f32 %v5317, 1.0
  %v5500 = vadd.f32 %v5319, 1.0
  %v5501 = vadd.f32 %v5321, 1.0
  %v5502 = vadd.f32 %v5323, 1.0
  %v5503 = vadd.f32 %v5325, 1.0
  %v5504 = vadd.f32 %v5327, 1.0
  %v5505 = vadd.f32 %v5329, 1.0
  %v5506 = vadd.f32 %v5331, 1.0
  %v5507 = vadd.f32 %v5333, 1.0
  %v5508 = vadd.f32 %v5335, 1.0
  %v5509 = vadd.f32 %v5337, 1.0
  %v5510 = vadd.f32 %v5339, 1.0
  %v5511 = vadd.f32 %v5341, 1.0
  %v5512 = vadd.f32 %v5343, 1.0
  %v5513 = vadd.f32 %v5345, 1.0
  %v5514 = vadd.f32 %v5347, 1.0
  %v5515 = vadd.f32 %v5349, 1.0
  %v5516 = vadd.f32 %v5351, 1.0
  %v5517 = vadd.f32 %v5353, 1.0
  %v5518 = vadd.f32 %v5355, 1.0
  %v5519 = vadd.f32 %v5357, 1.0
  %v5520 = vadd.f32 %v5359, 1.0
  %v5521 = vadd.f32 %v5361, 1.0
  %v5522 = vadd.f32 %v5363, 1.0
  %v5523 = vadd.f32 %v5365, 1.0
  %v5524 = vadd.f32 %v5367, 1.0
  %v5525 = vadd.f32 %v5369, 1.0
  %v5526 = vadd.f32 %v5371, 1.0
  %v5527 = vadd.f32 %v5373, 1.0
  %v5528 = vadd.f32 %v5375, 1.0
  %v5529 = vadd.f32 %v5377, 1.0
  %v5530 = vadd.f32 %v5379, 1.0
  %v5531 = vadd.f32 %v5381, 1.0
  %v5532 = vadd.f32 %v5383, 1.0
  %v5533 = vadd.f32 %v5385, 1.0
  %v5534 = vadd.f32 %v5387, 1.0
  %v5535 = vadd.f32 %v5389, 1.0
  %v5536 = vadd.f32 %v5391, 1.0
  %v5537 = vadd.f32 %v5393, 1.0
  %v5538 = vadd.f32 %v5395, 1.0
  %v5539 = vadd.f32 %v5397, 1.0
  %v5540 = vadd.f32 %v5399, 1.0
  %v5541 = vadd.f32 %v5401, 1.0
  %v5542 = vadd.f32 %v5403, 1.0
  %v5543 = vadd.f32 %v5405, 1.0
  %v5544 = vadd.f32 %v5407, 1.0
  %v5545 = vadd.f32 %v5409, 1.0
  %v5546 = vadd.f32 %v5411, 1.0
  %v5547 = vadd.f32 %v5413, 1.0
  %v5548 = vadd.f32 %v5415, 1.0
  %v5549 = vadd.f32 %v5417, 1.0
  %v5550 = vadd.f32 %v5419, 1.0
  %v5551 = vadd.f32 %v5421, 1.0
  %v5552 = vadd.f32 %v5423, 1.0
  %v5553 = vadd.f32 %v5425, 1.0
  %v5554 = vadd.f32 %v5427, 1.0
  %v5555 = vadd.f32 %v5429, 1.0
  %v5556 = vadd.f32 %v5431, 1.0
  %v5557 = vadd.f32 %v5433, 1.0
  %v5558 = vadd.f32 %v5435, 1.0
  %v5559 = vadd.f32 %v5437, 1.0
  %v5560 = vadd.f32 %v5439, 1.0
  %v5561 = vadd.f32 %v5441, 1.0
  %v5562 = vadd.f32 %v5443, 1.0
  %v5563 = vadd.f32 %v5445, 1.0
  %v5564 = vadd.f32 %v5447, 1.0
  %v5565 = vadd.f32 %v5449, 1.0
  %v5566 = vadd.f32 %v5451, 1.0
  %v5567 = vadd.f32 %v5453, 1.0
  %v5568 = vadd.f32 %v5455, 1.0
  %v5569 = vadd.f32 %v5457, 1.0
  %v5570 = vadd.f32 %v5459, 1.0
  %v5571 = vadd.f32 %v5461, 1.0
  %v5572 = vadd.f32 %v5463, 1.0
  %v5573 = vadd.f32 %v5465, 1.0
  %v5574 = vadd.f32 %v5467, 1.0
  %v5575 = vadd.f32 %v5469, 1.0
  %v5576 = vadd.f32 %v5471, 1.0
  %v5577 = vadd.f32 %v5473, 1.0
  %v5578 = vadd.f32 %v5475, 1.0
  %v5579 = vadd.f32 %v5477, 1.0
  %v5580 = vadd.f32 %v5479, 1.0
  %v5581 = vadd.f32 %v5481, 1.0
  %v5582 = vrcp.pop %v5482
  %v5583 = vrcp.pop %v5483
  %v5584 = vrcp.pop %v5484
  %v5585 = vrcp.pop %v5485
  %v5586 = vrcp.pop %v5486
  %v5587 = vrcp.pop %v5487
  %v5588 = vrcp.pop %v5488
  %v5589 = vrcp.pop %v5489
  %v5590 = vrcp.pop %v5490
  %v5591 = vrcp.pop %v5491
  %v5592 = vrcp.pop %v5492
  %v5593 = vrcp.pop %v5493
  %v5594 = vrcp.pop %v5494
  %v5595 = vrcp.pop %v5495
  %v5596 = vrcp.pop %v5496
  %v5597 = vrcp.pop %v5497
  %v5598 = vrcp.pop %v5498
  %v5599 = vrcp.pop %v5499
  %v5600 = vrcp.pop %v5500
  %v5601 = vrcp.pop %v5501
  %v5602 = vrcp.pop %v5502
  %v5603 = vrcp.pop %v5503
  %v5604 = vrcp.pop %v5504
  %v5605 = vrcp.pop %v5505
  %v5606 = vrcp.pop %v5506
  %v5607 = vrcp.pop %v5507
  %v5608 = vrcp.pop %v5508
  %v5609 = vrcp.pop %v5509
  %v5610 = vrcp.pop %v5510
  %v5611 = vrcp.pop %v5511
  %v5612 = vrcp.pop %v5512
  %v5613 = vrcp.pop %v5513
  %v5614 = vrcp.pop %v5514
  %v5615 = vrcp.pop %v5515
  %v5616 = vrcp.pop %v5516
  %v5617 = vrcp.pop %v5517
  %v5618 = vrcp.pop %v5518
  %v5619 = vrcp.pop %v5519
  %v5620 = vrcp.pop %v5520
  %v5621 = vrcp.pop %v5521
  %v5622 = vrcp.pop %v5522
  %v5623 = vrcp.pop %v5523
  %v5624 = vrcp.pop %v5524
  %v5625 = vrcp.pop %v5525
  %v5626 = vrcp.pop %v5526
  %v5627 = vrcp.pop %v5527
  %v5628 = vrcp.pop %v5528
  %v5629 = vrcp.pop %v5529
  %v5630 = vrcp.pop %v5530
  %v5631 = vrcp.pop %v5531
  %v5632 = vrcp.pop %v5532
  %v5633 = vrcp.pop %v5533
  %v5634 = vrcp.pop %v5534
  %v5635 = vrcp.pop %v5535
  %v5636 = vrcp.pop %v5536
  %v5637 = vrcp.pop %v5537
  %v5638 = vrcp.pop %v5538
  %v5639 = vrcp.pop %v5539
  %v5640 = vrcp.pop %v5540
  %v5641 = vrcp.pop %v5541
  %v5642 = vrcp.pop %v5542
  %v5643 = vrcp.pop %v5543
  %v5644 = vrcp.pop %v5544
  %v5645 = vrcp.pop %v5545
  %v5646 = vrcp.pop %v5546
  %v5647 = vrcp.pop %v5547
  %v5648 = vrcp.pop %v5548
  %v5649 = vrcp.pop %v5549
  %v5650 = vrcp.pop %v5550
  %v5651 = vrcp.pop %v5551
  %v5652 = vrcp.pop %v5552
  %v5653 = vrcp.pop %v5553
  %v5654 = vrcp.pop %v5554
  %v5655 = vrcp.pop %v5555
  %v5656 = vrcp.pop %v5556
  %v5657 = vrcp.pop %v5557
  %v5658 = vrcp.pop %v5558
  %v5659 = vrcp.pop %v5559
  %v5660 = vrcp.pop %v5560
  %v5661 = vrcp.pop %v5561
  %v5662 = vrcp.pop %v5562
  %v5663 = vrcp.pop %v5563
  %v5664 = vrcp.pop %v5564
  %v5665 = vrcp.pop %v5565
  %v5666 = vrcp.pop %v5566
  %v5667 = vrcp.pop %v5567
  %v5668 = vrcp.pop %v5568
  %v5669 = vrcp.pop %v5569
  %v5670 = vrcp.pop %v5570
  %v5671 = vrcp.pop %v5571
  %v5672 = vrcp.pop %v5572
  %v5673 = vrcp.pop %v5573
  %v5674 = vrcp.pop %v5574
  %v5675 = vrcp.pop %v5575
  %v5676 = vrcp.pop %v5576
  %v5677 = vrcp.pop %v5577
  %v5678 = vrcp.pop %v5578
  %v5679 = vrcp.pop %v5579
  %v5680 = vrcp.pop %v5580
  %v5681 = vrcp.pop %v5581
  %v5682 = vmax.f32 %v5582, 0.0
  %v5683 = vmax.f32 %v5583, 0.0
  %v5684 = vmax.f32 %v5584, 0.0
  %v5685 = vmax.f32 %v5585, 0.0
  %v5686 = vmax.f32 %v5586, 0.0
  %v5687 = vmax.f32 %v5587, 0.0
  %v5688 = vmax.f32 %v5588, 0.0
  %v5689 = vmax.f32 %v5589, 0.0
  %v5690 = vmax.f32 %v5590, 0.0
  %v5691 = vmax.f32 %v5591, 0.0
  %v5692 = vmax.f32 %v5592, 0.0
  %v5693 = vmax.f32 %v5593, 0.0
  %v5694 = vmax.f32 %v5594, 0.0
  %v5695 = vmax.f32 %v5595, 0.0
  %v5696 = vmax.f32 %v5596, 0.0
  %v5697 = vmax.f32 %v5597, 0.0
  %v5698 = vmax.f32 %v5598, 0.0
  %v5699 = vmax.f32 %v5599, 0.0
  %v5700 = vmax.f32 %v5600, 0.0
  %v5701 = vmax.f32 %v5601, 0.0
  %v5702 = vmax.f32 %v5602, 0.0
  %v5703 = vmax.f32 %v5603, 0.0
  %v5704 = vmax.f32 %v5604, 0.0
  %v5705 = vmax.f32 %v5605, 0.0
  %v5706 = vmax.f32 %v5606, 0.0
  %v5707 = vmax.f32 %v5607, 0.0
  %v5708 = vmax.f32 %v5608, 0.0
  %v5709 = vmax.f32 %v5609, 0.0
  %v5710 = vmax.f32 %v5610, 0.0
  %v5711 = vmax.f32 %v5611, 0.0
  %v5712 = vmax.f32 %v5612, 0.0
  %v5713 = vmax.f32 %v5613, 0.0
  %v5714 = vmax.f32 %v5614, 0.0
  %v5715 = vmax.f32 %v5615, 0.0
  %v5716 = vmax.f32 %v5616, 0.0
  %v5717 = vmax.f32 %v5617, 0.0
  %v5718 = vmax.f32 %v5618, 0.0
  %v5719 = vmax.f32 %v5619, 0.0
  %v5720 = vmax.f32 %v5620, 0.0
  %v5721 = vmax.f32 %v5621, 0.0
  %v5722 = vmax.f32 %v5622, 0.0
  %v5723 = vmax.f32 %v5623, 0.0
  %v5724 = vmax.f32 %v5624, 0.0
  %v5725 = vmax.f32 %v5625, 0.0
  %v5726 = vmax.f32 %v5626, 0.0
  %v5727 = vmax.f32 %v5627, 0.0
  %v5728 = vmax.f32 %v5628, 0.0
  %v5729 = vmax.f32 %v5629, 0.0
  %v5730 = vmax.f32 %v5630, 0.0
  %v5731 = vmax.f32 %v5631, 0.0
  %v5732 = vmax.f32 %v5632, 0.0
  %v5733 = vmax.f32 %v5633, 0.0
  %v5734 = vmax.f32 %v5634, 0.0
  %v5735 = vmax.f32 %v5635, 0.0
  %v5736 = vmax.f32 %v5636, 0.0
  %v5737 = vmax.f32 %v5637, 0.0
  %v5738 = vmax.f32 %v5638, 0.0
  %v5739 = vmax.f32 %v5639, 0.0
  %v5740 = vmax.f32 %v5640, 0.0
  %v5741 = vmax.f32 %v5641, 0.0
  %v5742 = vmax.f32 %v5642, 0.0
  %v5743 = vmax.f32 %v5643, 0.0
  %v5744 = vmax.f32 %v5644, 0.0
  %v5745 = vmax.f32 %v5645, 0.0
  %v5746 = vmax.f32 %v5646, 0.0
  %v5747 = vmax.f32 %v5647, 0.0
  %v5748 = vmax.f32 %v5648, 0.0
  %v5749 = vmax.f32 %v5649, 0.0
  %v5750 = vmax.f32 %v5650, 0.0
  %v5751 = vmax.f32 %v5651, 0.0
  %v5752 = vmax.f32 %v5652, 0.0
  %v5753 = vmax.f32 %v5653, 0.0
  %v5754 = vmax.f32 %v5654, 0.0
  %v5755 = vmax.f32 %v5655, 0.0
  %v5756 = vmax.f32 %v5656, 0.0
  %v5757 = vmax.f32 %v5657, 0.0
  %v5758 = vmax.f32 %v5658, 0.0
  %v5759 = vmax.f32 %v5659, 0.0
  %v5760 = vmax.f32 %v5660, 0.0
  %v5761 = vmax.f32 %v5661, 0.0
  %v5762 = vmax.f32 %v5662, 0.0
  %v5763 = vmax.f32 %v5663, 0.0
  %v5764 = vmax.f32 %v5664, 0.0
  %v5765 = vmax.f32 %v5665, 0.0
  %v5766 = vmax.f32 %v5666, 0.0
  %v5767 = vmax.f32 %v5667, 0.0
  %v5768 = vmax.f32 %v5668, 0.0
  %v5769 = vmax.f32 %v5669, 0.0
  %v5770 = vmax.f32 %v5670, 0.0
  %v5771 = vmax.f32 %v5671, 0.0
  %v5772 = vmax.f32 %v5672, 0.0
  %v5773 = vmax.f32 %v5673, 0.0
  %v5774 = vmax.f32 %v5674, 0.0
  %v5775 = vmax.f32 %v5675, 0.0
  %v5776 = vmax.f32 %v5676, 0.0
  %v5777 = vmax.f32 %v5677, 0.0
  %v5778 = vmax.f32 %v5678, 0.0
  %v5779 = vmax.f32 %v5679, 0.0
  %v5780 = vmax.f32 %v5680, 0.0
  %v5781 = vmax.f32 %v5681, 0.0
  %v5782 = vmin.f32 %v5682, 1.0
  %v5783 = vmin.f32 %v5683, 1.0
  %v5784 = vmin.f32 %v5684, 1.0
  %v5785 = vmin.f32 %v5685, 1.0
  %v5786 = vmin.f32 %v5686, 1.0
  %v5787 = vmin.f32 %v5687, 1.0
  %v5788 = vmin.f32 %v5688, 1.0
  %v5789 = vmin.f32 %v5689, 1.0
  %v5790 = vmin.f32 %v5690, 1.0
  %v5791 = vmin.f32 %v5691, 1.0
  %v5792 = vmin.f32 %v5692, 1.0
  %v5793 = vmin.f32 %v5693, 1.0
  %v5794 = vmin.f32 %v5694, 1.0
  %v5795 = vmin.f32 %v5695, 1.0
  %v5796 = vmin.f32 %v5696, 1.0
  %v5797 = vmin.f32 %v5697, 1.0
  %v5798 = vmin.f32 %v5698, 1.0
  %v5799 = vmin.f32 %v5699, 1.0
  %v5800 = vmin.f32 %v5700, 1.0
  %v5801 = vmin.f32 %v5701, 1.0
  %v5802 = vmin.f32 %v5702, 1.0
  %v5803 = vmin.f32 %v5703, 1.0
  %v5804 = vmin.f32 %v5704, 1.0
  %v5805 = vmin.f32 %v5705, 1.0
  %v5806 = vmin.f32 %v5706, 1.0
  %v5807 = vmin.f32 %v5707, 1.0
  %v5808 = vmin.f32 %v5708, 1.0
  %v5809 = vmin.f32 %v5709, 1.0
  %v5810 = vmin.f32 %v5710, 1.0
  %v5811 = vmin.f32 %v5711, 1.0
  %v5812 = vmin.f32 %v5712, 1.0
  %v5813 = vmin.f32 %v5713, 1.0
  %v5814 = vmin.f32 %v5714, 1.0
  %v5815 = vmin.f32 %v5715, 1.0
  %v5816 = vmin.f32 %v5716, 1.0
  %v5817 = vmin.f32 %v5717, 1.0
  %v5818 = vmin.f32 %v5718, 1.0
  %v5819 = vmin.f32 %v5719, 1.0
  %v5820 = vmin.f32 %v5720, 1.0
  %v5821 = vmin.f32 %v5721, 1.0
  %v5822 = vmin.f32 %v5722, 1.0
  %v5823 = vmin.f32 %v5723, 1.0
  %v5824 = vmin.f32 %v5724, 1.0
  %v5825 = vmin.f32 %v5725, 1.0
  %v5826 = vmin.f32 %v5726, 1.0
  %v5827 = vmin.f32 %v5727, 1.0
  %v5828 = vmin.f32 %v5728, 1.0
  %v5829 = vmin.f32 %v5729, 1.0
  %v5830 = vmin.f32 %v5730, 1.0
  %v5831 = vmin.f32 %v5731, 1.0
  %v5832 = vmin.f32 %v5732, 1.0
  %v5833 = vmin.f32 %v5733, 1.0
  %v5834 = vmin.f32 %v5734, 1.0
  %v5835 = vmin.f32 %v5735, 1.0
  %v5836 = vmin.f32 %v5736, 1.0
  %v5837 = vmin.f32 %v5737, 1.0
  %v5838 = vmin.f32 %v5738, 1.0
  %v5839 = vmin.f32 %v5739, 1.0
  %v5840 = vmin.f32 %v5740, 1.0
  %v5841 = vmin.f32 %v5741, 1.0
  %v5842 = vmin.f32 %v5742, 1.0
  %v5843 = vmin.f32 %v5743, 1.0
  %v5844 = vmin.f32 %v5744, 1.0
  %v5845 = vmin.f32 %v5745, 1.0
  %v5846 = vmin.f32 %v5746, 1.0
  %v5847 = vmin.f32 %v5747, 1.0
  %v5848 = vmin.f32 %v5748, 1.0
  %v5849 = vmin.f32 %v5749, 1.0
  %v5850 = vmin.f32 %v5750, 1.0
  %v5851 = vmin.f32 %v5751, 1.0
  %v5852 = vmin.f32 %v5752, 1.0
  %v5853 = vmin.f32 %v5753, 1.0
  %v5854 = vmin.f32 %v5754, 1.0
  %v5855 = vmin.f32 %v5755, 1.0
  %v5856 = vmin.f32 %v5756, 1.0
  %v5857 = vmin.f32 %v5757, 1.0
  %v5858 = vmin.f32 %v5758, 1.0
  %v5859 = vmin.f32 %v5759, 1.0
  %v5860 = vmin.f32 %v5760, 1.0
  %v5861 = vmin.f32 %v5761, 1.0
  %v5862 = vmin.f32 %v5762, 1.0
  %v5863 = vmin.f32 %v5763, 1.0
  %v5864 = vmin.f32 %v5764, 1.0
  %v5865 = vmin.f32 %v5765, 1.0
  %v5866 = vmin.f32 %v5766, 1.0
  %v5867 = vmin.f32 %v5767, 1.0
  %v5868 = vmin.f32 %v5768, 1.0
  %v5869 = vmin.f32 %v5769, 1.0
  %v5870 = vmin.f32 %v5770, 1.0
  %v5871 = vmin.f32 %v5771, 1.0
  %v5872 = vmin.f32 %v5772, 1.0
  %v5873 = vmin.f32 %v5773, 1.0
  %v5874 = vmin.f32 %v5774, 1.0
  %v5875 = vmin.f32 %v5775, 1.0
  %v5876 = vmin.f32 %v5776, 1.0
  %v5877 = vmin.f32 %v5777, 1.0
  %v5878 = vmin.f32 %v5778, 1.0
  %v5879 = vmin.f32 %v5779, 1.0
  %v5880 = vmin.f32 %v5780, 1.0
  %v5881 = vmin.f32 %v5781, 1.0
  %v5982 = vcombine.low %v5782, %v5783
  %v5983 = vcombine.low %v5784, %v5785
  %v5984 = vcombine.low %v5786, %v5787
  %v5985 = vcombine.low %v5788, %v5789
  %v5987 = vunpack.c.l.s4 1966171168
  %v5988 = vunpack.c.0.s8 %v5987
  %v5989 = vlaneseq
  %v5990 = vshrl.u32 %v5989, 7
  %v5991 = vsub.s32 %v5988, %v5990
  %v5992 = vrot.slane %v5982, %v5991
  %v5994 = vunpack.c.l.s4 1966171168
  %v5995 = vunpack.c.0.s8 %v5994
  %v5996 = vlaneseq
  %v5997 = vshrl.u32 %v5996, 7
  %v5998 = vsub.s32 %v5995, %v5997
  %v5999 = vrot.slane %v5983, %v5998
  %v6001 = vunpack.c.l.s4 1966171168
  %v6002 = vunpack.c.0.s8 %v6001
  %v6003 = vlaneseq
  %v6004 = vshrl.u32 %v6003, 7
  %v6005 = vsub.s32 %v6002, %v6004
  %v6006 = vrot.slane %v5984, %v6005
  %v6008 = vunpack.c.l.s4 1966171168
  %v6009 = vunpack.c.0.s8 %v6008
  %v6010 = vlaneseq
  %v6011 = vshrl.u32 %v6010, 7
  %v6012 = vsub.s32 %v6009, %v6011
  %v6013 = vrot.slane %v5985, %v6012
  %v6014 = vcombine.low %v5992, %v5999
  %v6015 = vcombine.low %v6006, %v6013
  %v6017 = vunpack.c.l.s4 1966171168
  %v6018 = vunpack.c.0.s8 %v6017
  %v6019 = vlaneseq
  %v6020 = vshrl.u32 %v6019, 7
  %v6021 = vsub.s32 %v6018, %v6020
  %v6022 = vrot.slane %v6014, %v6021
  %v6024 = vunpack.c.l.s4 1966171168
  %v6025 = vunpack.c.0.s8 %v6024
  %v6026 = vlaneseq
  %v6027 = vshrl.u32 %v6026, 7
  %v6028 = vsub.s32 %v6025, %v6027
  %v6029 = vrot.slane %v6015, %v6028
  %v6030 = vcombine.low %v6022, %v6029
  %v6031 = vcombine.low %v5790, %v5791
  %v6032 = vcombine.low %v5792, %v5793
  %v6033 = vcombine.low %v5794, %v5795
  %v6034 = vcombine.low %v5796, %v5797
  %v6036 = vunpack.c.l.s4 1966171168
  %v6037 = vunpack.c.0.s8 %v6036
  %v6038 = vlaneseq
  %v6039 = vshrl.u32 %v6038, 7
  %v6040 = vsub.s32 %v6037, %v6039
  %v6041 = vrot.slane %v6031, %v6040
  %v6043 = vunpack.c.l.s4 1966171168
  %v6044 = vunpack.c.0.s8 %v6043
  %v6045 = vlaneseq
  %v6046 = vshrl.u32 %v6045, 7
  %v6047 = vsub.s32 %v6044, %v6046
  %v6048 = vrot.slane %v6032, %v6047
  %v6050 = vunpack.c.l.s4 1966171168
  %v6051 = vunpack.c.0.s8 %v6050
  %v6052 = vlaneseq
  %v6053 = vshrl.u32 %v6052, 7
  %v6054 = vsub.s32 %v6051, %v6053
  %v6055 = vrot.slane %v6033, %v6054
  %v6057 = vunpack.c.l.s4 1966171168
  %v6058 = vunpack.c.0.s8 %v6057
  %v6059 = vlaneseq
  %v6060 = vshrl.u32 %v6059, 7
  %v6061 = vsub.s32 %v6058, %v6060
  %v6062 = vrot.slane %v6034, %v6061
  %v6063 = vcombine.low %v6041, %v6048
  %v6064 = vcombine.low %v6055, %v6062
  %v6066 = vunpack.c.l.s4 1966171168
  %v6067 = vunpack.c.0.s8 %v6066
  %v6068 = vlaneseq
  %v6069 = vshrl.u32 %v6068, 7
  %v6070 = vsub.s32 %v6067, %v6069
  %v6071 = vrot.slane %v6063, %v6070
  %v6073 = vunpack.c.l.s4 1966171168
  %v6074 = vunpack.c.0.s8 %v6073
  %v6075 = vlaneseq
  %v6076 = vshrl.u32 %v6075, 7
  %v6077 = vsub.s32 %v6074, %v6076
  %v6078 = vrot.slane %v6064, %v6077
  %v6079 = vcombine.low %v6071, %v6078
  %v6080 = vcombine.low %v5798, %v5799
  %v6081 = vcombine.low %v5800, %v5801
  %v6082 = vcombine.low %v5802, %v5803
  %v6083 = vcombine.low %v5804, %v5805
  %v6085 = vunpack.c.l.s4 1966171168
  %v6086 = vunpack.c.0.s8 %v6085
  %v6087 = vlaneseq
  %v6088 = vshrl.u32 %v6087, 7
  %v6089 = vsub.s32 %v6086, %v6088
  %v6090 = vrot.slane %v6080, %v6089
  %v6092 = vunpack.c.l.s4 1966171168
  %v6093 = vunpack.c.0.s8 %v6092
  %v6094 = vlaneseq
  %v6095 = vshrl.u32 %v6094, 7
  %v6096 = vsub.s32 %v6093, %v6095
  %v6097 = vrot.slane %v6081, %v6096
  %v6099 = vunpack.c.l.s4 1966171168
  %v6100 = vunpack.c.0.s8 %v6099
  %v6101 = vlaneseq
  %v6102 = vshrl.u32 %v6101, 7
  %v6103 = vsub.s32 %v6100, %v6102
  %v6104 = vrot.slane %v6082, %v6103
  %v6106 = vunpack.c.l.s4 1966171168
  %v6107 = vunpack.c.0.s8 %v6106
  %v6108 = vlaneseq
  %v6109 = vshrl.u32 %v6108, 7
  %v6110 = vsub.s32 %v6107, %v6109
  %v6111 = vrot.slane %v6083, %v6110
  %v6112 = vcombine.low %v6090, %v6097
  %v6113 = vcombine.low %v6104, %v6111
  %v6115 = vunpack.c.l.s4 1966171168
  %v6116 = vunpack.c.0.s8 %v6115
  %v6117 = vlaneseq
  %v6118 = vshrl.u32 %v6117, 7
  %v6119 = vsub.s32 %v6116, %v6118
  %v6120 = vrot.slane %v6112, %v6119
  %v6122 = vunpack.c.l.s4 1966171168
  %v6123 = vunpack.c.0.s8 %v6122
  %v6124 = vlaneseq
  %v6125 = vshrl.u32 %v6124, 7
  %v6126 = vsub.s32 %v6123, %v6125
  %v6127 = vrot.slane %v6113, %v6126
  %v6128 = vcombine.low %v6120, %v6127
  %v6129 = vcombine.low %v5806, %v5807
  %v6130 = vcombine.low %v5808, %v5809
  %v6131 = vcombine.low %v5810, %v5811
  %v6132 = vcombine.low %v5812, %v5813
  %v6134 = vunpack.c.l.s4 1966171168
  %v6135 = vunpack.c.0.s8 %v6134
  %v6136 = vlaneseq
  %v6137 = vshrl.u32 %v6136, 7
  %v6138 = vsub.s32 %v6135, %v6137
  %v6139 = vrot.slane %v6129, %v6138
  %v6141 = vunpack.c.l.s4 1966171168
  %v6142 = vunpack.c.0.s8 %v6141
  %v6143 = vlaneseq
  %v6144 = vshrl.u32 %v6143, 7
  %v6145 = vsub.s32 %v6142, %v6144
  %v6146 = vrot.slane %v6130, %v6145
  %v6148 = vunpack.c.l.s4 1966171168
  %v6149 = vunpack.c.0.s8 %v6148
  %v6150 = vlaneseq
  %v6151 = vshrl.u32 %v6150, 7
  %v6152 = vsub.s32 %v6149, %v6151
  %v6153 = vrot.slane %v6131, %v6152
  %v6155 = vunpack.c.l.s4 1966171168
  %v6156 = vunpack.c.0.s8 %v6155
  %v6157 = vlaneseq
  %v6158 = vshrl.u32 %v6157, 7
  %v6159 = vsub.s32 %v6156, %v6158
  %v6160 = vrot.slane %v6132, %v6159
  %v6161 = vcombine.low %v6139, %v6146
  %v6162 = vcombine.low %v6153, %v6160
  %v6164 = vunpack.c.l.s4 1966171168
  %v6165 = vunpack.c.0.s8 %v6164
  %v6166 = vlaneseq
  %v6167 = vshrl.u32 %v6166, 7
  %v6168 = vsub.s32 %v6165, %v6167
  %v6169 = vrot.slane %v6161, %v6168
  %v6171 = vunpack.c.l.s4 1966171168
  %v6172 = vunpack.c.0.s8 %v6171
  %v6173 = vlaneseq
  %v6174 = vshrl.u32 %v6173, 7
  %v6175 = vsub.s32 %v6172, %v6174
  %v6176 = vrot.slane %v6162, %v6175
  %v6177 = vcombine.low %v6169, %v6176
  %v6178 = vcombine.low %v5814, %v5815
  %v6179 = vcombine.low %v5816, %v5817
  %v6180 = vcombine.low %v5818, %v5819
  %v6181 = vcombine.low %v5820, %v5821
  %v6183 = vunpack.c.l.s4 1966171168
  %v6184 = vunpack.c.0.s8 %v6183
  %v6185 = vlaneseq
  %v6186 = vshrl.u32 %v6185, 7
  %v6187 = vsub.s32 %v6184, %v6186
  %v6188 = vrot.slane %v6178, %v6187
  %v6190 = vunpack.c.l.s4 1966171168
  %v6191 = vunpack.c.0.s8 %v6190
  %v6192 = vlaneseq
  %v6193 = vshrl.u32 %v6192, 7
  %v6194 = vsub.s32 %v6191, %v6193
  %v6195 = vrot.slane %v6179, %v6194
  %v6197 = vunpack.c.l.s4 1966171168
  %v6198 = vunpack.c.0.s8 %v6197
  %v6199 = vlaneseq
  %v6200 = vshrl.u32 %v6199, 7
  %v6201 = vsub.s32 %v6198, %v6200
  %v6202 = vrot.slane %v6180, %v6201
  %v6204 = vunpack.c.l.s4 1966171168
  %v6205 = vunpack.c.0.s8 %v6204
  %v6206 = vlaneseq
  %v6207 = vshrl.u32 %v6206, 7
  %v6208 = vsub.s32 %v6205, %v6207
  %v6209 = vrot.slane %v6181, %v6208
  %v6210 = vcombine.low %v6188, %v6195
  %v6211 = vcombine.low %v6202, %v6209
  %v6213 = vunpack.c.l.s4 1966171168
  %v6214 = vunpack.c.0.s8 %v6213
  %v6215 = vlaneseq
  %v6216 = vshrl.u32 %v6215, 7
  %v6217 = vsub.s32 %v6214, %v6216
  %v6218 = vrot.slane %v6210, %v6217
  %v6220 = vunpack.c.l.s4 1966171168
  %v6221 = vunpack.c.0.s8 %v6220
  %v6222 = vlaneseq
  %v6223 = vshrl.u32 %v6222, 7
  %v6224 = vsub.s32 %v6221, %v6223
  %v6225 = vrot.slane %v6211, %v6224
  %v6226 = vcombine.low %v6218, %v6225
  %v6227 = vcombine.low %v5822, %v5823
  %v6228 = vcombine.low %v5824, %v5825
  %v6229 = vcombine.low %v5826, %v5827
  %v6230 = vcombine.low %v5828, %v5829
  %v6232 = vunpack.c.l.s4 1966171168
  %v6233 = vunpack.c.0.s8 %v6232
  %v6234 = vlaneseq
  %v6235 = vshrl.u32 %v6234, 7
  %v6236 = vsub.s32 %v6233, %v6235
  %v6237 = vrot.slane %v6227, %v6236
  %v6239 = vunpack.c.l.s4 1966171168
  %v6240 = vunpack.c.0.s8 %v6239
  %v6241 = vlaneseq
  %v6242 = vshrl.u32 %v6241, 7
  %v6243 = vsub.s32 %v6240, %v6242
  %v6244 = vrot.slane %v6228, %v6243
  %v6246 = vunpack.c.l.s4 1966171168
  %v6247 = vunpack.c.0.s8 %v6246
  %v6248 = vlaneseq
  %v6249 = vshrl.u32 %v6248, 7
  %v6250 = vsub.s32 %v6247, %v6249
  %v6251 = vrot.slane %v6229, %v6250
  %v6253 = vunpack.c.l.s4 1966171168
  %v6254 = vunpack.c.0.s8 %v6253
  %v6255 = vlaneseq
  %v6256 = vshrl.u32 %v6255, 7
  %v6257 = vsub.s32 %v6254, %v6256
  %v6258 = vrot.slane %v6230, %v6257
  %v6259 = vcombine.low %v6237, %v6244
  %v6260 = vcombine.low %v6251, %v6258
  %v6262 = vunpack.c.l.s4 1966171168
  %v6263 = vunpack.c.0.s8 %v6262
  %v6264 = vlaneseq
  %v6265 = vshrl.u32 %v6264, 7
  %v6266 = vsub.s32 %v6263, %v6265
  %v6267 = vrot.slane %v6259, %v6266
  %v6269 = vunpack.c.l.s4 1966171168
  %v6270 = vunpack.c.0.s8 %v6269
  %v6271 = vlaneseq
  %v6272 = vshrl.u32 %v6271, 7
  %v6273 = vsub.s32 %v6270, %v6272
  %v6274 = vrot.slane %v6260, %v6273
  %v6275 = vcombine.low %v6267, %v6274
  %v6276 = vcombine.low %v5830, %v5831
  %v6277 = vcombine.low %v5832, %v5833
  %v6278 = vcombine.low %v5834, %v5835
  %v6279 = vcombine.low %v5836, %v5837
  %v6281 = vunpack.c.l.s4 1966171168
  %v6282 = vunpack.c.0.s8 %v6281
  %v6283 = vlaneseq
  %v6284 = vshrl.u32 %v6283, 7
  %v6285 = vsub.s32 %v6282, %v6284
  %v6286 = vrot.slane %v6276, %v6285
  %v6288 = vunpack.c.l.s4 1966171168
  %v6289 = vunpack.c.0.s8 %v6288
  %v6290 = vlaneseq
  %v6291 = vshrl.u32 %v6290, 7
  %v6292 = vsub.s32 %v6289, %v6291
  %v6293 = vrot.slane %v6277, %v6292
  %v6295 = vunpack.c.l.s4 1966171168
  %v6296 = vunpack.c.0.s8 %v6295
  %v6297 = vlaneseq
  %v6298 = vshrl.u32 %v6297, 7
  %v6299 = vsub.s32 %v6296, %v6298
  %v6300 = vrot.slane %v6278, %v6299
  %v6302 = vunpack.c.l.s4 1966171168
  %v6303 = vunpack.c.0.s8 %v6302
  %v6304 = vlaneseq
  %v6305 = vshrl.u32 %v6304, 7
  %v6306 = vsub.s32 %v6303, %v6305
  %v6307 = vrot.slane %v6279, %v6306
  %v6308 = vcombine.low %v6286, %v6293
  %v6309 = vcombine.low %v6300, %v6307
  %v6311 = vunpack.c.l.s4 1966171168
  %v6312 = vunpack.c.0.s8 %v6311
  %v6313 = vlaneseq
  %v6314 = vshrl.u32 %v6313, 7
  %v6315 = vsub.s32 %v6312, %v6314
  %v6316 = vrot.slane %v6308, %v6315
  %v6318 = vunpack.c.l.s4 1966171168
  %v6319 = vunpack.c.0.s8 %v6318
  %v6320 = vlaneseq
  %v6321 = vshrl.u32 %v6320, 7
  %v6322 = vsub.s32 %v6319, %v6321
  %v6323 = vrot.slane %v6309, %v6322
  %v6324 = vcombine.low %v6316, %v6323
  %v6325 = vcombine.low %v5838, %v5839
  %v6326 = vcombine.low %v5840, %v5841
  %v6327 = vcombine.low %v5842, %v5843
  %v6328 = vcombine.low %v5844, %v5845
  %v6330 = vunpack.c.l.s4 1966171168
  %v6331 = vunpack.c.0.s8 %v6330
  %v6332 = vlaneseq
  %v6333 = vshrl.u32 %v6332, 7
  %v6334 = vsub.s32 %v6331, %v6333
  %v6335 = vrot.slane %v6325, %v6334
  %v6337 = vunpack.c.l.s4 1966171168
  %v6338 = vunpack.c.0.s8 %v6337
  %v6339 = vlaneseq
  %v6340 = vshrl.u32 %v6339, 7
  %v6341 = vsub.s32 %v6338, %v6340
  %v6342 = vrot.slane %v6326, %v6341
  %v6344 = vunpack.c.l.s4 1966171168
  %v6345 = vunpack.c.0.s8 %v6344
  %v6346 = vlaneseq
  %v6347 = vshrl.u32 %v6346, 7
  %v6348 = vsub.s32 %v6345, %v6347
  %v6349 = vrot.slane %v6327, %v6348
  %v6351 = vunpack.c.l.s4 1966171168
  %v6352 = vunpack.c.0.s8 %v6351
  %v6353 = vlaneseq
  %v6354 = vshrl.u32 %v6353, 7
  %v6355 = vsub.s32 %v6352, %v6354
  %v6356 = vrot.slane %v6328, %v6355
  %v6357 = vcombine.low %v6335, %v6342
  %v6358 = vcombine.low %v6349, %v6356
  %v6360 = vunpack.c.l.s4 1966171168
  %v6361 = vunpack.c.0.s8 %v6360
  %v6362 = vlaneseq
  %v6363 = vshrl.u32 %v6362, 7
  %v6364 = vsub.s32 %v6361, %v6363
  %v6365 = vrot.slane %v6357, %v6364
  %v6367 = vunpack.c.l.s4 1966171168
  %v6368 = vunpack.c.0.s8 %v6367
  %v6369 = vlaneseq
  %v6370 = vshrl.u32 %v6369, 7
  %v6371 = vsub.s32 %v6368, %v6370
  %v6372 = vrot.slane %v6358, %v6371
  %v6373 = vcombine.low %v6365, %v6372
  %v6374 = vcombine.low %v5846, %v5847
  %v6375 = vcombine.low %v5848, %v5849
  %v6376 = vcombine.low %v5850, %v5851
  %v6377 = vcombine.low %v5852, %v5853
  %v6379 = vunpack.c.l.s4 1966171168
  %v6380 = vunpack.c.0.s8 %v6379
  %v6381 = vlaneseq
  %v6382 = vshrl.u32 %v6381, 7
  %v6383 = vsub.s32 %v6380, %v6382
  %v6384 = vrot.slane %v6374, %v6383
  %v6386 = vunpack.c.l.s4 1966171168
  %v6387 = vunpack.c.0.s8 %v6386
  %v6388 = vlaneseq
  %v6389 = vshrl.u32 %v6388, 7
  %v6390 = vsub.s32 %v6387, %v6389
  %v6391 = vrot.slane %v6375, %v6390
  %v6393 = vunpack.c.l.s4 1966171168
  %v6394 = vunpack.c.0.s8 %v6393
  %v6395 = vlaneseq
  %v6396 = vshrl.u32 %v6395, 7
  %v6397 = vsub.s32 %v6394, %v6396
  %v6398 = vrot.slane %v6376, %v6397
  %v6400 = vunpack.c.l.s4 1966171168
  %v6401 = vunpack.c.0.s8 %v6400
  %v6402 = vlaneseq
  %v6403 = vshrl.u32 %v6402, 7
  %v6404 = vsub.s32 %v6401, %v6403
  %v6405 = vrot.slane %v6377, %v6404
  %v6406 = vcombine.low %v6384, %v6391
  %v6407 = vcombine.low %v6398, %v6405
  %v6409 = vunpack.c.l.s4 1966171168
  %v6410 = vunpack.c.0.s8 %v6409
  %v6411 = vlaneseq
  %v6412 = vshrl.u32 %v6411, 7
  %v6413 = vsub.s32 %v6410, %v6412
  %v6414 = vrot.slane %v6406, %v6413
  %v6416 = vunpack.c.l.s4 1966171168
  %v6417 = vunpack.c.0.s8 %v6416
  %v6418 = vlaneseq
  %v6419 = vshrl.u32 %v6418, 7
  %v6420 = vsub.s32 %v6417, %v6419
  %v6421 = vrot.slane %v6407, %v6420
  %v6422 = vcombine.low %v6414, %v6421
  %v6423 = vcombine.low %v5854, %v5855
  %v6424 = vcombine.low %v5856, %v5857
  %v6425 = vcombine.low %v5858, %v5859
  %v6426 = vcombine.low %v5860, %v5861
  %v6428 = vunpack.c.l.s4 1966171168
  %v6429 = vunpack.c.0.s8 %v6428
  %v6430 = vlaneseq
  %v6431 = vshrl.u32 %v6430, 7
  %v6432 = vsub.s32 %v6429, %v6431
  %v6433 = vrot.slane %v6423, %v6432
  %v6435 = vunpack.c.l.s4 1966171168
  %v6436 = vunpack.c.0.s8 %v6435
  %v6437 = vlaneseq
  %v6438 = vshrl.u32 %v6437, 7
  %v6439 = vsub.s32 %v6436, %v6438
  %v6440 = vrot.slane %v6424, %v6439
  %v6442 = vunpack.c.l.s4 1966171168
  %v6443 = vunpack.c.0.s8 %v6442
  %v6444 = vlaneseq
  %v6445 = vshrl.u32 %v6444, 7
  %v6446 = vsub.s32 %v6443, %v6445
  %v6447 = vrot.slane %v6425, %v6446
  %v6449 = vunpack.c.l.s4 1966171168
  %v6450 = vunpack.c.0.s8 %v6449
  %v6451 = vlaneseq
  %v6452 = vshrl.u32 %v6451, 7
  %v6453 = vsub.s32 %v6450, %v6452
  %v6454 = vrot.slane %v6426, %v6453
  %v6455 = vcombine.low %v6433, %v6440
  %v6456 = vcombine.low %v6447, %v6454
  %v6458 = vunpack.c.l.s4 1966171168
  %v6459 = vunpack.c.0.s8 %v6458
  %v6460 = vlaneseq
  %v6461 = vshrl.u32 %v6460, 7
  %v6462 = vsub.s32 %v6459, %v6461
  %v6463 = vrot.slane %v6455, %v6462
  %v6465 = vunpack.c.l.s4 1966171168
  %v6466 = vunpack.c.0.s8 %v6465
  %v6467 = vlaneseq
  %v6468 = vshrl.u32 %v6467, 7
  %v6469 = vsub.s32 %v6466, %v6468
  %v6470 = vrot.slane %v6456, %v6469
  %v6471 = vcombine.low %v6463, %v6470
  %v6472 = vcombine.low %v5862, %v5863
  %v6473 = vcombine.low %v5864, %v5865
  %v6474 = vcombine.low %v5866, %v5867
  %v6475 = vcombine.low %v5868, %v5869
  %v6477 = vunpack.c.l.s4 1966171168
  %v6478 = vunpack.c.0.s8 %v6477
  %v6479 = vlaneseq
  %v6480 = vshrl.u32 %v6479, 7
  %v6481 = vsub.s32 %v6478, %v6480
  %v6482 = vrot.slane %v6472, %v6481
  %v6484 = vunpack.c.l.s4 1966171168
  %v6485 = vunpack.c.0.s8 %v6484
  %v6486 = vlaneseq
  %v6487 = vshrl.u32 %v6486, 7
  %v6488 = vsub.s32 %v6485, %v6487
  %v6489 = vrot.slane %v6473, %v6488
  %v6491 = vunpack.c.l.s4 1966171168
  %v6492 = vunpack.c.0.s8 %v6491
  %v6493 = vlaneseq
  %v6494 = vshrl.u32 %v6493, 7
  %v6495 = vsub.s32 %v6492, %v6494
  %v6496 = vrot.slane %v6474, %v6495
  %v6498 = vunpack.c.l.s4 1966171168
  %v6499 = vunpack.c.0.s8 %v6498
  %v6500 = vlaneseq
  %v6501 = vshrl.u32 %v6500, 7
  %v6502 = vsub.s32 %v6499, %v6501
  %v6503 = vrot.slane %v6475, %v6502
  %v6504 = vcombine.low %v6482, %v6489
  %v6505 = vcombine.low %v6496, %v6503
  %v6507 = vunpack.c.l.s4 1966171168
  %v6508 = vunpack.c.0.s8 %v6507
  %v6509 = vlaneseq
  %v6510 = vshrl.u32 %v6509, 7
  %v6511 = vsub.s32 %v6508, %v6510
  %v6512 = vrot.slane %v6504, %v6511
  %v6514 = vunpack.c.l.s4 1966171168
  %v6515 = vunpack.c.0.s8 %v6514
  %v6516 = vlaneseq
  %v6517 = vshrl.u32 %v6516, 7
  %v6518 = vsub.s32 %v6515, %v6517
  %v6519 = vrot.slane %v6505, %v6518
  %v6520 = vcombine.low %v6512, %v6519
  %v6521 = vcombine.low %v5870, %v5871
  %v6522 = vcombine.low %v5872, %v5873
  %v6523 = vcombine.low %v5874, %v5875
  %v6524 = vcombine.low %v5876, %v5877
  %v6526 = vunpack.c.l.s4 1966171168
  %v6527 = vunpack.c.0.s8 %v6526
  %v6528 = vlaneseq
  %v6529 = vshrl.u32 %v6528, 7
  %v6530 = vsub.s32 %v6527, %v6529
  %v6531 = vrot.slane %v6521, %v6530
  %v6533 = vunpack.c.l.s4 1966171168
  %v6534 = vunpack.c.0.s8 %v6533
  %v6535 = vlaneseq
  %v6536 = vshrl.u32 %v6535, 7
  %v6537 = vsub.s32 %v6534, %v6536
  %v6538 = vrot.slane %v6522, %v6537
  %v6540 = vunpack.c.l.s4 1966171168
  %v6541 = vunpack.c.0.s8 %v6540
  %v6542 = vlaneseq
  %v6543 = vshrl.u32 %v6542, 7
  %v6544 = vsub.s32 %v6541, %v6543
  %v6545 = vrot.slane %v6523, %v6544
  %v6547 = vunpack.c.l.s4 1966171168
  %v6548 = vunpack.c.0.s8 %v6547
  %v6549 = vlaneseq
  %v6550 = vshrl.u32 %v6549, 7
  %v6551 = vsub.s32 %v6548, %v6550
  %v6552 = vrot.slane %v6524, %v6551
  %v6553 = vcombine.low %v6531, %v6538
  %v6554 = vcombine.low %v6545, %v6552
  %v6556 = vunpack.c.l.s4 1966171168
  %v6557 = vunpack.c.0.s8 %v6556
  %v6558 = vlaneseq
  %v6559 = vshrl.u32 %v6558, 7
  %v6560 = vsub.s32 %v6557, %v6559
  %v6561 = vrot.slane %v6553, %v6560
  %v6563 = vunpack.c.l.s4 1966171168
  %v6564 = vunpack.c.0.s8 %v6563
  %v6565 = vlaneseq
  %v6566 = vshrl.u32 %v6565, 7
  %v6567 = vsub.s32 %v6564, %v6566
  %v6568 = vrot.slane %v6554, %v6567
  %v6569 = vcombine.low %v6561, %v6568
  %v6570 = vcombine.low %v5878, %v5879
  %v6571 = vcombine.low %v5880, %v5881
  %v6573 = vunpack.c.l.s4 1966171168
  %v6574 = vunpack.c.0.s8 %v6573
  %v6575 = vlaneseq
  %v6576 = vshrl.u32 %v6575, 7
  %v6577 = vsub.s32 %v6574, %v6576
  %v6578 = vrot.slane %v6570, %v6577
  %v6580 = vunpack.c.l.s4 1966171168
  %v6581 = vunpack.c.0.s8 %v6580
  %v6582 = vlaneseq
  %v6583 = vshrl.u32 %v6582, 7
  %v6584 = vsub.s32 %v6581, %v6583
  %v6585 = vrot.slane %v6571, %v6584
  %v6586 = vcombine.low %v6578, %v6585
  %v6588 = vunpack.c.l.s4 1966171168
  %v6589 = vunpack.c.0.s8 %v6588
  %v6590 = vlaneseq
  %v6591 = vshrl.u32 %v6590, 7
  %v6592 = vsub.s32 %v6589, %v6591
  %v6593 = vrot.slane %v6586, %v6592
  %6607 = vst [vmem:[%s3] sm:$0xff] %v6030
  %6608 = vst [vmem:[%s3 + $0x8] sm:$0xff] %v6079
  %6609 = vst [vmem:[%s3 + $0x10] sm:$0xff] %v6128
  %6610 = vst [vmem:[%s3 + $0x18] sm:$0xff] %v6177
  %6611 = vst [vmem:[%s3 + $0x20] sm:$0xff] %v6226
  %6612 = vst [vmem:[%s3 + $0x28] sm:$0xff] %v6275
  %6613 = vst [vmem:[%s3 + $0x30] sm:$0xff] %v6324
  %6614 = vst [vmem:[%s3 + $0x38] sm:$0xff] %v6373
  %6615 = vst [vmem:[%s3 + $0x40] sm:$0xff] %v6422
  %6616 = vst [vmem:[%s3 + $0x48] sm:$0xff] %v6471
  %6617 = vst [vmem:[%s3 + $0x50] sm:$0xff] %v6520
  %6618 = vst [vmem:[%s3 + $0x58] sm:$0xff] %v6569
  %v6619 = vlaneseq
  %vm6620 = vcmp.ge.s32.totalorder %v6619, 0
  %vm6621 = vcmp.lt.s32.totalorder %v6619, 512
  %vm6622 = vmand %vm6620, %vm6621
  %6623 = vst.msk [vmem:[%s3 + $0x60] sm:$0xf] %vm6622, %v6593
  // Predicated region
  $region14: #{vae_forward.11} parent=0 // pred_check
    _
  $region15: #{vae_forward.11} parent=0 // pred_check_branch
    %6625 = sbr.rel (0) target = $region17
  $region16: #{vae_forward.11} parent=0 // pred_region
    _
  $region17: #{vae_forward.11} parent=0 // pred_fallthru
    _
  // Predicated region
  $region18: #{vae_forward.11} parent=0 // pred_check
    _
  $region19: #{vae_forward.11} parent=0 // pred_check_branch
    %6627 = sbr.rel (0) target = $region21
  $region20: #{vae_forward.11} parent=0 // pred_region
    _
  $region21: #{vae_forward.11} parent=0 // pred_fallthru
    _

</llo_original>
